<compile_context>
chip_gen: v5e
topology: v5e:2x2
jax: 0.10.0
libtpu: 0.0.40
codegen_flags: <defaults>
</compile_context>

<pallas_src>
import jax
import jax.numpy as jnp
from jax.experimental import pallas as pl
from jax.experimental.pallas import tpu as pltpu


# ---------------------------------------------------------------------------
# Pallas kernels (time loops internal)
# ---------------------------------------------------------------------------
def lstm_encoder_kernel(gx_ref, len_ref, whh_ref, h_ref, c_ref):
    """Masked LSTM encoder over all T steps in one invocation.
    gx = Emb[token] @ W_ih^T + b is precomputed (bf16 gather table)."""
    T, N, G = gx_ref.shape
    H = G // 4
    lens = len_ref[...]                                    # (N, 1) int32, hoisted

    def step(t, carry):
        h, c = carry
        gates = gx_ref[t].astype(jnp.float32) + jnp.dot(
            h.astype(jnp.bfloat16), whh_ref[...],
            preferred_element_type=jnp.float32)            # (N, 4H) f32
        i_g = jax.nn.sigmoid(gates[:, 0:H])
        f_g = jax.nn.sigmoid(gates[:, H:2 * H])
        g_g = jnp.tanh(gates[:, 2 * H:3 * H])
        o_g = jax.nn.sigmoid(gates[:, 3 * H:4 * H])
        c_new = f_g * c + i_g * g_g
        h_new = o_g * jnp.tanh(c_new)
        keep = lens > t                                    # (N, 1): carry state on padding
        return jnp.where(keep, h_new, h), jnp.where(keep, c_new, c)

    h0 = jnp.zeros((N, H), jnp.float32)
    c0 = jnp.zeros((N, H), jnp.float32)
    h, c = jax.lax.fori_loop(0, T, step, (h0, c0), unroll=True)
    h_ref[...] = h
    c_ref[...] = c


def hist_img_kernel(x_ref, wcomb_ref, b_ref, regw_ref, regb_ref, img_ref,
                    hdec_ref, cdec_ref, iloss_ref):
    """History-encoder LSTM over T = R+1 steps (no padding), fused with the image
    regressor + per-round Frobenius-norm loss.  Step 0 consumes c_h, steps t>=1 consume
    fact_h[t-1].  Writes the R (h, c) states the decoder needs and the scalar img loss."""
    T, B, H = x_ref.shape
    R = T - 1
    bias = b_ref[...]                                      # (1, 4H), hoisted

    h = jnp.zeros((B, H), jnp.float32)
    c = jnp.zeros((B, H), jnp.float32)
    hs = []
    for t in range(T):                                     # T is tiny; fully unrolled trace
        inp = jnp.concatenate([x_ref[t].astype(jnp.bfloat16),
                               h.astype(jnp.bfloat16)], axis=1)          # (B, 2H)
        gates = jnp.dot(inp, wcomb_ref[...],
                        preferred_element_type=jnp.float32) + bias       # (B, 4H)
        i_g = jax.nn.sigmoid(gates[:, 0:H])
        f_g = jax.nn.sigmoid(gates[:, H:2 * H])
        g_g = jnp.tanh(gates[:, 2 * H:3 * H])
        o_g = jax.nn.sigmoid(gates[:, 3 * H:4 * H])
        c = f_g * c + i_g * g_g
        h = o_g * jnp.tanh(c)
        if t < R:                                          # states s_0 .. s_{R-1} -> decoder
            hdec_ref[t] = h
            cdec_ref[t] = c
        if t >= 1:                                         # states s_1 .. s_R -> regressor
            hs.append(h)

    # one batched regressor matmul over all R stored states
    hstack = jnp.concatenate(hs, axis=0)                                 # (R*B, H)
    y = jnp.dot(hstack.astype(jnp.bfloat16), regw_ref[...],
                preferred_element_type=jnp.float32) + regb_ref[...]      # (R*B, F)
    img = img_ref[...]
    iloss = jnp.zeros((1, 1), jnp.float32)
    for r in range(R):                                     # per-round ||img - y_r||_F, summed
        d = y[r * B:(r + 1) * B, :] - img
        iloss = iloss + jnp.sqrt(jnp.sum(d * d)).reshape(1, 1)
    iloss_ref[...] = iloss


def decoder_loss_kernel(gx_ref, tgt_ref, h0_ref, c0_ref, whh_ref,
                        genw_ref, genb_ref, loss_ref):
    """Fused q_decoder LSTM + q_generator + log_softmax + NLL (weight[pad]=0, sum) over all
    T_dec steps.  Padded rows / positions have target 0 -> zero weight -> no contribution."""
    T, N, G = gx_ref.shape
    H = h0_ref.shape[1]
    V = genw_ref.shape[1]

    # loop-invariant values, hoisted
    col = jax.lax.broadcasted_iota(jnp.int32, (N, V), 1)
    gb = jnp.broadcast_to(genb_ref[...], (N, V))

    def step(t, carry):
        h, c, acc = carry
        gates = gx_ref[t].astype(jnp.float32) + jnp.dot(
            h.astype(jnp.bfloat16), whh_ref[...],
            preferred_element_type=jnp.float32)            # (N, 4H)
        i_g = jax.nn.sigmoid(gates[:, 0:H])
        f_g = jax.nn.sigmoid(gates[:, H:2 * H])
        g_g = jnp.tanh(gates[:, 2 * H:3 * H])
        o_g = jax.nn.sigmoid(gates[:, 3 * H:4 * H])
        c_new = f_g * c + i_g * g_g
        h_new = o_g * jnp.tanh(c_new)

        logits = jnp.dot(h_new.astype(jnp.bfloat16), genw_ref[...],
                         preferred_element_type=jnp.float32) + gb        # (N, V)
        mx = jnp.max(logits, axis=-1, keepdims=True)                     # (N, 1)
        lse = jnp.log(jnp.sum(jnp.exp(logits - mx), axis=-1, keepdims=True))
        tgt = tgt_ref[t]                                                 # (N, 1) int32
        tgt_logit = jnp.sum(jnp.where(col == tgt, logits, 0.0),
                            axis=-1, keepdims=True)                      # (N, 1)
        w = (tgt != 0).astype(jnp.float32)                               # pad weight = 0
        acc = acc + w * (mx + lse - tgt_logit)                           # -w * logp[tgt]
        return h_new, c_new, acc

    acc0 = jnp.zeros((N, 1), jnp.float32)
    _, _, acc = jax.lax.fori_loop(0, T, step, (h0_ref[...], c0_ref[...], acc0),
                                  unroll=True)
    loss_ref[...] = jnp.sum(acc).reshape(1, 1, 1)


# ---------------------------------------------------------------------------
# pallas_call wrappers
# ---------------------------------------------------------------------------
_VMEM_LIMIT = 32 << 20   # explicit scoped-VMEM limit; safe on v5e/v6e/v7x at these shapes


def _split2(n):
    """Pad row count to a 16-multiple so it splits into 2 balanced, 8-aligned blocks
    (uses both v7x TensorCores; near-neutral on single-TC v5e/v6e)."""
    n_pad = ((n + 15) // 16) * 16
    return n_pad, 2, n_pad // 2


def lstm_encode(gx, lens, whh_bf16, nb):
    """Masked LSTM encoder: gx (T, N, 4H) bf16, lens (N, 1) int32, whh (H, 4H) bf16.
    Returns (hlast, clast) (N, H) f32 -- hidden state at each row's last real token."""
    T, N, G = gx.shape
    H = G // 4
    bb = N // nb
    hlast, clast = pl.pallas_call(
        lstm_encoder_kernel,
        grid=(nb,),
        in_specs=[
            pl.BlockSpec((T, bb, G), lambda b: (0, b, 0)),
            pl.BlockSpec((bb, 1), lambda b: (b, 0)),
            pl.BlockSpec((H, G), lambda b: (0, 0)),
        ],
        out_specs=[
            pl.BlockSpec((bb, H), lambda b: (b, 0)),
            pl.BlockSpec((bb, H), lambda b: (b, 0)),
        ],
        out_shape=[jax.ShapeDtypeStruct((N, H), jnp.float32),
                   jax.ShapeDtypeStruct((N, H), jnp.float32)],
        compiler_params=pltpu.CompilerParams(
            dimension_semantics=("parallel",),
            vmem_limit_bytes=_VMEM_LIMIT),
    )(gx, lens, whh_bf16)
    return hlast, clast


def hist_img_forward(x_hist, wcomb_bf16, b_hist, regw_bf16, regb, img):
    """History LSTM over T = R+1 steps fused with the img regression loss.
    Returns (hdec, cdec) of shape (R, B, H) (decoder init states) and the scalar img loss."""
    T, B, H = x_hist.shape
    R = T - 1
    F = regw_bf16.shape[1]
    hdec, cdec, iloss = pl.pallas_call(
        hist_img_kernel,
        grid=(1,),
        in_specs=[
            pl.BlockSpec((T, B, H), lambda i: (0, 0, 0)),
            pl.BlockSpec((2 * H, 4 * H), lambda i: (0, 0)),
            pl.BlockSpec((1, 4 * H), lambda i: (0, 0)),
            pl.BlockSpec((H, F), lambda i: (0, 0)),
            pl.BlockSpec((1, F), lambda i: (0, 0)),
            pl.BlockSpec((B, F), lambda i: (0, 0)),
        ],
        out_specs=[
            pl.BlockSpec((R, B, H), lambda i: (0, 0, 0)),
            pl.BlockSpec((R, B, H), lambda i: (0, 0, 0)),
            pl.BlockSpec((1, 1), lambda i: (0, 0)),
        ],
        out_shape=[
            jax.ShapeDtypeStruct((R, B, H), jnp.float32),
            jax.ShapeDtypeStruct((R, B, H), jnp.float32),
            jax.ShapeDtypeStruct((1, 1), jnp.float32),
        ],
        compiler_params=pltpu.CompilerParams(
            dimension_semantics=("arbitrary",),
            vmem_limit_bytes=_VMEM_LIMIT),
    )(x_hist, wcomb_bf16, b_hist, regw_bf16, regb, img)
    return hdec, cdec, iloss[0, 0]


def decoder_nll_forward(gx, tgt, h0, c0, whh_bf16, genw_bf16, genb, nb):
    """Fused decoder LSTM + generator + log_softmax + NLL over all rounds at once,
    2-way 'parallel' batch split; per-block partial losses summed in JAX."""
    T, N, G = gx.shape
    H = h0.shape[1]
    V = genw_bf16.shape[1]
    bb = N // nb
    losses = pl.pallas_call(
        decoder_loss_kernel,
        grid=(nb,),
        in_specs=[
            pl.BlockSpec((T, bb, G), lambda b: (0, b, 0)),
            pl.BlockSpec((T, bb, 1), lambda b: (0, b, 0)),
            pl.BlockSpec((bb, H), lambda b: (b, 0)),
            pl.BlockSpec((bb, H), lambda b: (b, 0)),
            pl.BlockSpec((H, G), lambda b: (0, 0)),
            pl.BlockSpec((H, V), lambda b: (0, 0)),
            pl.BlockSpec((1, V), lambda b: (0, 0)),
        ],
        out_specs=pl.BlockSpec((1, 1, 1), lambda b: (b, 0, 0)),
        out_shape=jax.ShapeDtypeStruct((nb, 1, 1), jnp.float32),
        compiler_params=pltpu.CompilerParams(
            dimension_semantics=("parallel",),
            vmem_limit_bytes=_VMEM_LIMIT),
    )(gx, tgt, h0, c0, whh_bf16, genw_bf16, genb)
    return jnp.sum(losses)


# ---------------------------------------------------------------------------
# JAX glue (concatqa, parameter init/prep, full QBot.forward)
# ---------------------------------------------------------------------------
def concatqa_jax(q, a, padding_idx=0):
    """concatqa with a STATIC output length q_len + a_len; trailing padding is masked
    (via lengths) in the LSTM encoder so the result is unchanged."""
    b, r, ql = q.shape
    al = a.shape[2]
    q2 = q.reshape(-1, ql)
    a2 = a.reshape(-1, al)
    lq = jnp.sum(q2 != padding_idx, axis=1, keepdims=True).astype(jnp.int32)   # (R, 1)
    L = ql + al
    pos = jnp.arange(L, dtype=jnp.int32)[None, :]
    qidx = jnp.broadcast_to(jnp.clip(pos, 0, ql - 1), (q2.shape[0], L))
    aidx = jnp.clip(pos - lq, 0, al - 1)
    qv = jnp.take_along_axis(q2, qidx, axis=1)
    av = jnp.take_along_axis(a2, aidx, axis=1)
    qa = jnp.where(pos < lq, qv,
                   jnp.where((pos - lq) < al, av, jnp.zeros_like(av)))
    return qa.reshape(b, r, L)


def init_lstm_params(key, in_dim, hidden):
    k1, k2, k3, k4 = jax.random.split(key, 4)
    s = 1.0 / float(hidden) ** 0.5
    return dict(
        w_ih=jax.random.uniform(k1, (4 * hidden, in_dim), jnp.float32, -s, s),
        w_hh=jax.random.uniform(k2, (4 * hidden, hidden), jnp.float32, -s, s),
        b_ih=jax.random.uniform(k3, (4 * hidden,), jnp.float32, -s, s),
        b_hh=jax.random.uniform(k4, (4 * hidden,), jnp.float32, -s, s),
    )


def init_qbot_params(key, vocab_size, embed_dim, rnn_dim, img_feature_size):
    keys = jax.random.split(key, 8)
    emb = 0.1 * jax.random.normal(keys[0], (vocab_size, embed_dim), jnp.float32)
    emb = emb.at[0].set(0.0)                               # padding_idx = 0
    return dict(
        emb=emb,
        fact=init_lstm_params(keys[1], embed_dim, rnn_dim),      # fact_encoder
        qdec=init_lstm_params(keys[2], embed_dim, rnn_dim),      # q_decoder
        hist=init_lstm_params(keys[3], rnn_dim, rnn_dim),        # history_encoder
        gen_w=0.1 * jax.random.normal(keys[4], (vocab_size, rnn_dim), jnp.float32),
        gen_b=0.1 * jax.random.normal(keys[5], (vocab_size,), jnp.float32),
        reg_w=0.1 * jax.random.normal(keys[6], (img_feature_size, rnn_dim), jnp.float32),
        reg_b=0.1 * jax.random.normal(keys[7], (img_feature_size,), jnp.float32),
    )


def prepare_params(p):
    """One-time pre-transpose / pre-cast / projection-table fusion.
    Token-input LSTMs get a bf16 gather table  proj = Emb @ W_ih^T + (b_ih+b_hh);
    the history LSTM gets a fused [W_ih^T; W_hh^T] (2H, 4H) bf16 weight."""
    emb = p["emb"].astype(jnp.float32)

    def proj_table(lstm):
        b = (lstm["b_ih"] + lstm["b_hh"]).astype(jnp.float32)
        return (emb @ lstm["w_ih"].T.astype(jnp.float32)
                + b[None, :]).astype(jnp.bfloat16)                 # (V, 4H) bf16

    hist = p["hist"]
    return dict(
        fact_proj=proj_table(p["fact"]),
        fact_whh=p["fact"]["w_hh"].T.astype(jnp.bfloat16),         # (H, 4H)
        dec_proj=proj_table(p["qdec"]),
        dec_whh=p["qdec"]["w_hh"].T.astype(jnp.bfloat16),
        hist_wcomb=jnp.concatenate([hist["w_ih"].T, hist["w_hh"].T],
                                   axis=0).astype(jnp.bfloat16),   # (2H, 4H)
        hist_b=(hist["b_ih"] + hist["b_hh"]).reshape(1, -1).astype(jnp.float32),
        gen_w=p["gen_w"].T.astype(jnp.bfloat16),                   # (H, V)
        gen_b=p["gen_b"].reshape(1, -1).astype(jnp.float32),
        reg_w=p["reg_w"].T.astype(jnp.bfloat16),                   # (H, F)
        reg_b=p["reg_b"].reshape(1, -1).astype(jnp.float32),
    )


@jax.jit
def qbot_forward(prep, c, img, q, a):
    """Equivalent of QBot.forward(c, img, q, a) -> (loss, img_loss)."""
    B, R, q_len = q.shape
    H = prep["fact_whh"].shape[0]
    c_len = c.shape[1]

    # --- merged caption + fact encoder (one pallas_call, rows = B + B*R, padded) ---
    fact = concatqa_jax(q, a)                                        # (B, R, L)
    L = fact.shape[2]
    T_enc = max(c_len, L)
    c_tok = jnp.pad(c.astype(jnp.int32), ((0, 0), (0, T_enc - c_len)))
    f_tok = jnp.pad(fact.reshape(B * R, L).astype(jnp.int32), ((0, 0), (0, T_enc - L)))
    tok = jnp.concatenate([c_tok, f_tok], axis=0)                    # (B + B*R, T_enc)
    N_real = tok.shape[0]
    N_pad, nb, _ = _split2(N_real)
    tok = jnp.pad(tok, ((0, N_pad - N_real), (0, 0)))                # pad rows: len 0, no-op
    lens = jnp.sum(tok != 0, axis=1).astype(jnp.int32).reshape(N_pad, 1)
    gx = jnp.take(prep["fact_proj"], tok.T, axis=0)                  # (T_enc, N_pad, 4H) bf16
    h_all, _ = lstm_encode(gx, lens, prep["fact_whh"], nb)           # (N_pad, H)

    c_h = h_all[:B]                                                  # (B, H)
    fact_h = h_all[B:B + B * R].reshape(B, R, H).transpose(1, 0, 2)  # (R, B, H)

    # --- history encoder over [c_h, fact_h[0..R-1]] fused with img regression loss ---
    x_hist = jnp.concatenate([c_h[None], fact_h], axis=0)            # (R+1, B, H)
    hdec, cdec, img_loss = hist_img_forward(
        x_hist, prep["hist_wcomb"], prep["hist_b"],
        prep["reg_w"], prep["reg_b"], img.astype(jnp.float32))

    # --- fused question decoder + generator + NLL, all rounds batched (N = R*B, padded) ---
    T_dec = q_len - 1
    N_dec = R * B
    Nd_pad, nbd, _ = _split2(N_dec)
    dec_tok = q[:, :, :-1].transpose(2, 1, 0).reshape(T_dec, N_dec).astype(jnp.int32)
    dec_tok = jnp.pad(dec_tok, ((0, 0), (0, Nd_pad - N_dec)))
    tgt = q[:, :, 1:].transpose(2, 1, 0).reshape(T_dec, N_dec, 1).astype(jnp.int32)
    tgt = jnp.pad(tgt, ((0, 0), (0, Nd_pad - N_dec), (0, 0)))        # pad targets = 0 -> w=0
    gx_d = jnp.take(prep["dec_proj"], dec_tok, axis=0)               # (T_dec, Nd_pad, 4H) bf16
    h0 = jnp.pad(hdec.reshape(N_dec, H), ((0, Nd_pad - N_dec), (0, 0)))
    c0 = jnp.pad(cdec.reshape(N_dec, H), ((0, Nd_pad - N_dec), (0, 0)))
    loss = decoder_nll_forward(gx_d, tgt, h0, c0, prep["dec_whh"],
                               prep["gen_w"], prep["gen_b"], nbd)
    return loss, img_loss


# ---------------------------------------------------------------------------
if __name__ == "__main__":
    vocab_size = 256
    embed_dim = 64
    rnn_dim = 128            # lane-dense hidden size (one 128-lane vreg per gate)
    img_feature_size = 64
    num_layers = 1           # chosen opt.num_layers (dropout is a no-op at 1 layer)

    batch = 8
    n_rounds = 3
    c_len = 6
    q_len = 6
    a_len = 5

    key = jax.random.PRNGKey(0)
    kp, kc, kq, ka, ki, kql, kal = jax.random.split(key, 7)

    params = init_qbot_params(kp, vocab_size, embed_dim, rnn_dim, img_feature_size)
    prep = prepare_params(params)

    # right-padded token sequences (pad id 0, real tokens in [1, vocab))
    c = jax.random.randint(kc, (batch, c_len), 1, vocab_size, dtype=jnp.int32)
    q = jax.random.randint(kq, (batch, n_rounds, q_len), 1, vocab_size, dtype=jnp.int32)
    a = jax.random.randint(ka, (batch, n_rounds, a_len), 1, vocab_size, dtype=jnp.int32)

    q_lens = jax.random.randint(kql, (batch, n_rounds), 2, q_len + 1, dtype=jnp.int32)
    a_lens = jax.random.randint(kal, (batch, n_rounds), 1, a_len + 1, dtype=jnp.int32)
    q = q * (jnp.arange(q_len)[None, None, :] < q_lens[:, :, None])
    a = a * (jnp.arange(a_len)[None, None, :] < a_lens[:, :, None])

    img = jax.random.normal(ki, (batch, img_feature_size), jnp.float32)

    loss, img_loss = qbot_forward(prep, c, img, q, a)
    loss = jax.block_until_ready(loss)
    img_loss = jax.block_until_ready(img_loss)
    assert jnp.isfinite(loss), "loss is not finite"
    assert jnp.isfinite(img_loss), "img_loss is not finite"
    print("KERNEL_OK")
</pallas_src>

<mosaic_0001>
module attributes {stable_mosaic.version = 11 : i64} {
  func.func @lstm_encoder_kernel(%arg0: i32, %arg1: memref<11x16x512xbf16, #tpu.memory_space<vmem>>, %arg2: memref<16x1xi32, #tpu.memory_space<vmem>>, %arg3: memref<128x512xbf16, #tpu.memory_space<vmem>>, %arg4: memref<16x128xf32, #tpu.memory_space<vmem>>, %arg5: memref<16x128xf32, #tpu.memory_space<vmem>>) attributes {dimension_semantics = [#tpu.dimension_semantics<parallel>], iteration_bounds = array<i64: 2>, scalar_prefetch = 0 : i64, scratch_operands = 0 : i64, tpu.core_type = #tpu.core_type<tc>, window_params = [{transform_indices = @transform_0, window_bounds = array<i64: 11, 16, 512>}, {transform_indices = @transform_1, window_bounds = array<i64: 16, 1>}, {pipeline_mode = #tpu.pipeline_mode<synchronous>, transform_indices = @transform_2, window_bounds = array<i64: 128, 512>}, {transform_indices = @transform_3, window_bounds = array<i64: 16, 128>}, {transform_indices = @transform_4, window_bounds = array<i64: 16, 128>}]} {
    %c0 = arith.constant 0 : index
    %c0_0 = arith.constant 0 : index
    %0 = vector.load %arg2[%c0, %c0_0] : memref<16x1xi32, #tpu.memory_space<vmem>>, vector<16x1xi32>
    %cst = arith.constant 0.000000e+00 : f32
    %1 = vector.broadcast %cst : f32 to vector<16x128xf32>
    %cst_1 = arith.constant 0.000000e+00 : f32
    %2 = vector.broadcast %cst_1 : f32 to vector<16x128xf32>
    %c0_i32 = arith.constant 0 : i32
    %3 = arith.index_cast %c0_i32 : i32 to index
    %c0_2 = arith.constant 0 : index
    %c0_3 = arith.constant 0 : index
    %4 = vector.load %arg1[%3, %c0_2, %c0_3] : memref<11x16x512xbf16, #tpu.memory_space<vmem>>, vector<1x16x512xbf16>
    %5 = vector.shape_cast %4 : vector<1x16x512xbf16> to vector<16x512xbf16>
    %6 = arith.extf %5 : vector<16x512xbf16> to vector<16x512xf32>
    %7 = arith.truncf %1 : vector<16x128xf32> to vector<16x128xbf16>
    %c0_4 = arith.constant 0 : index
    %c0_5 = arith.constant 0 : index
    %8 = vector.load %arg3[%c0_4, %c0_5] : memref<128x512xbf16, #tpu.memory_space<vmem>>, vector<128x512xbf16>
    %cst_6 = arith.constant dense<0.000000e+00> : vector<16x512xf32>
    %9 = tpu.matmul %7, %8, %cst_6 {dimension_numbers = #tpu.dot_dimension_numbers<[1], [0], [0], [1], [0, 0, 1, 1], [], []>} : vector<16x128xbf16>, vector<128x512xbf16>, vector<16x512xf32> -> vector<16x512xf32>
    %10 = arith.addf %6, %9 : vector<16x512xf32>
    %11 = vector.extract_strided_slice %10 {offsets = [0, 0], sizes = [16, 128], strides = [1, 1]} : vector<16x512xf32> to vector<16x128xf32>
    %12 = arith.negf %11 : vector<16x128xf32>
    %13 = math.exp %12 : vector<16x128xf32>
    %cst_7 = arith.constant 1.000000e+00 : f32
    %14 = vector.broadcast %cst_7 : f32 to vector<16x128xf32>
    %15 = arith.addf %14, %13 : vector<16x128xf32>
    %16 = arith.divf %14, %15 : vector<16x128xf32>
    %17 = vector.extract_strided_slice %10 {offsets = [0, 128], sizes = [16, 128], strides = [1, 1]} : vector<16x512xf32> to vector<16x128xf32>
    %18 = arith.negf %17 : vector<16x128xf32>
    %19 = math.exp %18 : vector<16x128xf32>
    %cst_8 = arith.constant 1.000000e+00 : f32
    %20 = vector.broadcast %cst_8 : f32 to vector<16x128xf32>
    %21 = arith.addf %20, %19 : vector<16x128xf32>
    %22 = arith.divf %20, %21 : vector<16x128xf32>
    %23 = vector.extract_strided_slice %10 {offsets = [0, 256], sizes = [16, 128], strides = [1, 1]} : vector<16x512xf32> to vector<16x128xf32>
    %24 = math.tanh %23 : vector<16x128xf32>
    %25 = vector.extract_strided_slice %10 {offsets = [0, 384], sizes = [16, 128], strides = [1, 1]} : vector<16x512xf32> to vector<16x128xf32>
    %26 = arith.negf %25 : vector<16x128xf32>
    %27 = math.exp %26 : vector<16x128xf32>
    %cst_9 = arith.constant 1.000000e+00 : f32
    %28 = vector.broadcast %cst_9 : f32 to vector<16x128xf32>
    %29 = arith.addf %28, %27 : vector<16x128xf32>
    %30 = arith.divf %28, %29 : vector<16x128xf32>
    %31 = arith.mulf %22, %2 : vector<16x128xf32>
    %32 = arith.mulf %16, %24 : vector<16x128xf32>
    %33 = arith.addf %31, %32 : vector<16x128xf32>
    %34 = math.tanh %33 : vector<16x128xf32>
    %35 = arith.mulf %30, %34 : vector<16x128xf32>
    %36 = vector.broadcast %c0_i32 : i32 to vector<16x1xi32>
    %37 = arith.cmpi sgt, %0, %36 : vector<16x1xi32>
    %38 = vector.shape_cast %37 : vector<16x1xi1> to vector<16x1xi1>
    %39 = vector.broadcast %38 : vector<16x1xi1> to vector<16x128xi1>
    %40 = arith.select %39, %35, %1 : vector<16x128xi1>, vector<16x128xf32>
    %41 = vector.shape_cast %37 : vector<16x1xi1> to vector<16x1xi1>
    %42 = vector.broadcast %41 : vector<16x1xi1> to vector<16x128xi1>
    %43 = arith.select %42, %33, %2 : vector<16x128xi1>, vector<16x128xf32>
    %c1_i32 = arith.constant 1 : i32
    %44 = arith.index_cast %c1_i32 : i32 to index
    %c0_10 = arith.constant 0 : index
    %c0_11 = arith.constant 0 : index
    %45 = vector.load %arg1[%44, %c0_10, %c0_11] : memref<11x16x512xbf16, #tpu.memory_space<vmem>>, vector<1x16x512xbf16>
    %46 = vector.shape_cast %45 : vector<1x16x512xbf16> to vector<16x512xbf16>
    %47 = arith.extf %46 : vector<16x512xbf16> to vector<16x512xf32>
    %48 = arith.truncf %40 : vector<16x128xf32> to vector<16x128xbf16>
    %c0_12 = arith.constant 0 : index
    %c0_13 = arith.constant 0 : index
    %49 = vector.load %arg3[%c0_12, %c0_13] : memref<128x512xbf16, #tpu.memory_space<vmem>>, vector<128x512xbf16>
    %cst_14 = arith.constant dense<0.000000e+00> : vector<16x512xf32>
    %50 = tpu.matmul %48, %49, %cst_14 {dimension_numbers = #tpu.dot_dimension_numbers<[1], [0], [0], [1], [0, 0, 1, 1], [], []>} : vector<16x128xbf16>, vector<128x512xbf16>, vector<16x512xf32> -> vector<16x512xf32>
    %51 = arith.addf %47, %50 : vector<16x512xf32>
    %52 = vector.extract_strided_slice %51 {offsets = [0, 0], sizes = [16, 128], strides = [1, 1]} : vector<16x512xf32> to vector<16x128xf32>
    %53 = arith.negf %52 : vector<16x128xf32>
    %54 = math.exp %53 : vector<16x128xf32>
    %cst_15 = arith.constant 1.000000e+00 : f32
    %55 = vector.broadcast %cst_15 : f32 to vector<16x128xf32>
    %56 = arith.addf %55, %54 : vector<16x128xf32>
    %57 = arith.divf %55, %56 : vector<16x128xf32>
    %58 = vector.extract_strided_slice %51 {offsets = [0, 128], sizes = [16, 128], strides = [1, 1]} : vector<16x512xf32> to vector<16x128xf32>
    %59 = arith.negf %58 : vector<16x128xf32>
    %60 = math.exp %59 : vector<16x128xf32>
    %cst_16 = arith.constant 1.000000e+00 : f32
    %61 = vector.broadcast %cst_16 : f32 to vector<16x128xf32>
    %62 = arith.addf %61, %60 : vector<16x128xf32>
    %63 = arith.divf %61, %62 : vector<16x128xf32>
    %64 = vector.extract_strided_slice %51 {offsets = [0, 256], sizes = [16, 128], strides = [1, 1]} : vector<16x512xf32> to vector<16x128xf32>
    %65 = math.tanh %64 : vector<16x128xf32>
    %66 = vector.extract_strided_slice %51 {offsets = [0, 384], sizes = [16, 128], strides = [1, 1]} : vector<16x512xf32> to vector<16x128xf32>
    %67 = arith.negf %66 : vector<16x128xf32>
    %68 = math.exp %67 : vector<16x128xf32>
    %cst_17 = arith.constant 1.000000e+00 : f32
    %69 = vector.broadcast %cst_17 : f32 to vector<16x128xf32>
    %70 = arith.addf %69, %68 : vector<16x128xf32>
    %71 = arith.divf %69, %70 : vector<16x128xf32>
    %72 = arith.mulf %63, %43 : vector<16x128xf32>
    %73 = arith.mulf %57, %65 : vector<16x128xf32>
    %74 = arith.addf %72, %73 : vector<16x128xf32>
    %75 = math.tanh %74 : vector<16x128xf32>
    %76 = arith.mulf %71, %75 : vector<16x128xf32>
    %77 = vector.broadcast %c1_i32 : i32 to vector<16x1xi32>
    %78 = arith.cmpi sgt, %0, %77 : vector<16x1xi32>
    %79 = vector.shape_cast %78 : vector<16x1xi1> to vector<16x1xi1>
    %80 = vector.broadcast %79 : vector<16x1xi1> to vector<16x128xi1>
    %81 = arith.select %80, %76, %40 : vector<16x128xi1>, vector<16x128xf32>
    %82 = vector.shape_cast %78 : vector<16x1xi1> to vector<16x1xi1>
    %83 = vector.broadcast %82 : vector<16x1xi1> to vector<16x128xi1>
    %84 = arith.select %83, %74, %43 : vector<16x128xi1>, vector<16x128xf32>
    %c2_i32 = arith.constant 2 : i32
    %85 = arith.index_cast %c2_i32 : i32 to index
    %c0_18 = arith.constant 0 : index
    %c0_19 = arith.constant 0 : index
    %86 = vector.load %arg1[%85, %c0_18, %c0_19] : memref<11x16x512xbf16, #tpu.memory_space<vmem>>, vector<1x16x512xbf16>
    %87 = vector.shape_cast %86 : vector<1x16x512xbf16> to vector<16x512xbf16>
    %88 = arith.extf %87 : vector<16x512xbf16> to vector<16x512xf32>
    %89 = arith.truncf %81 : vector<16x128xf32> to vector<16x128xbf16>
    %c0_20 = arith.constant 0 : index
    %c0_21 = arith.constant 0 : index
    %90 = vector.load %arg3[%c0_20, %c0_21] : memref<128x512xbf16, #tpu.memory_space<vmem>>, vector<128x512xbf16>
    %cst_22 = arith.constant dense<0.000000e+00> : vector<16x512xf32>
    %91 = tpu.matmul %89, %90, %cst_22 {dimension_numbers = #tpu.dot_dimension_numbers<[1], [0], [0], [1], [0, 0, 1, 1], [], []>} : vector<16x128xbf16>, vector<128x512xbf16>, vector<16x512xf32> -> vector<16x512xf32>
    %92 = arith.addf %88, %91 : vector<16x512xf32>
    %93 = vector.extract_strided_slice %92 {offsets = [0, 0], sizes = [16, 128], strides = [1, 1]} : vector<16x512xf32> to vector<16x128xf32>
    %94 = arith.negf %93 : vector<16x128xf32>
    %95 = math.exp %94 : vector<16x128xf32>
    %cst_23 = arith.constant 1.000000e+00 : f32
    %96 = vector.broadcast %cst_23 : f32 to vector<16x128xf32>
    %97 = arith.addf %96, %95 : vector<16x128xf32>
    %98 = arith.divf %96, %97 : vector<16x128xf32>
    %99 = vector.extract_strided_slice %92 {offsets = [0, 128], sizes = [16, 128], strides = [1, 1]} : vector<16x512xf32> to vector<16x128xf32>
    %100 = arith.negf %99 : vector<16x128xf32>
    %101 = math.exp %100 : vector<16x128xf32>
    %cst_24 = arith.constant 1.000000e+00 : f32
    %102 = vector.broadcast %cst_24 : f32 to vector<16x128xf32>
    %103 = arith.addf %102, %101 : vector<16x128xf32>
    %104 = arith.divf %102, %103 : vector<16x128xf32>
    %105 = vector.extract_strided_slice %92 {offsets = [0, 256], sizes = [16, 128], strides = [1, 1]} : vector<16x512xf32> to vector<16x128xf32>
    %106 = math.tanh %105 : vector<16x128xf32>
    %107 = vector.extract_strided_slice %92 {offsets = [0, 384], sizes = [16, 128], strides = [1, 1]} : vector<16x512xf32> to vector<16x128xf32>
    %108 = arith.negf %107 : vector<16x128xf32>
    %109 = math.exp %108 : vector<16x128xf32>
    %cst_25 = arith.constant 1.000000e+00 : f32
    %110 = vector.broadcast %cst_25 : f32 to vector<16x128xf32>
    %111 = arith.addf %110, %109 : vector<16x128xf32>
    %112 = arith.divf %110, %111 : vector<16x128xf32>
    %113 = arith.mulf %104, %84 : vector<16x128xf32>
    %114 = arith.mulf %98, %106 : vector<16x128xf32>
    %115 = arith.addf %113, %114 : vector<16x128xf32>
    %116 = math.tanh %115 : vector<16x128xf32>
    %117 = arith.mulf %112, %116 : vector<16x128xf32>
    %118 = vector.broadcast %c2_i32 : i32 to vector<16x1xi32>
    %119 = arith.cmpi sgt, %0, %118 : vector<16x1xi32>
    %120 = vector.shape_cast %119 : vector<16x1xi1> to vector<16x1xi1>
    %121 = vector.broadcast %120 : vector<16x1xi1> to vector<16x128xi1>
    %122 = arith.select %121, %117, %81 : vector<16x128xi1>, vector<16x128xf32>
    %123 = vector.shape_cast %119 : vector<16x1xi1> to vector<16x1xi1>
    %124 = vector.broadcast %123 : vector<16x1xi1> to vector<16x128xi1>
    %125 = arith.select %124, %115, %84 : vector<16x128xi1>, vector<16x128xf32>
    %c3_i32 = arith.constant 3 : i32
    %126 = arith.index_cast %c3_i32 : i32 to index
    %c0_26 = arith.constant 0 : index
    %c0_27 = arith.constant 0 : index
    %127 = vector.load %arg1[%126, %c0_26, %c0_27] : memref<11x16x512xbf16, #tpu.memory_space<vmem>>, vector<1x16x512xbf16>
    %128 = vector.shape_cast %127 : vector<1x16x512xbf16> to vector<16x512xbf16>
    %129 = arith.extf %128 : vector<16x512xbf16> to vector<16x512xf32>
    %130 = arith.truncf %122 : vector<16x128xf32> to vector<16x128xbf16>
    %c0_28 = arith.constant 0 : index
    %c0_29 = arith.constant 0 : index
    %131 = vector.load %arg3[%c0_28, %c0_29] : memref<128x512xbf16, #tpu.memory_space<vmem>>, vector<128x512xbf16>
    %cst_30 = arith.constant dense<0.000000e+00> : vector<16x512xf32>
    %132 = tpu.matmul %130, %131, %cst_30 {dimension_numbers = #tpu.dot_dimension_numbers<[1], [0], [0], [1], [0, 0, 1, 1], [], []>} : vector<16x128xbf16>, vector<128x512xbf16>, vector<16x512xf32> -> vector<16x512xf32>
    %133 = arith.addf %129, %132 : vector<16x512xf32>
    %134 = vector.extract_strided_slice %133 {offsets = [0, 0], sizes = [16, 128], strides = [1, 1]} : vector<16x512xf32> to vector<16x128xf32>
    %135 = arith.negf %134 : vector<16x128xf32>
    %136 = math.exp %135 : vector<16x128xf32>
    %cst_31 = arith.constant 1.000000e+00 : f32
    %137 = vector.broadcast %cst_31 : f32 to vector<16x128xf32>
    %138 = arith.addf %137, %136 : vector<16x128xf32>
    %139 = arith.divf %137, %138 : vector<16x128xf32>
    %140 = vector.extract_strided_slice %133 {offsets = [0, 128], sizes = [16, 128], strides = [1, 1]} : vector<16x512xf32> to vector<16x128xf32>
    %141 = arith.negf %140 : vector<16x128xf32>
    %142 = math.exp %141 : vector<16x128xf32>
    %cst_32 = arith.constant 1.000000e+00 : f32
    %143 = vector.broadcast %cst_32 : f32 to vector<16x128xf32>
    %144 = arith.addf %143, %142 : vector<16x128xf32>
    %145 = arith.divf %143, %144 : vector<16x128xf32>
    %146 = vector.extract_strided_slice %133 {offsets = [0, 256], sizes = [16, 128], strides = [1, 1]} : vector<16x512xf32> to vector<16x128xf32>
    %147 = math.tanh %146 : vector<16x128xf32>
    %148 = vector.extract_strided_slice %133 {offsets = [0, 384], sizes = [16, 128], strides = [1, 1]} : vector<16x512xf32> to vector<16x128xf32>
    %149 = arith.negf %148 : vector<16x128xf32>
    %150 = math.exp %149 : vector<16x128xf32>
    %cst_33 = arith.constant 1.000000e+00 : f32
    %151 = vector.broadcast %cst_33 : f32 to vector<16x128xf32>
    %152 = arith.addf %151, %150 : vector<16x128xf32>
    %153 = arith.divf %151, %152 : vector<16x128xf32>
    %154 = arith.mulf %145, %125 : vector<16x128xf32>
    %155 = arith.mulf %139, %147 : vector<16x128xf32>
    %156 = arith.addf %154, %155 : vector<16x128xf32>
    %157 = math.tanh %156 : vector<16x128xf32>
    %158 = arith.mulf %153, %157 : vector<16x128xf32>
    %159 = vector.broadcast %c3_i32 : i32 to vector<16x1xi32>
    %160 = arith.cmpi sgt, %0, %159 : vector<16x1xi32>
    %161 = vector.shape_cast %160 : vector<16x1xi1> to vector<16x1xi1>
    %162 = vector.broadcast %161 : vector<16x1xi1> to vector<16x128xi1>
    %163 = arith.select %162, %158, %122 : vector<16x128xi1>, vector<16x128xf32>
    %164 = vector.shape_cast %160 : vector<16x1xi1> to vector<16x1xi1>
    %165 = vector.broadcast %164 : vector<16x1xi1> to vector<16x128xi1>
    %166 = arith.select %165, %156, %125 : vector<16x128xi1>, vector<16x128xf32>
    %c4_i32 = arith.constant 4 : i32
    %167 = arith.index_cast %c4_i32 : i32 to index
    %c0_34 = arith.constant 0 : index
    %c0_35 = arith.constant 0 : index
    %168 = vector.load %arg1[%167, %c0_34, %c0_35] : memref<11x16x512xbf16, #tpu.memory_space<vmem>>, vector<1x16x512xbf16>
    %169 = vector.shape_cast %168 : vector<1x16x512xbf16> to vector<16x512xbf16>
    %170 = arith.extf %169 : vector<16x512xbf16> to vector<16x512xf32>
    %171 = arith.truncf %163 : vector<16x128xf32> to vector<16x128xbf16>
    %c0_36 = arith.constant 0 : index
    %c0_37 = arith.constant 0 : index
    %172 = vector.load %arg3[%c0_36, %c0_37] : memref<128x512xbf16, #tpu.memory_space<vmem>>, vector<128x512xbf16>
    %cst_38 = arith.constant dense<0.000000e+00> : vector<16x512xf32>
    %173 = tpu.matmul %171, %172, %cst_38 {dimension_numbers = #tpu.dot_dimension_numbers<[1], [0], [0], [1], [0, 0, 1, 1], [], []>} : vector<16x128xbf16>, vector<128x512xbf16>, vector<16x512xf32> -> vector<16x512xf32>
    %174 = arith.addf %170, %173 : vector<16x512xf32>
    %175 = vector.extract_strided_slice %174 {offsets = [0, 0], sizes = [16, 128], strides = [1, 1]} : vector<16x512xf32> to vector<16x128xf32>
    %176 = arith.negf %175 : vector<16x128xf32>
    %177 = math.exp %176 : vector<16x128xf32>
    %cst_39 = arith.constant 1.000000e+00 : f32
    %178 = vector.broadcast %cst_39 : f32 to vector<16x128xf32>
    %179 = arith.addf %178, %177 : vector<16x128xf32>
    %180 = arith.divf %178, %179 : vector<16x128xf32>
    %181 = vector.extract_strided_slice %174 {offsets = [0, 128], sizes = [16, 128], strides = [1, 1]} : vector<16x512xf32> to vector<16x128xf32>
    %182 = arith.negf %181 : vector<16x128xf32>
    %183 = math.exp %182 : vector<16x128xf32>
    %cst_40 = arith.constant 1.000000e+00 : f32
    %184 = vector.broadcast %cst_40 : f32 to vector<16x128xf32>
    %185 = arith.addf %184, %183 : vector<16x128xf32>
    %186 = arith.divf %184, %185 : vector<16x128xf32>
    %187 = vector.extract_strided_slice %174 {offsets = [0, 256], sizes = [16, 128], strides = [1, 1]} : vector<16x512xf32> to vector<16x128xf32>
    %188 = math.tanh %187 : vector<16x128xf32>
    %189 = vector.extract_strided_slice %174 {offsets = [0, 384], sizes = [16, 128], strides = [1, 1]} : vector<16x512xf32> to vector<16x128xf32>
    %190 = arith.negf %189 : vector<16x128xf32>
    %191 = math.exp %190 : vector<16x128xf32>
    %cst_41 = arith.constant 1.000000e+00 : f32
    %192 = vector.broadcast %cst_41 : f32 to vector<16x128xf32>
    %193 = arith.addf %192, %191 : vector<16x128xf32>
    %194 = arith.divf %192, %193 : vector<16x128xf32>
    %195 = arith.mulf %186, %166 : vector<16x128xf32>
    %196 = arith.mulf %180, %188 : vector<16x128xf32>
    %197 = arith.addf %195, %196 : vector<16x128xf32>
    %198 = math.tanh %197 : vector<16x128xf32>
    %199 = arith.mulf %194, %198 : vector<16x128xf32>
    %200 = vector.broadcast %c4_i32 : i32 to vector<16x1xi32>
    %201 = arith.cmpi sgt, %0, %200 : vector<16x1xi32>
    %202 = vector.shape_cast %201 : vector<16x1xi1> to vector<16x1xi1>
    %203 = vector.broadcast %202 : vector<16x1xi1> to vector<16x128xi1>
    %204 = arith.select %203, %199, %163 : vector<16x128xi1>, vector<16x128xf32>
    %205 = vector.shape_cast %201 : vector<16x1xi1> to vector<16x1xi1>
    %206 = vector.broadcast %205 : vector<16x1xi1> to vector<16x128xi1>
    %207 = arith.select %206, %197, %166 : vector<16x128xi1>, vector<16x128xf32>
    %c5_i32 = arith.constant 5 : i32
    %208 = arith.index_cast %c5_i32 : i32 to index
    %c0_42 = arith.constant 0 : index
    %c0_43 = arith.constant 0 : index
    %209 = vector.load %arg1[%208, %c0_42, %c0_43] : memref<11x16x512xbf16, #tpu.memory_space<vmem>>, vector<1x16x512xbf16>
    %210 = vector.shape_cast %209 : vector<1x16x512xbf16> to vector<16x512xbf16>
    %211 = arith.extf %210 : vector<16x512xbf16> to vector<16x512xf32>
    %212 = arith.truncf %204 : vector<16x128xf32> to vector<16x128xbf16>
    %c0_44 = arith.constant 0 : index
    %c0_45 = arith.constant 0 : index
    %213 = vector.load %arg3[%c0_44, %c0_45] : memref<128x512xbf16, #tpu.memory_space<vmem>>, vector<128x512xbf16>
    %cst_46 = arith.constant dense<0.000000e+00> : vector<16x512xf32>
    %214 = tpu.matmul %212, %213, %cst_46 {dimension_numbers = #tpu.dot_dimension_numbers<[1], [0], [0], [1], [0, 0, 1, 1], [], []>} : vector<16x128xbf16>, vector<128x512xbf16>, vector<16x512xf32> -> vector<16x512xf32>
    %215 = arith.addf %211, %214 : vector<16x512xf32>
    %216 = vector.extract_strided_slice %215 {offsets = [0, 0], sizes = [16, 128], strides = [1, 1]} : vector<16x512xf32> to vector<16x128xf32>
    %217 = arith.negf %216 : vector<16x128xf32>
    %218 = math.exp %217 : vector<16x128xf32>
    %cst_47 = arith.constant 1.000000e+00 : f32
    %219 = vector.broadcast %cst_47 : f32 to vector<16x128xf32>
    %220 = arith.addf %219, %218 : vector<16x128xf32>
    %221 = arith.divf %219, %220 : vector<16x128xf32>
    %222 = vector.extract_strided_slice %215 {offsets = [0, 128], sizes = [16, 128], strides = [1, 1]} : vector<16x512xf32> to vector<16x128xf32>
    %223 = arith.negf %222 : vector<16x128xf32>
    %224 = math.exp %223 : vector<16x128xf32>
    %cst_48 = arith.constant 1.000000e+00 : f32
    %225 = vector.broadcast %cst_48 : f32 to vector<16x128xf32>
    %226 = arith.addf %225, %224 : vector<16x128xf32>
    %227 = arith.divf %225, %226 : vector<16x128xf32>
    %228 = vector.extract_strided_slice %215 {offsets = [0, 256], sizes = [16, 128], strides = [1, 1]} : vector<16x512xf32> to vector<16x128xf32>
    %229 = math.tanh %228 : vector<16x128xf32>
    %230 = vector.extract_strided_slice %215 {offsets = [0, 384], sizes = [16, 128], strides = [1, 1]} : vector<16x512xf32> to vector<16x128xf32>
    %231 = arith.negf %230 : vector<16x128xf32>
    %232 = math.exp %231 : vector<16x128xf32>
    %cst_49 = arith.constant 1.000000e+00 : f32
    %233 = vector.broadcast %cst_49 : f32 to vector<16x128xf32>
    %234 = arith.addf %233, %232 : vector<16x128xf32>
    %235 = arith.divf %233, %234 : vector<16x128xf32>
    %236 = arith.mulf %227, %207 : vector<16x128xf32>
    %237 = arith.mulf %221, %229 : vector<16x128xf32>
    %238 = arith.addf %236, %237 : vector<16x128xf32>
    %239 = math.tanh %238 : vector<16x128xf32>
    %240 = arith.mulf %235, %239 : vector<16x128xf32>
    %241 = vector.broadcast %c5_i32 : i32 to vector<16x1xi32>
    %242 = arith.cmpi sgt, %0, %241 : vector<16x1xi32>
    %243 = vector.shape_cast %242 : vector<16x1xi1> to vector<16x1xi1>
    %244 = vector.broadcast %243 : vector<16x1xi1> to vector<16x128xi1>
    %245 = arith.select %244, %240, %204 : vector<16x128xi1>, vector<16x128xf32>
    %246 = vector.shape_cast %242 : vector<16x1xi1> to vector<16x1xi1>
    %247 = vector.broadcast %246 : vector<16x1xi1> to vector<16x128xi1>
    %248 = arith.select %247, %238, %207 : vector<16x128xi1>, vector<16x128xf32>
    %c6_i32 = arith.constant 6 : i32
    %249 = arith.index_cast %c6_i32 : i32 to index
    %c0_50 = arith.constant 0 : index
    %c0_51 = arith.constant 0 : index
    %250 = vector.load %arg1[%249, %c0_50, %c0_51] : memref<11x16x512xbf16, #tpu.memory_space<vmem>>, vector<1x16x512xbf16>
    %251 = vector.shape_cast %250 : vector<1x16x512xbf16> to vector<16x512xbf16>
    %252 = arith.extf %251 : vector<16x512xbf16> to vector<16x512xf32>
    %253 = arith.truncf %245 : vector<16x128xf32> to vector<16x128xbf16>
    %c0_52 = arith.constant 0 : index
    %c0_53 = arith.constant 0 : index
    %254 = vector.load %arg3[%c0_52, %c0_53] : memref<128x512xbf16, #tpu.memory_space<vmem>>, vector<128x512xbf16>
    %cst_54 = arith.constant dense<0.000000e+00> : vector<16x512xf32>
    %255 = tpu.matmul %253, %254, %cst_54 {dimension_numbers = #tpu.dot_dimension_numbers<[1], [0], [0], [1], [0, 0, 1, 1], [], []>} : vector<16x128xbf16>, vector<128x512xbf16>, vector<16x512xf32> -> vector<16x512xf32>
    %256 = arith.addf %252, %255 : vector<16x512xf32>
    %257 = vector.extract_strided_slice %256 {offsets = [0, 0], sizes = [16, 128], strides = [1, 1]} : vector<16x512xf32> to vector<16x128xf32>
    %258 = arith.negf %257 : vector<16x128xf32>
    %259 = math.exp %258 : vector<16x128xf32>
    %cst_55 = arith.constant 1.000000e+00 : f32
    %260 = vector.broadcast %cst_55 : f32 to vector<16x128xf32>
    %261 = arith.addf %260, %259 : vector<16x128xf32>
    %262 = arith.divf %260, %261 : vector<16x128xf32>
    %263 = vector.extract_strided_slice %256 {offsets = [0, 128], sizes = [16, 128], strides = [1, 1]} : vector<16x512xf32> to vector<16x128xf32>
    %264 = arith.negf %263 : vector<16x128xf32>
    %265 = math.exp %264 : vector<16x128xf32>
    %cst_56 = arith.constant 1.000000e+00 : f32
    %266 = vector.broadcast %cst_56 : f32 to vector<16x128xf32>
    %267 = arith.addf %266, %265 : vector<16x128xf32>
    %268 = arith.divf %266, %267 : vector<16x128xf32>
    %269 = vector.extract_strided_slice %256 {offsets = [0, 256], sizes = [16, 128], strides = [1, 1]} : vector<16x512xf32> to vector<16x128xf32>
    %270 = math.tanh %269 : vector<16x128xf32>
    %271 = vector.extract_strided_slice %256 {offsets = [0, 384], sizes = [16, 128], strides = [1, 1]} : vector<16x512xf32> to vector<16x128xf32>
    %272 = arith.negf %271 : vector<16x128xf32>
    %273 = math.exp %272 : vector<16x128xf32>
    %cst_57 = arith.constant 1.000000e+00 : f32
    %274 = vector.broadcast %cst_57 : f32 to vector<16x128xf32>
    %275 = arith.addf %274, %273 : vector<16x128xf32>
    %276 = arith.divf %274, %275 : vector<16x128xf32>
    %277 = arith.mulf %268, %248 : vector<16x128xf32>
    %278 = arith.mulf %262, %270 : vector<16x128xf32>
    %279 = arith.addf %277, %278 : vector<16x128xf32>
    %280 = math.tanh %279 : vector<16x128xf32>
    %281 = arith.mulf %276, %280 : vector<16x128xf32>
    %282 = vector.broadcast %c6_i32 : i32 to vector<16x1xi32>
    %283 = arith.cmpi sgt, %0, %282 : vector<16x1xi32>
    %284 = vector.shape_cast %283 : vector<16x1xi1> to vector<16x1xi1>
    %285 = vector.broadcast %284 : vector<16x1xi1> to vector<16x128xi1>
    %286 = arith.select %285, %281, %245 : vector<16x128xi1>, vector<16x128xf32>
    %287 = vector.shape_cast %283 : vector<16x1xi1> to vector<16x1xi1>
    %288 = vector.broadcast %287 : vector<16x1xi1> to vector<16x128xi1>
    %289 = arith.select %288, %279, %248 : vector<16x128xi1>, vector<16x128xf32>
    %c7_i32 = arith.constant 7 : i32
    %290 = arith.index_cast %c7_i32 : i32 to index
    %c0_58 = arith.constant 0 : index
    %c0_59 = arith.constant 0 : index
    %291 = vector.load %arg1[%290, %c0_58, %c0_59] : memref<11x16x512xbf16, #tpu.memory_space<vmem>>, vector<1x16x512xbf16>
    %292 = vector.shape_cast %291 : vector<1x16x512xbf16> to vector<16x512xbf16>
    %293 = arith.extf %292 : vector<16x512xbf16> to vector<16x512xf32>
    %294 = arith.truncf %286 : vector<16x128xf32> to vector<16x128xbf16>
    %c0_60 = arith.constant 0 : index
    %c0_61 = arith.constant 0 : index
    %295 = vector.load %arg3[%c0_60, %c0_61] : memref<128x512xbf16, #tpu.memory_space<vmem>>, vector<128x512xbf16>
    %cst_62 = arith.constant dense<0.000000e+00> : vector<16x512xf32>
    %296 = tpu.matmul %294, %295, %cst_62 {dimension_numbers = #tpu.dot_dimension_numbers<[1], [0], [0], [1], [0, 0, 1, 1], [], []>} : vector<16x128xbf16>, vector<128x512xbf16>, vector<16x512xf32> -> vector<16x512xf32>
    %297 = arith.addf %293, %296 : vector<16x512xf32>
    %298 = vector.extract_strided_slice %297 {offsets = [0, 0], sizes = [16, 128], strides = [1, 1]} : vector<16x512xf32> to vector<16x128xf32>
    %299 = arith.negf %298 : vector<16x128xf32>
    %300 = math.exp %299 : vector<16x128xf32>
    %cst_63 = arith.constant 1.000000e+00 : f32
    %301 = vector.broadcast %cst_63 : f32 to vector<16x128xf32>
    %302 = arith.addf %301, %300 : vector<16x128xf32>
    %303 = arith.divf %301, %302 : vector<16x128xf32>
    %304 = vector.extract_strided_slice %297 {offsets = [0, 128], sizes = [16, 128], strides = [1, 1]} : vector<16x512xf32> to vector<16x128xf32>
    %305 = arith.negf %304 : vector<16x128xf32>
    %306 = math.exp %305 : vector<16x128xf32>
    %cst_64 = arith.constant 1.000000e+00 : f32
    %307 = vector.broadcast %cst_64 : f32 to vector<16x128xf32>
    %308 = arith.addf %307, %306 : vector<16x128xf32>
    %309 = arith.divf %307, %308 : vector<16x128xf32>
    %310 = vector.extract_strided_slice %297 {offsets = [0, 256], sizes = [16, 128], strides = [1, 1]} : vector<16x512xf32> to vector<16x128xf32>
    %311 = math.tanh %310 : vector<16x128xf32>
    %312 = vector.extract_strided_slice %297 {offsets = [0, 384], sizes = [16, 128], strides = [1, 1]} : vector<16x512xf32> to vector<16x128xf32>
    %313 = arith.negf %312 : vector<16x128xf32>
    %314 = math.exp %313 : vector<16x128xf32>
    %cst_65 = arith.constant 1.000000e+00 : f32
    %315 = vector.broadcast %cst_65 : f32 to vector<16x128xf32>
    %316 = arith.addf %315, %314 : vector<16x128xf32>
    %317 = arith.divf %315, %316 : vector<16x128xf32>
    %318 = arith.mulf %309, %289 : vector<16x128xf32>
    %319 = arith.mulf %303, %311 : vector<16x128xf32>
    %320 = arith.addf %318, %319 : vector<16x128xf32>
    %321 = math.tanh %320 : vector<16x128xf32>
    %322 = arith.mulf %317, %321 : vector<16x128xf32>
    %323 = vector.broadcast %c7_i32 : i32 to vector<16x1xi32>
    %324 = arith.cmpi sgt, %0, %323 : vector<16x1xi32>
    %325 = vector.shape_cast %324 : vector<16x1xi1> to vector<16x1xi1>
    %326 = vector.broadcast %325 : vector<16x1xi1> to vector<16x128xi1>
    %327 = arith.select %326, %322, %286 : vector<16x128xi1>, vector<16x128xf32>
    %328 = vector.shape_cast %324 : vector<16x1xi1> to vector<16x1xi1>
    %329 = vector.broadcast %328 : vector<16x1xi1> to vector<16x128xi1>
    %330 = arith.select %329, %320, %289 : vector<16x128xi1>, vector<16x128xf32>
    %c8_i32 = arith.constant 8 : i32
    %331 = arith.index_cast %c8_i32 : i32 to index
    %c0_66 = arith.constant 0 : index
    %c0_67 = arith.constant 0 : index
    %332 = vector.load %arg1[%331, %c0_66, %c0_67] : memref<11x16x512xbf16, #tpu.memory_space<vmem>>, vector<1x16x512xbf16>
    %333 = vector.shape_cast %332 : vector<1x16x512xbf16> to vector<16x512xbf16>
    %334 = arith.extf %333 : vector<16x512xbf16> to vector<16x512xf32>
    %335 = arith.truncf %327 : vector<16x128xf32> to vector<16x128xbf16>
    %c0_68 = arith.constant 0 : index
    %c0_69 = arith.constant 0 : index
    %336 = vector.load %arg3[%c0_68, %c0_69] : memref<128x512xbf16, #tpu.memory_space<vmem>>, vector<128x512xbf16>
    %cst_70 = arith.constant dense<0.000000e+00> : vector<16x512xf32>
    %337 = tpu.matmul %335, %336, %cst_70 {dimension_numbers = #tpu.dot_dimension_numbers<[1], [0], [0], [1], [0, 0, 1, 1], [], []>} : vector<16x128xbf16>, vector<128x512xbf16>, vector<16x512xf32> -> vector<16x512xf32>
    %338 = arith.addf %334, %337 : vector<16x512xf32>
    %339 = vector.extract_strided_slice %338 {offsets = [0, 0], sizes = [16, 128], strides = [1, 1]} : vector<16x512xf32> to vector<16x128xf32>
    %340 = arith.negf %339 : vector<16x128xf32>
    %341 = math.exp %340 : vector<16x128xf32>
    %cst_71 = arith.constant 1.000000e+00 : f32
    %342 = vector.broadcast %cst_71 : f32 to vector<16x128xf32>
    %343 = arith.addf %342, %341 : vector<16x128xf32>
    %344 = arith.divf %342, %343 : vector<16x128xf32>
    %345 = vector.extract_strided_slice %338 {offsets = [0, 128], sizes = [16, 128], strides = [1, 1]} : vector<16x512xf32> to vector<16x128xf32>
    %346 = arith.negf %345 : vector<16x128xf32>
    %347 = math.exp %346 : vector<16x128xf32>
    %cst_72 = arith.constant 1.000000e+00 : f32
    %348 = vector.broadcast %cst_72 : f32 to vector<16x128xf32>
    %349 = arith.addf %348, %347 : vector<16x128xf32>
    %350 = arith.divf %348, %349 : vector<16x128xf32>
    %351 = vector.extract_strided_slice %338 {offsets = [0, 256], sizes = [16, 128], strides = [1, 1]} : vector<16x512xf32> to vector<16x128xf32>
    %352 = math.tanh %351 : vector<16x128xf32>
    %353 = vector.extract_strided_slice %338 {offsets = [0, 384], sizes = [16, 128], strides = [1, 1]} : vector<16x512xf32> to vector<16x128xf32>
    %354 = arith.negf %353 : vector<16x128xf32>
    %355 = math.exp %354 : vector<16x128xf32>
    %cst_73 = arith.constant 1.000000e+00 : f32
    %356 = vector.broadcast %cst_73 : f32 to vector<16x128xf32>
    %357 = arith.addf %356, %355 : vector<16x128xf32>
    %358 = arith.divf %356, %357 : vector<16x128xf32>
    %359 = arith.mulf %350, %330 : vector<16x128xf32>
    %360 = arith.mulf %344, %352 : vector<16x128xf32>
    %361 = arith.addf %359, %360 : vector<16x128xf32>
    %362 = math.tanh %361 : vector<16x128xf32>
    %363 = arith.mulf %358, %362 : vector<16x128xf32>
    %364 = vector.broadcast %c8_i32 : i32 to vector<16x1xi32>
    %365 = arith.cmpi sgt, %0, %364 : vector<16x1xi32>
    %366 = vector.shape_cast %365 : vector<16x1xi1> to vector<16x1xi1>
    %367 = vector.broadcast %366 : vector<16x1xi1> to vector<16x128xi1>
    %368 = arith.select %367, %363, %327 : vector<16x128xi1>, vector<16x128xf32>
    %369 = vector.shape_cast %365 : vector<16x1xi1> to vector<16x1xi1>
    %370 = vector.broadcast %369 : vector<16x1xi1> to vector<16x128xi1>
    %371 = arith.select %370, %361, %330 : vector<16x128xi1>, vector<16x128xf32>
    %c9_i32 = arith.constant 9 : i32
    %372 = arith.index_cast %c9_i32 : i32 to index
    %c0_74 = arith.constant 0 : index
    %c0_75 = arith.constant 0 : index
    %373 = vector.load %arg1[%372, %c0_74, %c0_75] : memref<11x16x512xbf16, #tpu.memory_space<vmem>>, vector<1x16x512xbf16>
    %374 = vector.shape_cast %373 : vector<1x16x512xbf16> to vector<16x512xbf16>
    %375 = arith.extf %374 : vector<16x512xbf16> to vector<16x512xf32>
    %376 = arith.truncf %368 : vector<16x128xf32> to vector<16x128xbf16>
    %c0_76 = arith.constant 0 : index
    %c0_77 = arith.constant 0 : index
    %377 = vector.load %arg3[%c0_76, %c0_77] : memref<128x512xbf16, #tpu.memory_space<vmem>>, vector<128x512xbf16>
    %cst_78 = arith.constant dense<0.000000e+00> : vector<16x512xf32>
    %378 = tpu.matmul %376, %377, %cst_78 {dimension_numbers = #tpu.dot_dimension_numbers<[1], [0], [0], [1], [0, 0, 1, 1], [], []>} : vector<16x128xbf16>, vector<128x512xbf16>, vector<16x512xf32> -> vector<16x512xf32>
    %379 = arith.addf %375, %378 : vector<16x512xf32>
    %380 = vector.extract_strided_slice %379 {offsets = [0, 0], sizes = [16, 128], strides = [1, 1]} : vector<16x512xf32> to vector<16x128xf32>
    %381 = arith.negf %380 : vector<16x128xf32>
    %382 = math.exp %381 : vector<16x128xf32>
    %cst_79 = arith.constant 1.000000e+00 : f32
    %383 = vector.broadcast %cst_79 : f32 to vector<16x128xf32>
    %384 = arith.addf %383, %382 : vector<16x128xf32>
    %385 = arith.divf %383, %384 : vector<16x128xf32>
    %386 = vector.extract_strided_slice %379 {offsets = [0, 128], sizes = [16, 128], strides = [1, 1]} : vector<16x512xf32> to vector<16x128xf32>
    %387 = arith.negf %386 : vector<16x128xf32>
    %388 = math.exp %387 : vector<16x128xf32>
    %cst_80 = arith.constant 1.000000e+00 : f32
    %389 = vector.broadcast %cst_80 : f32 to vector<16x128xf32>
    %390 = arith.addf %389, %388 : vector<16x128xf32>
    %391 = arith.divf %389, %390 : vector<16x128xf32>
    %392 = vector.extract_strided_slice %379 {offsets = [0, 256], sizes = [16, 128], strides = [1, 1]} : vector<16x512xf32> to vector<16x128xf32>
    %393 = math.tanh %392 : vector<16x128xf32>
    %394 = vector.extract_strided_slice %379 {offsets = [0, 384], sizes = [16, 128], strides = [1, 1]} : vector<16x512xf32> to vector<16x128xf32>
    %395 = arith.negf %394 : vector<16x128xf32>
    %396 = math.exp %395 : vector<16x128xf32>
    %cst_81 = arith.constant 1.000000e+00 : f32
    %397 = vector.broadcast %cst_81 : f32 to vector<16x128xf32>
    %398 = arith.addf %397, %396 : vector<16x128xf32>
    %399 = arith.divf %397, %398 : vector<16x128xf32>
    %400 = arith.mulf %391, %371 : vector<16x128xf32>
    %401 = arith.mulf %385, %393 : vector<16x128xf32>
    %402 = arith.addf %400, %401 : vector<16x128xf32>
    %403 = math.tanh %402 : vector<16x128xf32>
    %404 = arith.mulf %399, %403 : vector<16x128xf32>
    %405 = vector.broadcast %c9_i32 : i32 to vector<16x1xi32>
    %406 = arith.cmpi sgt, %0, %405 : vector<16x1xi32>
    %407 = vector.shape_cast %406 : vector<16x1xi1> to vector<16x1xi1>
    %408 = vector.broadcast %407 : vector<16x1xi1> to vector<16x128xi1>
    %409 = arith.select %408, %404, %368 : vector<16x128xi1>, vector<16x128xf32>
    %410 = vector.shape_cast %406 : vector<16x1xi1> to vector<16x1xi1>
    %411 = vector.broadcast %410 : vector<16x1xi1> to vector<16x128xi1>
    %412 = arith.select %411, %402, %371 : vector<16x128xi1>, vector<16x128xf32>
    %c10_i32 = arith.constant 10 : i32
    %413 = arith.index_cast %c10_i32 : i32 to index
    %c0_82 = arith.constant 0 : index
    %c0_83 = arith.constant 0 : index
    %414 = vector.load %arg1[%413, %c0_82, %c0_83] : memref<11x16x512xbf16, #tpu.memory_space<vmem>>, vector<1x16x512xbf16>
    %415 = vector.shape_cast %414 : vector<1x16x512xbf16> to vector<16x512xbf16>
    %416 = arith.extf %415 : vector<16x512xbf16> to vector<16x512xf32>
    %417 = arith.truncf %409 : vector<16x128xf32> to vector<16x128xbf16>
    %c0_84 = arith.constant 0 : index
    %c0_85 = arith.constant 0 : index
    %418 = vector.load %arg3[%c0_84, %c0_85] : memref<128x512xbf16, #tpu.memory_space<vmem>>, vector<128x512xbf16>
    %cst_86 = arith.constant dense<0.000000e+00> : vector<16x512xf32>
    %419 = tpu.matmul %417, %418, %cst_86 {dimension_numbers = #tpu.dot_dimension_numbers<[1], [0], [0], [1], [0, 0, 1, 1], [], []>} : vector<16x128xbf16>, vector<128x512xbf16>, vector<16x512xf32> -> vector<16x512xf32>
    %420 = arith.addf %416, %419 : vector<16x512xf32>
    %421 = vector.extract_strided_slice %420 {offsets = [0, 0], sizes = [16, 128], strides = [1, 1]} : vector<16x512xf32> to vector<16x128xf32>
    %422 = arith.negf %421 : vector<16x128xf32>
    %423 = math.exp %422 : vector<16x128xf32>
    %cst_87 = arith.constant 1.000000e+00 : f32
    %424 = vector.broadcast %cst_87 : f32 to vector<16x128xf32>
    %425 = arith.addf %424, %423 : vector<16x128xf32>
    %426 = arith.divf %424, %425 : vector<16x128xf32>
    %427 = vector.extract_strided_slice %420 {offsets = [0, 128], sizes = [16, 128], strides = [1, 1]} : vector<16x512xf32> to vector<16x128xf32>
    %428 = arith.negf %427 : vector<16x128xf32>
    %429 = math.exp %428 : vector<16x128xf32>
    %cst_88 = arith.constant 1.000000e+00 : f32
    %430 = vector.broadcast %cst_88 : f32 to vector<16x128xf32>
    %431 = arith.addf %430, %429 : vector<16x128xf32>
    %432 = arith.divf %430, %431 : vector<16x128xf32>
    %433 = vector.extract_strided_slice %420 {offsets = [0, 256], sizes = [16, 128], strides = [1, 1]} : vector<16x512xf32> to vector<16x128xf32>
    %434 = math.tanh %433 : vector<16x128xf32>
    %435 = vector.extract_strided_slice %420 {offsets = [0, 384], sizes = [16, 128], strides = [1, 1]} : vector<16x512xf32> to vector<16x128xf32>
    %436 = arith.negf %435 : vector<16x128xf32>
    %437 = math.exp %436 : vector<16x128xf32>
    %cst_89 = arith.constant 1.000000e+00 : f32
    %438 = vector.broadcast %cst_89 : f32 to vector<16x128xf32>
    %439 = arith.addf %438, %437 : vector<16x128xf32>
    %440 = arith.divf %438, %439 : vector<16x128xf32>
    %441 = arith.mulf %432, %412 : vector<16x128xf32>
    %442 = arith.mulf %426, %434 : vector<16x128xf32>
    %443 = arith.addf %441, %442 : vector<16x128xf32>
    %444 = math.tanh %443 : vector<16x128xf32>
    %445 = arith.mulf %440, %444 : vector<16x128xf32>
    %446 = vector.broadcast %c10_i32 : i32 to vector<16x1xi32>
    %447 = arith.cmpi sgt, %0, %446 : vector<16x1xi32>
    %448 = vector.shape_cast %447 : vector<16x1xi1> to vector<16x1xi1>
    %449 = vector.broadcast %448 : vector<16x1xi1> to vector<16x128xi1>
    %450 = arith.select %449, %445, %409 : vector<16x128xi1>, vector<16x128xf32>
    %451 = vector.shape_cast %447 : vector<16x1xi1> to vector<16x1xi1>
    %452 = vector.broadcast %451 : vector<16x1xi1> to vector<16x128xi1>
    %453 = arith.select %452, %443, %412 : vector<16x128xi1>, vector<16x128xf32>
    %c11_i32 = arith.constant 11 : i32
    %c0_90 = arith.constant 0 : index
    %c0_91 = arith.constant 0 : index
    %454 = vector.load %arg4[%c0_90, %c0_91] : memref<16x128xf32, #tpu.memory_space<vmem>>, vector<16x128xf32>
    tpu.vector_store %arg4[%c0_90, %c0_91], %450 {strides = array<i32>} : memref<16x128xf32, #tpu.memory_space<vmem>>, vector<16x128xf32>,
    %c0_92 = arith.constant 0 : index
    %c0_93 = arith.constant 0 : index
    %455 = vector.load %arg5[%c0_92, %c0_93] : memref<16x128xf32, #tpu.memory_space<vmem>>, vector<16x128xf32>
    tpu.vector_store %arg5[%c0_92, %c0_93], %453 {strides = array<i32>} : memref<16x128xf32, #tpu.memory_space<vmem>>, vector<16x128xf32>,
    return
  }
  func.func @transform_0(%arg0: i32) -> (i32, i32, i32) {
    %c0_i32 = arith.constant 0 : i32
    %c0_i32_0 = arith.constant 0 : i32
    %c0_i32_1 = arith.constant 0 : i32
    return %c0_i32, %arg0, %c0_i32_0 : i32, i32, i32
  }
  func.func @transform_1(%arg0: i32) -> (i32, i32) {
    %c0_i32 = arith.constant 0 : i32
    %c0_i32_0 = arith.constant 0 : i32
    return %arg0, %c0_i32 : i32, i32
  }
  func.func @transform_2(%arg0: i32) -> (i32, i32) {
    %c0_i32 = arith.constant 0 : i32
    %c0_i32_0 = arith.constant 0 : i32
    %c0_i32_1 = arith.constant 0 : i32
    return %c0_i32, %c0_i32_0 : i32, i32
  }
  func.func @transform_3(%arg0: i32) -> (i32, i32) {
    %c0_i32 = arith.constant 0 : i32
    %c0_i32_0 = arith.constant 0 : i32
    return %arg0, %c0_i32 : i32, i32
  }
  func.func @transform_4(%arg0: i32) -> (i32, i32) {
    %c0_i32 = arith.constant 0 : i32
    %c0_i32_0 = arith.constant 0 : i32
    return %arg0, %c0_i32 : i32, i32
  }
}

module attributes {stable_mosaic.version = 11 : i64} {
  func.func @hist_img_kernel(%arg0: i32, %arg1: memref<4x8x128xf32, #tpu.memory_space<vmem>>, %arg2: memref<256x512xbf16, #tpu.memory_space<vmem>>, %arg3: memref<1x512xf32, #tpu.memory_space<vmem>>, %arg4: memref<128x64xbf16, #tpu.memory_space<vmem>>, %arg5: memref<1x64xf32, #tpu.memory_space<vmem>>, %arg6: memref<8x64xf32, #tpu.memory_space<vmem>>, %arg7: memref<3x8x128xf32, #tpu.memory_space<vmem>>, %arg8: memref<3x8x128xf32, #tpu.memory_space<vmem>>, %arg9: memref<1x1xf32, #tpu.memory_space<vmem>>) attributes {dimension_semantics = [#tpu.dimension_semantics<arbitrary>], iteration_bounds = array<i64: 1>, scalar_prefetch = 0 : i64, scratch_operands = 0 : i64, tpu.core_type = #tpu.core_type<tc>, window_params = [{pipeline_mode = #tpu.pipeline_mode<synchronous>, transform_indices = @transform_0, window_bounds = array<i64: 4, 8, 128>}, {pipeline_mode = #tpu.pipeline_mode<synchronous>, transform_indices = @transform_1, window_bounds = array<i64: 256, 512>}, {pipeline_mode = #tpu.pipeline_mode<synchronous>, transform_indices = @transform_2, window_bounds = array<i64: 1, 512>}, {pipeline_mode = #tpu.pipeline_mode<synchronous>, transform_indices = @transform_3, window_bounds = array<i64: 128, 64>}, {pipeline_mode = #tpu.pipeline_mode<synchronous>, transform_indices = @transform_4, window_bounds = array<i64: 1, 64>}, {pipeline_mode = #tpu.pipeline_mode<synchronous>, transform_indices = @transform_5, window_bounds = array<i64: 8, 64>}, {pipeline_mode = #tpu.pipeline_mode<synchronous>, transform_indices = @transform_6, window_bounds = array<i64: 3, 8, 128>}, {pipeline_mode = #tpu.pipeline_mode<synchronous>, transform_indices = @transform_7, window_bounds = array<i64: 3, 8, 128>}, {pipeline_mode = #tpu.pipeline_mode<synchronous>, transform_indices = @transform_8, window_bounds = array<i64: 1, 1>}]} {
    %c0 = arith.constant 0 : index
    %c0_0 = arith.constant 0 : index
    %0 = vector.load %arg3[%c0, %c0_0] : memref<1x512xf32, #tpu.memory_space<vmem>>, vector<1x512xf32>
    %cst = arith.constant 0.000000e+00 : f32
    %1 = vector.broadcast %cst : f32 to vector<8x128xf32>
    %cst_1 = arith.constant 0.000000e+00 : f32
    %2 = vector.broadcast %cst_1 : f32 to vector<8x128xf32>
    %c0_2 = arith.constant 0 : index
    %c0_3 = arith.constant 0 : index
    %c0_4 = arith.constant 0 : index
    %3 = vector.load %arg1[%c0_2, %c0_3, %c0_4] : memref<4x8x128xf32, #tpu.memory_space<vmem>>, vector<1x8x128xf32>
    %4 = vector.shape_cast %3 : vector<1x8x128xf32> to vector<8x128xf32>
    %5 = arith.truncf %4 : vector<8x128xf32> to vector<8x128xbf16>
    %6 = arith.truncf %1 : vector<8x128xf32> to vector<8x128xbf16>
    %7 = tpu.concatenate %5, %6 in 1 : vector<8x128xbf16>, vector<8x128xbf16> -> vector<8x256xbf16>
    %c0_5 = arith.constant 0 : index
    %c0_6 = arith.constant 0 : index
    %8 = vector.load %arg2[%c0_5, %c0_6] : memref<256x512xbf16, #tpu.memory_space<vmem>>, vector<256x512xbf16>
    %cst_7 = arith.constant dense<0.000000e+00> : vector<8x512xf32>
    %9 = tpu.matmul %7, %8, %cst_7 {dimension_numbers = #tpu.dot_dimension_numbers<[1], [0], [0], [1], [0, 0, 1, 1], [], []>} : vector<8x256xbf16>, vector<256x512xbf16>, vector<8x512xf32> -> vector<8x512xf32>
    %10 = vector.broadcast %0 : vector<1x512xf32> to vector<8x512xf32>
    %11 = arith.addf %9, %10 : vector<8x512xf32>
    %12 = vector.extract_strided_slice %11 {offsets = [0, 0], sizes = [8, 128], strides = [1, 1]} : vector<8x512xf32> to vector<8x128xf32>
    %13 = arith.negf %12 : vector<8x128xf32>
    %14 = math.exp %13 : vector<8x128xf32>
    %cst_8 = arith.constant 1.000000e+00 : f32
    %15 = vector.broadcast %cst_8 : f32 to vector<8x128xf32>
    %16 = arith.addf %15, %14 : vector<8x128xf32>
    %17 = arith.divf %15, %16 : vector<8x128xf32>
    %18 = vector.extract_strided_slice %11 {offsets = [0, 128], sizes = [8, 128], strides = [1, 1]} : vector<8x512xf32> to vector<8x128xf32>
    %19 = arith.negf %18 : vector<8x128xf32>
    %20 = math.exp %19 : vector<8x128xf32>
    %cst_9 = arith.constant 1.000000e+00 : f32
    %21 = vector.broadcast %cst_9 : f32 to vector<8x128xf32>
    %22 = arith.addf %21, %20 : vector<8x128xf32>
    %23 = arith.divf %21, %22 : vector<8x128xf32>
    %24 = vector.extract_strided_slice %11 {offsets = [0, 256], sizes = [8, 128], strides = [1, 1]} : vector<8x512xf32> to vector<8x128xf32>
    %25 = math.tanh %24 : vector<8x128xf32>
    %26 = vector.extract_strided_slice %11 {offsets = [0, 384], sizes = [8, 128], strides = [1, 1]} : vector<8x512xf32> to vector<8x128xf32>
    %27 = arith.negf %26 : vector<8x128xf32>
    %28 = math.exp %27 : vector<8x128xf32>
    %cst_10 = arith.constant 1.000000e+00 : f32
    %29 = vector.broadcast %cst_10 : f32 to vector<8x128xf32>
    %30 = arith.addf %29, %28 : vector<8x128xf32>
    %31 = arith.divf %29, %30 : vector<8x128xf32>
    %32 = arith.mulf %23, %2 : vector<8x128xf32>
    %33 = arith.mulf %17, %25 : vector<8x128xf32>
    %34 = arith.addf %32, %33 : vector<8x128xf32>
    %35 = math.tanh %34 : vector<8x128xf32>
    %36 = arith.mulf %31, %35 : vector<8x128xf32>
    %c0_11 = arith.constant 0 : index
    %c0_12 = arith.constant 0 : index
    %c0_13 = arith.constant 0 : index
    %37 = vector.load %arg7[%c0_11, %c0_12, %c0_13] : memref<3x8x128xf32, #tpu.memory_space<vmem>>, vector<1x8x128xf32>
    %38 = vector.shape_cast %37 : vector<1x8x128xf32> to vector<8x128xf32>
    %39 = vector.shape_cast %36 : vector<8x128xf32> to vector<1x8x128xf32>
    tpu.vector_store %arg7[%c0_11, %c0_12, %c0_13], %39 {strides = array<i32>} : memref<3x8x128xf32, #tpu.memory_space<vmem>>, vector<1x8x128xf32>,
    %c0_14 = arith.constant 0 : index
    %c0_15 = arith.constant 0 : index
    %c0_16 = arith.constant 0 : index
    %40 = vector.load %arg8[%c0_14, %c0_15, %c0_16] : memref<3x8x128xf32, #tpu.memory_space<vmem>>, vector<1x8x128xf32>
    %41 = vector.shape_cast %40 : vector<1x8x128xf32> to vector<8x128xf32>
    %42 = vector.shape_cast %34 : vector<8x128xf32> to vector<1x8x128xf32>
    tpu.vector_store %arg8[%c0_14, %c0_15, %c0_16], %42 {strides = array<i32>} : memref<3x8x128xf32, #tpu.memory_space<vmem>>, vector<1x8x128xf32>,
    %c1 = arith.constant 1 : index
    %c0_17 = arith.constant 0 : index
    %c0_18 = arith.constant 0 : index
    %43 = vector.load %arg1[%c1, %c0_17, %c0_18] : memref<4x8x128xf32, #tpu.memory_space<vmem>>, vector<1x8x128xf32>
    %44 = vector.shape_cast %43 : vector<1x8x128xf32> to vector<8x128xf32>
    %45 = arith.truncf %44 : vector<8x128xf32> to vector<8x128xbf16>
    %46 = arith.truncf %36 : vector<8x128xf32> to vector<8x128xbf16>
    %47 = tpu.concatenate %45, %46 in 1 : vector<8x128xbf16>, vector<8x128xbf16> -> vector<8x256xbf16>
    %c0_19 = arith.constant 0 : index
    %c0_20 = arith.constant 0 : index
    %48 = vector.load %arg2[%c0_19, %c0_20] : memref<256x512xbf16, #tpu.memory_space<vmem>>, vector<256x512xbf16>
    %cst_21 = arith.constant dense<0.000000e+00> : vector<8x512xf32>
    %49 = tpu.matmul %47, %48, %cst_21 {dimension_numbers = #tpu.dot_dimension_numbers<[1], [0], [0], [1], [0, 0, 1, 1], [], []>} : vector<8x256xbf16>, vector<256x512xbf16>, vector<8x512xf32> -> vector<8x512xf32>
    %50 = vector.broadcast %0 : vector<1x512xf32> to vector<8x512xf32>
    %51 = arith.addf %49, %50 : vector<8x512xf32>
    %52 = vector.extract_strided_slice %51 {offsets = [0, 0], sizes = [8, 128], strides = [1, 1]} : vector<8x512xf32> to vector<8x128xf32>
    %53 = arith.negf %52 : vector<8x128xf32>
    %54 = math.exp %53 : vector<8x128xf32>
    %cst_22 = arith.constant 1.000000e+00 : f32
    %55 = vector.broadcast %cst_22 : f32 to vector<8x128xf32>
    %56 = arith.addf %55, %54 : vector<8x128xf32>
    %57 = arith.divf %55, %56 : vector<8x128xf32>
    %58 = vector.extract_strided_slice %51 {offsets = [0, 128], sizes = [8, 128], strides = [1, 1]} : vector<8x512xf32> to vector<8x128xf32>
    %59 = arith.negf %58 : vector<8x128xf32>
    %60 = math.exp %59 : vector<8x128xf32>
    %cst_23 = arith.constant 1.000000e+00 : f32
    %61 = vector.broadcast %cst_23 : f32 to vector<8x128xf32>
    %62 = arith.addf %61, %60 : vector<8x128xf32>
    %63 = arith.divf %61, %62 : vector<8x128xf32>
    %64 = vector.extract_strided_slice %51 {offsets = [0, 256], sizes = [8, 128], strides = [1, 1]} : vector<8x512xf32> to vector<8x128xf32>
    %65 = math.tanh %64 : vector<8x128xf32>
    %66 = vector.extract_strided_slice %51 {offsets = [0, 384], sizes = [8, 128], strides = [1, 1]} : vector<8x512xf32> to vector<8x128xf32>
    %67 = arith.negf %66 : vector<8x128xf32>
    %68 = math.exp %67 : vector<8x128xf32>
    %cst_24 = arith.constant 1.000000e+00 : f32
    %69 = vector.broadcast %cst_24 : f32 to vector<8x128xf32>
    %70 = arith.addf %69, %68 : vector<8x128xf32>
    %71 = arith.divf %69, %70 : vector<8x128xf32>
    %72 = arith.mulf %63, %34 : vector<8x128xf32>
    %73 = arith.mulf %57, %65 : vector<8x128xf32>
    %74 = arith.addf %72, %73 : vector<8x128xf32>
    %75 = math.tanh %74 : vector<8x128xf32>
    %76 = arith.mulf %71, %75 : vector<8x128xf32>
    %c1_25 = arith.constant 1 : index
    %c0_26 = arith.constant 0 : index
    %c0_27 = arith.constant 0 : index
    %77 = vector.load %arg7[%c1_25, %c0_26, %c0_27] : memref<3x8x128xf32, #tpu.memory_space<vmem>>, vector<1x8x128xf32>
    %78 = vector.shape_cast %77 : vector<1x8x128xf32> to vector<8x128xf32>
    %79 = vector.shape_cast %76 : vector<8x128xf32> to vector<1x8x128xf32>
    tpu.vector_store %arg7[%c1_25, %c0_26, %c0_27], %79 {strides = array<i32>} : memref<3x8x128xf32, #tpu.memory_space<vmem>>, vector<1x8x128xf32>,
    %c1_28 = arith.constant 1 : index
    %c0_29 = arith.constant 0 : index
    %c0_30 = arith.constant 0 : index
    %80 = vector.load %arg8[%c1_28, %c0_29, %c0_30] : memref<3x8x128xf32, #tpu.memory_space<vmem>>, vector<1x8x128xf32>
    %81 = vector.shape_cast %80 : vector<1x8x128xf32> to vector<8x128xf32>
    %82 = vector.shape_cast %74 : vector<8x128xf32> to vector<1x8x128xf32>
    tpu.vector_store %arg8[%c1_28, %c0_29, %c0_30], %82 {strides = array<i32>} : memref<3x8x128xf32, #tpu.memory_space<vmem>>, vector<1x8x128xf32>,
    %c2 = arith.constant 2 : index
    %c0_31 = arith.constant 0 : index
    %c0_32 = arith.constant 0 : index
    %83 = vector.load %arg1[%c2, %c0_31, %c0_32] : memref<4x8x128xf32, #tpu.memory_space<vmem>>, vector<1x8x128xf32>
    %84 = vector.shape_cast %83 : vector<1x8x128xf32> to vector<8x128xf32>
    %85 = arith.truncf %84 : vector<8x128xf32> to vector<8x128xbf16>
    %86 = arith.truncf %76 : vector<8x128xf32> to vector<8x128xbf16>
    %87 = tpu.concatenate %85, %86 in 1 : vector<8x128xbf16>, vector<8x128xbf16> -> vector<8x256xbf16>
    %c0_33 = arith.constant 0 : index
    %c0_34 = arith.constant 0 : index
    %88 = vector.load %arg2[%c0_33, %c0_34] : memref<256x512xbf16, #tpu.memory_space<vmem>>, vector<256x512xbf16>
    %cst_35 = arith.constant dense<0.000000e+00> : vector<8x512xf32>
    %89 = tpu.matmul %87, %88, %cst_35 {dimension_numbers = #tpu.dot_dimension_numbers<[1], [0], [0], [1], [0, 0, 1, 1], [], []>} : vector<8x256xbf16>, vector<256x512xbf16>, vector<8x512xf32> -> vector<8x512xf32>
    %90 = vector.broadcast %0 : vector<1x512xf32> to vector<8x512xf32>
    %91 = arith.addf %89, %90 : vector<8x512xf32>
    %92 = vector.extract_strided_slice %91 {offsets = [0, 0], sizes = [8, 128], strides = [1, 1]} : vector<8x512xf32> to vector<8x128xf32>
    %93 = arith.negf %92 : vector<8x128xf32>
    %94 = math.exp %93 : vector<8x128xf32>
    %cst_36 = arith.constant 1.000000e+00 : f32
    %95 = vector.broadcast %cst_36 : f32 to vector<8x128xf32>
    %96 = arith.addf %95, %94 : vector<8x128xf32>
    %97 = arith.divf %95, %96 : vector<8x128xf32>
    %98 = vector.extract_strided_slice %91 {offsets = [0, 128], sizes = [8, 128], strides = [1, 1]} : vector<8x512xf32> to vector<8x128xf32>
    %99 = arith.negf %98 : vector<8x128xf32>
    %100 = math.exp %99 : vector<8x128xf32>
    %cst_37 = arith.constant 1.000000e+00 : f32
    %101 = vector.broadcast %cst_37 : f32 to vector<8x128xf32>
    %102 = arith.addf %101, %100 : vector<8x128xf32>
    %103 = arith.divf %101, %102 : vector<8x128xf32>
    %104 = vector.extract_strided_slice %91 {offsets = [0, 256], sizes = [8, 128], strides = [1, 1]} : vector<8x512xf32> to vector<8x128xf32>
    %105 = math.tanh %104 : vector<8x128xf32>
    %106 = vector.extract_strided_slice %91 {offsets = [0, 384], sizes = [8, 128], strides = [1, 1]} : vector<8x512xf32> to vector<8x128xf32>
    %107 = arith.negf %106 : vector<8x128xf32>
    %108 = math.exp %107 : vector<8x128xf32>
    %cst_38 = arith.constant 1.000000e+00 : f32
    %109 = vector.broadcast %cst_38 : f32 to vector<8x128xf32>
    %110 = arith.addf %109, %108 : vector<8x128xf32>
    %111 = arith.divf %109, %110 : vector<8x128xf32>
    %112 = arith.mulf %103, %74 : vector<8x128xf32>
    %113 = arith.mulf %97, %105 : vector<8x128xf32>
    %114 = arith.addf %112, %113 : vector<8x128xf32>
    %115 = math.tanh %114 : vector<8x128xf32>
    %116 = arith.mulf %111, %115 : vector<8x128xf32>
    %c2_39 = arith.constant 2 : index
    %c0_40 = arith.constant 0 : index
    %c0_41 = arith.constant 0 : index
    %117 = vector.load %arg7[%c2_39, %c0_40, %c0_41] : memref<3x8x128xf32, #tpu.memory_space<vmem>>, vector<1x8x128xf32>
    %118 = vector.shape_cast %117 : vector<1x8x128xf32> to vector<8x128xf32>
    %119 = vector.shape_cast %116 : vector<8x128xf32> to vector<1x8x128xf32>
    tpu.vector_store %arg7[%c2_39, %c0_40, %c0_41], %119 {strides = array<i32>} : memref<3x8x128xf32, #tpu.memory_space<vmem>>, vector<1x8x128xf32>,
    %c2_42 = arith.constant 2 : index
    %c0_43 = arith.constant 0 : index
    %c0_44 = arith.constant 0 : index
    %120 = vector.load %arg8[%c2_42, %c0_43, %c0_44] : memref<3x8x128xf32, #tpu.memory_space<vmem>>, vector<1x8x128xf32>
    %121 = vector.shape_cast %120 : vector<1x8x128xf32> to vector<8x128xf32>
    %122 = vector.shape_cast %114 : vector<8x128xf32> to vector<1x8x128xf32>
    tpu.vector_store %arg8[%c2_42, %c0_43, %c0_44], %122 {strides = array<i32>} : memref<3x8x128xf32, #tpu.memory_space<vmem>>, vector<1x8x128xf32>,
    %c3 = arith.constant 3 : index
    %c0_45 = arith.constant 0 : index
    %c0_46 = arith.constant 0 : index
    %123 = vector.load %arg1[%c3, %c0_45, %c0_46] : memref<4x8x128xf32, #tpu.memory_space<vmem>>, vector<1x8x128xf32>
    %124 = vector.shape_cast %123 : vector<1x8x128xf32> to vector<8x128xf32>
    %125 = arith.truncf %124 : vector<8x128xf32> to vector<8x128xbf16>
    %126 = arith.truncf %116 : vector<8x128xf32> to vector<8x128xbf16>
    %127 = tpu.concatenate %125, %126 in 1 : vector<8x128xbf16>, vector<8x128xbf16> -> vector<8x256xbf16>
    %c0_47 = arith.constant 0 : index
    %c0_48 = arith.constant 0 : index
    %128 = vector.load %arg2[%c0_47, %c0_48] : memref<256x512xbf16, #tpu.memory_space<vmem>>, vector<256x512xbf16>
    %cst_49 = arith.constant dense<0.000000e+00> : vector<8x512xf32>
    %129 = tpu.matmul %127, %128, %cst_49 {dimension_numbers = #tpu.dot_dimension_numbers<[1], [0], [0], [1], [0, 0, 1, 1], [], []>} : vector<8x256xbf16>, vector<256x512xbf16>, vector<8x512xf32> -> vector<8x512xf32>
    %130 = vector.broadcast %0 : vector<1x512xf32> to vector<8x512xf32>
    %131 = arith.addf %129, %130 : vector<8x512xf32>
    %132 = vector.extract_strided_slice %131 {offsets = [0, 0], sizes = [8, 128], strides = [1, 1]} : vector<8x512xf32> to vector<8x128xf32>
    %133 = arith.negf %132 : vector<8x128xf32>
    %134 = math.exp %133 : vector<8x128xf32>
    %cst_50 = arith.constant 1.000000e+00 : f32
    %135 = vector.broadcast %cst_50 : f32 to vector<8x128xf32>
    %136 = arith.addf %135, %134 : vector<8x128xf32>
    %137 = arith.divf %135, %136 : vector<8x128xf32>
    %138 = vector.extract_strided_slice %131 {offsets = [0, 128], sizes = [8, 128], strides = [1, 1]} : vector<8x512xf32> to vector<8x128xf32>
    %139 = arith.negf %138 : vector<8x128xf32>
    %140 = math.exp %139 : vector<8x128xf32>
    %cst_51 = arith.constant 1.000000e+00 : f32
    %141 = vector.broadcast %cst_51 : f32 to vector<8x128xf32>
    %142 = arith.addf %141, %140 : vector<8x128xf32>
    %143 = arith.divf %141, %142 : vector<8x128xf32>
    %144 = vector.extract_strided_slice %131 {offsets = [0, 256], sizes = [8, 128], strides = [1, 1]} : vector<8x512xf32> to vector<8x128xf32>
    %145 = math.tanh %144 : vector<8x128xf32>
    %146 = vector.extract_strided_slice %131 {offsets = [0, 384], sizes = [8, 128], strides = [1, 1]} : vector<8x512xf32> to vector<8x128xf32>
    %147 = arith.negf %146 : vector<8x128xf32>
    %148 = math.exp %147 : vector<8x128xf32>
    %cst_52 = arith.constant 1.000000e+00 : f32
    %149 = vector.broadcast %cst_52 : f32 to vector<8x128xf32>
    %150 = arith.addf %149, %148 : vector<8x128xf32>
    %151 = arith.divf %149, %150 : vector<8x128xf32>
    %152 = arith.mulf %143, %114 : vector<8x128xf32>
    %153 = arith.mulf %137, %145 : vector<8x128xf32>
    %154 = arith.addf %152, %153 : vector<8x128xf32>
    %155 = math.tanh %154 : vector<8x128xf32>
    %156 = arith.mulf %151, %155 : vector<8x128xf32>
    %157 = tpu.concatenate %76, %116, %156 in 0 : vector<8x128xf32>, vector<8x128xf32>, vector<8x128xf32> -> vector<24x128xf32>
    %158 = arith.truncf %157 : vector<24x128xf32> to vector<24x128xbf16>
    %c0_53 = arith.constant 0 : index
    %c0_54 = arith.constant 0 : index
    %159 = vector.load %arg4[%c0_53, %c0_54] : memref<128x64xbf16, #tpu.memory_space<vmem>>, vector<128x64xbf16>
    %cst_55 = arith.constant dense<0.000000e+00> : vector<24x64xf32>
    %160 = tpu.matmul %158, %159, %cst_55 {dimension_numbers = #tpu.dot_dimension_numbers<[1], [0], [0], [1], [0, 0, 1, 1], [], []>} : vector<24x128xbf16>, vector<128x64xbf16>, vector<24x64xf32> -> vector<24x64xf32>
    %c0_56 = arith.constant 0 : index
    %c0_57 = arith.constant 0 : index
    %161 = vector.load %arg5[%c0_56, %c0_57] : memref<1x64xf32, #tpu.memory_space<vmem>>, vector<1x64xf32>
    %162 = vector.broadcast %161 : vector<1x64xf32> to vector<24x64xf32>
    %163 = arith.addf %160, %162 : vector<24x64xf32>
    %c0_58 = arith.constant 0 : index
    %c0_59 = arith.constant 0 : index
    %164 = vector.load %arg6[%c0_58, %c0_59] : memref<8x64xf32, #tpu.memory_space<vmem>>, vector<8x64xf32>
    %cst_60 = arith.constant 0.000000e+00 : f32
    %165 = vector.broadcast %cst_60 : f32 to vector<1x1xf32>
    %166 = vector.extract_strided_slice %163 {offsets = [0, 0], sizes = [8, 64], strides = [1, 1]} : vector<24x64xf32> to vector<8x64xf32>
    %167 = arith.subf %166, %164 : vector<8x64xf32>
    %168 = arith.mulf %167, %167 : vector<8x64xf32>
    %169 = vector.shape_cast %168 : vector<8x64xf32> to vector<1x8x64xf32>
    %cst_61 = arith.constant dense<0.000000e+00> : vector<1xf32>
    %170 = vector.multi_reduction <add>, %169, %cst_61 [1, 2] : vector<1x8x64xf32> to vector<1xf32>
    %171 = vector.shape_cast %170 : vector<1xf32> to vector<1x1x1xf32>
    %172 = vector.extract %171[0, 0, 0] : f32 from vector<1x1x1xf32>
    %173 = math.sqrt %172 : f32
    %174 = vector.broadcast %173 : f32 to vector<1x1xf32>
    %175 = arith.addf %165, %174 : vector<1x1xf32>
    %176 = vector.extract_strided_slice %163 {offsets = [8, 0], sizes = [8, 64], strides = [1, 1]} : vector<24x64xf32> to vector<8x64xf32>
    %177 = arith.subf %176, %164 : vector<8x64xf32>
    %178 = arith.mulf %177, %177 : vector<8x64xf32>
    %179 = vector.shape_cast %178 : vector<8x64xf32> to vector<1x8x64xf32>
    %cst_62 = arith.constant dense<0.000000e+00> : vector<1xf32>
    %180 = vector.multi_reduction <add>, %179, %cst_62 [1, 2] : vector<1x8x64xf32> to vector<1xf32>
    %181 = vector.shape_cast %180 : vector<1xf32> to vector<1x1x1xf32>
    %182 = vector.extract %181[0, 0, 0] : f32 from vector<1x1x1xf32>
    %183 = math.sqrt %182 : f32
    %184 = vector.broadcast %183 : f32 to vector<1x1xf32>
    %185 = arith.addf %175, %184 : vector<1x1xf32>
    %186 = vector.extract_strided_slice %163 {offsets = [16, 0], sizes = [8, 64], strides = [1, 1]} : vector<24x64xf32> to vector<8x64xf32>
    %187 = arith.subf %186, %164 : vector<8x64xf32>
    %188 = arith.mulf %187, %187 : vector<8x64xf32>
    %189 = vector.shape_cast %188 : vector<8x64xf32> to vector<1x8x64xf32>
    %cst_63 = arith.constant dense<0.000000e+00> : vector<1xf32>
    %190 = vector.multi_reduction <add>, %189, %cst_63 [1, 2] : vector<1x8x64xf32> to vector<1xf32>
    %191 = vector.shape_cast %190 : vector<1xf32> to vector<1x1x1xf32>
    %192 = vector.extract %191[0, 0, 0] : f32 from vector<1x1x1xf32>
    %193 = math.sqrt %192 : f32
    %194 = vector.broadcast %193 : f32 to vector<1x1xf32>
    %195 = arith.addf %185, %194 : vector<1x1xf32>
    %c0_64 = arith.constant 0 : index
    %c0_65 = arith.constant 0 : index
    %196 = vector.load %arg9[%c0_64, %c0_65] : memref<1x1xf32, #tpu.memory_space<vmem>>, vector<1x1xf32>
    tpu.vector_store %arg9[%c0_64, %c0_65], %195 {strides = array<i32>} : memref<1x1xf32, #tpu.memory_space<vmem>>, vector<1x1xf32>,
    return
  }
  func.func @transform_0(%arg0: i32) -> (i32, i32, i32) {
    %c0_i32 = arith.constant 0 : i32
    %c0_i32_0 = arith.constant 0 : i32
    %c0_i32_1 = arith.constant 0 : i32
    %c0_i32_2 = arith.constant 0 : i32
    return %c0_i32, %c0_i32_0, %c0_i32_1 : i32, i32, i32
  }
  func.func @transform_1(%arg0: i32) -> (i32, i32) {
    %c0_i32 = arith.constant 0 : i32
    %c0_i32_0 = arith.constant 0 : i32
    %c0_i32_1 = arith.constant 0 : i32
    return %c0_i32, %c0_i32_0 : i32, i32
  }
  func.func @transform_2(%arg0: i32) -> (i32, i32) {
    %c0_i32 = arith.constant 0 : i32
    %c0_i32_0 = arith.constant 0 : i32
    %c0_i32_1 = arith.constant 0 : i32
    return %c0_i32, %c0_i32_0 : i32, i32
  }
  func.func @transform_3(%arg0: i32) -> (i32, i32) {
    %c0_i32 = arith.constant 0 : i32
    %c0_i32_0 = arith.constant 0 : i32
    %c0_i32_1 = arith.constant 0 : i32
    return %c0_i32, %c0_i32_0 : i32, i32
  }
  func.func @transform_4(%arg0: i32) -> (i32, i32) {
    %c0_i32 = arith.constant 0 : i32
    %c0_i32_0 = arith.constant 0 : i32
    %c0_i32_1 = arith.constant 0 : i32
    return %c0_i32, %c0_i32_0 : i32, i32
  }
  func.func @transform_5(%arg0: i32) -> (i32, i32) {
    %c0_i32 = arith.constant 0 : i32
    %c0_i32_0 = arith.constant 0 : i32
    %c0_i32_1 = arith.constant 0 : i32
    return %c0_i32, %c0_i32_0 : i32, i32
  }
  func.func @transform_6(%arg0: i32) -> (i32, i32, i32) {
    %c0_i32 = arith.constant 0 : i32
    %c0_i32_0 = arith.constant 0 : i32
    %c0_i32_1 = arith.constant 0 : i32
    %c0_i32_2 = arith.constant 0 : i32
    return %c0_i32, %c0_i32_0, %c0_i32_1 : i32, i32, i32
  }
  func.func @transform_7(%arg0: i32) -> (i32, i32, i32) {
    %c0_i32 = arith.constant 0 : i32
    %c0_i32_0 = arith.constant 0 : i32
    %c0_i32_1 = arith.constant 0 : i32
    %c0_i32_2 = arith.constant 0 : i32
    return %c0_i32, %c0_i32_0, %c0_i32_1 : i32, i32, i32
  }
  func.func @transform_8(%arg0: i32) -> (i32, i32) {
    %c0_i32 = arith.constant 0 : i32
    %c0_i32_0 = arith.constant 0 : i32
    %c0_i32_1 = arith.constant 0 : i32
    return %c0_i32, %c0_i32_0 : i32, i32
  }
}

module attributes {stable_mosaic.version = 11 : i64} {
  func.func @decoder_loss_kernel(%arg0: i32, %arg1: memref<5x16x512xbf16, #tpu.memory_space<vmem>>, %arg2: memref<5x16x1xi32, #tpu.memory_space<vmem>>, %arg3: memref<16x128xf32, #tpu.memory_space<vmem>>, %arg4: memref<16x128xf32, #tpu.memory_space<vmem>>, %arg5: memref<128x512xbf16, #tpu.memory_space<vmem>>, %arg6: memref<128x256xbf16, #tpu.memory_space<vmem>>, %arg7: memref<1x256xf32, #tpu.memory_space<vmem>>, %arg8: memref<1x1x1xf32, #tpu.memory_space<vmem>>) attributes {dimension_semantics = [#tpu.dimension_semantics<parallel>], iteration_bounds = array<i64: 2>, scalar_prefetch = 0 : i64, scratch_operands = 0 : i64, tpu.core_type = #tpu.core_type<tc>, window_params = [{transform_indices = @transform_0, window_bounds = array<i64: 5, 16, 512>}, {transform_indices = @transform_1, window_bounds = array<i64: 5, 16, 1>}, {transform_indices = @transform_2, window_bounds = array<i64: 16, 128>}, {transform_indices = @transform_3, window_bounds = array<i64: 16, 128>}, {pipeline_mode = #tpu.pipeline_mode<synchronous>, transform_indices = @transform_4, window_bounds = array<i64: 128, 512>}, {pipeline_mode = #tpu.pipeline_mode<synchronous>, transform_indices = @transform_5, window_bounds = array<i64: 128, 256>}, {pipeline_mode = #tpu.pipeline_mode<synchronous>, transform_indices = @transform_6, window_bounds = array<i64: 1, 256>}, {transform_indices = @transform_7, window_bounds = array<i64: 1, 1, 1>}]} {
    %0 = tpu.iota {dimensions = array<i32: 1>} : vector<16x256xi32>
    %c0 = arith.constant 0 : index
    %c0_0 = arith.constant 0 : index
    %1 = vector.load %arg7[%c0, %c0_0] : memref<1x256xf32, #tpu.memory_space<vmem>>, vector<1x256xf32>
    %2 = vector.shape_cast %1 : vector<1x256xf32> to vector<1x256xf32>
    %3 = vector.broadcast %2 : vector<1x256xf32> to vector<16x256xf32>
    %cst = arith.constant 0.000000e+00 : f32
    %4 = vector.broadcast %cst : f32 to vector<16x1xf32>
    %c0_1 = arith.constant 0 : index
    %c0_2 = arith.constant 0 : index
    %5 = vector.load %arg3[%c0_1, %c0_2] : memref<16x128xf32, #tpu.memory_space<vmem>>, vector<16x128xf32>
    %c0_3 = arith.constant 0 : index
    %c0_4 = arith.constant 0 : index
    %6 = vector.load %arg4[%c0_3, %c0_4] : memref<16x128xf32, #tpu.memory_space<vmem>>, vector<16x128xf32>
    %c0_i32 = arith.constant 0 : i32
    %7 = arith.index_cast %c0_i32 : i32 to index
    %c0_5 = arith.constant 0 : index
    %c0_6 = arith.constant 0 : index
    %8 = vector.load %arg1[%7, %c0_5, %c0_6] : memref<5x16x512xbf16, #tpu.memory_space<vmem>>, vector<1x16x512xbf16>
    %9 = vector.shape_cast %8 : vector<1x16x512xbf16> to vector<16x512xbf16>
    %10 = arith.extf %9 : vector<16x512xbf16> to vector<16x512xf32>
    %11 = arith.truncf %5 : vector<16x128xf32> to vector<16x128xbf16>
    %c0_7 = arith.constant 0 : index
    %c0_8 = arith.constant 0 : index
    %12 = vector.load %arg5[%c0_7, %c0_8] : memref<128x512xbf16, #tpu.memory_space<vmem>>, vector<128x512xbf16>
    %cst_9 = arith.constant dense<0.000000e+00> : vector<16x512xf32>
    %13 = tpu.matmul %11, %12, %cst_9 {dimension_numbers = #tpu.dot_dimension_numbers<[1], [0], [0], [1], [0, 0, 1, 1], [], []>} : vector<16x128xbf16>, vector<128x512xbf16>, vector<16x512xf32> -> vector<16x512xf32>
    %14 = arith.addf %10, %13 : vector<16x512xf32>
    %15 = vector.extract_strided_slice %14 {offsets = [0, 0], sizes = [16, 128], strides = [1, 1]} : vector<16x512xf32> to vector<16x128xf32>
    %16 = arith.negf %15 : vector<16x128xf32>
    %17 = math.exp %16 : vector<16x128xf32>
    %cst_10 = arith.constant 1.000000e+00 : f32
    %18 = vector.broadcast %cst_10 : f32 to vector<16x128xf32>
    %19 = arith.addf %18, %17 : vector<16x128xf32>
    %20 = arith.divf %18, %19 : vector<16x128xf32>
    %21 = vector.extract_strided_slice %14 {offsets = [0, 128], sizes = [16, 128], strides = [1, 1]} : vector<16x512xf32> to vector<16x128xf32>
    %22 = arith.negf %21 : vector<16x128xf32>
    %23 = math.exp %22 : vector<16x128xf32>
    %cst_11 = arith.constant 1.000000e+00 : f32
    %24 = vector.broadcast %cst_11 : f32 to vector<16x128xf32>
    %25 = arith.addf %24, %23 : vector<16x128xf32>
    %26 = arith.divf %24, %25 : vector<16x128xf32>
    %27 = vector.extract_strided_slice %14 {offsets = [0, 256], sizes = [16, 128], strides = [1, 1]} : vector<16x512xf32> to vector<16x128xf32>
    %28 = math.tanh %27 : vector<16x128xf32>
    %29 = vector.extract_strided_slice %14 {offsets = [0, 384], sizes = [16, 128], strides = [1, 1]} : vector<16x512xf32> to vector<16x128xf32>
    %30 = arith.negf %29 : vector<16x128xf32>
    %31 = math.exp %30 : vector<16x128xf32>
    %cst_12 = arith.constant 1.000000e+00 : f32
    %32 = vector.broadcast %cst_12 : f32 to vector<16x128xf32>
    %33 = arith.addf %32, %31 : vector<16x128xf32>
    %34 = arith.divf %32, %33 : vector<16x128xf32>
    %35 = arith.mulf %26, %6 : vector<16x128xf32>
    %36 = arith.mulf %20, %28 : vector<16x128xf32>
    %37 = arith.addf %35, %36 : vector<16x128xf32>
    %38 = math.tanh %37 : vector<16x128xf32>
    %39 = arith.mulf %34, %38 : vector<16x128xf32>
    %40 = arith.truncf %39 : vector<16x128xf32> to vector<16x128xbf16>
    %c0_13 = arith.constant 0 : index
    %c0_14 = arith.constant 0 : index
    %41 = vector.load %arg6[%c0_13, %c0_14] : memref<128x256xbf16, #tpu.memory_space<vmem>>, vector<128x256xbf16>
    %cst_15 = arith.constant dense<0.000000e+00> : vector<16x256xf32>
    %42 = tpu.matmul %40, %41, %cst_15 {dimension_numbers = #tpu.dot_dimension_numbers<[1], [0], [0], [1], [0, 0, 1, 1], [], []>} : vector<16x128xbf16>, vector<128x256xbf16>, vector<16x256xf32> -> vector<16x256xf32>
    %43 = arith.addf %42, %3 : vector<16x256xf32>
    %cst_16 = arith.constant dense<0xFF800000> : vector<16xf32>
    %44 = vector.multi_reduction <maximumf>, %43, %cst_16 [1] : vector<16x256xf32> to vector<16xf32>
    %45 = vector.shape_cast %44 : vector<16xf32> to vector<16x1xf32>
    %46 = vector.broadcast %45 : vector<16x1xf32> to vector<16x256xf32>
    %47 = arith.subf %43, %46 : vector<16x256xf32>
    %48 = math.exp %47 : vector<16x256xf32>
    %cst_17 = arith.constant dense<0.000000e+00> : vector<16xf32>
    %49 = vector.multi_reduction <add>, %48, %cst_17 [1] : vector<16x256xf32> to vector<16xf32>
    %50 = vector.shape_cast %49 : vector<16xf32> to vector<16x1xf32>
    %51 = math.log %50 : vector<16x1xf32>
    %52 = arith.index_cast %c0_i32 : i32 to index
    %c0_18 = arith.constant 0 : index
    %c0_19 = arith.constant 0 : index
    %53 = vector.load %arg2[%52, %c0_18, %c0_19] : memref<5x16x1xi32, #tpu.memory_space<vmem>>, vector<1x16x1xi32>
    %54 = vector.shape_cast %53 : vector<1x16x1xi32> to vector<16x1xi32>
    %55 = vector.broadcast %54 : vector<16x1xi32> to vector<16x256xi32>
    %56 = arith.cmpi eq, %0, %55 : vector<16x256xi32>
    %cst_20 = arith.constant 0.000000e+00 : f32
    %57 = vector.broadcast %cst_20 : f32 to vector<16x256xf32>
    %58 = arith.select %56, %43, %57 : vector<16x256xi1>, vector<16x256xf32>
    %cst_21 = arith.constant dense<0.000000e+00> : vector<16xf32>
    %59 = vector.multi_reduction <add>, %58, %cst_21 [1] : vector<16x256xf32> to vector<16xf32>
    %60 = vector.shape_cast %59 : vector<16xf32> to vector<16x1xf32>
    %c0_i32_22 = arith.constant 0 : i32
    %61 = vector.broadcast %c0_i32_22 : i32 to vector<16x1xi32>
    %62 = arith.cmpi ne, %54, %61 : vector<16x1xi32>
    %63 = arith.extui %62 : vector<16x1xi1> to vector<16x1xi32>
    %64 = arith.sitofp %63 : vector<16x1xi32> to vector<16x1xf32>
    %65 = arith.addf %45, %51 : vector<16x1xf32>
    %66 = arith.subf %65, %60 : vector<16x1xf32>
    %67 = arith.mulf %64, %66 : vector<16x1xf32>
    %68 = arith.addf %4, %67 : vector<16x1xf32>
    %c1_i32 = arith.constant 1 : i32
    %69 = arith.index_cast %c1_i32 : i32 to index
    %c0_23 = arith.constant 0 : index
    %c0_24 = arith.constant 0 : index
    %70 = vector.load %arg1[%69, %c0_23, %c0_24] : memref<5x16x512xbf16, #tpu.memory_space<vmem>>, vector<1x16x512xbf16>
    %71 = vector.shape_cast %70 : vector<1x16x512xbf16> to vector<16x512xbf16>
    %72 = arith.extf %71 : vector<16x512xbf16> to vector<16x512xf32>
    %73 = arith.truncf %39 : vector<16x128xf32> to vector<16x128xbf16>
    %c0_25 = arith.constant 0 : index
    %c0_26 = arith.constant 0 : index
    %74 = vector.load %arg5[%c0_25, %c0_26] : memref<128x512xbf16, #tpu.memory_space<vmem>>, vector<128x512xbf16>
    %cst_27 = arith.constant dense<0.000000e+00> : vector<16x512xf32>
    %75 = tpu.matmul %73, %74, %cst_27 {dimension_numbers = #tpu.dot_dimension_numbers<[1], [0], [0], [1], [0, 0, 1, 1], [], []>} : vector<16x128xbf16>, vector<128x512xbf16>, vector<16x512xf32> -> vector<16x512xf32>
    %76 = arith.addf %72, %75 : vector<16x512xf32>
    %77 = vector.extract_strided_slice %76 {offsets = [0, 0], sizes = [16, 128], strides = [1, 1]} : vector<16x512xf32> to vector<16x128xf32>
    %78 = arith.negf %77 : vector<16x128xf32>
    %79 = math.exp %78 : vector<16x128xf32>
    %cst_28 = arith.constant 1.000000e+00 : f32
    %80 = vector.broadcast %cst_28 : f32 to vector<16x128xf32>
    %81 = arith.addf %80, %79 : vector<16x128xf32>
    %82 = arith.divf %80, %81 : vector<16x128xf32>
    %83 = vector.extract_strided_slice %76 {offsets = [0, 128], sizes = [16, 128], strides = [1, 1]} : vector<16x512xf32> to vector<16x128xf32>
    %84 = arith.negf %83 : vector<16x128xf32>
    %85 = math.exp %84 : vector<16x128xf32>
    %cst_29 = arith.constant 1.000000e+00 : f32
    %86 = vector.broadcast %cst_29 : f32 to vector<16x128xf32>
    %87 = arith.addf %86, %85 : vector<16x128xf32>
    %88 = arith.divf %86, %87 : vector<16x128xf32>
    %89 = vector.extract_strided_slice %76 {offsets = [0, 256], sizes = [16, 128], strides = [1, 1]} : vector<16x512xf32> to vector<16x128xf32>
    %90 = math.tanh %89 : vector<16x128xf32>
    %91 = vector.extract_strided_slice %76 {offsets = [0, 384], sizes = [16, 128], strides = [1, 1]} : vector<16x512xf32> to vector<16x128xf32>
    %92 = arith.negf %91 : vector<16x128xf32>
    %93 = math.exp %92 : vector<16x128xf32>
    %cst_30 = arith.constant 1.000000e+00 : f32
    %94 = vector.broadcast %cst_30 : f32 to vector<16x128xf32>
    %95 = arith.addf %94, %93 : vector<16x128xf32>
    %96 = arith.divf %94, %95 : vector<16x128xf32>
    %97 = arith.mulf %88, %37 : vector<16x128xf32>
    %98 = arith.mulf %82, %90 : vector<16x128xf32>
    %99 = arith.addf %97, %98 : vector<16x128xf32>
    %100 = math.tanh %99 : vector<16x128xf32>
    %101 = arith.mulf %96, %100 : vector<16x128xf32>
    %102 = arith.truncf %101 : vector<16x128xf32> to vector<16x128xbf16>
    %c0_31 = arith.constant 0 : index
    %c0_32 = arith.constant 0 : index
    %103 = vector.load %arg6[%c0_31, %c0_32] : memref<128x256xbf16, #tpu.memory_space<vmem>>, vector<128x256xbf16>
    %cst_33 = arith.constant dense<0.000000e+00> : vector<16x256xf32>
    %104 = tpu.matmul %102, %103, %cst_33 {dimension_numbers = #tpu.dot_dimension_numbers<[1], [0], [0], [1], [0, 0, 1, 1], [], []>} : vector<16x128xbf16>, vector<128x256xbf16>, vector<16x256xf32> -> vector<16x256xf32>
    %105 = arith.addf %104, %3 : vector<16x256xf32>
    %cst_34 = arith.constant dense<0xFF800000> : vector<16xf32>
    %106 = vector.multi_reduction <maximumf>, %105, %cst_34 [1] : vector<16x256xf32> to vector<16xf32>
    %107 = vector.shape_cast %106 : vector<16xf32> to vector<16x1xf32>
    %108 = vector.broadcast %107 : vector<16x1xf32> to vector<16x256xf32>
    %109 = arith.subf %105, %108 : vector<16x256xf32>
    %110 = math.exp %109 : vector<16x256xf32>
    %cst_35 = arith.constant dense<0.000000e+00> : vector<16xf32>
    %111 = vector.multi_reduction <add>, %110, %cst_35 [1] : vector<16x256xf32> to vector<16xf32>
    %112 = vector.shape_cast %111 : vector<16xf32> to vector<16x1xf32>
    %113 = math.log %112 : vector<16x1xf32>
    %114 = arith.index_cast %c1_i32 : i32 to index
    %c0_36 = arith.constant 0 : index
    %c0_37 = arith.constant 0 : index
    %115 = vector.load %arg2[%114, %c0_36, %c0_37] : memref<5x16x1xi32, #tpu.memory_space<vmem>>, vector<1x16x1xi32>
    %116 = vector.shape_cast %115 : vector<1x16x1xi32> to vector<16x1xi32>
    %117 = vector.broadcast %116 : vector<16x1xi32> to vector<16x256xi32>
    %118 = arith.cmpi eq, %0, %117 : vector<16x256xi32>
    %cst_38 = arith.constant 0.000000e+00 : f32
    %119 = vector.broadcast %cst_38 : f32 to vector<16x256xf32>
    %120 = arith.select %118, %105, %119 : vector<16x256xi1>, vector<16x256xf32>
    %cst_39 = arith.constant dense<0.000000e+00> : vector<16xf32>
    %121 = vector.multi_reduction <add>, %120, %cst_39 [1] : vector<16x256xf32> to vector<16xf32>
    %122 = vector.shape_cast %121 : vector<16xf32> to vector<16x1xf32>
    %c0_i32_40 = arith.constant 0 : i32
    %123 = vector.broadcast %c0_i32_40 : i32 to vector<16x1xi32>
    %124 = arith.cmpi ne, %116, %123 : vector<16x1xi32>
    %125 = arith.extui %124 : vector<16x1xi1> to vector<16x1xi32>
    %126 = arith.sitofp %125 : vector<16x1xi32> to vector<16x1xf32>
    %127 = arith.addf %107, %113 : vector<16x1xf32>
    %128 = arith.subf %127, %122 : vector<16x1xf32>
    %129 = arith.mulf %126, %128 : vector<16x1xf32>
    %130 = arith.addf %68, %129 : vector<16x1xf32>
    %c2_i32 = arith.constant 2 : i32
    %131 = arith.index_cast %c2_i32 : i32 to index
    %c0_41 = arith.constant 0 : index
    %c0_42 = arith.constant 0 : index
    %132 = vector.load %arg1[%131, %c0_41, %c0_42] : memref<5x16x512xbf16, #tpu.memory_space<vmem>>, vector<1x16x512xbf16>
    %133 = vector.shape_cast %132 : vector<1x16x512xbf16> to vector<16x512xbf16>
    %134 = arith.extf %133 : vector<16x512xbf16> to vector<16x512xf32>
    %135 = arith.truncf %101 : vector<16x128xf32> to vector<16x128xbf16>
    %c0_43 = arith.constant 0 : index
    %c0_44 = arith.constant 0 : index
    %136 = vector.load %arg5[%c0_43, %c0_44] : memref<128x512xbf16, #tpu.memory_space<vmem>>, vector<128x512xbf16>
    %cst_45 = arith.constant dense<0.000000e+00> : vector<16x512xf32>
    %137 = tpu.matmul %135, %136, %cst_45 {dimension_numbers = #tpu.dot_dimension_numbers<[1], [0], [0], [1], [0, 0, 1, 1], [], []>} : vector<16x128xbf16>, vector<128x512xbf16>, vector<16x512xf32> -> vector<16x512xf32>
    %138 = arith.addf %134, %137 : vector<16x512xf32>
    %139 = vector.extract_strided_slice %138 {offsets = [0, 0], sizes = [16, 128], strides = [1, 1]} : vector<16x512xf32> to vector<16x128xf32>
    %140 = arith.negf %139 : vector<16x128xf32>
    %141 = math.exp %140 : vector<16x128xf32>
    %cst_46 = arith.constant 1.000000e+00 : f32
    %142 = vector.broadcast %cst_46 : f32 to vector<16x128xf32>
    %143 = arith.addf %142, %141 : vector<16x128xf32>
    %144 = arith.divf %142, %143 : vector<16x128xf32>
    %145 = vector.extract_strided_slice %138 {offsets = [0, 128], sizes = [16, 128], strides = [1, 1]} : vector<16x512xf32> to vector<16x128xf32>
    %146 = arith.negf %145 : vector<16x128xf32>
    %147 = math.exp %146 : vector<16x128xf32>
    %cst_47 = arith.constant 1.000000e+00 : f32
    %148 = vector.broadcast %cst_47 : f32 to vector<16x128xf32>
    %149 = arith.addf %148, %147 : vector<16x128xf32>
    %150 = arith.divf %148, %149 : vector<16x128xf32>
    %151 = vector.extract_strided_slice %138 {offsets = [0, 256], sizes = [16, 128], strides = [1, 1]} : vector<16x512xf32> to vector<16x128xf32>
    %152 = math.tanh %151 : vector<16x128xf32>
    %153 = vector.extract_strided_slice %138 {offsets = [0, 384], sizes = [16, 128], strides = [1, 1]} : vector<16x512xf32> to vector<16x128xf32>
    %154 = arith.negf %153 : vector<16x128xf32>
    %155 = math.exp %154 : vector<16x128xf32>
    %cst_48 = arith.constant 1.000000e+00 : f32
    %156 = vector.broadcast %cst_48 : f32 to vector<16x128xf32>
    %157 = arith.addf %156, %155 : vector<16x128xf32>
    %158 = arith.divf %156, %157 : vector<16x128xf32>
    %159 = arith.mulf %150, %99 : vector<16x128xf32>
    %160 = arith.mulf %144, %152 : vector<16x128xf32>
    %161 = arith.addf %159, %160 : vector<16x128xf32>
    %162 = math.tanh %161 : vector<16x128xf32>
    %163 = arith.mulf %158, %162 : vector<16x128xf32>
    %164 = arith.truncf %163 : vector<16x128xf32> to vector<16x128xbf16>
    %c0_49 = arith.constant 0 : index
    %c0_50 = arith.constant 0 : index
    %165 = vector.load %arg6[%c0_49, %c0_50] : memref<128x256xbf16, #tpu.memory_space<vmem>>, vector<128x256xbf16>
    %cst_51 = arith.constant dense<0.000000e+00> : vector<16x256xf32>
    %166 = tpu.matmul %164, %165, %cst_51 {dimension_numbers = #tpu.dot_dimension_numbers<[1], [0], [0], [1], [0, 0, 1, 1], [], []>} : vector<16x128xbf16>, vector<128x256xbf16>, vector<16x256xf32> -> vector<16x256xf32>
    %167 = arith.addf %166, %3 : vector<16x256xf32>
    %cst_52 = arith.constant dense<0xFF800000> : vector<16xf32>
    %168 = vector.multi_reduction <maximumf>, %167, %cst_52 [1] : vector<16x256xf32> to vector<16xf32>
    %169 = vector.shape_cast %168 : vector<16xf32> to vector<16x1xf32>
    %170 = vector.broadcast %169 : vector<16x1xf32> to vector<16x256xf32>
    %171 = arith.subf %167, %170 : vector<16x256xf32>
    %172 = math.exp %171 : vector<16x256xf32>
    %cst_53 = arith.constant dense<0.000000e+00> : vector<16xf32>
    %173 = vector.multi_reduction <add>, %172, %cst_53 [1] : vector<16x256xf32> to vector<16xf32>
    %174 = vector.shape_cast %173 : vector<16xf32> to vector<16x1xf32>
    %175 = math.log %174 : vector<16x1xf32>
    %176 = arith.index_cast %c2_i32 : i32 to index
    %c0_54 = arith.constant 0 : index
    %c0_55 = arith.constant 0 : index
    %177 = vector.load %arg2[%176, %c0_54, %c0_55] : memref<5x16x1xi32, #tpu.memory_space<vmem>>, vector<1x16x1xi32>
    %178 = vector.shape_cast %177 : vector<1x16x1xi32> to vector<16x1xi32>
    %179 = vector.broadcast %178 : vector<16x1xi32> to vector<16x256xi32>
    %180 = arith.cmpi eq, %0, %179 : vector<16x256xi32>
    %cst_56 = arith.constant 0.000000e+00 : f32
    %181 = vector.broadcast %cst_56 : f32 to vector<16x256xf32>
    %182 = arith.select %180, %167, %181 : vector<16x256xi1>, vector<16x256xf32>
    %cst_57 = arith.constant dense<0.000000e+00> : vector<16xf32>
    %183 = vector.multi_reduction <add>, %182, %cst_57 [1] : vector<16x256xf32> to vector<16xf32>
    %184 = vector.shape_cast %183 : vector<16xf32> to vector<16x1xf32>
    %c0_i32_58 = arith.constant 0 : i32
    %185 = vector.broadcast %c0_i32_58 : i32 to vector<16x1xi32>
    %186 = arith.cmpi ne, %178, %185 : vector<16x1xi32>
    %187 = arith.extui %186 : vector<16x1xi1> to vector<16x1xi32>
    %188 = arith.sitofp %187 : vector<16x1xi32> to vector<16x1xf32>
    %189 = arith.addf %169, %175 : vector<16x1xf32>
    %190 = arith.subf %189, %184 : vector<16x1xf32>
    %191 = arith.mulf %188, %190 : vector<16x1xf32>
    %192 = arith.addf %130, %191 : vector<16x1xf32>
    %c3_i32 = arith.constant 3 : i32
    %193 = arith.index_cast %c3_i32 : i32 to index
    %c0_59 = arith.constant 0 : index
    %c0_60 = arith.constant 0 : index
    %194 = vector.load %arg1[%193, %c0_59, %c0_60] : memref<5x16x512xbf16, #tpu.memory_space<vmem>>, vector<1x16x512xbf16>
    %195 = vector.shape_cast %194 : vector<1x16x512xbf16> to vector<16x512xbf16>
    %196 = arith.extf %195 : vector<16x512xbf16> to vector<16x512xf32>
    %197 = arith.truncf %163 : vector<16x128xf32> to vector<16x128xbf16>
    %c0_61 = arith.constant 0 : index
    %c0_62 = arith.constant 0 : index
    %198 = vector.load %arg5[%c0_61, %c0_62] : memref<128x512xbf16, #tpu.memory_space<vmem>>, vector<128x512xbf16>
    %cst_63 = arith.constant dense<0.000000e+00> : vector<16x512xf32>
    %199 = tpu.matmul %197, %198, %cst_63 {dimension_numbers = #tpu.dot_dimension_numbers<[1], [0], [0], [1], [0, 0, 1, 1], [], []>} : vector<16x128xbf16>, vector<128x512xbf16>, vector<16x512xf32> -> vector<16x512xf32>
    %200 = arith.addf %196, %199 : vector<16x512xf32>
    %201 = vector.extract_strided_slice %200 {offsets = [0, 0], sizes = [16, 128], strides = [1, 1]} : vector<16x512xf32> to vector<16x128xf32>
    %202 = arith.negf %201 : vector<16x128xf32>
    %203 = math.exp %202 : vector<16x128xf32>
    %cst_64 = arith.constant 1.000000e+00 : f32
    %204 = vector.broadcast %cst_64 : f32 to vector<16x128xf32>
    %205 = arith.addf %204, %203 : vector<16x128xf32>
    %206 = arith.divf %204, %205 : vector<16x128xf32>
    %207 = vector.extract_strided_slice %200 {offsets = [0, 128], sizes = [16, 128], strides = [1, 1]} : vector<16x512xf32> to vector<16x128xf32>
    %208 = arith.negf %207 : vector<16x128xf32>
    %209 = math.exp %208 : vector<16x128xf32>
    %cst_65 = arith.constant 1.000000e+00 : f32
    %210 = vector.broadcast %cst_65 : f32 to vector<16x128xf32>
    %211 = arith.addf %210, %209 : vector<16x128xf32>
    %212 = arith.divf %210, %211 : vector<16x128xf32>
    %213 = vector.extract_strided_slice %200 {offsets = [0, 256], sizes = [16, 128], strides = [1, 1]} : vector<16x512xf32> to vector<16x128xf32>
    %214 = math.tanh %213 : vector<16x128xf32>
    %215 = vector.extract_strided_slice %200 {offsets = [0, 384], sizes = [16, 128], strides = [1, 1]} : vector<16x512xf32> to vector<16x128xf32>
    %216 = arith.negf %215 : vector<16x128xf32>
    %217 = math.exp %216 : vector<16x128xf32>
    %cst_66 = arith.constant 1.000000e+00 : f32
    %218 = vector.broadcast %cst_66 : f32 to vector<16x128xf32>
    %219 = arith.addf %218, %217 : vector<16x128xf32>
    %220 = arith.divf %218, %219 : vector<16x128xf32>
    %221 = arith.mulf %212, %161 : vector<16x128xf32>
    %222 = arith.mulf %206, %214 : vector<16x128xf32>
    %223 = arith.addf %221, %222 : vector<16x128xf32>
    %224 = math.tanh %223 : vector<16x128xf32>
    %225 = arith.mulf %220, %224 : vector<16x128xf32>
    %226 = arith.truncf %225 : vector<16x128xf32> to vector<16x128xbf16>
    %c0_67 = arith.constant 0 : index
    %c0_68 = arith.constant 0 : index
    %227 = vector.load %arg6[%c0_67, %c0_68] : memref<128x256xbf16, #tpu.memory_space<vmem>>, vector<128x256xbf16>
    %cst_69 = arith.constant dense<0.000000e+00> : vector<16x256xf32>
    %228 = tpu.matmul %226, %227, %cst_69 {dimension_numbers = #tpu.dot_dimension_numbers<[1], [0], [0], [1], [0, 0, 1, 1], [], []>} : vector<16x128xbf16>, vector<128x256xbf16>, vector<16x256xf32> -> vector<16x256xf32>
    %229 = arith.addf %228, %3 : vector<16x256xf32>
    %cst_70 = arith.constant dense<0xFF800000> : vector<16xf32>
    %230 = vector.multi_reduction <maximumf>, %229, %cst_70 [1] : vector<16x256xf32> to vector<16xf32>
    %231 = vector.shape_cast %230 : vector<16xf32> to vector<16x1xf32>
    %232 = vector.broadcast %231 : vector<16x1xf32> to vector<16x256xf32>
    %233 = arith.subf %229, %232 : vector<16x256xf32>
    %234 = math.exp %233 : vector<16x256xf32>
    %cst_71 = arith.constant dense<0.000000e+00> : vector<16xf32>
    %235 = vector.multi_reduction <add>, %234, %cst_71 [1] : vector<16x256xf32> to vector<16xf32>
    %236 = vector.shape_cast %235 : vector<16xf32> to vector<16x1xf32>
    %237 = math.log %236 : vector<16x1xf32>
    %238 = arith.index_cast %c3_i32 : i32 to index
    %c0_72 = arith.constant 0 : index
    %c0_73 = arith.constant 0 : index
    %239 = vector.load %arg2[%238, %c0_72, %c0_73] : memref<5x16x1xi32, #tpu.memory_space<vmem>>, vector<1x16x1xi32>
    %240 = vector.shape_cast %239 : vector<1x16x1xi32> to vector<16x1xi32>
    %241 = vector.broadcast %240 : vector<16x1xi32> to vector<16x256xi32>
    %242 = arith.cmpi eq, %0, %241 : vector<16x256xi32>
    %cst_74 = arith.constant 0.000000e+00 : f32
    %243 = vector.broadcast %cst_74 : f32 to vector<16x256xf32>
    %244 = arith.select %242, %229, %243 : vector<16x256xi1>, vector<16x256xf32>
    %cst_75 = arith.constant dense<0.000000e+00> : vector<16xf32>
    %245 = vector.multi_reduction <add>, %244, %cst_75 [1] : vector<16x256xf32> to vector<16xf32>
    %246 = vector.shape_cast %245 : vector<16xf32> to vector<16x1xf32>
    %c0_i32_76 = arith.constant 0 : i32
    %247 = vector.broadcast %c0_i32_76 : i32 to vector<16x1xi32>
    %248 = arith.cmpi ne, %240, %247 : vector<16x1xi32>
    %249 = arith.extui %248 : vector<16x1xi1> to vector<16x1xi32>
    %250 = arith.sitofp %249 : vector<16x1xi32> to vector<16x1xf32>
    %251 = arith.addf %231, %237 : vector<16x1xf32>
    %252 = arith.subf %251, %246 : vector<16x1xf32>
    %253 = arith.mulf %250, %252 : vector<16x1xf32>
    %254 = arith.addf %192, %253 : vector<16x1xf32>
    %c4_i32 = arith.constant 4 : i32
    %255 = arith.index_cast %c4_i32 : i32 to index
    %c0_77 = arith.constant 0 : index
    %c0_78 = arith.constant 0 : index
    %256 = vector.load %arg1[%255, %c0_77, %c0_78] : memref<5x16x512xbf16, #tpu.memory_space<vmem>>, vector<1x16x512xbf16>
    %257 = vector.shape_cast %256 : vector<1x16x512xbf16> to vector<16x512xbf16>
    %258 = arith.extf %257 : vector<16x512xbf16> to vector<16x512xf32>
    %259 = arith.truncf %225 : vector<16x128xf32> to vector<16x128xbf16>
    %c0_79 = arith.constant 0 : index
    %c0_80 = arith.constant 0 : index
    %260 = vector.load %arg5[%c0_79, %c0_80] : memref<128x512xbf16, #tpu.memory_space<vmem>>, vector<128x512xbf16>
    %cst_81 = arith.constant dense<0.000000e+00> : vector<16x512xf32>
    %261 = tpu.matmul %259, %260, %cst_81 {dimension_numbers = #tpu.dot_dimension_numbers<[1], [0], [0], [1], [0, 0, 1, 1], [], []>} : vector<16x128xbf16>, vector<128x512xbf16>, vector<16x512xf32> -> vector<16x512xf32>
    %262 = arith.addf %258, %261 : vector<16x512xf32>
    %263 = vector.extract_strided_slice %262 {offsets = [0, 0], sizes = [16, 128], strides = [1, 1]} : vector<16x512xf32> to vector<16x128xf32>
    %264 = arith.negf %263 : vector<16x128xf32>
    %265 = math.exp %264 : vector<16x128xf32>
    %cst_82 = arith.constant 1.000000e+00 : f32
    %266 = vector.broadcast %cst_82 : f32 to vector<16x128xf32>
    %267 = arith.addf %266, %265 : vector<16x128xf32>
    %268 = arith.divf %266, %267 : vector<16x128xf32>
    %269 = vector.extract_strided_slice %262 {offsets = [0, 128], sizes = [16, 128], strides = [1, 1]} : vector<16x512xf32> to vector<16x128xf32>
    %270 = arith.negf %269 : vector<16x128xf32>
    %271 = math.exp %270 : vector<16x128xf32>
    %cst_83 = arith.constant 1.000000e+00 : f32
    %272 = vector.broadcast %cst_83 : f32 to vector<16x128xf32>
    %273 = arith.addf %272, %271 : vector<16x128xf32>
    %274 = arith.divf %272, %273 : vector<16x128xf32>
    %275 = vector.extract_strided_slice %262 {offsets = [0, 256], sizes = [16, 128], strides = [1, 1]} : vector<16x512xf32> to vector<16x128xf32>
    %276 = math.tanh %275 : vector<16x128xf32>
    %277 = vector.extract_strided_slice %262 {offsets = [0, 384], sizes = [16, 128], strides = [1, 1]} : vector<16x512xf32> to vector<16x128xf32>
    %278 = arith.negf %277 : vector<16x128xf32>
    %279 = math.exp %278 : vector<16x128xf32>
    %cst_84 = arith.constant 1.000000e+00 : f32
    %280 = vector.broadcast %cst_84 : f32 to vector<16x128xf32>
    %281 = arith.addf %280, %279 : vector<16x128xf32>
    %282 = arith.divf %280, %281 : vector<16x128xf32>
    %283 = arith.mulf %274, %223 : vector<16x128xf32>
    %284 = arith.mulf %268, %276 : vector<16x128xf32>
    %285 = arith.addf %283, %284 : vector<16x128xf32>
    %286 = math.tanh %285 : vector<16x128xf32>
    %287 = arith.mulf %282, %286 : vector<16x128xf32>
    %288 = arith.truncf %287 : vector<16x128xf32> to vector<16x128xbf16>
    %c0_85 = arith.constant 0 : index
    %c0_86 = arith.constant 0 : index
    %289 = vector.load %arg6[%c0_85, %c0_86] : memref<128x256xbf16, #tpu.memory_space<vmem>>, vector<128x256xbf16>
    %cst_87 = arith.constant dense<0.000000e+00> : vector<16x256xf32>
    %290 = tpu.matmul %288, %289, %cst_87 {dimension_numbers = #tpu.dot_dimension_numbers<[1], [0], [0], [1], [0, 0, 1, 1], [], []>} : vector<16x128xbf16>, vector<128x256xbf16>, vector<16x256xf32> -> vector<16x256xf32>
    %291 = arith.addf %290, %3 : vector<16x256xf32>
    %cst_88 = arith.constant dense<0xFF800000> : vector<16xf32>
    %292 = vector.multi_reduction <maximumf>, %291, %cst_88 [1] : vector<16x256xf32> to vector<16xf32>
    %293 = vector.shape_cast %292 : vector<16xf32> to vector<16x1xf32>
    %294 = vector.broadcast %293 : vector<16x1xf32> to vector<16x256xf32>
    %295 = arith.subf %291, %294 : vector<16x256xf32>
    %296 = math.exp %295 : vector<16x256xf32>
    %cst_89 = arith.constant dense<0.000000e+00> : vector<16xf32>
    %297 = vector.multi_reduction <add>, %296, %cst_89 [1] : vector<16x256xf32> to vector<16xf32>
    %298 = vector.shape_cast %297 : vector<16xf32> to vector<16x1xf32>
    %299 = math.log %298 : vector<16x1xf32>
    %300 = arith.index_cast %c4_i32 : i32 to index
    %c0_90 = arith.constant 0 : index
    %c0_91 = arith.constant 0 : index
    %301 = vector.load %arg2[%300, %c0_90, %c0_91] : memref<5x16x1xi32, #tpu.memory_space<vmem>>, vector<1x16x1xi32>
    %302 = vector.shape_cast %301 : vector<1x16x1xi32> to vector<16x1xi32>
    %303 = vector.broadcast %302 : vector<16x1xi32> to vector<16x256xi32>
    %304 = arith.cmpi eq, %0, %303 : vector<16x256xi32>
    %cst_92 = arith.constant 0.000000e+00 : f32
    %305 = vector.broadcast %cst_92 : f32 to vector<16x256xf32>
    %306 = arith.select %304, %291, %305 : vector<16x256xi1>, vector<16x256xf32>
    %cst_93 = arith.constant dense<0.000000e+00> : vector<16xf32>
    %307 = vector.multi_reduction <add>, %306, %cst_93 [1] : vector<16x256xf32> to vector<16xf32>
    %308 = vector.shape_cast %307 : vector<16xf32> to vector<16x1xf32>
    %c0_i32_94 = arith.constant 0 : i32
    %309 = vector.broadcast %c0_i32_94 : i32 to vector<16x1xi32>
    %310 = arith.cmpi ne, %302, %309 : vector<16x1xi32>
    %311 = arith.extui %310 : vector<16x1xi1> to vector<16x1xi32>
    %312 = arith.sitofp %311 : vector<16x1xi32> to vector<16x1xf32>
    %313 = arith.addf %293, %299 : vector<16x1xf32>
    %314 = arith.subf %313, %308 : vector<16x1xf32>
    %315 = arith.mulf %312, %314 : vector<16x1xf32>
    %316 = arith.addf %254, %315 : vector<16x1xf32>
    %c5_i32 = arith.constant 5 : i32
    %317 = vector.shape_cast %316 : vector<16x1xf32> to vector<1x16x1xf32>
    %cst_95 = arith.constant dense<0.000000e+00> : vector<1xf32>
    %318 = vector.multi_reduction <add>, %317, %cst_95 [1, 2] : vector<1x16x1xf32> to vector<1xf32>
    %319 = vector.shape_cast %318 : vector<1xf32> to vector<1x1x1xf32>
    %320 = vector.extract %319[0, 0, 0] : f32 from vector<1x1x1xf32>
    %321 = vector.broadcast %320 : f32 to vector<1x1x1xf32>
    %c0_96 = arith.constant 0 : index
    %c0_97 = arith.constant 0 : index
    %c0_98 = arith.constant 0 : index
    %322 = vector.load %arg8[%c0_96, %c0_97, %c0_98] : memref<1x1x1xf32, #tpu.memory_space<vmem>>, vector<1x1x1xf32>
    tpu.vector_store %arg8[%c0_96, %c0_97, %c0_98], %321 {strides = array<i32>} : memref<1x1x1xf32, #tpu.memory_space<vmem>>, vector<1x1x1xf32>,
    return
  }
  func.func @transform_0(%arg0: i32) -> (i32, i32, i32) {
    %c0_i32 = arith.constant 0 : i32
    %c0_i32_0 = arith.constant 0 : i32
    %c0_i32_1 = arith.constant 0 : i32
    return %c0_i32, %arg0, %c0_i32_0 : i32, i32, i32
  }
  func.func @transform_1(%arg0: i32) -> (i32, i32, i32) {
    %c0_i32 = arith.constant 0 : i32
    %c0_i32_0 = arith.constant 0 : i32
    %c0_i32_1 = arith.constant 0 : i32
    return %c0_i32, %arg0, %c0_i32_0 : i32, i32, i32
  }
  func.func @transform_2(%arg0: i32) -> (i32, i32) {
    %c0_i32 = arith.constant 0 : i32
    %c0_i32_0 = arith.constant 0 : i32
    return %arg0, %c0_i32 : i32, i32
  }
  func.func @transform_3(%arg0: i32) -> (i32, i32) {
    %c0_i32 = arith.constant 0 : i32
    %c0_i32_0 = arith.constant 0 : i32
    return %arg0, %c0_i32 : i32, i32
  }
  func.func @transform_4(%arg0: i32) -> (i32, i32) {
    %c0_i32 = arith.constant 0 : i32
    %c0_i32_0 = arith.constant 0 : i32
    %c0_i32_1 = arith.constant 0 : i32
    return %c0_i32, %c0_i32_0 : i32, i32
  }
  func.func @transform_5(%arg0: i32) -> (i32, i32) {
    %c0_i32 = arith.constant 0 : i32
    %c0_i32_0 = arith.constant 0 : i32
    %c0_i32_1 = arith.constant 0 : i32
    return %c0_i32, %c0_i32_0 : i32, i32
  }
  func.func @transform_6(%arg0: i32) -> (i32, i32) {
    %c0_i32 = arith.constant 0 : i32
    %c0_i32_0 = arith.constant 0 : i32
    %c0_i32_1 = arith.constant 0 : i32
    return %c0_i32, %c0_i32_0 : i32, i32
  }
  func.func @transform_7(%arg0: i32) -> (i32, i32, i32) {
    %c0_i32 = arith.constant 0 : i32
    %c0_i32_0 = arith.constant 0 : i32
    %c0_i32_1 = arith.constant 0 : i32
    return %arg0, %c0_i32, %c0_i32_0 : i32, i32, i32
  }
}

</mosaic_0001>

<llo_original>
// kernel: lt.30
$region0: #{lt.30}
  %s0 = inlined_call_operand.vmem [shape: s32[8,3], index: 0, kind: input, shape index: {}]
  %s1 = inlined_call_operand.vmem [shape: s32[24], index: 1, kind: output, shape index: {}]
  $region1: #{lt.30} parent=0
    #allocation0 [shape = 'u8[4096]{0}', space=vmem, size = 0x1000, scoped, tag = 'scoped mem for output reshape']
    %v2 = vld [vmem:[%s0] sm:$0x1]
    %vm3 = vcmask 23552
    %4 = vst.msk [vmem:[#allocation0] sm:$0x1] %vm3, %v2
    %s5 = scalar_lea.vmem %s0, 7
    %v6 = vld [vmem:[%s5] sm:$0x1]
    %7 = vrot.lane.b32.xlu0 %v6, 21
    %v8 = vpop.permute.xlu0 %7
    %vm9 = vcmask 195752
    %10 = vst.msk [vmem:[#allocation0] sm:$0x1] %vm9, %v8
    %s11 = scalar_lea.vmem %s0, 6
    %v12 = vld [vmem:[%s11] sm:$0x1]
    %13 = vrot.lane.b32.xlu0 %v12, 18
    %v14 = vpop.permute.xlu0 %13
    %vm15 = vcmask 171152
    %16 = vst.msk [vmem:[#allocation0] sm:$0x1] %vm15, %v14
    %s17 = scalar_lea.vmem %s0, 5
    %v18 = vld [vmem:[%s17] sm:$0x1]
    %19 = vrot.lane.b32.xlu0 %v18, 15
    %v20 = vpop.permute.xlu0 %19
    %vm21 = vcmask 146552
    %22 = vst.msk [vmem:[#allocation0] sm:$0x1] %vm21, %v20
    %s23 = scalar_lea.vmem %s0, 4
    %v24 = vld [vmem:[%s23] sm:$0x1]
    %25 = vrot.lane.b32.xlu0 %v24, 12
    %v26 = vpop.permute.xlu0 %25
    %vm27 = vcmask 121952
    %28 = vst.msk [vmem:[#allocation0] sm:$0x1] %vm27, %v26
    %s29 = scalar_lea.vmem %s0, 3
    %v30 = vld [vmem:[%s29] sm:$0x1]
    %31 = vrot.lane.b32.xlu0 %v30, 9
    %v32 = vpop.permute.xlu0 %31
    %vm33 = vcmask 97352
    %34 = vst.msk [vmem:[#allocation0] sm:$0x1] %vm33, %v32
    %s35 = scalar_lea.vmem %s0, 2
    %v36 = vld [vmem:[%s35] sm:$0x1]
    %37 = vrot.lane.b32.xlu0 %v36, 6
    %v38 = vpop.permute.xlu0 %37
    %vm39 = vcmask 72752
    %40 = vst.msk [vmem:[#allocation0] sm:$0x1] %vm39, %v38
    %s41 = scalar_lea.vmem %s0, 1
    %v42 = vld [vmem:[%s41] sm:$0x1]
    %43 = vrot.lane.b32.xlu0 %v42, 3
    %v44 = vpop.permute.xlu0 %43
    %vm45 = vcmask 48152
    %46 = vst.msk [vmem:[#allocation0] sm:$0x1] %vm45, %v44
    %s48 = ssub.s32 2, 1
    %v49 = vld [vmem:[#allocation0] sm:%s48]
    %s51 = ssub.s32 2, 1
    %52 = vst [vmem:[%s1] sm:%s51] %v49

// kernel: qbot_forward.3
$region0: #{qbot_forward.3}
  #allocation0 [shape = 'u32[]', space=smem, size = 0x4, offset = 0x4, fixed_abs, tag = 'smem constant byte address 0x4 - core index']
  #allocation1 [shape = 'u32[72,128]{1,0:T(1,128)}', space=vmem, size = 0x9000, scoped, tag = 'internal scratch']
  %s0 = inlined_call_operand.vmem [shape: bf16[11,32,512], index: 0, kind: input, shape index: {}]
  %s1 = inlined_call_operand.vmem [shape: s32[32,1], index: 1, kind: input, shape index: {}]
  %s2 = inlined_call_operand.vmem [shape: bf16[128,512], index: 2, kind: input, shape index: {}]
  %s3 = inlined_call_operand.vmem [shape: f32[32,128], index: 3, kind: output, shape index: {0}]
  %s4 = inlined_call_operand.hbm [shape: f32[32,128], index: 4, kind: output, shape index: {1}]
  %5 = xla_tuple %s3, %s4
  %s6 = sld [smem:[#allocation0]]
  $region76: #{qbot_forward.3} parent=0
    _
  %s8 = ssub.s32 1, %s6
  %s9 = scalar_select 0, %s8, %s6
  $region1: #{qbot_forward.3} parent=0
    #allocation2 [shape = 'u8[360448]{0}', space=vmem, size = 0x58000, scoped, tag = 'input window, operand 0']
    #allocation3 [shape = 'u8[16384]{0}', space=vmem, size = 0x4000, scoped, tag = 'output window, operand 1']
    #allocation4 [shape = 's32[2]{0}', space=sflag, size = 0x8, scoped, tag = 'scoped memory for qbot_forward.3']
    %10 = vsyncpa [#allocation4], 0
    %s11 = scalar_lea.sflag [#allocation4], 1
    %12 = vsyncpa %s11, 0
    loop: start=0, step=1, limit=4
    $region2: #{qbot_forward.3} parent=1 // loop_pre_header
      _
    $region3: #{qbot_forward.3} parent=1 // loop_header
      %s14 = sphi 0, %s18
      %p15 = scmp.ge.s32.totalorder %s14, 4
      %s24 = sphi 0, %s26
      %s27 = sphi 0, %s24
      %s28 = sphi 0, %s27
      %s44 = sphi 0, %s28
      %s50 = sphi 0, %s52
      %s53 = sphi 0, %s50
      %s54 = sphi 0, %s53
      %s70 = sphi 0, %s54
      %s74 = sphi 0, %s74
      %s76 = sphi 0, %s74
      %s77 = sphi 0, %s76
      %s91 = sphi 0, %s77
      %s97 = sphi 0, %s99
      %s100 = sphi 0, %s97
      %s101 = sphi 0, %s100
      %s117 = sphi 0, %s101
      %s123 = sphi 0, %s125
      %s126 = sphi 0, %s123
      %s127 = sphi 0, %s126
      %s143 = sphi 0, %s127
    $region4: #{qbot_forward.3} parent=1 // loop_header_branch
      %17 = sbr.rel (%p15) target = $region8
    $region5: #{qbot_forward.3} parent=1 // loop_body
      %s19 = ssub.s32 %s14, 1
      %s20 = ssub.s32 %s14, 2
      %s21 = sadd.s32 %s14, 1
      %s22 = ssub.s32 %s14, %s21
      %p23 = scmp.eq.s32.totalorder %s22, 0
      %s25 = sadd.s32 %s24, 1
      %s26 = scalar_select %p23, %s24, %s25
      %p29 = pneg %p23
      %p30 = scmp.eq.s32.totalorder %s14, 1
      %p31 = por %p29, %p30
      %p32 = scmp.ne.s32.totalorder %s24, %s27
      %p33 = scmp.eq.s32.totalorder %s14, 0
      %p34 = por %p32, %p33
      %p35 = scmp.ne.s32.totalorder %s24, %s27
      %p36 = scmp.eq.s32.totalorder %s19, 1
      %p37 = por %p35, %p36
      %p38 = scmp.ne.s32.totalorder %s27, %s28
      %p39 = scmp.eq.s32.totalorder %s19, 0
      %p40 = por %p38, %p39
      %p41 = scmp.ne.s32.totalorder %s27, %s28
      %p42 = scmp.eq.s32.totalorder %s20, 1
      %p43 = por %p41, %p42
      %p45 = scmp.ne.s32.totalorder %s28, %s44
      %p46 = scmp.eq.s32.totalorder %s20, 0
      %p47 = por %p45, %p46
      %s48 = ssub.s32 %s14, %s21
      %p49 = scmp.eq.s32.totalorder %s48, 0
      %s51 = sadd.s32 %s50, 1
      %s52 = scalar_select %p49, %s50, %s51
      %p55 = pneg %p49
      %p56 = scmp.eq.s32.totalorder %s14, 1
      %p57 = por %p55, %p56
      %p58 = scmp.ne.s32.totalorder %s50, %s53
      %p59 = scmp.eq.s32.totalorder %s14, 0
      %p60 = por %p58, %p59
      %p61 = scmp.ne.s32.totalorder %s50, %s53
      %p62 = scmp.eq.s32.totalorder %s19, 1
      %p63 = por %p61, %p62
      %p64 = scmp.ne.s32.totalorder %s53, %s54
      %p65 = scmp.eq.s32.totalorder %s19, 0
      %p66 = por %p64, %p65
      %p67 = scmp.ne.s32.totalorder %s53, %s54
      %p68 = scmp.eq.s32.totalorder %s20, 1
      %p69 = por %p67, %p68
      %p71 = scmp.ne.s32.totalorder %s54, %s70
      %p72 = scmp.eq.s32.totalorder %s20, 0
      %p73 = por %p71, %p72
      %s75 = sadd.s32 %s74, 1
      %p78 = scmp.eq.s32.totalorder %s14, 1
      %p79 = scmp.ne.s32.totalorder %s74, %s76
      %p80 = scmp.eq.s32.totalorder %s14, 0
      %p81 = por %p79, %p80
      %p82 = scmp.ne.s32.totalorder %s74, %s76
      %p83 = scmp.eq.s32.totalorder %s19, 1
      %p84 = por %p82, %p83
      %p85 = scmp.ne.s32.totalorder %s76, %s77
      %p86 = scmp.eq.s32.totalorder %s19, 0
      %p87 = por %p85, %p86
      %p88 = scmp.ne.s32.totalorder %s76, %s77
      %p89 = scmp.eq.s32.totalorder %s20, 1
      %p90 = por %p88, %p89
      %p92 = scmp.ne.s32.totalorder %s77, %s91
      %p93 = scmp.eq.s32.totalorder %s20, 0
      %p94 = por %p92, %p93
      %s95 = ssub.s32 %s14, %s21
      %p96 = scmp.eq.s32.totalorder %s95, 0
      %s98 = sadd.s32 %s97, 1
      %s99 = scalar_select %p96, %s97, %s98
      %p102 = pneg %p96
      %p103 = scmp.eq.s32.totalorder %s14, 1
      %p104 = por %p102, %p103
      %p105 = scmp.ne.s32.totalorder %s97, %s100
      %p106 = scmp.eq.s32.totalorder %s14, 0
      %p107 = por %p105, %p106
      %p108 = scmp.ne.s32.totalorder %s97, %s100
      %p109 = scmp.eq.s32.totalorder %s19, 1
      %p110 = por %p108, %p109
      %p111 = scmp.ne.s32.totalorder %s100, %s101
      %p112 = scmp.eq.s32.totalorder %s19, 0
      %p113 = por %p111, %p112
      %p114 = scmp.ne.s32.totalorder %s100, %s101
      %p115 = scmp.eq.s32.totalorder %s20, 1
      %p116 = por %p114, %p115
      %p118 = scmp.ne.s32.totalorder %s101, %s117
      %p119 = scmp.eq.s32.totalorder %s20, 0
      %p120 = por %p118, %p119
      %s121 = ssub.s32 %s14, %s21
      %p122 = scmp.eq.s32.totalorder %s121, 0
      %s124 = sadd.s32 %s123, 1
      %s125 = scalar_select %p122, %s123, %s124
      %p128 = pneg %p122
      %p129 = scmp.eq.s32.totalorder %s14, 1
      %p130 = por %p128, %p129
      %p131 = scmp.ne.s32.totalorder %s123, %s126
      %p132 = scmp.eq.s32.totalorder %s14, 0
      %p133 = por %p131, %p132
      %p134 = scmp.ne.s32.totalorder %s123, %s126
      %p135 = scmp.eq.s32.totalorder %s19, 1
      %p136 = por %p134, %p135
      %p137 = scmp.ne.s32.totalorder %s126, %s127
      %p138 = scmp.eq.s32.totalorder %s19, 0
      %p139 = por %p137, %p138
      %p140 = scmp.ne.s32.totalorder %s126, %s127
      %p141 = scmp.eq.s32.totalorder %s20, 1
      %p142 = por %p140, %p141
      %p144 = scmp.ne.s32.totalorder %s127, %s143
      %p145 = scmp.eq.s32.totalorder %s20, 0
      %p146 = por %p144, %p145
      %p147 = scmp.le.s32.totalorder 1, %s14
      %p148 = scmp.lt.s32.totalorder %s14, 3
      %p149 = pnand %p147, %p148
      %p150 = pneg %p149
      // Predicated region
      $region9: #{qbot_forward.3} parent=5 // pred_check
        _
      $region10: #{qbot_forward.3} parent=5 // pred_check_branch
        %152 = sbr.rel (%p149) target = $region12
      $region11: #{qbot_forward.3} parent=5 // pred_region
        %s153 = ssub.s32 %s14, 1
        // Predicated region
        $region13: #{qbot_forward.3} parent=11 // pred_check
          %p154 = pneg %p87
        $region14: #{qbot_forward.3} parent=11 // pred_check_branch
          %156 = sbr.rel (%p154) target = $region16
        $region15: #{qbot_forward.3} parent=11 // pred_region
          _
        $region16: #{qbot_forward.3} parent=11 // pred_fallthru
          _
      $region12: #{qbot_forward.3} parent=5 // pred_fallthru
        _
      %p157 = scmp.lt.s32.totalorder %s14, 2
      // Predicated region
      $region17: #{qbot_forward.3} parent=5 // pred_check
        %p158 = pneg %p157
      $region18: #{qbot_forward.3} parent=5 // pred_check_branch
        %160 = sbr.rel (%p158) target = $region20
      $region19: #{qbot_forward.3} parent=5 // pred_region
        // Predicated region
        $region21: #{qbot_forward.3} parent=19 // pred_check
          %p161 = pneg %p34
        $region22: #{qbot_forward.3} parent=19 // pred_check_branch
          %163 = sbr.rel (%p161) target = $region24
        $region23: #{qbot_forward.3} parent=19 // pred_region
          %s164 = sand.u32 %s24, 1
          %s165 = sand.u32 %s24, 1
          %s166 = smul.addr %s165, 352
          %s167 = scalar_lea.vmem [#allocation2], %s166
          %s168 = smul.u32 2, %s14
          %s169 = smul.addr %s168, 4
          %s170 = smul.addr %s169, 4
          %s171 = scalar_lea.vmem %s0, %s170
          // Predicated region
          $region25: #{qbot_forward.3} parent=23 // pred_check
            _
          $region26: #{qbot_forward.3} parent=23 // pred_check_branch
            %173 = sbr.rel (0) target = $region28
          $region27: #{qbot_forward.3} parent=23 // pred_region
            // Predicated region
            $region29: #{qbot_forward.3} parent=27 // pred_check
              _
            $region30: #{qbot_forward.3} parent=27 // pred_check_branch
              %175 = sbr.rel (0) target = $region32
            $region31: #{qbot_forward.3} parent=27 // pred_region
              loop: start=0, step=1, limit=1
              $region33: #{qbot_forward.3} parent=31 // loop_pre_header
                _
              $region34: #{qbot_forward.3} parent=31 // loop_header
                %s177 = sphi 0, %s181
                %p178 = scmp.ge.s32.totalorder %s177, 1
                %s182 = sphi %s171, %s171
                %s183 = sphi %s167, %s167
              $region35: #{qbot_forward.3} parent=31 // loop_header_branch
                %180 = sbr.rel (%p178) target = $region39
              $region36: #{qbot_forward.3} parent=31 // loop_body
                %v184 = vld [vmem:[%s182] sm:$0xff]
                %185 = vst [vmem:[%s183] sm:$0xff] %v184
                %v186 = vld [vmem:[%s182 + $0x8] sm:$0xff]
                %187 = vst [vmem:[%s183 + $0x8] sm:$0xff] %v186
                %v188 = vld [vmem:[%s182 + $0x10] sm:$0xff]
                %189 = vst [vmem:[%s183 + $0x10] sm:$0xff] %v188
                %v190 = vld [vmem:[%s182 + $0x18] sm:$0xff]
                %191 = vst [vmem:[%s183 + $0x18] sm:$0xff] %v190
                %v192 = vld [vmem:[%s182 + $0x40] sm:$0xff]
                %193 = vst [vmem:[%s183 + $0x20] sm:$0xff] %v192
                %v194 = vld [vmem:[%s182 + $0x48] sm:$0xff]
                %195 = vst [vmem:[%s183 + $0x28] sm:$0xff] %v194
                %v196 = vld [vmem:[%s182 + $0x50] sm:$0xff]
                %197 = vst [vmem:[%s183 + $0x30] sm:$0xff] %v196
                %v198 = vld [vmem:[%s182 + $0x58] sm:$0xff]
                %199 = vst [vmem:[%s183 + $0x38] sm:$0xff] %v198
                %v200 = vld [vmem:[%s182 + $0x80] sm:$0xff]
                %201 = vst [vmem:[%s183 + $0x40] sm:$0xff] %v200
                %v202 = vld [vmem:[%s182 + $0x88] sm:$0xff]
                %203 = vst [vmem:[%s183 + $0x48] sm:$0xff] %v202
                %v204 = vld [vmem:[%s182 + $0x90] sm:$0xff]
                %205 = vst [vmem:[%s183 + $0x50] sm:$0xff] %v204
                %v206 = vld [vmem:[%s182 + $0x98] sm:$0xff]
                %207 = vst [vmem:[%s183 + $0x58] sm:$0xff] %v206
                %v208 = vld [vmem:[%s182 + $0xc0] sm:$0xff]
                %209 = vst [vmem:[%s183 + $0x60] sm:$0xff] %v208
                %v210 = vld [vmem:[%s182 + $0xc8] sm:$0xff]
                %211 = vst [vmem:[%s183 + $0x68] sm:$0xff] %v210
                %v212 = vld [vmem:[%s182 + $0xd0] sm:$0xff]
                %213 = vst [vmem:[%s183 + $0x70] sm:$0xff] %v212
                %v214 = vld [vmem:[%s182 + $0xd8] sm:$0xff]
                %215 = vst [vmem:[%s183 + $0x78] sm:$0xff] %v214
                %v216 = vld [vmem:[%s182 + $0x100] sm:$0xff]
                %217 = vst [vmem:[%s183 + $0x80] sm:$0xff] %v216
                %v218 = vld [vmem:[%s182 + $0x108] sm:$0xff]
                %219 = vst [vmem:[%s183 + $0x88] sm:$0xff] %v218
                %v220 = vld [vmem:[%s182 + $0x110] sm:$0xff]
                %221 = vst [vmem:[%s183 + $0x90] sm:$0xff] %v220
                %v222 = vld [vmem:[%s182 + $0x118] sm:$0xff]
                %223 = vst [vmem:[%s183 + $0x98] sm:$0xff] %v222
                %v224 = vld [vmem:[%s182 + $0x140] sm:$0xff]
                %225 = vst [vmem:[%s183 + $0xa0] sm:$0xff] %v224
                %v226 = vld [vmem:[%s182 + $0x148] sm:$0xff]
                %227 = vst [vmem:[%s183 + $0xa8] sm:$0xff] %v226
                %v228 = vld [vmem:[%s182 + $0x150] sm:$0xff]
                %229 = vst [vmem:[%s183 + $0xb0] sm:$0xff] %v228
                %v230 = vld [vmem:[%s182 + $0x158] sm:$0xff]
                %231 = vst [vmem:[%s183 + $0xb8] sm:$0xff] %v230
                %v232 = vld [vmem:[%s182 + $0x180] sm:$0xff]
                %233 = vst [vmem:[%s183 + $0xc0] sm:$0xff] %v232
                %v234 = vld [vmem:[%s182 + $0x188] sm:$0xff]
                %235 = vst [vmem:[%s183 + $0xc8] sm:$0xff] %v234
                %v236 = vld [vmem:[%s182 + $0x190] sm:$0xff]
                %237 = vst [vmem:[%s183 + $0xd0] sm:$0xff] %v236
                %v238 = vld [vmem:[%s182 + $0x198] sm:$0xff]
                %239 = vst [vmem:[%s183 + $0xd8] sm:$0xff] %v238
                %v240 = vld [vmem:[%s182 + $0x1c0] sm:$0xff]
                %241 = vst [vmem:[%s183 + $0xe0] sm:$0xff] %v240
                %v242 = vld [vmem:[%s182 + $0x1c8] sm:$0xff]
                %243 = vst [vmem:[%s183 + $0xe8] sm:$0xff] %v242
                %v244 = vld [vmem:[%s182 + $0x1d0] sm:$0xff]
                %245 = vst [vmem:[%s183 + $0xf0] sm:$0xff] %v244
                %v246 = vld [vmem:[%s182 + $0x1d8] sm:$0xff]
                %247 = vst [vmem:[%s183 + $0xf8] sm:$0xff] %v246
                %v248 = vld [vmem:[%s182 + $0x200] sm:$0xff]
                %249 = vst [vmem:[%s183 + $0x100] sm:$0xff] %v248
                %v250 = vld [vmem:[%s182 + $0x208] sm:$0xff]
                %251 = vst [vmem:[%s183 + $0x108] sm:$0xff] %v250
                %v252 = vld [vmem:[%s182 + $0x210] sm:$0xff]
                %253 = vst [vmem:[%s183 + $0x110] sm:$0xff] %v252
                %v254 = vld [vmem:[%s182 + $0x218] sm:$0xff]
                %255 = vst [vmem:[%s183 + $0x118] sm:$0xff] %v254
                %v256 = vld [vmem:[%s182 + $0x240] sm:$0xff]
                %257 = vst [vmem:[%s183 + $0x120] sm:$0xff] %v256
                %v258 = vld [vmem:[%s182 + $0x248] sm:$0xff]
                %259 = vst [vmem:[%s183 + $0x128] sm:$0xff] %v258
                %v260 = vld [vmem:[%s182 + $0x250] sm:$0xff]
                %261 = vst [vmem:[%s183 + $0x130] sm:$0xff] %v260
                %v262 = vld [vmem:[%s182 + $0x258] sm:$0xff]
                %263 = vst [vmem:[%s183 + $0x138] sm:$0xff] %v262
                %v264 = vld [vmem:[%s182 + $0x280] sm:$0xff]
                %265 = vst [vmem:[%s183 + $0x140] sm:$0xff] %v264
                %v266 = vld [vmem:[%s182 + $0x288] sm:$0xff]
                %267 = vst [vmem:[%s183 + $0x148] sm:$0xff] %v266
                %v268 = vld [vmem:[%s182 + $0x290] sm:$0xff]
                %269 = vst [vmem:[%s183 + $0x150] sm:$0xff] %v268
                %v270 = vld [vmem:[%s182 + $0x298] sm:$0xff]
                %271 = vst [vmem:[%s183 + $0x158] sm:$0xff] %v270
              $region37: #{qbot_forward.3} parent=31 // loop_footer
                %s181 = sadd.s32 1, %s177
              $region38: #{qbot_forward.3} parent=31 // loop_footer_branch
                %176 = sbr.rel target = $region34
              $region39: #{qbot_forward.3} parent=31 // loop_exit
                _
            $region32: #{qbot_forward.3} parent=27 // pred_fallthru
              _
            // Predicated region
            $region40: #{qbot_forward.3} parent=27 // pred_check
              _
            $region41: #{qbot_forward.3} parent=27 // pred_check_branch
              %273 = sbr.rel target = $region43
            $region42: #{qbot_forward.3} parent=27 // pred_region
              _
            $region43: #{qbot_forward.3} parent=27 // pred_fallthru
              _
          $region28: #{qbot_forward.3} parent=23 // pred_fallthru
            _
          %274 = vnop
        $region24: #{qbot_forward.3} parent=19 // pred_fallthru
          _
        // Predicated region
        $region44: #{qbot_forward.3} parent=19 // pred_check
          %p275 = pneg %p60
        $region45: #{qbot_forward.3} parent=19 // pred_check_branch
          %277 = sbr.rel (%p275) target = $region47
        $region46: #{qbot_forward.3} parent=19 // pred_region
          %s278 = smul.u32 2, %s14
          %p279 = scmp.lt.s32.totalorder %s278, 3
          %s280 = scalar_select %p279, %s278, 3
          %s281 = smul.addr %s280, 8
          %s282 = scalar_lea.vmem %s1, %s281
          %s283 = smul.u32 2, %s14
        $region47: #{qbot_forward.3} parent=19 // pred_fallthru
          _
      $region20: #{qbot_forward.3} parent=5 // pred_fallthru
        _
      %p284 = scmp.le.s32.totalorder 1, %s14
      %p285 = scmp.lt.s32.totalorder %s14, 3
      %p286 = pnand %p284, %p285
      %p287 = pneg %p286
      // Predicated region
      $region48: #{qbot_forward.3} parent=5 // pred_check
        _
      $region49: #{qbot_forward.3} parent=5 // pred_check_branch
        %289 = sbr.rel (%p286) target = $region51
      $region50: #{qbot_forward.3} parent=5 // pred_region
        %s290 = ssub.s32 %s14, 1
        %s291 = sand.u32 %s27, 1
        %s292 = sand.u32 %s27, 1
        %s293 = smul.addr %s292, 352
        %s294 = scalar_lea.vmem [#allocation2], %s293
        // Predicated region
        $region52: #{qbot_forward.3} parent=50 // pred_check
          %p295 = pneg %p40
        $region53: #{qbot_forward.3} parent=50 // pred_check_branch
          %297 = sbr.rel (%p295) target = $region55
        $region54: #{qbot_forward.3} parent=50 // pred_region
          _
        $region55: #{qbot_forward.3} parent=50 // pred_fallthru
          _
        %s298 = sand.u32 %s27, 1
        %s299 = sand.u32 %s27, 1
        %s300 = smul.addr %s299, 352
        %s301 = scalar_lea.vmem [#allocation2], %s300
        %p302 = pneg %p40
        %p303 = pneg %p37
        %s304 = smul.u32 2, %s19
        %p305 = scmp.lt.s32.totalorder %s304, 3
        %s306 = scalar_select %p305, %s304, 3
        %s307 = smul.addr %s306, 8
        %s308 = scalar_lea.vmem %s1, %s307
        %p309 = pneg %p66
        %p310 = pneg %p63
        %p311 = pneg %p87
        %p312 = pneg %p84
        %p313 = pneg %p113
        %p314 = pneg %p110
        %s315 = smul.u32 2, %s19
        %p316 = scmp.lt.s32.totalorder %s315, 3
        %s317 = scalar_select %p316, %s315, 3
        %s318 = smul.addr %s317, 8
        %s319 = scalar_lea.vmem %s3, %s318
        %p320 = pneg %p139
        %p321 = pneg %p136
        %s322 = sand.u32 %s126, 1
        %s323 = scalar_lea.sflag [#allocation4], %s322
        %s324 = sand.u32 %s126, 1
        %s325 = smul.addr %s324, 16
        %s326 = scalar_lea.vmem [#allocation3], %s325
        %s327 = smul.u32 2, %s19
        %s328 = smul.u32 2, %s19
        %p329 = scmp.lt.s32.totalorder %s328, 3
        %s330 = scalar_select %p329, %s328, 3
        %s331 = smul.addr %s330, 8
        %s332 = scalar_lea.vmem %s1, %s331
        %s333 = smul.u32 2, %s19
        %s334 = smul.u32 2, %s19
        %p335 = scmp.lt.s32.totalorder %s334, 3
        %s336 = scalar_select %p335, %s334, 3
        %s337 = smul.addr %s336, 8
        %s338 = scalar_lea.vmem %s3, %s337
        %s339 = smul.u32 2, %s19
        %s340 = smul.u32 2, %s19
        %v342 = vld [vmem:[%s332] sm:$0xff]
        %v343 = vld [vmem:[%s332 + $0x8] sm:$0xff]
        %v344 = vld [vmem:[%s294] sm:$0xff]
        %v345 = vld [vmem:[%s294 + $0x8] sm:$0xff]
        %v346 = vld [vmem:[%s294 + $0x10] sm:$0xff]
        %v347 = vld [vmem:[%s294 + $0x18] sm:$0xff]
        %v348 = vunpack.c.l.bf16 %v344
        %v349 = vunpack.c.h.bf16 %v344
        %v350 = vunpack.c.l.bf16 %v345
        %v351 = vunpack.c.h.bf16 %v345
        %v352 = vunpack.c.l.bf16 %v346
        %v353 = vunpack.c.h.bf16 %v346
        %v354 = vunpack.c.l.bf16 %v347
        %v355 = vunpack.c.h.bf16 %v347
        %v356 = vld [vmem:[%s2] sm:$0xff]
        %v357 = vld [vmem:[%s2 + $0x8] sm:$0xff]
        %v358 = vld [vmem:[%s2 + $0x10] sm:$0xff]
        %v359 = vld [vmem:[%s2 + $0x18] sm:$0xff]
        %v360 = vld [vmem:[%s2 + $0x20] sm:$0xff]
        %v361 = vld [vmem:[%s2 + $0x28] sm:$0xff]
        %v362 = vld [vmem:[%s2 + $0x30] sm:$0xff]
        %v363 = vld [vmem:[%s2 + $0x38] sm:$0xff]
        %v364 = vld [vmem:[%s2 + $0x40] sm:$0xff]
        %v365 = vld [vmem:[%s2 + $0x48] sm:$0xff]
        %v366 = vld [vmem:[%s2 + $0x50] sm:$0xff]
        %v367 = vld [vmem:[%s2 + $0x58] sm:$0xff]
        %v368 = vld [vmem:[%s2 + $0x60] sm:$0xff]
        %v369 = vld [vmem:[%s2 + $0x68] sm:$0xff]
        %v370 = vld [vmem:[%s2 + $0x70] sm:$0xff]
        %v371 = vld [vmem:[%s2 + $0x78] sm:$0xff]
        %v372 = vld [vmem:[%s2 + $0x80] sm:$0xff]
        %v373 = vld [vmem:[%s2 + $0x88] sm:$0xff]
        %v374 = vld [vmem:[%s2 + $0x90] sm:$0xff]
        %v375 = vld [vmem:[%s2 + $0x98] sm:$0xff]
        %v376 = vld [vmem:[%s2 + $0xa0] sm:$0xff]
        %v377 = vld [vmem:[%s2 + $0xa8] sm:$0xff]
        %v378 = vld [vmem:[%s2 + $0xb0] sm:$0xff]
        %v379 = vld [vmem:[%s2 + $0xb8] sm:$0xff]
        %v380 = vld [vmem:[%s2 + $0xc0] sm:$0xff]
        %v381 = vld [vmem:[%s2 + $0xc8] sm:$0xff]
        %v382 = vld [vmem:[%s2 + $0xd0] sm:$0xff]
        %v383 = vld [vmem:[%s2 + $0xd8] sm:$0xff]
        %v384 = vld [vmem:[%s2 + $0xe0] sm:$0xff]
        %v385 = vld [vmem:[%s2 + $0xe8] sm:$0xff]
        %v386 = vld [vmem:[%s2 + $0xf0] sm:$0xff]
        %v387 = vld [vmem:[%s2 + $0xf8] sm:$0xff]
        %v420 = vunpack.c.l.b16 %v356
        %v421 = vunpack.c.h.b16 %v356
        %v422 = vunpack.c.l.b16 %v357
        %v423 = vunpack.c.h.b16 %v357
        %v424 = vunpack.c.l.b16 %v358
        %v425 = vunpack.c.h.b16 %v358
        %v426 = vunpack.c.l.b16 %v359
        %v427 = vunpack.c.h.b16 %v359
        %v428 = vunpack.c.l.b16 %v360
        %v429 = vunpack.c.h.b16 %v360
        %v430 = vunpack.c.l.b16 %v361
        %v431 = vunpack.c.h.b16 %v361
        %v432 = vunpack.c.l.b16 %v362
        %v433 = vunpack.c.h.b16 %v362
        %v434 = vunpack.c.l.b16 %v363
        %v435 = vunpack.c.h.b16 %v363
        %v436 = vunpack.c.l.b16 %v364
        %v437 = vunpack.c.h.b16 %v364
        %v438 = vunpack.c.l.b16 %v365
        %v439 = vunpack.c.h.b16 %v365
        %v440 = vunpack.c.l.b16 %v366
        %v441 = vunpack.c.h.b16 %v366
        %v442 = vunpack.c.l.b16 %v367
        %v443 = vunpack.c.h.b16 %v367
        %v444 = vunpack.c.l.b16 %v368
        %v445 = vunpack.c.h.b16 %v368
        %v446 = vunpack.c.l.b16 %v369
        %v447 = vunpack.c.h.b16 %v369
        %v448 = vunpack.c.l.b16 %v370
        %v449 = vunpack.c.h.b16 %v370
        %v450 = vunpack.c.l.b16 %v371
        %v451 = vunpack.c.h.b16 %v371
        %v452 = vunpack.c.l.b16 %v372
        %v453 = vunpack.c.h.b16 %v372
        %v454 = vunpack.c.l.b16 %v373
        %v455 = vunpack.c.h.b16 %v373
        %v456 = vunpack.c.l.b16 %v374
        %v457 = vunpack.c.h.b16 %v374
        %v458 = vunpack.c.l.b16 %v375
        %v459 = vunpack.c.h.b16 %v375
        %v460 = vunpack.c.l.b16 %v376
        %v461 = vunpack.c.h.b16 %v376
        %v462 = vunpack.c.l.b16 %v377
        %v463 = vunpack.c.h.b16 %v377
        %v464 = vunpack.c.l.b16 %v378
        %v465 = vunpack.c.h.b16 %v378
        %v466 = vunpack.c.l.b16 %v379
        %v467 = vunpack.c.h.b16 %v379
        %v468 = vunpack.c.l.b16 %v380
        %v469 = vunpack.c.h.b16 %v380
        %v470 = vunpack.c.l.b16 %v381
        %v471 = vunpack.c.h.b16 %v381
        %v472 = vunpack.c.l.b16 %v382
        %v473 = vunpack.c.h.b16 %v382
        %v474 = vunpack.c.l.b16 %v383
        %v475 = vunpack.c.h.b16 %v383
        %v476 = vunpack.c.l.b16 %v384
        %v477 = vunpack.c.h.b16 %v384
        %v478 = vunpack.c.l.b16 %v385
        %v479 = vunpack.c.h.b16 %v385
        %v480 = vunpack.c.l.b16 %v386
        %v481 = vunpack.c.h.b16 %v386
        %v482 = vunpack.c.l.b16 %v387
        %v483 = vunpack.c.h.b16 %v387
        %v484 = vpack.c.b16 %v424, %v420
        %v485 = vpack.c.b16 %v425, %v421
        %v486 = vpack.c.b16 %v426, %v422
        %v487 = vpack.c.b16 %v427, %v423
        %v488 = vpack.c.b16 %v432, %v428
        %v489 = vpack.c.b16 %v433, %v429
        %v490 = vpack.c.b16 %v434, %v430
        %v491 = vpack.c.b16 %v435, %v431
        %v492 = vpack.c.b16 %v440, %v436
        %v493 = vpack.c.b16 %v441, %v437
        %v494 = vpack.c.b16 %v442, %v438
        %v495 = vpack.c.b16 %v443, %v439
        %v496 = vpack.c.b16 %v448, %v444
        %v497 = vpack.c.b16 %v449, %v445
        %v498 = vpack.c.b16 %v450, %v446
        %v499 = vpack.c.b16 %v451, %v447
        %v500 = vpack.c.b16 %v456, %v452
        %v501 = vpack.c.b16 %v457, %v453
        %v502 = vpack.c.b16 %v458, %v454
        %v503 = vpack.c.b16 %v459, %v455
        %v504 = vpack.c.b16 %v464, %v460
        %v505 = vpack.c.b16 %v465, %v461
        %v506 = vpack.c.b16 %v466, %v462
        %v507 = vpack.c.b16 %v467, %v463
        %v508 = vpack.c.b16 %v472, %v468
        %v509 = vpack.c.b16 %v473, %v469
        %v510 = vpack.c.b16 %v474, %v470
        %v511 = vpack.c.b16 %v475, %v471
        %v512 = vpack.c.b16 %v480, %v476
        %v513 = vpack.c.b16 %v481, %v477
        %v514 = vpack.c.b16 %v482, %v478
        %v515 = vpack.c.b16 %v483, %v479
        %548 = vmatpush.bf16.msra.mxu0 %v512
        %549 = vmatpush.bf16.msra.mxu0 %v508
        %550 = vmatpush.bf16.msra.mxu0 %v504
        %551 = vmatpush.bf16.msra.mxu0 %v500
        %552 = vmatpush.bf16.msra.mxu0 %v496
        %553 = vmatpush.bf16.msra.mxu0 %v492
        %554 = vmatpush.bf16.msra.mxu0 %v488
        %555 = vmatpush.bf16.msra.mxu0 %v484
        %556 = vmatmul.bf16.gmra.mxu0 0
        %v557 = vpop.f32.mrf.mxu0
        %v558 = vadd.f32 0.0, %v557
        %v559 = vpop.f32.mrf.mxu0
        %v560 = vadd.f32 0.0, %v559
        %561 = vdwg.mxu0
        %562 = vmatpush.bf16.msra.mxu0 %v513
        %563 = vmatpush.bf16.msra.mxu0 %v509
        %564 = vmatpush.bf16.msra.mxu0 %v505
        %565 = vmatpush.bf16.msra.mxu0 %v501
        %566 = vmatpush.bf16.msra.mxu0 %v497
        %567 = vmatpush.bf16.msra.mxu0 %v493
        %568 = vmatpush.bf16.msra.mxu0 %v489
        %569 = vmatpush.bf16.msra.mxu0 %v485
        %570 = vmatmul.bf16.gmra.mxu0 0
        %v571 = vpop.f32.mrf.mxu0
        %v572 = vadd.f32 0.0, %v571
        %v573 = vpop.f32.mrf.mxu0
        %v574 = vadd.f32 0.0, %v573
        %575 = vdwg.mxu0
        %576 = vmatpush.bf16.msra.mxu0 %v514
        %577 = vmatpush.bf16.msra.mxu0 %v510
        %578 = vmatpush.bf16.msra.mxu0 %v506
        %579 = vmatpush.bf16.msra.mxu0 %v502
        %580 = vmatpush.bf16.msra.mxu0 %v498
        %581 = vmatpush.bf16.msra.mxu0 %v494
        %582 = vmatpush.bf16.msra.mxu0 %v490
        %583 = vmatpush.bf16.msra.mxu0 %v486
        %584 = vmatmul.bf16.gmra.mxu0 0
        %v585 = vpop.f32.mrf.mxu0
        %v586 = vadd.f32 0.0, %v585
        %v587 = vpop.f32.mrf.mxu0
        %v588 = vadd.f32 0.0, %v587
        %589 = vdwg.mxu0
        %590 = vmatpush.bf16.msra.mxu0 %v515
        %591 = vmatpush.bf16.msra.mxu0 %v511
        %592 = vmatpush.bf16.msra.mxu0 %v507
        %593 = vmatpush.bf16.msra.mxu0 %v503
        %594 = vmatpush.bf16.msra.mxu0 %v499
        %595 = vmatpush.bf16.msra.mxu0 %v495
        %596 = vmatpush.bf16.msra.mxu0 %v491
        %597 = vmatpush.bf16.msra.mxu0 %v487
        %598 = vmatmul.bf16.gmra.mxu0 0
        %v599 = vpop.f32.mrf.mxu0
        %v600 = vadd.f32 0.0, %v599
        %v601 = vpop.f32.mrf.mxu0
        %v602 = vadd.f32 0.0, %v601
        %603 = vdwg.mxu0
        %v604 = vadd.f32 %v348, %v558
        %v605 = vadd.f32 %v349, %v572
        %v606 = vadd.f32 %v350, %v586
        %v607 = vadd.f32 %v351, %v600
        %v608 = vadd.f32 %v352, %v560
        %v609 = vadd.f32 %v353, %v574
        %v610 = vadd.f32 %v354, %v588
        %v611 = vadd.f32 %v355, %v602
        %v612 = vxor.u32 %v604, 2147483648
        %v613 = vxor.u32 %v608, 2147483648
        %v614 = vmul.f32 %v612, 1.442695
        %v615 = vpow.pop %v614
        %v616 = vmul.f32 %v613, 1.442695
        %v617 = vpow.pop %v616
        %v618 = vadd.f32 %v615, 1.0
        %v619 = vadd.f32 %v617, 1.0
        %v620 = vrcp.pop %v618
        %v621 = vmul.f32 %v618, %v620
        %v622 = vsub.f32 1.0, %v621
        %v623 = vmul.f32 %v620, %v622
        %v624 = vadd.f32 %v620, %v623
        %vm625 = vweird.f32 %v618
        %vm626 = vweird.f32 %v620
        %vm627 = vmor %vm625, %vm626
        %v628 = vsel %vm627, %v620, %v624
        %v629 = vand.u32 2147483647, %v618
        %vm630 = vcmp.eq.f32.partialorder %v629, 8.507059e+37
        %v631 = vand.u32 %v618, 2147483648
        %v632 = vor.u32 1.1754944e-38, %v631
        %v633 = vsel %vm630, %v632, %v628
        %v634 = vmul.f32 1.0, %v633
        %v635 = vrcp.pop %v619
        %v636 = vmul.f32 %v619, %v635
        %v637 = vsub.f32 1.0, %v636
        %v638 = vmul.f32 %v635, %v637
        %v639 = vadd.f32 %v635, %v638
        %vm640 = vweird.f32 %v619
        %vm641 = vweird.f32 %v635
        %vm642 = vmor %vm640, %vm641
        %v643 = vsel %vm642, %v635, %v639
        %v644 = vand.u32 2147483647, %v619
        %vm645 = vcmp.eq.f32.partialorder %v644, 8.507059e+37
        %v646 = vand.u32 %v619, 2147483648
        %v647 = vor.u32 1.1754944e-38, %v646
        %v648 = vsel %vm645, %v647, %v643
        %v649 = vmul.f32 1.0, %v648
        %v650 = vxor.u32 %v605, 2147483648
        %v651 = vxor.u32 %v609, 2147483648
        %v652 = vmul.f32 %v650, 1.442695
        %v653 = vpow.pop %v652
        %v654 = vmul.f32 %v651, 1.442695
        %v655 = vpow.pop %v654
        %v656 = vadd.f32 %v653, 1.0
        %v657 = vadd.f32 %v655, 1.0
        %v658 = vrcp.pop %v656
        %v659 = vmul.f32 %v656, %v658
        %v660 = vsub.f32 1.0, %v659
        %v661 = vmul.f32 %v658, %v660
        %v662 = vadd.f32 %v658, %v661
        %vm663 = vweird.f32 %v656
        %vm664 = vweird.f32 %v658
        %vm665 = vmor %vm663, %vm664
        %v666 = vsel %vm665, %v658, %v662
        %v667 = vand.u32 2147483647, %v656
        %vm668 = vcmp.eq.f32.partialorder %v667, 8.507059e+37
        %v669 = vand.u32 %v656, 2147483648
        %v670 = vor.u32 1.1754944e-38, %v669
        %v671 = vsel %vm668, %v670, %v666
        %v672 = vmul.f32 1.0, %v671
        %v673 = vrcp.pop %v657
        %v674 = vmul.f32 %v657, %v673
        %v675 = vsub.f32 1.0, %v674
        %v676 = vmul.f32 %v673, %v675
        %v677 = vadd.f32 %v673, %v676
        %vm678 = vweird.f32 %v657
        %vm679 = vweird.f32 %v673
        %vm680 = vmor %vm678, %vm679
        %v681 = vsel %vm680, %v673, %v677
        %v682 = vand.u32 2147483647, %v657
        %vm683 = vcmp.eq.f32.partialorder %v682, 8.507059e+37
        %v684 = vand.u32 %v657, 2147483648
        %v685 = vor.u32 1.1754944e-38, %v684
        %v686 = vsel %vm683, %v685, %v681
        %v687 = vmul.f32 1.0, %v686
        %v688 = vtanh.pop %v606
        %v689 = vtanh.pop %v610
        %v690 = vxor.u32 %v607, 2147483648
        %v691 = vxor.u32 %v611, 2147483648
        %v692 = vmul.f32 %v690, 1.442695
        %v693 = vpow.pop %v692
        %v694 = vmul.f32 %v691, 1.442695
        %v695 = vpow.pop %v694
        %v696 = vadd.f32 %v693, 1.0
        %v697 = vadd.f32 %v695, 1.0
        %v698 = vrcp.pop %v696
        %v699 = vmul.f32 %v696, %v698
        %v700 = vsub.f32 1.0, %v699
        %v701 = vmul.f32 %v698, %v700
        %v702 = vadd.f32 %v698, %v701
        %vm703 = vweird.f32 %v696
        %vm704 = vweird.f32 %v698
        %vm705 = vmor %vm703, %vm704
        %v706 = vsel %vm705, %v698, %v702
        %v707 = vand.u32 2147483647, %v696
        %vm708 = vcmp.eq.f32.partialorder %v707, 8.507059e+37
        %v709 = vand.u32 %v696, 2147483648
        %v710 = vor.u32 1.1754944e-38, %v709
        %v711 = vsel %vm708, %v710, %v706
        %v712 = vmul.f32 1.0, %v711
        %v713 = vrcp.pop %v697
        %v714 = vmul.f32 %v697, %v713
        %v715 = vsub.f32 1.0, %v714
        %v716 = vmul.f32 %v713, %v715
        %v717 = vadd.f32 %v713, %v716
        %vm718 = vweird.f32 %v697
        %vm719 = vweird.f32 %v713
        %vm720 = vmor %vm718, %vm719
        %v721 = vsel %vm720, %v713, %v717
        %v722 = vand.u32 2147483647, %v697
        %vm723 = vcmp.eq.f32.partialorder %v722, 8.507059e+37
        %v724 = vand.u32 %v697, 2147483648
        %v725 = vor.u32 1.1754944e-38, %v724
        %v726 = vsel %vm723, %v725, %v721
        %v727 = vmul.f32 1.0, %v726
        %v728 = vmul.f32 %v672, 0.0
        %v729 = vmul.f32 %v687, 0.0
        %v730 = vmul.f32 %v634, %v688
        %v731 = vmul.f32 %v649, %v689
        %v732 = vadd.f32 %v728, %v730
        %v733 = vadd.f32 %v729, %v731
        %v734 = vtanh.pop %v732
        %v735 = vtanh.pop %v733
        %v736 = vmul.f32 %v712, %v734
        %v737 = vmul.f32 %v727, %v735
        %vm738 = vcmp.gt.s32.totalorder %v342, 0
        %vm739 = vcmp.gt.s32.totalorder %v343, 0
        %v740 = vsel %vm738, 1, 0
        %v741 = vsel %vm739, 1, 0
        %742 = vset.pattern.permute.xlu0 0
        %743 = vperm.xlu0 %742, %v740
        %v744 = vpop.permute.xlu0 %743
        %745 = vset.pattern.permute.xlu0 0
        %746 = vperm.xlu0 %745, %v741
        %v747 = vpop.permute.xlu0 %746
        %vm748 = vcmp.eq.s32.totalorder %v744, 1
        %vm749 = vcmp.eq.s32.totalorder %v747, 1
        %v750 = vsel %vm748, %v736, 0.0
        %v751 = vsel %vm749, %v737, 0.0
        %v752 = vsel %vm748, %v732, 0.0
        %v753 = vsel %vm749, %v733, 0.0
        %s754 = scalar_lea.vmem %s294, 32 [#allocation2]
        %v755 = vld [vmem:[%s754] sm:$0xff]
        %v756 = vld [vmem:[%s754 + $0x8] sm:$0xff]
        %v757 = vld [vmem:[%s754 + $0x10] sm:$0xff]
        %v758 = vld [vmem:[%s754 + $0x18] sm:$0xff]
        %v759 = vunpack.c.l.bf16 %v755
        %v760 = vunpack.c.h.bf16 %v755
        %v761 = vunpack.c.l.bf16 %v756
        %v762 = vunpack.c.h.bf16 %v756
        %v763 = vunpack.c.l.bf16 %v757
        %v764 = vunpack.c.h.bf16 %v757
        %v765 = vunpack.c.l.bf16 %v758
        %v766 = vunpack.c.h.bf16 %v758
        %v767 = vpack.c.bf16 %v751, %v750
        %768 = vmatpush.bf16.msra.mxu0 %v512
        %769 = vmatpush.bf16.msra.mxu0 %v508
        %770 = vmatpush.bf16.msra.mxu0 %v504
        %771 = vmatpush.bf16.msra.mxu0 %v500
        %772 = vmatpush.bf16.msra.mxu0 %v496
        %773 = vmatpush.bf16.msra.mxu0 %v492
        %774 = vmatpush.bf16.msra.mxu0 %v488
        %775 = vmatpush.bf16.msra.mxu0 %v484
        %776 = vmatmul.bf16.gmra.mxu0 %v767
        %v777 = vpop.f32.mrf.mxu0
        %v778 = vadd.f32 0.0, %v777
        %v779 = vpop.f32.mrf.mxu0
        %v780 = vadd.f32 0.0, %v779
        %781 = vdwg.mxu0
        %782 = vmatpush.bf16.msra.mxu0 %v513
        %783 = vmatpush.bf16.msra.mxu0 %v509
        %784 = vmatpush.bf16.msra.mxu0 %v505
        %785 = vmatpush.bf16.msra.mxu0 %v501
        %786 = vmatpush.bf16.msra.mxu0 %v497
        %787 = vmatpush.bf16.msra.mxu0 %v493
        %788 = vmatpush.bf16.msra.mxu0 %v489
        %789 = vmatpush.bf16.msra.mxu0 %v485
        %790 = vmatmul.bf16.gmra.mxu0 %v767
        %v791 = vpop.f32.mrf.mxu0
        %v792 = vadd.f32 0.0, %v791
        %v793 = vpop.f32.mrf.mxu0
        %v794 = vadd.f32 0.0, %v793
        %795 = vdwg.mxu0
        %796 = vmatpush.bf16.msra.mxu0 %v514
        %797 = vmatpush.bf16.msra.mxu0 %v510
        %798 = vmatpush.bf16.msra.mxu0 %v506
        %799 = vmatpush.bf16.msra.mxu0 %v502
        %800 = vmatpush.bf16.msra.mxu0 %v498
        %801 = vmatpush.bf16.msra.mxu0 %v494
        %802 = vmatpush.bf16.msra.mxu0 %v490
        %803 = vmatpush.bf16.msra.mxu0 %v486
        %804 = vmatmul.bf16.gmra.mxu0 %v767
        %v805 = vpop.f32.mrf.mxu0
        %v806 = vadd.f32 0.0, %v805
        %v807 = vpop.f32.mrf.mxu0
        %v808 = vadd.f32 0.0, %v807
        %809 = vdwg.mxu0
        %810 = vmatpush.bf16.msra.mxu0 %v515
        %811 = vmatpush.bf16.msra.mxu0 %v511
        %812 = vmatpush.bf16.msra.mxu0 %v507
        %813 = vmatpush.bf16.msra.mxu0 %v503
        %814 = vmatpush.bf16.msra.mxu0 %v499
        %815 = vmatpush.bf16.msra.mxu0 %v495
        %816 = vmatpush.bf16.msra.mxu0 %v491
        %817 = vmatpush.bf16.msra.mxu0 %v487
        %818 = vmatmul.bf16.gmra.mxu0 %v767
        %v819 = vpop.f32.mrf.mxu0
        %v820 = vadd.f32 0.0, %v819
        %v821 = vpop.f32.mrf.mxu0
        %v822 = vadd.f32 0.0, %v821
        %823 = vdwg.mxu0
        %v824 = vadd.f32 %v759, %v778
        %v825 = vadd.f32 %v760, %v792
        %v826 = vadd.f32 %v761, %v806
        %v827 = vadd.f32 %v762, %v820
        %v828 = vadd.f32 %v763, %v780
        %v829 = vadd.f32 %v764, %v794
        %v830 = vadd.f32 %v765, %v808
        %v831 = vadd.f32 %v766, %v822
        %v832 = vxor.u32 %v824, 2147483648
        %v833 = vxor.u32 %v828, 2147483648
        %v834 = vmul.f32 %v832, 1.442695
        %v835 = vpow.pop %v834
        %v836 = vmul.f32 %v833, 1.442695
        %v837 = vpow.pop %v836
        %v838 = vadd.f32 %v835, 1.0
        %v839 = vadd.f32 %v837, 1.0
        %v840 = vrcp.pop %v838
        %v841 = vmul.f32 %v838, %v840
        %v842 = vsub.f32 1.0, %v841
        %v843 = vmul.f32 %v840, %v842
        %v844 = vadd.f32 %v840, %v843
        %vm845 = vweird.f32 %v838
        %vm846 = vweird.f32 %v840
        %vm847 = vmor %vm845, %vm846
        %v848 = vsel %vm847, %v840, %v844
        %v849 = vand.u32 2147483647, %v838
        %vm850 = vcmp.eq.f32.partialorder %v849, 8.507059e+37
        %v851 = vand.u32 %v838, 2147483648
        %v852 = vor.u32 1.1754944e-38, %v851
        %v853 = vsel %vm850, %v852, %v848
        %v854 = vmul.f32 1.0, %v853
        %v855 = vrcp.pop %v839
        %v856 = vmul.f32 %v839, %v855
        %v857 = vsub.f32 1.0, %v856
        %v858 = vmul.f32 %v855, %v857
        %v859 = vadd.f32 %v855, %v858
        %vm860 = vweird.f32 %v839
        %vm861 = vweird.f32 %v855
        %vm862 = vmor %vm860, %vm861
        %v863 = vsel %vm862, %v855, %v859
        %v864 = vand.u32 2147483647, %v839
        %vm865 = vcmp.eq.f32.partialorder %v864, 8.507059e+37
        %v866 = vand.u32 %v839, 2147483648
        %v867 = vor.u32 1.1754944e-38, %v866
        %v868 = vsel %vm865, %v867, %v863
        %v869 = vmul.f32 1.0, %v868
        %v870 = vxor.u32 %v825, 2147483648
        %v871 = vxor.u32 %v829, 2147483648
        %v872 = vmul.f32 %v870, 1.442695
        %v873 = vpow.pop %v872
        %v874 = vmul.f32 %v871, 1.442695
        %v875 = vpow.pop %v874
        %v876 = vadd.f32 %v873, 1.0
        %v877 = vadd.f32 %v875, 1.0
        %v878 = vrcp.pop %v876
        %v879 = vmul.f32 %v876, %v878
        %v880 = vsub.f32 1.0, %v879
        %v881 = vmul.f32 %v878, %v880
        %v882 = vadd.f32 %v878, %v881
        %vm883 = vweird.f32 %v876
        %vm884 = vweird.f32 %v878
        %vm885 = vmor %vm883, %vm884
        %v886 = vsel %vm885, %v878, %v882
        %v887 = vand.u32 2147483647, %v876
        %vm888 = vcmp.eq.f32.partialorder %v887, 8.507059e+37
        %v889 = vand.u32 %v876, 2147483648
        %v890 = vor.u32 1.1754944e-38, %v889
        %v891 = vsel %vm888, %v890, %v886
        %v892 = vmul.f32 1.0, %v891
        %v893 = vrcp.pop %v877
        %v894 = vmul.f32 %v877, %v893
        %v895 = vsub.f32 1.0, %v894
        %v896 = vmul.f32 %v893, %v895
        %v897 = vadd.f32 %v893, %v896
        %vm898 = vweird.f32 %v877
        %vm899 = vweird.f32 %v893
        %vm900 = vmor %vm898, %vm899
        %v901 = vsel %vm900, %v893, %v897
        %v902 = vand.u32 2147483647, %v877
        %vm903 = vcmp.eq.f32.partialorder %v902, 8.507059e+37
        %v904 = vand.u32 %v877, 2147483648
        %v905 = vor.u32 1.1754944e-38, %v904
        %v906 = vsel %vm903, %v905, %v901
        %v907 = vmul.f32 1.0, %v906
        %v908 = vtanh.pop %v826
        %v909 = vtanh.pop %v830
        %v910 = vxor.u32 %v827, 2147483648
        %v911 = vxor.u32 %v831, 2147483648
        %v912 = vmul.f32 %v910, 1.442695
        %v913 = vpow.pop %v912
        %v914 = vmul.f32 %v911, 1.442695
        %v915 = vpow.pop %v914
        %v916 = vadd.f32 %v913, 1.0
        %v917 = vadd.f32 %v915, 1.0
        %v918 = vrcp.pop %v916
        %v919 = vmul.f32 %v916, %v918
        %v920 = vsub.f32 1.0, %v919
        %v921 = vmul.f32 %v918, %v920
        %v922 = vadd.f32 %v918, %v921
        %vm923 = vweird.f32 %v916
        %vm924 = vweird.f32 %v918
        %vm925 = vmor %vm923, %vm924
        %v926 = vsel %vm925, %v918, %v922
        %v927 = vand.u32 2147483647, %v916
        %vm928 = vcmp.eq.f32.partialorder %v927, 8.507059e+37
        %v929 = vand.u32 %v916, 2147483648
        %v930 = vor.u32 1.1754944e-38, %v929
        %v931 = vsel %vm928, %v930, %v926
        %v932 = vmul.f32 1.0, %v931
        %v933 = vrcp.pop %v917
        %v934 = vmul.f32 %v917, %v933
        %v935 = vsub.f32 1.0, %v934
        %v936 = vmul.f32 %v933, %v935
        %v937 = vadd.f32 %v933, %v936
        %vm938 = vweird.f32 %v917
        %vm939 = vweird.f32 %v933
        %vm940 = vmor %vm938, %vm939
        %v941 = vsel %vm940, %v933, %v937
        %v942 = vand.u32 2147483647, %v917
        %vm943 = vcmp.eq.f32.partialorder %v942, 8.507059e+37
        %v944 = vand.u32 %v917, 2147483648
        %v945 = vor.u32 1.1754944e-38, %v944
        %v946 = vsel %vm943, %v945, %v941
        %v947 = vmul.f32 1.0, %v946
        %v948 = vmul.f32 %v892, %v752
        %v949 = vmul.f32 %v907, %v753
        %v950 = vmul.f32 %v854, %v908
        %v951 = vmul.f32 %v869, %v909
        %v952 = vadd.f32 %v948, %v950
        %v953 = vadd.f32 %v949, %v951
        %v954 = vtanh.pop %v952
        %v955 = vtanh.pop %v953
        %v956 = vmul.f32 %v932, %v954
        %v957 = vmul.f32 %v947, %v955
        %vm958 = vcmp.gt.s32.totalorder %v342, 1
        %vm959 = vcmp.gt.s32.totalorder %v343, 1
        %v960 = vsel %vm958, 1, 0
        %v961 = vsel %vm959, 1, 0
        %962 = vset.pattern.permute.xlu0 0
        %963 = vperm.xlu0 %962, %v960
        %v964 = vpop.permute.xlu0 %963
        %965 = vset.pattern.permute.xlu0 0
        %966 = vperm.xlu0 %965, %v961
        %v967 = vpop.permute.xlu0 %966
        %vm968 = vcmp.eq.s32.totalorder %v964, 1
        %vm969 = vcmp.eq.s32.totalorder %v967, 1
        %v970 = vsel %vm968, %v956, %v750
        %v971 = vsel %vm969, %v957, %v751
        %v972 = vsel %vm968, %v952, %v752
        %v973 = vsel %vm969, %v953, %v753
        %s974 = scalar_lea.vmem %s294, 64 [#allocation2]
        %v975 = vld [vmem:[%s974] sm:$0xff]
        %v976 = vld [vmem:[%s974 + $0x8] sm:$0xff]
        %v977 = vld [vmem:[%s974 + $0x10] sm:$0xff]
        %v978 = vld [vmem:[%s974 + $0x18] sm:$0xff]
        %v979 = vunpack.c.l.bf16 %v975
        %v980 = vunpack.c.h.bf16 %v975
        %v981 = vunpack.c.l.bf16 %v976
        %v982 = vunpack.c.h.bf16 %v976
        %v983 = vunpack.c.l.bf16 %v977
        %v984 = vunpack.c.h.bf16 %v977
        %v985 = vunpack.c.l.bf16 %v978
        %v986 = vunpack.c.h.bf16 %v978
        %v987 = vpack.c.bf16 %v971, %v970
        %988 = vmatpush.bf16.msra.mxu0 %v512
        %989 = vmatpush.bf16.msra.mxu0 %v508
        %990 = vmatpush.bf16.msra.mxu0 %v504
        %991 = vmatpush.bf16.msra.mxu0 %v500
        %992 = vmatpush.bf16.msra.mxu0 %v496
        %993 = vmatpush.bf16.msra.mxu0 %v492
        %994 = vmatpush.bf16.msra.mxu0 %v488
        %995 = vmatpush.bf16.msra.mxu0 %v484
        %996 = vmatmul.bf16.gmra.mxu0 %v987
        %v997 = vpop.f32.mrf.mxu0
        %v998 = vadd.f32 0.0, %v997
        %v999 = vpop.f32.mrf.mxu0
        %v1000 = vadd.f32 0.0, %v999
        %1001 = vdwg.mxu0
        %1002 = vmatpush.bf16.msra.mxu0 %v513
        %1003 = vmatpush.bf16.msra.mxu0 %v509
        %1004 = vmatpush.bf16.msra.mxu0 %v505
        %1005 = vmatpush.bf16.msra.mxu0 %v501
        %1006 = vmatpush.bf16.msra.mxu0 %v497
        %1007 = vmatpush.bf16.msra.mxu0 %v493
        %1008 = vmatpush.bf16.msra.mxu0 %v489
        %1009 = vmatpush.bf16.msra.mxu0 %v485
        %1010 = vmatmul.bf16.gmra.mxu0 %v987
        %v1011 = vpop.f32.mrf.mxu0
        %v1012 = vadd.f32 0.0, %v1011
        %v1013 = vpop.f32.mrf.mxu0
        %v1014 = vadd.f32 0.0, %v1013
        %1015 = vdwg.mxu0
        %1016 = vmatpush.bf16.msra.mxu0 %v514
        %1017 = vmatpush.bf16.msra.mxu0 %v510
        %1018 = vmatpush.bf16.msra.mxu0 %v506
        %1019 = vmatpush.bf16.msra.mxu0 %v502
        %1020 = vmatpush.bf16.msra.mxu0 %v498
        %1021 = vmatpush.bf16.msra.mxu0 %v494
        %1022 = vmatpush.bf16.msra.mxu0 %v490
        %1023 = vmatpush.bf16.msra.mxu0 %v486
        %1024 = vmatmul.bf16.gmra.mxu0 %v987
        %v1025 = vpop.f32.mrf.mxu0
        %v1026 = vadd.f32 0.0, %v1025
        %v1027 = vpop.f32.mrf.mxu0
        %v1028 = vadd.f32 0.0, %v1027
        %1029 = vdwg.mxu0
        %1030 = vmatpush.bf16.msra.mxu0 %v515
        %1031 = vmatpush.bf16.msra.mxu0 %v511
        %1032 = vmatpush.bf16.msra.mxu0 %v507
        %1033 = vmatpush.bf16.msra.mxu0 %v503
        %1034 = vmatpush.bf16.msra.mxu0 %v499
        %1035 = vmatpush.bf16.msra.mxu0 %v495
        %1036 = vmatpush.bf16.msra.mxu0 %v491
        %1037 = vmatpush.bf16.msra.mxu0 %v487
        %1038 = vmatmul.bf16.gmra.mxu0 %v987
        %v1039 = vpop.f32.mrf.mxu0
        %v1040 = vadd.f32 0.0, %v1039
        %v1041 = vpop.f32.mrf.mxu0
        %v1042 = vadd.f32 0.0, %v1041
        %1043 = vdwg.mxu0
        %v1044 = vadd.f32 %v979, %v998
        %v1045 = vadd.f32 %v980, %v1012
        %v1046 = vadd.f32 %v981, %v1026
        %v1047 = vadd.f32 %v982, %v1040
        %v1048 = vadd.f32 %v983, %v1000
        %v1049 = vadd.f32 %v984, %v1014
        %v1050 = vadd.f32 %v985, %v1028
        %v1051 = vadd.f32 %v986, %v1042
        %v1052 = vxor.u32 %v1044, 2147483648
        %v1053 = vxor.u32 %v1048, 2147483648
        %v1054 = vmul.f32 %v1052, 1.442695
        %v1055 = vpow.pop %v1054
        %v1056 = vmul.f32 %v1053, 1.442695
        %v1057 = vpow.pop %v1056
        %v1058 = vadd.f32 %v1055, 1.0
        %v1059 = vadd.f32 %v1057, 1.0
        %v1060 = vrcp.pop %v1058
        %v1061 = vmul.f32 %v1058, %v1060
        %v1062 = vsub.f32 1.0, %v1061
        %v1063 = vmul.f32 %v1060, %v1062
        %v1064 = vadd.f32 %v1060, %v1063
        %vm1065 = vweird.f32 %v1058
        %vm1066 = vweird.f32 %v1060
        %vm1067 = vmor %vm1065, %vm1066
        %v1068 = vsel %vm1067, %v1060, %v1064
        %v1069 = vand.u32 2147483647, %v1058
        %vm1070 = vcmp.eq.f32.partialorder %v1069, 8.507059e+37
        %v1071 = vand.u32 %v1058, 2147483648
        %v1072 = vor.u32 1.1754944e-38, %v1071
        %v1073 = vsel %vm1070, %v1072, %v1068
        %v1074 = vmul.f32 1.0, %v1073
        %v1075 = vrcp.pop %v1059
        %v1076 = vmul.f32 %v1059, %v1075
        %v1077 = vsub.f32 1.0, %v1076
        %v1078 = vmul.f32 %v1075, %v1077
        %v1079 = vadd.f32 %v1075, %v1078
        %vm1080 = vweird.f32 %v1059
        %vm1081 = vweird.f32 %v1075
        %vm1082 = vmor %vm1080, %vm1081
        %v1083 = vsel %vm1082, %v1075, %v1079
        %v1084 = vand.u32 2147483647, %v1059
        %vm1085 = vcmp.eq.f32.partialorder %v1084, 8.507059e+37
        %v1086 = vand.u32 %v1059, 2147483648
        %v1087 = vor.u32 1.1754944e-38, %v1086
        %v1088 = vsel %vm1085, %v1087, %v1083
        %v1089 = vmul.f32 1.0, %v1088
        %v1090 = vxor.u32 %v1045, 2147483648
        %v1091 = vxor.u32 %v1049, 2147483648
        %v1092 = vmul.f32 %v1090, 1.442695
        %v1093 = vpow.pop %v1092
        %v1094 = vmul.f32 %v1091, 1.442695
        %v1095 = vpow.pop %v1094
        %v1096 = vadd.f32 %v1093, 1.0
        %v1097 = vadd.f32 %v1095, 1.0
        %v1098 = vrcp.pop %v1096
        %v1099 = vmul.f32 %v1096, %v1098
        %v1100 = vsub.f32 1.0, %v1099
        %v1101 = vmul.f32 %v1098, %v1100
        %v1102 = vadd.f32 %v1098, %v1101
        %vm1103 = vweird.f32 %v1096
        %vm1104 = vweird.f32 %v1098
        %vm1105 = vmor %vm1103, %vm1104
        %v1106 = vsel %vm1105, %v1098, %v1102
        %v1107 = vand.u32 2147483647, %v1096
        %vm1108 = vcmp.eq.f32.partialorder %v1107, 8.507059e+37
        %v1109 = vand.u32 %v1096, 2147483648
        %v1110 = vor.u32 1.1754944e-38, %v1109
        %v1111 = vsel %vm1108, %v1110, %v1106
        %v1112 = vmul.f32 1.0, %v1111
        %v1113 = vrcp.pop %v1097
        %v1114 = vmul.f32 %v1097, %v1113
        %v1115 = vsub.f32 1.0, %v1114
        %v1116 = vmul.f32 %v1113, %v1115
        %v1117 = vadd.f32 %v1113, %v1116
        %vm1118 = vweird.f32 %v1097
        %vm1119 = vweird.f32 %v1113
        %vm1120 = vmor %vm1118, %vm1119
        %v1121 = vsel %vm1120, %v1113, %v1117
        %v1122 = vand.u32 2147483647, %v1097
        %vm1123 = vcmp.eq.f32.partialorder %v1122, 8.507059e+37
        %v1124 = vand.u32 %v1097, 2147483648
        %v1125 = vor.u32 1.1754944e-38, %v1124
        %v1126 = vsel %vm1123, %v1125, %v1121
        %v1127 = vmul.f32 1.0, %v1126
        %v1128 = vtanh.pop %v1046
        %v1129 = vtanh.pop %v1050
        %v1130 = vxor.u32 %v1047, 2147483648
        %v1131 = vxor.u32 %v1051, 2147483648
        %v1132 = vmul.f32 %v1130, 1.442695
        %v1133 = vpow.pop %v1132
        %v1134 = vmul.f32 %v1131, 1.442695
        %v1135 = vpow.pop %v1134
        %v1136 = vadd.f32 %v1133, 1.0
        %v1137 = vadd.f32 %v1135, 1.0
        %v1138 = vrcp.pop %v1136
        %v1139 = vmul.f32 %v1136, %v1138
        %v1140 = vsub.f32 1.0, %v1139
        %v1141 = vmul.f32 %v1138, %v1140
        %v1142 = vadd.f32 %v1138, %v1141
        %vm1143 = vweird.f32 %v1136
        %vm1144 = vweird.f32 %v1138
        %vm1145 = vmor %vm1143, %vm1144
        %v1146 = vsel %vm1145, %v1138, %v1142
        %v1147 = vand.u32 2147483647, %v1136
        %vm1148 = vcmp.eq.f32.partialorder %v1147, 8.507059e+37
        %v1149 = vand.u32 %v1136, 2147483648
        %v1150 = vor.u32 1.1754944e-38, %v1149
        %v1151 = vsel %vm1148, %v1150, %v1146
        %v1152 = vmul.f32 1.0, %v1151
        %v1153 = vrcp.pop %v1137
        %v1154 = vmul.f32 %v1137, %v1153
        %v1155 = vsub.f32 1.0, %v1154
        %v1156 = vmul.f32 %v1153, %v1155
        %v1157 = vadd.f32 %v1153, %v1156
        %vm1158 = vweird.f32 %v1137
        %vm1159 = vweird.f32 %v1153
        %vm1160 = vmor %vm1158, %vm1159
        %v1161 = vsel %vm1160, %v1153, %v1157
        %v1162 = vand.u32 2147483647, %v1137
        %vm1163 = vcmp.eq.f32.partialorder %v1162, 8.507059e+37
        %v1164 = vand.u32 %v1137, 2147483648
        %v1165 = vor.u32 1.1754944e-38, %v1164
        %v1166 = vsel %vm1163, %v1165, %v1161
        %v1167 = vmul.f32 1.0, %v1166
        %v1168 = vmul.f32 %v1112, %v972
        %v1169 = vmul.f32 %v1127, %v973
        %v1170 = vmul.f32 %v1074, %v1128
        %v1171 = vmul.f32 %v1089, %v1129
        %v1172 = vadd.f32 %v1168, %v1170
        %v1173 = vadd.f32 %v1169, %v1171
        %v1174 = vtanh.pop %v1172
        %v1175 = vtanh.pop %v1173
        %v1176 = vmul.f32 %v1152, %v1174
        %v1177 = vmul.f32 %v1167, %v1175
        %vm1178 = vcmp.gt.s32.totalorder %v342, 2
        %vm1179 = vcmp.gt.s32.totalorder %v343, 2
        %v1180 = vsel %vm1178, 1, 0
        %v1181 = vsel %vm1179, 1, 0
        %1182 = vset.pattern.permute.xlu0 0
        %1183 = vperm.xlu0 %1182, %v1180
        %v1184 = vpop.permute.xlu0 %1183
        %1185 = vset.pattern.permute.xlu0 0
        %1186 = vperm.xlu0 %1185, %v1181
        %v1187 = vpop.permute.xlu0 %1186
        %vm1188 = vcmp.eq.s32.totalorder %v1184, 1
        %vm1189 = vcmp.eq.s32.totalorder %v1187, 1
        %v1190 = vsel %vm1188, %v1176, %v970
        %v1191 = vsel %vm1189, %v1177, %v971
        %v1192 = vsel %vm1188, %v1172, %v972
        %v1193 = vsel %vm1189, %v1173, %v973
        %s1194 = scalar_lea.vmem %s294, 96 [#allocation2]
        %v1195 = vld [vmem:[%s1194] sm:$0xff]
        %v1196 = vld [vmem:[%s1194 + $0x8] sm:$0xff]
        %v1197 = vld [vmem:[%s1194 + $0x10] sm:$0xff]
        %v1198 = vld [vmem:[%s1194 + $0x18] sm:$0xff]
        %v1199 = vunpack.c.l.bf16 %v1195
        %v1200 = vunpack.c.h.bf16 %v1195
        %v1201 = vunpack.c.l.bf16 %v1196
        %v1202 = vunpack.c.h.bf16 %v1196
        %v1203 = vunpack.c.l.bf16 %v1197
        %v1204 = vunpack.c.h.bf16 %v1197
        %v1205 = vunpack.c.l.bf16 %v1198
        %v1206 = vunpack.c.h.bf16 %v1198
        %v1207 = vpack.c.bf16 %v1191, %v1190
        %1208 = vmatpush.bf16.msra.mxu0 %v512
        %1209 = vmatpush.bf16.msra.mxu0 %v508
        %1210 = vmatpush.bf16.msra.mxu0 %v504
        %1211 = vmatpush.bf16.msra.mxu0 %v500
        %1212 = vmatpush.bf16.msra.mxu0 %v496
        %1213 = vmatpush.bf16.msra.mxu0 %v492
        %1214 = vmatpush.bf16.msra.mxu0 %v488
        %1215 = vmatpush.bf16.msra.mxu0 %v484
        %1216 = vmatmul.bf16.gmra.mxu0 %v1207
        %v1217 = vpop.f32.mrf.mxu0
        %v1218 = vadd.f32 0.0, %v1217
        %v1219 = vpop.f32.mrf.mxu0
        %v1220 = vadd.f32 0.0, %v1219
        %1221 = vdwg.mxu0
        %1222 = vmatpush.bf16.msra.mxu0 %v513
        %1223 = vmatpush.bf16.msra.mxu0 %v509
        %1224 = vmatpush.bf16.msra.mxu0 %v505
        %1225 = vmatpush.bf16.msra.mxu0 %v501
        %1226 = vmatpush.bf16.msra.mxu0 %v497
        %1227 = vmatpush.bf16.msra.mxu0 %v493
        %1228 = vmatpush.bf16.msra.mxu0 %v489
        %1229 = vmatpush.bf16.msra.mxu0 %v485
        %1230 = vmatmul.bf16.gmra.mxu0 %v1207
        %v1231 = vpop.f32.mrf.mxu0
        %v1232 = vadd.f32 0.0, %v1231
        %v1233 = vpop.f32.mrf.mxu0
        %v1234 = vadd.f32 0.0, %v1233
        %1235 = vdwg.mxu0
        %1236 = vmatpush.bf16.msra.mxu0 %v514
        %1237 = vmatpush.bf16.msra.mxu0 %v510
        %1238 = vmatpush.bf16.msra.mxu0 %v506
        %1239 = vmatpush.bf16.msra.mxu0 %v502
        %1240 = vmatpush.bf16.msra.mxu0 %v498
        %1241 = vmatpush.bf16.msra.mxu0 %v494
        %1242 = vmatpush.bf16.msra.mxu0 %v490
        %1243 = vmatpush.bf16.msra.mxu0 %v486
        %1244 = vmatmul.bf16.gmra.mxu0 %v1207
        %v1245 = vpop.f32.mrf.mxu0
        %v1246 = vadd.f32 0.0, %v1245
        %v1247 = vpop.f32.mrf.mxu0
        %v1248 = vadd.f32 0.0, %v1247
        %1249 = vdwg.mxu0
        %1250 = vmatpush.bf16.msra.mxu0 %v515
        %1251 = vmatpush.bf16.msra.mxu0 %v511
        %1252 = vmatpush.bf16.msra.mxu0 %v507
        %1253 = vmatpush.bf16.msra.mxu0 %v503
        %1254 = vmatpush.bf16.msra.mxu0 %v499
        %1255 = vmatpush.bf16.msra.mxu0 %v495
        %1256 = vmatpush.bf16.msra.mxu0 %v491
        %1257 = vmatpush.bf16.msra.mxu0 %v487
        %1258 = vmatmul.bf16.gmra.mxu0 %v1207
        %v1259 = vpop.f32.mrf.mxu0
        %v1260 = vadd.f32 0.0, %v1259
        %v1261 = vpop.f32.mrf.mxu0
        %v1262 = vadd.f32 0.0, %v1261
        %1263 = vdwg.mxu0
        %v1264 = vadd.f32 %v1199, %v1218
        %v1265 = vadd.f32 %v1200, %v1232
        %v1266 = vadd.f32 %v1201, %v1246
        %v1267 = vadd.f32 %v1202, %v1260
        %v1268 = vadd.f32 %v1203, %v1220
        %v1269 = vadd.f32 %v1204, %v1234
        %v1270 = vadd.f32 %v1205, %v1248
        %v1271 = vadd.f32 %v1206, %v1262
        %v1272 = vxor.u32 %v1264, 2147483648
        %v1273 = vxor.u32 %v1268, 2147483648
        %v1274 = vmul.f32 %v1272, 1.442695
        %v1275 = vpow.pop %v1274
        %v1276 = vmul.f32 %v1273, 1.442695
        %v1277 = vpow.pop %v1276
        %v1278 = vadd.f32 %v1275, 1.0
        %v1279 = vadd.f32 %v1277, 1.0
        %v1280 = vrcp.pop %v1278
        %v1281 = vmul.f32 %v1278, %v1280
        %v1282 = vsub.f32 1.0, %v1281
        %v1283 = vmul.f32 %v1280, %v1282
        %v1284 = vadd.f32 %v1280, %v1283
        %vm1285 = vweird.f32 %v1278
        %vm1286 = vweird.f32 %v1280
        %vm1287 = vmor %vm1285, %vm1286
        %v1288 = vsel %vm1287, %v1280, %v1284
        %v1289 = vand.u32 2147483647, %v1278
        %vm1290 = vcmp.eq.f32.partialorder %v1289, 8.507059e+37
        %v1291 = vand.u32 %v1278, 2147483648
        %v1292 = vor.u32 1.1754944e-38, %v1291
        %v1293 = vsel %vm1290, %v1292, %v1288
        %v1294 = vmul.f32 1.0, %v1293
        %v1295 = vrcp.pop %v1279
        %v1296 = vmul.f32 %v1279, %v1295
        %v1297 = vsub.f32 1.0, %v1296
        %v1298 = vmul.f32 %v1295, %v1297
        %v1299 = vadd.f32 %v1295, %v1298
        %vm1300 = vweird.f32 %v1279
        %vm1301 = vweird.f32 %v1295
        %vm1302 = vmor %vm1300, %vm1301
        %v1303 = vsel %vm1302, %v1295, %v1299
        %v1304 = vand.u32 2147483647, %v1279
        %vm1305 = vcmp.eq.f32.partialorder %v1304, 8.507059e+37
        %v1306 = vand.u32 %v1279, 2147483648
        %v1307 = vor.u32 1.1754944e-38, %v1306
        %v1308 = vsel %vm1305, %v1307, %v1303
        %v1309 = vmul.f32 1.0, %v1308
        %v1310 = vxor.u32 %v1265, 2147483648
        %v1311 = vxor.u32 %v1269, 2147483648
        %v1312 = vmul.f32 %v1310, 1.442695
        %v1313 = vpow.pop %v1312
        %v1314 = vmul.f32 %v1311, 1.442695
        %v1315 = vpow.pop %v1314
        %v1316 = vadd.f32 %v1313, 1.0
        %v1317 = vadd.f32 %v1315, 1.0
        %v1318 = vrcp.pop %v1316
        %v1319 = vmul.f32 %v1316, %v1318
        %v1320 = vsub.f32 1.0, %v1319
        %v1321 = vmul.f32 %v1318, %v1320
        %v1322 = vadd.f32 %v1318, %v1321
        %vm1323 = vweird.f32 %v1316
        %vm1324 = vweird.f32 %v1318
        %vm1325 = vmor %vm1323, %vm1324
        %v1326 = vsel %vm1325, %v1318, %v1322
        %v1327 = vand.u32 2147483647, %v1316
        %vm1328 = vcmp.eq.f32.partialorder %v1327, 8.507059e+37
        %v1329 = vand.u32 %v1316, 2147483648
        %v1330 = vor.u32 1.1754944e-38, %v1329
        %v1331 = vsel %vm1328, %v1330, %v1326
        %v1332 = vmul.f32 1.0, %v1331
        %v1333 = vrcp.pop %v1317
        %v1334 = vmul.f32 %v1317, %v1333
        %v1335 = vsub.f32 1.0, %v1334
        %v1336 = vmul.f32 %v1333, %v1335
        %v1337 = vadd.f32 %v1333, %v1336
        %vm1338 = vweird.f32 %v1317
        %vm1339 = vweird.f32 %v1333
        %vm1340 = vmor %vm1338, %vm1339
        %v1341 = vsel %vm1340, %v1333, %v1337
        %v1342 = vand.u32 2147483647, %v1317
        %vm1343 = vcmp.eq.f32.partialorder %v1342, 8.507059e+37
        %v1344 = vand.u32 %v1317, 2147483648
        %v1345 = vor.u32 1.1754944e-38, %v1344
        %v1346 = vsel %vm1343, %v1345, %v1341
        %v1347 = vmul.f32 1.0, %v1346
        %v1348 = vtanh.pop %v1266
        %v1349 = vtanh.pop %v1270
        %v1350 = vxor.u32 %v1267, 2147483648
        %v1351 = vxor.u32 %v1271, 2147483648
        %v1352 = vmul.f32 %v1350, 1.442695
        %v1353 = vpow.pop %v1352
        %v1354 = vmul.f32 %v1351, 1.442695
        %v1355 = vpow.pop %v1354
        %v1356 = vadd.f32 %v1353, 1.0
        %v1357 = vadd.f32 %v1355, 1.0
        %v1358 = vrcp.pop %v1356
        %v1359 = vmul.f32 %v1356, %v1358
        %v1360 = vsub.f32 1.0, %v1359
        %v1361 = vmul.f32 %v1358, %v1360
        %v1362 = vadd.f32 %v1358, %v1361
        %vm1363 = vweird.f32 %v1356
        %vm1364 = vweird.f32 %v1358
        %vm1365 = vmor %vm1363, %vm1364
        %v1366 = vsel %vm1365, %v1358, %v1362
        %v1367 = vand.u32 2147483647, %v1356
        %vm1368 = vcmp.eq.f32.partialorder %v1367, 8.507059e+37
        %v1369 = vand.u32 %v1356, 2147483648
        %v1370 = vor.u32 1.1754944e-38, %v1369
        %v1371 = vsel %vm1368, %v1370, %v1366
        %v1372 = vmul.f32 1.0, %v1371
        %v1373 = vrcp.pop %v1357
        %v1374 = vmul.f32 %v1357, %v1373
        %v1375 = vsub.f32 1.0, %v1374
        %v1376 = vmul.f32 %v1373, %v1375
        %v1377 = vadd.f32 %v1373, %v1376
        %vm1378 = vweird.f32 %v1357
        %vm1379 = vweird.f32 %v1373
        %vm1380 = vmor %vm1378, %vm1379
        %v1381 = vsel %vm1380, %v1373, %v1377
        %v1382 = vand.u32 2147483647, %v1357
        %vm1383 = vcmp.eq.f32.partialorder %v1382, 8.507059e+37
        %v1384 = vand.u32 %v1357, 2147483648
        %v1385 = vor.u32 1.1754944e-38, %v1384
        %v1386 = vsel %vm1383, %v1385, %v1381
        %v1387 = vmul.f32 1.0, %v1386
        %v1388 = vmul.f32 %v1332, %v1192
        %v1389 = vmul.f32 %v1347, %v1193
        %v1390 = vmul.f32 %v1294, %v1348
        %v1391 = vmul.f32 %v1309, %v1349
        %v1392 = vadd.f32 %v1388, %v1390
        %v1393 = vadd.f32 %v1389, %v1391
        %v1394 = vtanh.pop %v1392
        %v1395 = vtanh.pop %v1393
        %v1396 = vmul.f32 %v1372, %v1394
        %v1397 = vmul.f32 %v1387, %v1395
        %vm1398 = vcmp.gt.s32.totalorder %v342, 3
        %vm1399 = vcmp.gt.s32.totalorder %v343, 3
        %v1400 = vsel %vm1398, 1, 0
        %v1401 = vsel %vm1399, 1, 0
        %1402 = vset.pattern.permute.xlu0 0
        %1403 = vperm.xlu0 %1402, %v1400
        %v1404 = vpop.permute.xlu0 %1403
        %1405 = vset.pattern.permute.xlu0 0
        %1406 = vperm.xlu0 %1405, %v1401
        %v1407 = vpop.permute.xlu0 %1406
        %vm1408 = vcmp.eq.s32.totalorder %v1404, 1
        %vm1409 = vcmp.eq.s32.totalorder %v1407, 1
        %v1410 = vsel %vm1408, %v1396, %v1190
        %v1411 = vsel %vm1409, %v1397, %v1191
        %v1412 = vsel %vm1408, %v1392, %v1192
        %v1413 = vsel %vm1409, %v1393, %v1193
        %s1414 = scalar_lea.vmem %s294, 128 [#allocation2]
        %v1415 = vld [vmem:[%s1414] sm:$0xff]
        %v1416 = vld [vmem:[%s1414 + $0x8] sm:$0xff]
        %v1417 = vld [vmem:[%s1414 + $0x10] sm:$0xff]
        %v1418 = vld [vmem:[%s1414 + $0x18] sm:$0xff]
        %v1419 = vunpack.c.l.bf16 %v1415
        %v1420 = vunpack.c.h.bf16 %v1415
        %v1421 = vunpack.c.l.bf16 %v1416
        %v1422 = vunpack.c.h.bf16 %v1416
        %v1423 = vunpack.c.l.bf16 %v1417
        %v1424 = vunpack.c.h.bf16 %v1417
        %v1425 = vunpack.c.l.bf16 %v1418
        %v1426 = vunpack.c.h.bf16 %v1418
        %v1427 = vpack.c.bf16 %v1411, %v1410
        %1428 = vmatpush.bf16.msra.mxu0 %v512
        %1429 = vmatpush.bf16.msra.mxu0 %v508
        %1430 = vmatpush.bf16.msra.mxu0 %v504
        %1431 = vmatpush.bf16.msra.mxu0 %v500
        %1432 = vmatpush.bf16.msra.mxu0 %v496
        %1433 = vmatpush.bf16.msra.mxu0 %v492
        %1434 = vmatpush.bf16.msra.mxu0 %v488
        %1435 = vmatpush.bf16.msra.mxu0 %v484
        %1436 = vmatmul.bf16.gmra.mxu0 %v1427
        %v1437 = vpop.f32.mrf.mxu0
        %v1438 = vadd.f32 0.0, %v1437
        %v1439 = vpop.f32.mrf.mxu0
        %v1440 = vadd.f32 0.0, %v1439
        %1441 = vdwg.mxu0
        %1442 = vmatpush.bf16.msra.mxu0 %v513
        %1443 = vmatpush.bf16.msra.mxu0 %v509
        %1444 = vmatpush.bf16.msra.mxu0 %v505
        %1445 = vmatpush.bf16.msra.mxu0 %v501
        %1446 = vmatpush.bf16.msra.mxu0 %v497
        %1447 = vmatpush.bf16.msra.mxu0 %v493
        %1448 = vmatpush.bf16.msra.mxu0 %v489
        %1449 = vmatpush.bf16.msra.mxu0 %v485
        %1450 = vmatmul.bf16.gmra.mxu0 %v1427
        %v1451 = vpop.f32.mrf.mxu0
        %v1452 = vadd.f32 0.0, %v1451
        %v1453 = vpop.f32.mrf.mxu0
        %v1454 = vadd.f32 0.0, %v1453
        %1455 = vdwg.mxu0
        %1456 = vmatpush.bf16.msra.mxu0 %v514
        %1457 = vmatpush.bf16.msra.mxu0 %v510
        %1458 = vmatpush.bf16.msra.mxu0 %v506
        %1459 = vmatpush.bf16.msra.mxu0 %v502
        %1460 = vmatpush.bf16.msra.mxu0 %v498
        %1461 = vmatpush.bf16.msra.mxu0 %v494
        %1462 = vmatpush.bf16.msra.mxu0 %v490
        %1463 = vmatpush.bf16.msra.mxu0 %v486
        %1464 = vmatmul.bf16.gmra.mxu0 %v1427
        %v1465 = vpop.f32.mrf.mxu0
        %v1466 = vadd.f32 0.0, %v1465
        %v1467 = vpop.f32.mrf.mxu0
        %v1468 = vadd.f32 0.0, %v1467
        %1469 = vdwg.mxu0
        %1470 = vmatpush.bf16.msra.mxu0 %v515
        %1471 = vmatpush.bf16.msra.mxu0 %v511
        %1472 = vmatpush.bf16.msra.mxu0 %v507
        %1473 = vmatpush.bf16.msra.mxu0 %v503
        %1474 = vmatpush.bf16.msra.mxu0 %v499
        %1475 = vmatpush.bf16.msra.mxu0 %v495
        %1476 = vmatpush.bf16.msra.mxu0 %v491
        %1477 = vmatpush.bf16.msra.mxu0 %v487
        %1478 = vmatmul.bf16.gmra.mxu0 %v1427
        %v1479 = vpop.f32.mrf.mxu0
        %v1480 = vadd.f32 0.0, %v1479
        %v1481 = vpop.f32.mrf.mxu0
        %v1482 = vadd.f32 0.0, %v1481
        %1483 = vdwg.mxu0
        %v1484 = vadd.f32 %v1419, %v1438
        %v1485 = vadd.f32 %v1420, %v1452
        %v1486 = vadd.f32 %v1421, %v1466
        %v1487 = vadd.f32 %v1422, %v1480
        %v1488 = vadd.f32 %v1423, %v1440
        %v1489 = vadd.f32 %v1424, %v1454
        %v1490 = vadd.f32 %v1425, %v1468
        %v1491 = vadd.f32 %v1426, %v1482
        %v1492 = vxor.u32 %v1484, 2147483648
        %v1493 = vxor.u32 %v1488, 2147483648
        %v1494 = vmul.f32 %v1492, 1.442695
        %v1495 = vpow.pop %v1494
        %v1496 = vmul.f32 %v1493, 1.442695
        %v1497 = vpow.pop %v1496
        %v1498 = vadd.f32 %v1495, 1.0
        %v1499 = vadd.f32 %v1497, 1.0
        %v1500 = vrcp.pop %v1498
        %v1501 = vmul.f32 %v1498, %v1500
        %v1502 = vsub.f32 1.0, %v1501
        %v1503 = vmul.f32 %v1500, %v1502
        %v1504 = vadd.f32 %v1500, %v1503
        %vm1505 = vweird.f32 %v1498
        %vm1506 = vweird.f32 %v1500
        %vm1507 = vmor %vm1505, %vm1506
        %v1508 = vsel %vm1507, %v1500, %v1504
        %v1509 = vand.u32 2147483647, %v1498
        %vm1510 = vcmp.eq.f32.partialorder %v1509, 8.507059e+37
        %v1511 = vand.u32 %v1498, 2147483648
        %v1512 = vor.u32 1.1754944e-38, %v1511
        %v1513 = vsel %vm1510, %v1512, %v1508
        %v1514 = vmul.f32 1.0, %v1513
        %v1515 = vrcp.pop %v1499
        %v1516 = vmul.f32 %v1499, %v1515
        %v1517 = vsub.f32 1.0, %v1516
        %v1518 = vmul.f32 %v1515, %v1517
        %v1519 = vadd.f32 %v1515, %v1518
        %vm1520 = vweird.f32 %v1499
        %vm1521 = vweird.f32 %v1515
        %vm1522 = vmor %vm1520, %vm1521
        %v1523 = vsel %vm1522, %v1515, %v1519
        %v1524 = vand.u32 2147483647, %v1499
        %vm1525 = vcmp.eq.f32.partialorder %v1524, 8.507059e+37
        %v1526 = vand.u32 %v1499, 2147483648
        %v1527 = vor.u32 1.1754944e-38, %v1526
        %v1528 = vsel %vm1525, %v1527, %v1523
        %v1529 = vmul.f32 1.0, %v1528
        %v1530 = vxor.u32 %v1485, 2147483648
        %v1531 = vxor.u32 %v1489, 2147483648
        %v1532 = vmul.f32 %v1530, 1.442695
        %v1533 = vpow.pop %v1532
        %v1534 = vmul.f32 %v1531, 1.442695
        %v1535 = vpow.pop %v1534
        %v1536 = vadd.f32 %v1533, 1.0
        %v1537 = vadd.f32 %v1535, 1.0
        %v1538 = vrcp.pop %v1536
        %v1539 = vmul.f32 %v1536, %v1538
        %v1540 = vsub.f32 1.0, %v1539
        %v1541 = vmul.f32 %v1538, %v1540
        %v1542 = vadd.f32 %v1538, %v1541
        %vm1543 = vweird.f32 %v1536
        %vm1544 = vweird.f32 %v1538
        %vm1545 = vmor %vm1543, %vm1544
        %v1546 = vsel %vm1545, %v1538, %v1542
        %v1547 = vand.u32 2147483647, %v1536
        %vm1548 = vcmp.eq.f32.partialorder %v1547, 8.507059e+37
        %v1549 = vand.u32 %v1536, 2147483648
        %v1550 = vor.u32 1.1754944e-38, %v1549
        %v1551 = vsel %vm1548, %v1550, %v1546
        %v1552 = vmul.f32 1.0, %v1551
        %v1553 = vrcp.pop %v1537
        %v1554 = vmul.f32 %v1537, %v1553
        %v1555 = vsub.f32 1.0, %v1554
        %v1556 = vmul.f32 %v1553, %v1555
        %v1557 = vadd.f32 %v1553, %v1556
        %vm1558 = vweird.f32 %v1537
        %vm1559 = vweird.f32 %v1553
        %vm1560 = vmor %vm1558, %vm1559
        %v1561 = vsel %vm1560, %v1553, %v1557
        %v1562 = vand.u32 2147483647, %v1537
        %vm1563 = vcmp.eq.f32.partialorder %v1562, 8.507059e+37
        %v1564 = vand.u32 %v1537, 2147483648
        %v1565 = vor.u32 1.1754944e-38, %v1564
        %v1566 = vsel %vm1563, %v1565, %v1561
        %v1567 = vmul.f32 1.0, %v1566
        %v1568 = vtanh.pop %v1486
        %v1569 = vtanh.pop %v1490
        %v1570 = vxor.u32 %v1487, 2147483648
        %v1571 = vxor.u32 %v1491, 2147483648
        %v1572 = vmul.f32 %v1570, 1.442695
        %v1573 = vpow.pop %v1572
        %v1574 = vmul.f32 %v1571, 1.442695
        %v1575 = vpow.pop %v1574
        %v1576 = vadd.f32 %v1573, 1.0
        %v1577 = vadd.f32 %v1575, 1.0
        %v1578 = vrcp.pop %v1576
        %v1579 = vmul.f32 %v1576, %v1578
        %v1580 = vsub.f32 1.0, %v1579
        %v1581 = vmul.f32 %v1578, %v1580
        %v1582 = vadd.f32 %v1578, %v1581
        %vm1583 = vweird.f32 %v1576
        %vm1584 = vweird.f32 %v1578
        %vm1585 = vmor %vm1583, %vm1584
        %v1586 = vsel %vm1585, %v1578, %v1582
        %v1587 = vand.u32 2147483647, %v1576
        %vm1588 = vcmp.eq.f32.partialorder %v1587, 8.507059e+37
        %v1589 = vand.u32 %v1576, 2147483648
        %v1590 = vor.u32 1.1754944e-38, %v1589
        %v1591 = vsel %vm1588, %v1590, %v1586
        %v1592 = vmul.f32 1.0, %v1591
        %v1593 = vrcp.pop %v1577
        %v1594 = vmul.f32 %v1577, %v1593
        %v1595 = vsub.f32 1.0, %v1594
        %v1596 = vmul.f32 %v1593, %v1595
        %v1597 = vadd.f32 %v1593, %v1596
        %vm1598 = vweird.f32 %v1577
        %vm1599 = vweird.f32 %v1593
        %vm1600 = vmor %vm1598, %vm1599
        %v1601 = vsel %vm1600, %v1593, %v1597
        %v1602 = vand.u32 2147483647, %v1577
        %vm1603 = vcmp.eq.f32.partialorder %v1602, 8.507059e+37
        %v1604 = vand.u32 %v1577, 2147483648
        %v1605 = vor.u32 1.1754944e-38, %v1604
        %v1606 = vsel %vm1603, %v1605, %v1601
        %v1607 = vmul.f32 1.0, %v1606
        %v1608 = vmul.f32 %v1552, %v1412
        %v1609 = vmul.f32 %v1567, %v1413
        %v1610 = vmul.f32 %v1514, %v1568
        %v1611 = vmul.f32 %v1529, %v1569
        %v1612 = vadd.f32 %v1608, %v1610
        %v1613 = vadd.f32 %v1609, %v1611
        %v1614 = vtanh.pop %v1612
        %v1615 = vtanh.pop %v1613
        %v1616 = vmul.f32 %v1592, %v1614
        %v1617 = vmul.f32 %v1607, %v1615
        %vm1618 = vcmp.gt.s32.totalorder %v342, 4
        %vm1619 = vcmp.gt.s32.totalorder %v343, 4
        %v1620 = vsel %vm1618, 1, 0
        %v1621 = vsel %vm1619, 1, 0
        %1622 = vset.pattern.permute.xlu0 0
        %1623 = vperm.xlu0 %1622, %v1620
        %v1624 = vpop.permute.xlu0 %1623
        %1625 = vset.pattern.permute.xlu0 0
        %1626 = vperm.xlu0 %1625, %v1621
        %v1627 = vpop.permute.xlu0 %1626
        %vm1628 = vcmp.eq.s32.totalorder %v1624, 1
        %vm1629 = vcmp.eq.s32.totalorder %v1627, 1
        %v1630 = vsel %vm1628, %v1616, %v1410
        %v1631 = vsel %vm1629, %v1617, %v1411
        %v1632 = vsel %vm1628, %v1612, %v1412
        %v1633 = vsel %vm1629, %v1613, %v1413
        %s1634 = scalar_lea.vmem %s294, 160 [#allocation2]
        %v1635 = vld [vmem:[%s1634] sm:$0xff]
        %v1636 = vld [vmem:[%s1634 + $0x8] sm:$0xff]
        %v1637 = vld [vmem:[%s1634 + $0x10] sm:$0xff]
        %v1638 = vld [vmem:[%s1634 + $0x18] sm:$0xff]
        %v1639 = vunpack.c.l.bf16 %v1635
        %v1640 = vunpack.c.h.bf16 %v1635
        %v1641 = vunpack.c.l.bf16 %v1636
        %v1642 = vunpack.c.h.bf16 %v1636
        %v1643 = vunpack.c.l.bf16 %v1637
        %v1644 = vunpack.c.h.bf16 %v1637
        %v1645 = vunpack.c.l.bf16 %v1638
        %v1646 = vunpack.c.h.bf16 %v1638
        %v1647 = vpack.c.bf16 %v1631, %v1630
        %1648 = vmatpush.bf16.msra.mxu0 %v512
        %1649 = vmatpush.bf16.msra.mxu0 %v508
        %1650 = vmatpush.bf16.msra.mxu0 %v504
        %1651 = vmatpush.bf16.msra.mxu0 %v500
        %1652 = vmatpush.bf16.msra.mxu0 %v496
        %1653 = vmatpush.bf16.msra.mxu0 %v492
        %1654 = vmatpush.bf16.msra.mxu0 %v488
        %1655 = vmatpush.bf16.msra.mxu0 %v484
        %1656 = vmatmul.bf16.gmra.mxu0 %v1647
        %v1657 = vpop.f32.mrf.mxu0
        %v1658 = vadd.f32 0.0, %v1657
        %v1659 = vpop.f32.mrf.mxu0
        %v1660 = vadd.f32 0.0, %v1659
        %1661 = vdwg.mxu0
        %1662 = vmatpush.bf16.msra.mxu0 %v513
        %1663 = vmatpush.bf16.msra.mxu0 %v509
        %1664 = vmatpush.bf16.msra.mxu0 %v505
        %1665 = vmatpush.bf16.msra.mxu0 %v501
        %1666 = vmatpush.bf16.msra.mxu0 %v497
        %1667 = vmatpush.bf16.msra.mxu0 %v493
        %1668 = vmatpush.bf16.msra.mxu0 %v489
        %1669 = vmatpush.bf16.msra.mxu0 %v485
        %1670 = vmatmul.bf16.gmra.mxu0 %v1647
        %v1671 = vpop.f32.mrf.mxu0
        %v1672 = vadd.f32 0.0, %v1671
        %v1673 = vpop.f32.mrf.mxu0
        %v1674 = vadd.f32 0.0, %v1673
        %1675 = vdwg.mxu0
        %1676 = vmatpush.bf16.msra.mxu0 %v514
        %1677 = vmatpush.bf16.msra.mxu0 %v510
        %1678 = vmatpush.bf16.msra.mxu0 %v506
        %1679 = vmatpush.bf16.msra.mxu0 %v502
        %1680 = vmatpush.bf16.msra.mxu0 %v498
        %1681 = vmatpush.bf16.msra.mxu0 %v494
        %1682 = vmatpush.bf16.msra.mxu0 %v490
        %1683 = vmatpush.bf16.msra.mxu0 %v486
        %1684 = vmatmul.bf16.gmra.mxu0 %v1647
        %v1685 = vpop.f32.mrf.mxu0
        %v1686 = vadd.f32 0.0, %v1685
        %v1687 = vpop.f32.mrf.mxu0
        %v1688 = vadd.f32 0.0, %v1687
        %1689 = vdwg.mxu0
        %1690 = vmatpush.bf16.msra.mxu0 %v515
        %1691 = vmatpush.bf16.msra.mxu0 %v511
        %1692 = vmatpush.bf16.msra.mxu0 %v507
        %1693 = vmatpush.bf16.msra.mxu0 %v503
        %1694 = vmatpush.bf16.msra.mxu0 %v499
        %1695 = vmatpush.bf16.msra.mxu0 %v495
        %1696 = vmatpush.bf16.msra.mxu0 %v491
        %1697 = vmatpush.bf16.msra.mxu0 %v487
        %1698 = vmatmul.bf16.gmra.mxu0 %v1647
        %v1699 = vpop.f32.mrf.mxu0
        %v1700 = vadd.f32 0.0, %v1699
        %v1701 = vpop.f32.mrf.mxu0
        %v1702 = vadd.f32 0.0, %v1701
        %1703 = vdwg.mxu0
        %v1704 = vadd.f32 %v1639, %v1658
        %v1705 = vadd.f32 %v1640, %v1672
        %v1706 = vadd.f32 %v1641, %v1686
        %v1707 = vadd.f32 %v1642, %v1700
        %v1708 = vadd.f32 %v1643, %v1660
        %v1709 = vadd.f32 %v1644, %v1674
        %v1710 = vadd.f32 %v1645, %v1688
        %v1711 = vadd.f32 %v1646, %v1702
        %v1712 = vxor.u32 %v1704, 2147483648
        %v1713 = vxor.u32 %v1708, 2147483648
        %v1714 = vmul.f32 %v1712, 1.442695
        %v1715 = vpow.pop %v1714
        %v1716 = vmul.f32 %v1713, 1.442695
        %v1717 = vpow.pop %v1716
        %v1718 = vadd.f32 %v1715, 1.0
        %v1719 = vadd.f32 %v1717, 1.0
        %v1720 = vrcp.pop %v1718
        %v1721 = vmul.f32 %v1718, %v1720
        %v1722 = vsub.f32 1.0, %v1721
        %v1723 = vmul.f32 %v1720, %v1722
        %v1724 = vadd.f32 %v1720, %v1723
        %vm1725 = vweird.f32 %v1718
        %vm1726 = vweird.f32 %v1720
        %vm1727 = vmor %vm1725, %vm1726
        %v1728 = vsel %vm1727, %v1720, %v1724
        %v1729 = vand.u32 2147483647, %v1718
        %vm1730 = vcmp.eq.f32.partialorder %v1729, 8.507059e+37
        %v1731 = vand.u32 %v1718, 2147483648
        %v1732 = vor.u32 1.1754944e-38, %v1731
        %v1733 = vsel %vm1730, %v1732, %v1728
        %v1734 = vmul.f32 1.0, %v1733
        %v1735 = vrcp.pop %v1719
        %v1736 = vmul.f32 %v1719, %v1735
        %v1737 = vsub.f32 1.0, %v1736
        %v1738 = vmul.f32 %v1735, %v1737
        %v1739 = vadd.f32 %v1735, %v1738
        %vm1740 = vweird.f32 %v1719
        %vm1741 = vweird.f32 %v1735
        %vm1742 = vmor %vm1740, %vm1741
        %v1743 = vsel %vm1742, %v1735, %v1739
        %v1744 = vand.u32 2147483647, %v1719
        %vm1745 = vcmp.eq.f32.partialorder %v1744, 8.507059e+37
        %v1746 = vand.u32 %v1719, 2147483648
        %v1747 = vor.u32 1.1754944e-38, %v1746
        %v1748 = vsel %vm1745, %v1747, %v1743
        %v1749 = vmul.f32 1.0, %v1748
        %v1750 = vxor.u32 %v1705, 2147483648
        %v1751 = vxor.u32 %v1709, 2147483648
        %v1752 = vmul.f32 %v1750, 1.442695
        %v1753 = vpow.pop %v1752
        %v1754 = vmul.f32 %v1751, 1.442695
        %v1755 = vpow.pop %v1754
        %v1756 = vadd.f32 %v1753, 1.0
        %v1757 = vadd.f32 %v1755, 1.0
        %v1758 = vrcp.pop %v1756
        %v1759 = vmul.f32 %v1756, %v1758
        %v1760 = vsub.f32 1.0, %v1759
        %v1761 = vmul.f32 %v1758, %v1760
        %v1762 = vadd.f32 %v1758, %v1761
        %vm1763 = vweird.f32 %v1756
        %vm1764 = vweird.f32 %v1758
        %vm1765 = vmor %vm1763, %vm1764
        %v1766 = vsel %vm1765, %v1758, %v1762
        %v1767 = vand.u32 2147483647, %v1756
        %vm1768 = vcmp.eq.f32.partialorder %v1767, 8.507059e+37
        %v1769 = vand.u32 %v1756, 2147483648
        %v1770 = vor.u32 1.1754944e-38, %v1769
        %v1771 = vsel %vm1768, %v1770, %v1766
        %v1772 = vmul.f32 1.0, %v1771
        %v1773 = vrcp.pop %v1757
        %v1774 = vmul.f32 %v1757, %v1773
        %v1775 = vsub.f32 1.0, %v1774
        %v1776 = vmul.f32 %v1773, %v1775
        %v1777 = vadd.f32 %v1773, %v1776
        %vm1778 = vweird.f32 %v1757
        %vm1779 = vweird.f32 %v1773
        %vm1780 = vmor %vm1778, %vm1779
        %v1781 = vsel %vm1780, %v1773, %v1777
        %v1782 = vand.u32 2147483647, %v1757
        %vm1783 = vcmp.eq.f32.partialorder %v1782, 8.507059e+37
        %v1784 = vand.u32 %v1757, 2147483648
        %v1785 = vor.u32 1.1754944e-38, %v1784
        %v1786 = vsel %vm1783, %v1785, %v1781
        %v1787 = vmul.f32 1.0, %v1786
        %v1788 = vtanh.pop %v1706
        %v1789 = vtanh.pop %v1710
        %v1790 = vxor.u32 %v1707, 2147483648
        %v1791 = vxor.u32 %v1711, 2147483648
        %v1792 = vmul.f32 %v1790, 1.442695
        %v1793 = vpow.pop %v1792
        %v1794 = vmul.f32 %v1791, 1.442695
        %v1795 = vpow.pop %v1794
        %v1796 = vadd.f32 %v1793, 1.0
        %v1797 = vadd.f32 %v1795, 1.0
        %v1798 = vrcp.pop %v1796
        %v1799 = vmul.f32 %v1796, %v1798
        %v1800 = vsub.f32 1.0, %v1799
        %v1801 = vmul.f32 %v1798, %v1800
        %v1802 = vadd.f32 %v1798, %v1801
        %vm1803 = vweird.f32 %v1796
        %vm1804 = vweird.f32 %v1798
        %vm1805 = vmor %vm1803, %vm1804
        %v1806 = vsel %vm1805, %v1798, %v1802
        %v1807 = vand.u32 2147483647, %v1796
        %vm1808 = vcmp.eq.f32.partialorder %v1807, 8.507059e+37
        %v1809 = vand.u32 %v1796, 2147483648
        %v1810 = vor.u32 1.1754944e-38, %v1809
        %v1811 = vsel %vm1808, %v1810, %v1806
        %v1812 = vmul.f32 1.0, %v1811
        %v1813 = vrcp.pop %v1797
        %v1814 = vmul.f32 %v1797, %v1813
        %v1815 = vsub.f32 1.0, %v1814
        %v1816 = vmul.f32 %v1813, %v1815
        %v1817 = vadd.f32 %v1813, %v1816
        %vm1818 = vweird.f32 %v1797
        %vm1819 = vweird.f32 %v1813
        %vm1820 = vmor %vm1818, %vm1819
        %v1821 = vsel %vm1820, %v1813, %v1817
        %v1822 = vand.u32 2147483647, %v1797
        %vm1823 = vcmp.eq.f32.partialorder %v1822, 8.507059e+37
        %v1824 = vand.u32 %v1797, 2147483648
        %v1825 = vor.u32 1.1754944e-38, %v1824
        %v1826 = vsel %vm1823, %v1825, %v1821
        %v1827 = vmul.f32 1.0, %v1826
        %v1828 = vmul.f32 %v1772, %v1632
        %v1829 = vmul.f32 %v1787, %v1633
        %v1830 = vmul.f32 %v1734, %v1788
        %v1831 = vmul.f32 %v1749, %v1789
        %v1832 = vadd.f32 %v1828, %v1830
        %v1833 = vadd.f32 %v1829, %v1831
        %v1834 = vtanh.pop %v1832
        %v1835 = vtanh.pop %v1833
        %v1836 = vmul.f32 %v1812, %v1834
        %v1837 = vmul.f32 %v1827, %v1835
        %vm1838 = vcmp.gt.s32.totalorder %v342, 5
        %vm1839 = vcmp.gt.s32.totalorder %v343, 5
        %v1840 = vsel %vm1838, 1, 0
        %v1841 = vsel %vm1839, 1, 0
        %1842 = vset.pattern.permute.xlu0 0
        %1843 = vperm.xlu0 %1842, %v1840
        %v1844 = vpop.permute.xlu0 %1843
        %1845 = vset.pattern.permute.xlu0 0
        %1846 = vperm.xlu0 %1845, %v1841
        %v1847 = vpop.permute.xlu0 %1846
        %vm1848 = vcmp.eq.s32.totalorder %v1844, 1
        %vm1849 = vcmp.eq.s32.totalorder %v1847, 1
        %v1850 = vsel %vm1848, %v1836, %v1630
        %v1851 = vsel %vm1849, %v1837, %v1631
        %v1852 = vsel %vm1848, %v1832, %v1632
        %v1853 = vsel %vm1849, %v1833, %v1633
        %s1854 = scalar_lea.vmem %s294, 192 [#allocation2]
        %v1855 = vld [vmem:[%s1854] sm:$0xff]
        %v1856 = vld [vmem:[%s1854 + $0x8] sm:$0xff]
        %v1857 = vld [vmem:[%s1854 + $0x10] sm:$0xff]
        %v1858 = vld [vmem:[%s1854 + $0x18] sm:$0xff]
        %v1859 = vunpack.c.l.bf16 %v1855
        %v1860 = vunpack.c.h.bf16 %v1855
        %v1861 = vunpack.c.l.bf16 %v1856
        %v1862 = vunpack.c.h.bf16 %v1856
        %v1863 = vunpack.c.l.bf16 %v1857
        %v1864 = vunpack.c.h.bf16 %v1857
        %v1865 = vunpack.c.l.bf16 %v1858
        %v1866 = vunpack.c.h.bf16 %v1858
        %v1867 = vpack.c.bf16 %v1851, %v1850
        %1868 = vmatpush.bf16.msra.mxu0 %v512
        %1869 = vmatpush.bf16.msra.mxu0 %v508
        %1870 = vmatpush.bf16.msra.mxu0 %v504
        %1871 = vmatpush.bf16.msra.mxu0 %v500
        %1872 = vmatpush.bf16.msra.mxu0 %v496
        %1873 = vmatpush.bf16.msra.mxu0 %v492
        %1874 = vmatpush.bf16.msra.mxu0 %v488
        %1875 = vmatpush.bf16.msra.mxu0 %v484
        %1876 = vmatmul.bf16.gmra.mxu0 %v1867
        %v1877 = vpop.f32.mrf.mxu0
        %v1878 = vadd.f32 0.0, %v1877
        %v1879 = vpop.f32.mrf.mxu0
        %v1880 = vadd.f32 0.0, %v1879
        %1881 = vdwg.mxu0
        %1882 = vmatpush.bf16.msra.mxu0 %v513
        %1883 = vmatpush.bf16.msra.mxu0 %v509
        %1884 = vmatpush.bf16.msra.mxu0 %v505
        %1885 = vmatpush.bf16.msra.mxu0 %v501
        %1886 = vmatpush.bf16.msra.mxu0 %v497
        %1887 = vmatpush.bf16.msra.mxu0 %v493
        %1888 = vmatpush.bf16.msra.mxu0 %v489
        %1889 = vmatpush.bf16.msra.mxu0 %v485
        %1890 = vmatmul.bf16.gmra.mxu0 %v1867
        %v1891 = vpop.f32.mrf.mxu0
        %v1892 = vadd.f32 0.0, %v1891
        %v1893 = vpop.f32.mrf.mxu0
        %v1894 = vadd.f32 0.0, %v1893
        %1895 = vdwg.mxu0
        %1896 = vmatpush.bf16.msra.mxu0 %v514
        %1897 = vmatpush.bf16.msra.mxu0 %v510
        %1898 = vmatpush.bf16.msra.mxu0 %v506
        %1899 = vmatpush.bf16.msra.mxu0 %v502
        %1900 = vmatpush.bf16.msra.mxu0 %v498
        %1901 = vmatpush.bf16.msra.mxu0 %v494
        %1902 = vmatpush.bf16.msra.mxu0 %v490
        %1903 = vmatpush.bf16.msra.mxu0 %v486
        %1904 = vmatmul.bf16.gmra.mxu0 %v1867
        %v1905 = vpop.f32.mrf.mxu0
        %v1906 = vadd.f32 0.0, %v1905
        %v1907 = vpop.f32.mrf.mxu0
        %v1908 = vadd.f32 0.0, %v1907
        %1909 = vdwg.mxu0
        %1910 = vmatpush.bf16.msra.mxu0 %v515
        %1911 = vmatpush.bf16.msra.mxu0 %v511
        %1912 = vmatpush.bf16.msra.mxu0 %v507
        %1913 = vmatpush.bf16.msra.mxu0 %v503
        %1914 = vmatpush.bf16.msra.mxu0 %v499
        %1915 = vmatpush.bf16.msra.mxu0 %v495
        %1916 = vmatpush.bf16.msra.mxu0 %v491
        %1917 = vmatpush.bf16.msra.mxu0 %v487
        %1918 = vmatmul.bf16.gmra.mxu0 %v1867
        %v1919 = vpop.f32.mrf.mxu0
        %v1920 = vadd.f32 0.0, %v1919
        %v1921 = vpop.f32.mrf.mxu0
        %v1922 = vadd.f32 0.0, %v1921
        %1923 = vdwg.mxu0
        %v1924 = vadd.f32 %v1859, %v1878
        %v1925 = vadd.f32 %v1860, %v1892
        %v1926 = vadd.f32 %v1861, %v1906
        %v1927 = vadd.f32 %v1862, %v1920
        %v1928 = vadd.f32 %v1863, %v1880
        %v1929 = vadd.f32 %v1864, %v1894
        %v1930 = vadd.f32 %v1865, %v1908
        %v1931 = vadd.f32 %v1866, %v1922
        %v1932 = vxor.u32 %v1924, 2147483648
        %v1933 = vxor.u32 %v1928, 2147483648
        %v1934 = vmul.f32 %v1932, 1.442695
        %v1935 = vpow.pop %v1934
        %v1936 = vmul.f32 %v1933, 1.442695
        %v1937 = vpow.pop %v1936
        %v1938 = vadd.f32 %v1935, 1.0
        %v1939 = vadd.f32 %v1937, 1.0
        %v1940 = vrcp.pop %v1938
        %v1941 = vmul.f32 %v1938, %v1940
        %v1942 = vsub.f32 1.0, %v1941
        %v1943 = vmul.f32 %v1940, %v1942
        %v1944 = vadd.f32 %v1940, %v1943
        %vm1945 = vweird.f32 %v1938
        %vm1946 = vweird.f32 %v1940
        %vm1947 = vmor %vm1945, %vm1946
        %v1948 = vsel %vm1947, %v1940, %v1944
        %v1949 = vand.u32 2147483647, %v1938
        %vm1950 = vcmp.eq.f32.partialorder %v1949, 8.507059e+37
        %v1951 = vand.u32 %v1938, 2147483648
        %v1952 = vor.u32 1.1754944e-38, %v1951
        %v1953 = vsel %vm1950, %v1952, %v1948
        %v1954 = vmul.f32 1.0, %v1953
        %v1955 = vrcp.pop %v1939
        %v1956 = vmul.f32 %v1939, %v1955
        %v1957 = vsub.f32 1.0, %v1956
        %v1958 = vmul.f32 %v1955, %v1957
        %v1959 = vadd.f32 %v1955, %v1958
        %vm1960 = vweird.f32 %v1939
        %vm1961 = vweird.f32 %v1955
        %vm1962 = vmor %vm1960, %vm1961
        %v1963 = vsel %vm1962, %v1955, %v1959
        %v1964 = vand.u32 2147483647, %v1939
        %vm1965 = vcmp.eq.f32.partialorder %v1964, 8.507059e+37
        %v1966 = vand.u32 %v1939, 2147483648
        %v1967 = vor.u32 1.1754944e-38, %v1966
        %v1968 = vsel %vm1965, %v1967, %v1963
        %v1969 = vmul.f32 1.0, %v1968
        %v1970 = vxor.u32 %v1925, 2147483648
        %v1971 = vxor.u32 %v1929, 2147483648
        %v1972 = vmul.f32 %v1970, 1.442695
        %v1973 = vpow.pop %v1972
        %v1974 = vmul.f32 %v1971, 1.442695
        %v1975 = vpow.pop %v1974
        %v1976 = vadd.f32 %v1973, 1.0
        %v1977 = vadd.f32 %v1975, 1.0
        %v1978 = vrcp.pop %v1976
        %v1979 = vmul.f32 %v1976, %v1978
        %v1980 = vsub.f32 1.0, %v1979
        %v1981 = vmul.f32 %v1978, %v1980
        %v1982 = vadd.f32 %v1978, %v1981
        %vm1983 = vweird.f32 %v1976
        %vm1984 = vweird.f32 %v1978
        %vm1985 = vmor %vm1983, %vm1984
        %v1986 = vsel %vm1985, %v1978, %v1982
        %v1987 = vand.u32 2147483647, %v1976
        %vm1988 = vcmp.eq.f32.partialorder %v1987, 8.507059e+37
        %v1989 = vand.u32 %v1976, 2147483648
        %v1990 = vor.u32 1.1754944e-38, %v1989
        %v1991 = vsel %vm1988, %v1990, %v1986
        %v1992 = vmul.f32 1.0, %v1991
        %v1993 = vrcp.pop %v1977
        %v1994 = vmul.f32 %v1977, %v1993
        %v1995 = vsub.f32 1.0, %v1994
        %v1996 = vmul.f32 %v1993, %v1995
        %v1997 = vadd.f32 %v1993, %v1996
        %vm1998 = vweird.f32 %v1977
        %vm1999 = vweird.f32 %v1993
        %vm2000 = vmor %vm1998, %vm1999
        %v2001 = vsel %vm2000, %v1993, %v1997
        %v2002 = vand.u32 2147483647, %v1977
        %vm2003 = vcmp.eq.f32.partialorder %v2002, 8.507059e+37
        %v2004 = vand.u32 %v1977, 2147483648
        %v2005 = vor.u32 1.1754944e-38, %v2004
        %v2006 = vsel %vm2003, %v2005, %v2001
        %v2007 = vmul.f32 1.0, %v2006
        %v2008 = vtanh.pop %v1926
        %v2009 = vtanh.pop %v1930
        %v2010 = vxor.u32 %v1927, 2147483648
        %v2011 = vxor.u32 %v1931, 2147483648
        %v2012 = vmul.f32 %v2010, 1.442695
        %v2013 = vpow.pop %v2012
        %v2014 = vmul.f32 %v2011, 1.442695
        %v2015 = vpow.pop %v2014
        %v2016 = vadd.f32 %v2013, 1.0
        %v2017 = vadd.f32 %v2015, 1.0
        %v2018 = vrcp.pop %v2016
        %v2019 = vmul.f32 %v2016, %v2018
        %v2020 = vsub.f32 1.0, %v2019
        %v2021 = vmul.f32 %v2018, %v2020
        %v2022 = vadd.f32 %v2018, %v2021
        %vm2023 = vweird.f32 %v2016
        %vm2024 = vweird.f32 %v2018
        %vm2025 = vmor %vm2023, %vm2024
        %v2026 = vsel %vm2025, %v2018, %v2022
        %v2027 = vand.u32 2147483647, %v2016
        %vm2028 = vcmp.eq.f32.partialorder %v2027, 8.507059e+37
        %v2029 = vand.u32 %v2016, 2147483648
        %v2030 = vor.u32 1.1754944e-38, %v2029
        %v2031 = vsel %vm2028, %v2030, %v2026
        %v2032 = vmul.f32 1.0, %v2031
        %v2033 = vrcp.pop %v2017
        %v2034 = vmul.f32 %v2017, %v2033
        %v2035 = vsub.f32 1.0, %v2034
        %v2036 = vmul.f32 %v2033, %v2035
        %v2037 = vadd.f32 %v2033, %v2036
        %vm2038 = vweird.f32 %v2017
        %vm2039 = vweird.f32 %v2033
        %vm2040 = vmor %vm2038, %vm2039
        %v2041 = vsel %vm2040, %v2033, %v2037
        %v2042 = vand.u32 2147483647, %v2017
        %vm2043 = vcmp.eq.f32.partialorder %v2042, 8.507059e+37
        %v2044 = vand.u32 %v2017, 2147483648
        %v2045 = vor.u32 1.1754944e-38, %v2044
        %v2046 = vsel %vm2043, %v2045, %v2041
        %v2047 = vmul.f32 1.0, %v2046
        %v2048 = vmul.f32 %v1992, %v1852
        %v2049 = vmul.f32 %v2007, %v1853
        %v2050 = vmul.f32 %v1954, %v2008
        %v2051 = vmul.f32 %v1969, %v2009
        %v2052 = vadd.f32 %v2048, %v2050
        %v2053 = vadd.f32 %v2049, %v2051
        %v2054 = vtanh.pop %v2052
        %v2055 = vtanh.pop %v2053
        %v2056 = vmul.f32 %v2032, %v2054
        %v2057 = vmul.f32 %v2047, %v2055
        %vm2058 = vcmp.gt.s32.totalorder %v342, 6
        %vm2059 = vcmp.gt.s32.totalorder %v343, 6
        %v2060 = vsel %vm2058, 1, 0
        %v2061 = vsel %vm2059, 1, 0
        %2062 = vset.pattern.permute.xlu0 0
        %2063 = vperm.xlu0 %2062, %v2060
        %v2064 = vpop.permute.xlu0 %2063
        %2065 = vset.pattern.permute.xlu0 0
        %2066 = vperm.xlu0 %2065, %v2061
        %v2067 = vpop.permute.xlu0 %2066
        %vm2068 = vcmp.eq.s32.totalorder %v2064, 1
        %vm2069 = vcmp.eq.s32.totalorder %v2067, 1
        %v2070 = vsel %vm2068, %v2056, %v1850
        %v2071 = vsel %vm2069, %v2057, %v1851
        %v2072 = vsel %vm2068, %v2052, %v1852
        %v2073 = vsel %vm2069, %v2053, %v1853
        %s2074 = scalar_lea.vmem %s294, 224 [#allocation2]
        %v2075 = vld [vmem:[%s2074] sm:$0xff]
        %v2076 = vld [vmem:[%s2074 + $0x8] sm:$0xff]
        %v2077 = vld [vmem:[%s2074 + $0x10] sm:$0xff]
        %v2078 = vld [vmem:[%s2074 + $0x18] sm:$0xff]
        %v2079 = vunpack.c.l.bf16 %v2075
        %v2080 = vunpack.c.h.bf16 %v2075
        %v2081 = vunpack.c.l.bf16 %v2076
        %v2082 = vunpack.c.h.bf16 %v2076
        %v2083 = vunpack.c.l.bf16 %v2077
        %v2084 = vunpack.c.h.bf16 %v2077
        %v2085 = vunpack.c.l.bf16 %v2078
        %v2086 = vunpack.c.h.bf16 %v2078
        %v2087 = vpack.c.bf16 %v2071, %v2070
        %2088 = vmatpush.bf16.msra.mxu0 %v512
        %2089 = vmatpush.bf16.msra.mxu0 %v508
        %2090 = vmatpush.bf16.msra.mxu0 %v504
        %2091 = vmatpush.bf16.msra.mxu0 %v500
        %2092 = vmatpush.bf16.msra.mxu0 %v496
        %2093 = vmatpush.bf16.msra.mxu0 %v492
        %2094 = vmatpush.bf16.msra.mxu0 %v488
        %2095 = vmatpush.bf16.msra.mxu0 %v484
        %2096 = vmatmul.bf16.gmra.mxu0 %v2087
        %v2097 = vpop.f32.mrf.mxu0
        %v2098 = vadd.f32 0.0, %v2097
        %v2099 = vpop.f32.mrf.mxu0
        %v2100 = vadd.f32 0.0, %v2099
        %2101 = vdwg.mxu0
        %2102 = vmatpush.bf16.msra.mxu0 %v513
        %2103 = vmatpush.bf16.msra.mxu0 %v509
        %2104 = vmatpush.bf16.msra.mxu0 %v505
        %2105 = vmatpush.bf16.msra.mxu0 %v501
        %2106 = vmatpush.bf16.msra.mxu0 %v497
        %2107 = vmatpush.bf16.msra.mxu0 %v493
        %2108 = vmatpush.bf16.msra.mxu0 %v489
        %2109 = vmatpush.bf16.msra.mxu0 %v485
        %2110 = vmatmul.bf16.gmra.mxu0 %v2087
        %v2111 = vpop.f32.mrf.mxu0
        %v2112 = vadd.f32 0.0, %v2111
        %v2113 = vpop.f32.mrf.mxu0
        %v2114 = vadd.f32 0.0, %v2113
        %2115 = vdwg.mxu0
        %2116 = vmatpush.bf16.msra.mxu0 %v514
        %2117 = vmatpush.bf16.msra.mxu0 %v510
        %2118 = vmatpush.bf16.msra.mxu0 %v506
        %2119 = vmatpush.bf16.msra.mxu0 %v502
        %2120 = vmatpush.bf16.msra.mxu0 %v498
        %2121 = vmatpush.bf16.msra.mxu0 %v494
        %2122 = vmatpush.bf16.msra.mxu0 %v490
        %2123 = vmatpush.bf16.msra.mxu0 %v486
        %2124 = vmatmul.bf16.gmra.mxu0 %v2087
        %v2125 = vpop.f32.mrf.mxu0
        %v2126 = vadd.f32 0.0, %v2125
        %v2127 = vpop.f32.mrf.mxu0
        %v2128 = vadd.f32 0.0, %v2127
        %2129 = vdwg.mxu0
        %2130 = vmatpush.bf16.msra.mxu0 %v515
        %2131 = vmatpush.bf16.msra.mxu0 %v511
        %2132 = vmatpush.bf16.msra.mxu0 %v507
        %2133 = vmatpush.bf16.msra.mxu0 %v503
        %2134 = vmatpush.bf16.msra.mxu0 %v499
        %2135 = vmatpush.bf16.msra.mxu0 %v495
        %2136 = vmatpush.bf16.msra.mxu0 %v491
        %2137 = vmatpush.bf16.msra.mxu0 %v487
        %2138 = vmatmul.bf16.gmra.mxu0 %v2087
        %v2139 = vpop.f32.mrf.mxu0
        %v2140 = vadd.f32 0.0, %v2139
        %v2141 = vpop.f32.mrf.mxu0
        %v2142 = vadd.f32 0.0, %v2141
        %2143 = vdwg.mxu0
        %v2144 = vadd.f32 %v2079, %v2098
        %v2145 = vadd.f32 %v2080, %v2112
        %v2146 = vadd.f32 %v2081, %v2126
        %v2147 = vadd.f32 %v2082, %v2140
        %v2148 = vadd.f32 %v2083, %v2100
        %v2149 = vadd.f32 %v2084, %v2114
        %v2150 = vadd.f32 %v2085, %v2128
        %v2151 = vadd.f32 %v2086, %v2142
        %v2152 = vxor.u32 %v2144, 2147483648
        %v2153 = vxor.u32 %v2148, 2147483648
        %v2154 = vmul.f32 %v2152, 1.442695
        %v2155 = vpow.pop %v2154
        %v2156 = vmul.f32 %v2153, 1.442695
        %v2157 = vpow.pop %v2156
        %v2158 = vadd.f32 %v2155, 1.0
        %v2159 = vadd.f32 %v2157, 1.0
        %v2160 = vrcp.pop %v2158
        %v2161 = vmul.f32 %v2158, %v2160
        %v2162 = vsub.f32 1.0, %v2161
        %v2163 = vmul.f32 %v2160, %v2162
        %v2164 = vadd.f32 %v2160, %v2163
        %vm2165 = vweird.f32 %v2158
        %vm2166 = vweird.f32 %v2160
        %vm2167 = vmor %vm2165, %vm2166
        %v2168 = vsel %vm2167, %v2160, %v2164
        %v2169 = vand.u32 2147483647, %v2158
        %vm2170 = vcmp.eq.f32.partialorder %v2169, 8.507059e+37
        %v2171 = vand.u32 %v2158, 2147483648
        %v2172 = vor.u32 1.1754944e-38, %v2171
        %v2173 = vsel %vm2170, %v2172, %v2168
        %v2174 = vmul.f32 1.0, %v2173
        %v2175 = vrcp.pop %v2159
        %v2176 = vmul.f32 %v2159, %v2175
        %v2177 = vsub.f32 1.0, %v2176
        %v2178 = vmul.f32 %v2175, %v2177
        %v2179 = vadd.f32 %v2175, %v2178
        %vm2180 = vweird.f32 %v2159
        %vm2181 = vweird.f32 %v2175
        %vm2182 = vmor %vm2180, %vm2181
        %v2183 = vsel %vm2182, %v2175, %v2179
        %v2184 = vand.u32 2147483647, %v2159
        %vm2185 = vcmp.eq.f32.partialorder %v2184, 8.507059e+37
        %v2186 = vand.u32 %v2159, 2147483648
        %v2187 = vor.u32 1.1754944e-38, %v2186
        %v2188 = vsel %vm2185, %v2187, %v2183
        %v2189 = vmul.f32 1.0, %v2188
        %v2190 = vxor.u32 %v2145, 2147483648
        %v2191 = vxor.u32 %v2149, 2147483648
        %v2192 = vmul.f32 %v2190, 1.442695
        %v2193 = vpow.pop %v2192
        %v2194 = vmul.f32 %v2191, 1.442695
        %v2195 = vpow.pop %v2194
        %v2196 = vadd.f32 %v2193, 1.0
        %v2197 = vadd.f32 %v2195, 1.0
        %v2198 = vrcp.pop %v2196
        %v2199 = vmul.f32 %v2196, %v2198
        %v2200 = vsub.f32 1.0, %v2199
        %v2201 = vmul.f32 %v2198, %v2200
        %v2202 = vadd.f32 %v2198, %v2201
        %vm2203 = vweird.f32 %v2196
        %vm2204 = vweird.f32 %v2198
        %vm2205 = vmor %vm2203, %vm2204
        %v2206 = vsel %vm2205, %v2198, %v2202
        %v2207 = vand.u32 2147483647, %v2196
        %vm2208 = vcmp.eq.f32.partialorder %v2207, 8.507059e+37
        %v2209 = vand.u32 %v2196, 2147483648
        %v2210 = vor.u32 1.1754944e-38, %v2209
        %v2211 = vsel %vm2208, %v2210, %v2206
        %v2212 = vmul.f32 1.0, %v2211
        %v2213 = vrcp.pop %v2197
        %v2214 = vmul.f32 %v2197, %v2213
        %v2215 = vsub.f32 1.0, %v2214
        %v2216 = vmul.f32 %v2213, %v2215
        %v2217 = vadd.f32 %v2213, %v2216
        %vm2218 = vweird.f32 %v2197
        %vm2219 = vweird.f32 %v2213
        %vm2220 = vmor %vm2218, %vm2219
        %v2221 = vsel %vm2220, %v2213, %v2217
        %v2222 = vand.u32 2147483647, %v2197
        %vm2223 = vcmp.eq.f32.partialorder %v2222, 8.507059e+37
        %v2224 = vand.u32 %v2197, 2147483648
        %v2225 = vor.u32 1.1754944e-38, %v2224
        %v2226 = vsel %vm2223, %v2225, %v2221
        %v2227 = vmul.f32 1.0, %v2226
        %v2228 = vtanh.pop %v2146
        %v2229 = vtanh.pop %v2150
        %v2230 = vxor.u32 %v2147, 2147483648
        %v2231 = vxor.u32 %v2151, 2147483648
        %v2232 = vmul.f32 %v2230, 1.442695
        %v2233 = vpow.pop %v2232
        %v2234 = vmul.f32 %v2231, 1.442695
        %v2235 = vpow.pop %v2234
        %v2236 = vadd.f32 %v2233, 1.0
        %v2237 = vadd.f32 %v2235, 1.0
        %v2238 = vrcp.pop %v2236
        %v2239 = vmul.f32 %v2236, %v2238
        %v2240 = vsub.f32 1.0, %v2239
        %v2241 = vmul.f32 %v2238, %v2240
        %v2242 = vadd.f32 %v2238, %v2241
        %vm2243 = vweird.f32 %v2236
        %vm2244 = vweird.f32 %v2238
        %vm2245 = vmor %vm2243, %vm2244
        %v2246 = vsel %vm2245, %v2238, %v2242
        %v2247 = vand.u32 2147483647, %v2236
        %vm2248 = vcmp.eq.f32.partialorder %v2247, 8.507059e+37
        %v2249 = vand.u32 %v2236, 2147483648
        %v2250 = vor.u32 1.1754944e-38, %v2249
        %v2251 = vsel %vm2248, %v2250, %v2246
        %v2252 = vmul.f32 1.0, %v2251
        %v2253 = vrcp.pop %v2237
        %v2254 = vmul.f32 %v2237, %v2253
        %v2255 = vsub.f32 1.0, %v2254
        %v2256 = vmul.f32 %v2253, %v2255
        %v2257 = vadd.f32 %v2253, %v2256
        %vm2258 = vweird.f32 %v2237
        %vm2259 = vweird.f32 %v2253
        %vm2260 = vmor %vm2258, %vm2259
        %v2261 = vsel %vm2260, %v2253, %v2257
        %v2262 = vand.u32 2147483647, %v2237
        %vm2263 = vcmp.eq.f32.partialorder %v2262, 8.507059e+37
        %v2264 = vand.u32 %v2237, 2147483648
        %v2265 = vor.u32 1.1754944e-38, %v2264
        %v2266 = vsel %vm2263, %v2265, %v2261
        %v2267 = vmul.f32 1.0, %v2266
        %v2268 = vmul.f32 %v2212, %v2072
        %v2269 = vmul.f32 %v2227, %v2073
        %v2270 = vmul.f32 %v2174, %v2228
        %v2271 = vmul.f32 %v2189, %v2229
        %v2272 = vadd.f32 %v2268, %v2270
        %v2273 = vadd.f32 %v2269, %v2271
        %v2274 = vtanh.pop %v2272
        %v2275 = vtanh.pop %v2273
        %v2276 = vmul.f32 %v2252, %v2274
        %v2277 = vmul.f32 %v2267, %v2275
        %vm2278 = vcmp.gt.s32.totalorder %v342, 7
        %vm2279 = vcmp.gt.s32.totalorder %v343, 7
        %v2280 = vsel %vm2278, 1, 0
        %v2281 = vsel %vm2279, 1, 0
        %2282 = vset.pattern.permute.xlu0 0
        %2283 = vperm.xlu0 %2282, %v2280
        %v2284 = vpop.permute.xlu0 %2283
        %2285 = vset.pattern.permute.xlu0 0
        %2286 = vperm.xlu0 %2285, %v2281
        %v2287 = vpop.permute.xlu0 %2286
        %vm2288 = vcmp.eq.s32.totalorder %v2284, 1
        %vm2289 = vcmp.eq.s32.totalorder %v2287, 1
        %v2290 = vsel %vm2288, %v2276, %v2070
        %v2291 = vsel %vm2289, %v2277, %v2071
        %v2292 = vsel %vm2288, %v2272, %v2072
        %v2293 = vsel %vm2289, %v2273, %v2073
        %s2294 = scalar_lea.vmem %s294, 256 [#allocation2]
        %v2295 = vld [vmem:[%s2294] sm:$0xff]
        %v2296 = vld [vmem:[%s2294 + $0x8] sm:$0xff]
        %v2297 = vld [vmem:[%s2294 + $0x10] sm:$0xff]
        %v2298 = vld [vmem:[%s2294 + $0x18] sm:$0xff]
        %v2299 = vunpack.c.l.bf16 %v2295
        %v2300 = vunpack.c.h.bf16 %v2295
        %v2301 = vunpack.c.l.bf16 %v2296
        %v2302 = vunpack.c.h.bf16 %v2296
        %v2303 = vunpack.c.l.bf16 %v2297
        %v2304 = vunpack.c.h.bf16 %v2297
        %v2305 = vunpack.c.l.bf16 %v2298
        %v2306 = vunpack.c.h.bf16 %v2298
        %v2307 = vpack.c.bf16 %v2291, %v2290
        %2308 = vmatpush.bf16.msra.mxu0 %v512
        %2309 = vmatpush.bf16.msra.mxu0 %v508
        %2310 = vmatpush.bf16.msra.mxu0 %v504
        %2311 = vmatpush.bf16.msra.mxu0 %v500
        %2312 = vmatpush.bf16.msra.mxu0 %v496
        %2313 = vmatpush.bf16.msra.mxu0 %v492
        %2314 = vmatpush.bf16.msra.mxu0 %v488
        %2315 = vmatpush.bf16.msra.mxu0 %v484
        %2316 = vmatmul.bf16.gmra.mxu0 %v2307
        %v2317 = vpop.f32.mrf.mxu0
        %v2318 = vadd.f32 0.0, %v2317
        %v2319 = vpop.f32.mrf.mxu0
        %v2320 = vadd.f32 0.0, %v2319
        %2321 = vdwg.mxu0
        %2322 = vmatpush.bf16.msra.mxu0 %v513
        %2323 = vmatpush.bf16.msra.mxu0 %v509
        %2324 = vmatpush.bf16.msra.mxu0 %v505
        %2325 = vmatpush.bf16.msra.mxu0 %v501
        %2326 = vmatpush.bf16.msra.mxu0 %v497
        %2327 = vmatpush.bf16.msra.mxu0 %v493
        %2328 = vmatpush.bf16.msra.mxu0 %v489
        %2329 = vmatpush.bf16.msra.mxu0 %v485
        %2330 = vmatmul.bf16.gmra.mxu0 %v2307
        %v2331 = vpop.f32.mrf.mxu0
        %v2332 = vadd.f32 0.0, %v2331
        %v2333 = vpop.f32.mrf.mxu0
        %v2334 = vadd.f32 0.0, %v2333
        %2335 = vdwg.mxu0
        %2336 = vmatpush.bf16.msra.mxu0 %v514
        %2337 = vmatpush.bf16.msra.mxu0 %v510
        %2338 = vmatpush.bf16.msra.mxu0 %v506
        %2339 = vmatpush.bf16.msra.mxu0 %v502
        %2340 = vmatpush.bf16.msra.mxu0 %v498
        %2341 = vmatpush.bf16.msra.mxu0 %v494
        %2342 = vmatpush.bf16.msra.mxu0 %v490
        %2343 = vmatpush.bf16.msra.mxu0 %v486
        %2344 = vmatmul.bf16.gmra.mxu0 %v2307
        %v2345 = vpop.f32.mrf.mxu0
        %v2346 = vadd.f32 0.0, %v2345
        %v2347 = vpop.f32.mrf.mxu0
        %v2348 = vadd.f32 0.0, %v2347
        %2349 = vdwg.mxu0
        %2350 = vmatpush.bf16.msra.mxu0 %v515
        %2351 = vmatpush.bf16.msra.mxu0 %v511
        %2352 = vmatpush.bf16.msra.mxu0 %v507
        %2353 = vmatpush.bf16.msra.mxu0 %v503
        %2354 = vmatpush.bf16.msra.mxu0 %v499
        %2355 = vmatpush.bf16.msra.mxu0 %v495
        %2356 = vmatpush.bf16.msra.mxu0 %v491
        %2357 = vmatpush.bf16.msra.mxu0 %v487
        %2358 = vmatmul.bf16.gmra.mxu0 %v2307
        %v2359 = vpop.f32.mrf.mxu0
        %v2360 = vadd.f32 0.0, %v2359
        %v2361 = vpop.f32.mrf.mxu0
        %v2362 = vadd.f32 0.0, %v2361
        %2363 = vdwg.mxu0
        %v2364 = vadd.f32 %v2299, %v2318
        %v2365 = vadd.f32 %v2300, %v2332
        %v2366 = vadd.f32 %v2301, %v2346
        %v2367 = vadd.f32 %v2302, %v2360
        %v2368 = vadd.f32 %v2303, %v2320
        %v2369 = vadd.f32 %v2304, %v2334
        %v2370 = vadd.f32 %v2305, %v2348
        %v2371 = vadd.f32 %v2306, %v2362
        %v2372 = vxor.u32 %v2364, 2147483648
        %v2373 = vxor.u32 %v2368, 2147483648
        %v2374 = vmul.f32 %v2372, 1.442695
        %v2375 = vpow.pop %v2374
        %v2376 = vmul.f32 %v2373, 1.442695
        %v2377 = vpow.pop %v2376
        %v2378 = vadd.f32 %v2375, 1.0
        %v2379 = vadd.f32 %v2377, 1.0
        %v2380 = vrcp.pop %v2378
        %v2381 = vmul.f32 %v2378, %v2380
        %v2382 = vsub.f32 1.0, %v2381
        %v2383 = vmul.f32 %v2380, %v2382
        %v2384 = vadd.f32 %v2380, %v2383
        %vm2385 = vweird.f32 %v2378
        %vm2386 = vweird.f32 %v2380
        %vm2387 = vmor %vm2385, %vm2386
        %v2388 = vsel %vm2387, %v2380, %v2384
        %v2389 = vand.u32 2147483647, %v2378
        %vm2390 = vcmp.eq.f32.partialorder %v2389, 8.507059e+37
        %v2391 = vand.u32 %v2378, 2147483648
        %v2392 = vor.u32 1.1754944e-38, %v2391
        %v2393 = vsel %vm2390, %v2392, %v2388
        %v2394 = vmul.f32 1.0, %v2393
        %v2395 = vrcp.pop %v2379
        %v2396 = vmul.f32 %v2379, %v2395
        %v2397 = vsub.f32 1.0, %v2396
        %v2398 = vmul.f32 %v2395, %v2397
        %v2399 = vadd.f32 %v2395, %v2398
        %vm2400 = vweird.f32 %v2379
        %vm2401 = vweird.f32 %v2395
        %vm2402 = vmor %vm2400, %vm2401
        %v2403 = vsel %vm2402, %v2395, %v2399
        %v2404 = vand.u32 2147483647, %v2379
        %vm2405 = vcmp.eq.f32.partialorder %v2404, 8.507059e+37
        %v2406 = vand.u32 %v2379, 2147483648
        %v2407 = vor.u32 1.1754944e-38, %v2406
        %v2408 = vsel %vm2405, %v2407, %v2403
        %v2409 = vmul.f32 1.0, %v2408
        %v2410 = vxor.u32 %v2365, 2147483648
        %v2411 = vxor.u32 %v2369, 2147483648
        %v2412 = vmul.f32 %v2410, 1.442695
        %v2413 = vpow.pop %v2412
        %v2414 = vmul.f32 %v2411, 1.442695
        %v2415 = vpow.pop %v2414
        %v2416 = vadd.f32 %v2413, 1.0
        %v2417 = vadd.f32 %v2415, 1.0
        %v2418 = vrcp.pop %v2416
        %v2419 = vmul.f32 %v2416, %v2418
        %v2420 = vsub.f32 1.0, %v2419
        %v2421 = vmul.f32 %v2418, %v2420
        %v2422 = vadd.f32 %v2418, %v2421
        %vm2423 = vweird.f32 %v2416
        %vm2424 = vweird.f32 %v2418
        %vm2425 = vmor %vm2423, %vm2424
        %v2426 = vsel %vm2425, %v2418, %v2422
        %v2427 = vand.u32 2147483647, %v2416
        %vm2428 = vcmp.eq.f32.partialorder %v2427, 8.507059e+37
        %v2429 = vand.u32 %v2416, 2147483648
        %v2430 = vor.u32 1.1754944e-38, %v2429
        %v2431 = vsel %vm2428, %v2430, %v2426
        %v2432 = vmul.f32 1.0, %v2431
        %v2433 = vrcp.pop %v2417
        %v2434 = vmul.f32 %v2417, %v2433
        %v2435 = vsub.f32 1.0, %v2434
        %v2436 = vmul.f32 %v2433, %v2435
        %v2437 = vadd.f32 %v2433, %v2436
        %vm2438 = vweird.f32 %v2417
        %vm2439 = vweird.f32 %v2433
        %vm2440 = vmor %vm2438, %vm2439
        %v2441 = vsel %vm2440, %v2433, %v2437
        %v2442 = vand.u32 2147483647, %v2417
        %vm2443 = vcmp.eq.f32.partialorder %v2442, 8.507059e+37
        %v2444 = vand.u32 %v2417, 2147483648
        %v2445 = vor.u32 1.1754944e-38, %v2444
        %v2446 = vsel %vm2443, %v2445, %v2441
        %v2447 = vmul.f32 1.0, %v2446
        %v2448 = vtanh.pop %v2366
        %v2449 = vtanh.pop %v2370
        %v2450 = vxor.u32 %v2367, 2147483648
        %v2451 = vxor.u32 %v2371, 2147483648
        %v2452 = vmul.f32 %v2450, 1.442695
        %v2453 = vpow.pop %v2452
        %v2454 = vmul.f32 %v2451, 1.442695
        %v2455 = vpow.pop %v2454
        %v2456 = vadd.f32 %v2453, 1.0
        %v2457 = vadd.f32 %v2455, 1.0
        %v2458 = vrcp.pop %v2456
        %v2459 = vmul.f32 %v2456, %v2458
        %v2460 = vsub.f32 1.0, %v2459
        %v2461 = vmul.f32 %v2458, %v2460
        %v2462 = vadd.f32 %v2458, %v2461
        %vm2463 = vweird.f32 %v2456
        %vm2464 = vweird.f32 %v2458
        %vm2465 = vmor %vm2463, %vm2464
        %v2466 = vsel %vm2465, %v2458, %v2462
        %v2467 = vand.u32 2147483647, %v2456
        %vm2468 = vcmp.eq.f32.partialorder %v2467, 8.507059e+37
        %v2469 = vand.u32 %v2456, 2147483648
        %v2470 = vor.u32 1.1754944e-38, %v2469
        %v2471 = vsel %vm2468, %v2470, %v2466
        %v2472 = vmul.f32 1.0, %v2471
        %v2473 = vrcp.pop %v2457
        %v2474 = vmul.f32 %v2457, %v2473
        %v2475 = vsub.f32 1.0, %v2474
        %v2476 = vmul.f32 %v2473, %v2475
        %v2477 = vadd.f32 %v2473, %v2476
        %vm2478 = vweird.f32 %v2457
        %vm2479 = vweird.f32 %v2473
        %vm2480 = vmor %vm2478, %vm2479
        %v2481 = vsel %vm2480, %v2473, %v2477
        %v2482 = vand.u32 2147483647, %v2457
        %vm2483 = vcmp.eq.f32.partialorder %v2482, 8.507059e+37
        %v2484 = vand.u32 %v2457, 2147483648
        %v2485 = vor.u32 1.1754944e-38, %v2484
        %v2486 = vsel %vm2483, %v2485, %v2481
        %v2487 = vmul.f32 1.0, %v2486
        %v2488 = vmul.f32 %v2432, %v2292
        %v2489 = vmul.f32 %v2447, %v2293
        %v2490 = vmul.f32 %v2394, %v2448
        %v2491 = vmul.f32 %v2409, %v2449
        %v2492 = vadd.f32 %v2488, %v2490
        %v2493 = vadd.f32 %v2489, %v2491
        %v2494 = vtanh.pop %v2492
        %v2495 = vtanh.pop %v2493
        %v2496 = vmul.f32 %v2472, %v2494
        %v2497 = vmul.f32 %v2487, %v2495
        %vm2498 = vcmp.gt.s32.totalorder %v342, 8
        %vm2499 = vcmp.gt.s32.totalorder %v343, 8
        %v2500 = vsel %vm2498, 1, 0
        %v2501 = vsel %vm2499, 1, 0
        %2502 = vset.pattern.permute.xlu0 0
        %2503 = vperm.xlu0 %2502, %v2500
        %v2504 = vpop.permute.xlu0 %2503
        %2505 = vset.pattern.permute.xlu0 0
        %2506 = vperm.xlu0 %2505, %v2501
        %v2507 = vpop.permute.xlu0 %2506
        %vm2508 = vcmp.eq.s32.totalorder %v2504, 1
        %vm2509 = vcmp.eq.s32.totalorder %v2507, 1
        %v2510 = vsel %vm2508, %v2496, %v2290
        %v2511 = vsel %vm2509, %v2497, %v2291
        %v2512 = vsel %vm2508, %v2492, %v2292
        %v2513 = vsel %vm2509, %v2493, %v2293
        %s2514 = scalar_lea.vmem %s294, 288 [#allocation2]
        %v2515 = vld [vmem:[%s2514] sm:$0xff]
        %v2516 = vld [vmem:[%s2514 + $0x8] sm:$0xff]
        %v2517 = vld [vmem:[%s2514 + $0x10] sm:$0xff]
        %v2518 = vld [vmem:[%s2514 + $0x18] sm:$0xff]
        %v2519 = vunpack.c.l.bf16 %v2515
        %v2520 = vunpack.c.h.bf16 %v2515
        %v2521 = vunpack.c.l.bf16 %v2516
        %v2522 = vunpack.c.h.bf16 %v2516
        %v2523 = vunpack.c.l.bf16 %v2517
        %v2524 = vunpack.c.h.bf16 %v2517
        %v2525 = vunpack.c.l.bf16 %v2518
        %v2526 = vunpack.c.h.bf16 %v2518
        %v2527 = vpack.c.bf16 %v2511, %v2510
        %2528 = vmatpush.bf16.msra.mxu0 %v512
        %2529 = vmatpush.bf16.msra.mxu0 %v508
        %2530 = vmatpush.bf16.msra.mxu0 %v504
        %2531 = vmatpush.bf16.msra.mxu0 %v500
        %2532 = vmatpush.bf16.msra.mxu0 %v496
        %2533 = vmatpush.bf16.msra.mxu0 %v492
        %2534 = vmatpush.bf16.msra.mxu0 %v488
        %2535 = vmatpush.bf16.msra.mxu0 %v484
        %2536 = vmatmul.bf16.gmra.mxu0 %v2527
        %v2537 = vpop.f32.mrf.mxu0
        %v2538 = vadd.f32 0.0, %v2537
        %v2539 = vpop.f32.mrf.mxu0
        %v2540 = vadd.f32 0.0, %v2539
        %2541 = vdwg.mxu0
        %2542 = vmatpush.bf16.msra.mxu0 %v513
        %2543 = vmatpush.bf16.msra.mxu0 %v509
        %2544 = vmatpush.bf16.msra.mxu0 %v505
        %2545 = vmatpush.bf16.msra.mxu0 %v501
        %2546 = vmatpush.bf16.msra.mxu0 %v497
        %2547 = vmatpush.bf16.msra.mxu0 %v493
        %2548 = vmatpush.bf16.msra.mxu0 %v489
        %2549 = vmatpush.bf16.msra.mxu0 %v485
        %2550 = vmatmul.bf16.gmra.mxu0 %v2527
        %v2551 = vpop.f32.mrf.mxu0
        %v2552 = vadd.f32 0.0, %v2551
        %v2553 = vpop.f32.mrf.mxu0
        %v2554 = vadd.f32 0.0, %v2553
        %2555 = vdwg.mxu0
        %2556 = vmatpush.bf16.msra.mxu0 %v514
        %2557 = vmatpush.bf16.msra.mxu0 %v510
        %2558 = vmatpush.bf16.msra.mxu0 %v506
        %2559 = vmatpush.bf16.msra.mxu0 %v502
        %2560 = vmatpush.bf16.msra.mxu0 %v498
        %2561 = vmatpush.bf16.msra.mxu0 %v494
        %2562 = vmatpush.bf16.msra.mxu0 %v490
        %2563 = vmatpush.bf16.msra.mxu0 %v486
        %2564 = vmatmul.bf16.gmra.mxu0 %v2527
        %v2565 = vpop.f32.mrf.mxu0
        %v2566 = vadd.f32 0.0, %v2565
        %v2567 = vpop.f32.mrf.mxu0
        %v2568 = vadd.f32 0.0, %v2567
        %2569 = vdwg.mxu0
        %2570 = vmatpush.bf16.msra.mxu0 %v515
        %2571 = vmatpush.bf16.msra.mxu0 %v511
        %2572 = vmatpush.bf16.msra.mxu0 %v507
        %2573 = vmatpush.bf16.msra.mxu0 %v503
        %2574 = vmatpush.bf16.msra.mxu0 %v499
        %2575 = vmatpush.bf16.msra.mxu0 %v495
        %2576 = vmatpush.bf16.msra.mxu0 %v491
        %2577 = vmatpush.bf16.msra.mxu0 %v487
        %2578 = vmatmul.bf16.gmra.mxu0 %v2527
        %v2579 = vpop.f32.mrf.mxu0
        %v2580 = vadd.f32 0.0, %v2579
        %v2581 = vpop.f32.mrf.mxu0
        %v2582 = vadd.f32 0.0, %v2581
        %2583 = vdwg.mxu0
        %v2584 = vadd.f32 %v2519, %v2538
        %v2585 = vadd.f32 %v2520, %v2552
        %v2586 = vadd.f32 %v2521, %v2566
        %v2587 = vadd.f32 %v2522, %v2580
        %v2588 = vadd.f32 %v2523, %v2540
        %v2589 = vadd.f32 %v2524, %v2554
        %v2590 = vadd.f32 %v2525, %v2568
        %v2591 = vadd.f32 %v2526, %v2582
        %v2592 = vxor.u32 %v2584, 2147483648
        %v2593 = vxor.u32 %v2588, 2147483648
        %v2594 = vmul.f32 %v2592, 1.442695
        %v2595 = vpow.pop %v2594
        %v2596 = vmul.f32 %v2593, 1.442695
        %v2597 = vpow.pop %v2596
        %v2598 = vadd.f32 %v2595, 1.0
        %v2599 = vadd.f32 %v2597, 1.0
        %v2600 = vrcp.pop %v2598
        %v2601 = vmul.f32 %v2598, %v2600
        %v2602 = vsub.f32 1.0, %v2601
        %v2603 = vmul.f32 %v2600, %v2602
        %v2604 = vadd.f32 %v2600, %v2603
        %vm2605 = vweird.f32 %v2598
        %vm2606 = vweird.f32 %v2600
        %vm2607 = vmor %vm2605, %vm2606
        %v2608 = vsel %vm2607, %v2600, %v2604
        %v2609 = vand.u32 2147483647, %v2598
        %vm2610 = vcmp.eq.f32.partialorder %v2609, 8.507059e+37
        %v2611 = vand.u32 %v2598, 2147483648
        %v2612 = vor.u32 1.1754944e-38, %v2611
        %v2613 = vsel %vm2610, %v2612, %v2608
        %v2614 = vmul.f32 1.0, %v2613
        %v2615 = vrcp.pop %v2599
        %v2616 = vmul.f32 %v2599, %v2615
        %v2617 = vsub.f32 1.0, %v2616
        %v2618 = vmul.f32 %v2615, %v2617
        %v2619 = vadd.f32 %v2615, %v2618
        %vm2620 = vweird.f32 %v2599
        %vm2621 = vweird.f32 %v2615
        %vm2622 = vmor %vm2620, %vm2621
        %v2623 = vsel %vm2622, %v2615, %v2619
        %v2624 = vand.u32 2147483647, %v2599
        %vm2625 = vcmp.eq.f32.partialorder %v2624, 8.507059e+37
        %v2626 = vand.u32 %v2599, 2147483648
        %v2627 = vor.u32 1.1754944e-38, %v2626
        %v2628 = vsel %vm2625, %v2627, %v2623
        %v2629 = vmul.f32 1.0, %v2628
        %v2630 = vxor.u32 %v2585, 2147483648
        %v2631 = vxor.u32 %v2589, 2147483648
        %v2632 = vmul.f32 %v2630, 1.442695
        %v2633 = vpow.pop %v2632
        %v2634 = vmul.f32 %v2631, 1.442695
        %v2635 = vpow.pop %v2634
        %v2636 = vadd.f32 %v2633, 1.0
        %v2637 = vadd.f32 %v2635, 1.0
        %v2638 = vrcp.pop %v2636
        %v2639 = vmul.f32 %v2636, %v2638
        %v2640 = vsub.f32 1.0, %v2639
        %v2641 = vmul.f32 %v2638, %v2640
        %v2642 = vadd.f32 %v2638, %v2641
        %vm2643 = vweird.f32 %v2636
        %vm2644 = vweird.f32 %v2638
        %vm2645 = vmor %vm2643, %vm2644
        %v2646 = vsel %vm2645, %v2638, %v2642
        %v2647 = vand.u32 2147483647, %v2636
        %vm2648 = vcmp.eq.f32.partialorder %v2647, 8.507059e+37
        %v2649 = vand.u32 %v2636, 2147483648
        %v2650 = vor.u32 1.1754944e-38, %v2649
        %v2651 = vsel %vm2648, %v2650, %v2646
        %v2652 = vmul.f32 1.0, %v2651
        %v2653 = vrcp.pop %v2637
        %v2654 = vmul.f32 %v2637, %v2653
        %v2655 = vsub.f32 1.0, %v2654
        %v2656 = vmul.f32 %v2653, %v2655
        %v2657 = vadd.f32 %v2653, %v2656
        %vm2658 = vweird.f32 %v2637
        %vm2659 = vweird.f32 %v2653
        %vm2660 = vmor %vm2658, %vm2659
        %v2661 = vsel %vm2660, %v2653, %v2657
        %v2662 = vand.u32 2147483647, %v2637
        %vm2663 = vcmp.eq.f32.partialorder %v2662, 8.507059e+37
        %v2664 = vand.u32 %v2637, 2147483648
        %v2665 = vor.u32 1.1754944e-38, %v2664
        %v2666 = vsel %vm2663, %v2665, %v2661
        %v2667 = vmul.f32 1.0, %v2666
        %v2668 = vtanh.pop %v2586
        %v2669 = vtanh.pop %v2590
        %v2670 = vxor.u32 %v2587, 2147483648
        %v2671 = vxor.u32 %v2591, 2147483648
        %v2672 = vmul.f32 %v2670, 1.442695
        %v2673 = vpow.pop %v2672
        %v2674 = vmul.f32 %v2671, 1.442695
        %v2675 = vpow.pop %v2674
        %v2676 = vadd.f32 %v2673, 1.0
        %v2677 = vadd.f32 %v2675, 1.0
        %v2678 = vrcp.pop %v2676
        %v2679 = vmul.f32 %v2676, %v2678
        %v2680 = vsub.f32 1.0, %v2679
        %v2681 = vmul.f32 %v2678, %v2680
        %v2682 = vadd.f32 %v2678, %v2681
        %vm2683 = vweird.f32 %v2676
        %vm2684 = vweird.f32 %v2678
        %vm2685 = vmor %vm2683, %vm2684
        %v2686 = vsel %vm2685, %v2678, %v2682
        %v2687 = vand.u32 2147483647, %v2676
        %vm2688 = vcmp.eq.f32.partialorder %v2687, 8.507059e+37
        %v2689 = vand.u32 %v2676, 2147483648
        %v2690 = vor.u32 1.1754944e-38, %v2689
        %v2691 = vsel %vm2688, %v2690, %v2686
        %v2692 = vmul.f32 1.0, %v2691
        %v2693 = vrcp.pop %v2677
        %v2694 = vmul.f32 %v2677, %v2693
        %v2695 = vsub.f32 1.0, %v2694
        %v2696 = vmul.f32 %v2693, %v2695
        %v2697 = vadd.f32 %v2693, %v2696
        %vm2698 = vweird.f32 %v2677
        %vm2699 = vweird.f32 %v2693
        %vm2700 = vmor %vm2698, %vm2699
        %v2701 = vsel %vm2700, %v2693, %v2697
        %v2702 = vand.u32 2147483647, %v2677
        %vm2703 = vcmp.eq.f32.partialorder %v2702, 8.507059e+37
        %v2704 = vand.u32 %v2677, 2147483648
        %v2705 = vor.u32 1.1754944e-38, %v2704
        %v2706 = vsel %vm2703, %v2705, %v2701
        %v2707 = vmul.f32 1.0, %v2706
        %v2708 = vmul.f32 %v2652, %v2512
        %v2709 = vmul.f32 %v2667, %v2513
        %v2710 = vmul.f32 %v2614, %v2668
        %v2711 = vmul.f32 %v2629, %v2669
        %v2712 = vadd.f32 %v2708, %v2710
        %v2713 = vadd.f32 %v2709, %v2711
        %v2714 = vtanh.pop %v2712
        %v2715 = vtanh.pop %v2713
        %v2716 = vmul.f32 %v2692, %v2714
        %v2717 = vmul.f32 %v2707, %v2715
        %vm2718 = vcmp.gt.s32.totalorder %v342, 9
        %vm2719 = vcmp.gt.s32.totalorder %v343, 9
        %v2720 = vsel %vm2718, 1, 0
        %v2721 = vsel %vm2719, 1, 0
        %2722 = vset.pattern.permute.xlu0 0
        %2723 = vperm.xlu0 %2722, %v2720
        %v2724 = vpop.permute.xlu0 %2723
        %2725 = vset.pattern.permute.xlu0 0
        %2726 = vperm.xlu0 %2725, %v2721
        %v2727 = vpop.permute.xlu0 %2726
        %vm2728 = vcmp.eq.s32.totalorder %v2724, 1
        %vm2729 = vcmp.eq.s32.totalorder %v2727, 1
        %v2730 = vsel %vm2728, %v2716, %v2510
        %v2731 = vsel %vm2729, %v2717, %v2511
        %v2732 = vsel %vm2728, %v2712, %v2512
        %v2733 = vsel %vm2729, %v2713, %v2513
        %s2734 = scalar_lea.vmem %s294, 320 [#allocation2]
        %v2735 = vld [vmem:[%s2734] sm:$0xff]
        %v2736 = vld [vmem:[%s2734 + $0x8] sm:$0xff]
        %v2737 = vld [vmem:[%s2734 + $0x10] sm:$0xff]
        %v2738 = vld [vmem:[%s2734 + $0x18] sm:$0xff]
        %v2739 = vunpack.c.l.bf16 %v2735
        %v2740 = vunpack.c.h.bf16 %v2735
        %v2741 = vunpack.c.l.bf16 %v2736
        %v2742 = vunpack.c.h.bf16 %v2736
        %v2743 = vunpack.c.l.bf16 %v2737
        %v2744 = vunpack.c.h.bf16 %v2737
        %v2745 = vunpack.c.l.bf16 %v2738
        %v2746 = vunpack.c.h.bf16 %v2738
        %v2747 = vpack.c.bf16 %v2731, %v2730
        %2748 = vmatpush.bf16.msra.mxu0 %v512
        %2749 = vmatpush.bf16.msra.mxu0 %v508
        %2750 = vmatpush.bf16.msra.mxu0 %v504
        %2751 = vmatpush.bf16.msra.mxu0 %v500
        %2752 = vmatpush.bf16.msra.mxu0 %v496
        %2753 = vmatpush.bf16.msra.mxu0 %v492
        %2754 = vmatpush.bf16.msra.mxu0 %v488
        %2755 = vmatpush.bf16.msra.mxu0 %v484
        %2756 = vmatmul.bf16.gmra.mxu0 %v2747
        %v2757 = vpop.f32.mrf.mxu0
        %v2758 = vadd.f32 0.0, %v2757
        %v2759 = vpop.f32.mrf.mxu0
        %v2760 = vadd.f32 0.0, %v2759
        %2761 = vdwg.mxu0
        %2762 = vmatpush.bf16.msra.mxu0 %v513
        %2763 = vmatpush.bf16.msra.mxu0 %v509
        %2764 = vmatpush.bf16.msra.mxu0 %v505
        %2765 = vmatpush.bf16.msra.mxu0 %v501
        %2766 = vmatpush.bf16.msra.mxu0 %v497
        %2767 = vmatpush.bf16.msra.mxu0 %v493
        %2768 = vmatpush.bf16.msra.mxu0 %v489
        %2769 = vmatpush.bf16.msra.mxu0 %v485
        %2770 = vmatmul.bf16.gmra.mxu0 %v2747
        %v2771 = vpop.f32.mrf.mxu0
        %v2772 = vadd.f32 0.0, %v2771
        %v2773 = vpop.f32.mrf.mxu0
        %v2774 = vadd.f32 0.0, %v2773
        %2775 = vdwg.mxu0
        %2776 = vmatpush.bf16.msra.mxu0 %v514
        %2777 = vmatpush.bf16.msra.mxu0 %v510
        %2778 = vmatpush.bf16.msra.mxu0 %v506
        %2779 = vmatpush.bf16.msra.mxu0 %v502
        %2780 = vmatpush.bf16.msra.mxu0 %v498
        %2781 = vmatpush.bf16.msra.mxu0 %v494
        %2782 = vmatpush.bf16.msra.mxu0 %v490
        %2783 = vmatpush.bf16.msra.mxu0 %v486
        %2784 = vmatmul.bf16.gmra.mxu0 %v2747
        %v2785 = vpop.f32.mrf.mxu0
        %v2786 = vadd.f32 0.0, %v2785
        %v2787 = vpop.f32.mrf.mxu0
        %v2788 = vadd.f32 0.0, %v2787
        %2789 = vdwg.mxu0
        %2790 = vmatpush.bf16.msra.mxu0 %v515
        %2791 = vmatpush.bf16.msra.mxu0 %v511
        %2792 = vmatpush.bf16.msra.mxu0 %v507
        %2793 = vmatpush.bf16.msra.mxu0 %v503
        %2794 = vmatpush.bf16.msra.mxu0 %v499
        %2795 = vmatpush.bf16.msra.mxu0 %v495
        %2796 = vmatpush.bf16.msra.mxu0 %v491
        %2797 = vmatpush.bf16.msra.mxu0 %v487
        %2798 = vmatmul.bf16.gmra.mxu0 %v2747
        %v2799 = vpop.f32.mrf.mxu0
        %v2800 = vadd.f32 0.0, %v2799
        %v2801 = vpop.f32.mrf.mxu0
        %v2802 = vadd.f32 0.0, %v2801
        %2803 = vdwg.mxu0
        %v2804 = vadd.f32 %v2739, %v2758
        %v2805 = vadd.f32 %v2740, %v2772
        %v2806 = vadd.f32 %v2741, %v2786
        %v2807 = vadd.f32 %v2742, %v2800
        %v2808 = vadd.f32 %v2743, %v2760
        %v2809 = vadd.f32 %v2744, %v2774
        %v2810 = vadd.f32 %v2745, %v2788
        %v2811 = vadd.f32 %v2746, %v2802
        %v2812 = vxor.u32 %v2804, 2147483648
        %v2813 = vxor.u32 %v2808, 2147483648
        %v2814 = vmul.f32 %v2812, 1.442695
        %v2815 = vpow.pop %v2814
        %v2816 = vmul.f32 %v2813, 1.442695
        %v2817 = vpow.pop %v2816
        %v2818 = vadd.f32 %v2815, 1.0
        %v2819 = vadd.f32 %v2817, 1.0
        %v2820 = vrcp.pop %v2818
        %v2821 = vmul.f32 %v2818, %v2820
        %v2822 = vsub.f32 1.0, %v2821
        %v2823 = vmul.f32 %v2820, %v2822
        %v2824 = vadd.f32 %v2820, %v2823
        %vm2825 = vweird.f32 %v2818
        %vm2826 = vweird.f32 %v2820
        %vm2827 = vmor %vm2825, %vm2826
        %v2828 = vsel %vm2827, %v2820, %v2824
        %v2829 = vand.u32 2147483647, %v2818
        %vm2830 = vcmp.eq.f32.partialorder %v2829, 8.507059e+37
        %v2831 = vand.u32 %v2818, 2147483648
        %v2832 = vor.u32 1.1754944e-38, %v2831
        %v2833 = vsel %vm2830, %v2832, %v2828
        %v2834 = vmul.f32 1.0, %v2833
        %v2835 = vrcp.pop %v2819
        %v2836 = vmul.f32 %v2819, %v2835
        %v2837 = vsub.f32 1.0, %v2836
        %v2838 = vmul.f32 %v2835, %v2837
        %v2839 = vadd.f32 %v2835, %v2838
        %vm2840 = vweird.f32 %v2819
        %vm2841 = vweird.f32 %v2835
        %vm2842 = vmor %vm2840, %vm2841
        %v2843 = vsel %vm2842, %v2835, %v2839
        %v2844 = vand.u32 2147483647, %v2819
        %vm2845 = vcmp.eq.f32.partialorder %v2844, 8.507059e+37
        %v2846 = vand.u32 %v2819, 2147483648
        %v2847 = vor.u32 1.1754944e-38, %v2846
        %v2848 = vsel %vm2845, %v2847, %v2843
        %v2849 = vmul.f32 1.0, %v2848
        %v2850 = vxor.u32 %v2805, 2147483648
        %v2851 = vxor.u32 %v2809, 2147483648
        %v2852 = vmul.f32 %v2850, 1.442695
        %v2853 = vpow.pop %v2852
        %v2854 = vmul.f32 %v2851, 1.442695
        %v2855 = vpow.pop %v2854
        %v2856 = vadd.f32 %v2853, 1.0
        %v2857 = vadd.f32 %v2855, 1.0
        %v2858 = vrcp.pop %v2856
        %v2859 = vmul.f32 %v2856, %v2858
        %v2860 = vsub.f32 1.0, %v2859
        %v2861 = vmul.f32 %v2858, %v2860
        %v2862 = vadd.f32 %v2858, %v2861
        %vm2863 = vweird.f32 %v2856
        %vm2864 = vweird.f32 %v2858
        %vm2865 = vmor %vm2863, %vm2864
        %v2866 = vsel %vm2865, %v2858, %v2862
        %v2867 = vand.u32 2147483647, %v2856
        %vm2868 = vcmp.eq.f32.partialorder %v2867, 8.507059e+37
        %v2869 = vand.u32 %v2856, 2147483648
        %v2870 = vor.u32 1.1754944e-38, %v2869
        %v2871 = vsel %vm2868, %v2870, %v2866
        %v2872 = vmul.f32 1.0, %v2871
        %v2873 = vrcp.pop %v2857
        %v2874 = vmul.f32 %v2857, %v2873
        %v2875 = vsub.f32 1.0, %v2874
        %v2876 = vmul.f32 %v2873, %v2875
        %v2877 = vadd.f32 %v2873, %v2876
        %vm2878 = vweird.f32 %v2857
        %vm2879 = vweird.f32 %v2873
        %vm2880 = vmor %vm2878, %vm2879
        %v2881 = vsel %vm2880, %v2873, %v2877
        %v2882 = vand.u32 2147483647, %v2857
        %vm2883 = vcmp.eq.f32.partialorder %v2882, 8.507059e+37
        %v2884 = vand.u32 %v2857, 2147483648
        %v2885 = vor.u32 1.1754944e-38, %v2884
        %v2886 = vsel %vm2883, %v2885, %v2881
        %v2887 = vmul.f32 1.0, %v2886
        %v2888 = vtanh.pop %v2806
        %v2889 = vtanh.pop %v2810
        %v2890 = vxor.u32 %v2807, 2147483648
        %v2891 = vxor.u32 %v2811, 2147483648
        %v2892 = vmul.f32 %v2890, 1.442695
        %v2893 = vpow.pop %v2892
        %v2894 = vmul.f32 %v2891, 1.442695
        %v2895 = vpow.pop %v2894
        %v2896 = vadd.f32 %v2893, 1.0
        %v2897 = vadd.f32 %v2895, 1.0
        %v2898 = vrcp.pop %v2896
        %v2899 = vmul.f32 %v2896, %v2898
        %v2900 = vsub.f32 1.0, %v2899
        %v2901 = vmul.f32 %v2898, %v2900
        %v2902 = vadd.f32 %v2898, %v2901
        %vm2903 = vweird.f32 %v2896
        %vm2904 = vweird.f32 %v2898
        %vm2905 = vmor %vm2903, %vm2904
        %v2906 = vsel %vm2905, %v2898, %v2902
        %v2907 = vand.u32 2147483647, %v2896
        %vm2908 = vcmp.eq.f32.partialorder %v2907, 8.507059e+37
        %v2909 = vand.u32 %v2896, 2147483648
        %v2910 = vor.u32 1.1754944e-38, %v2909
        %v2911 = vsel %vm2908, %v2910, %v2906
        %v2912 = vmul.f32 1.0, %v2911
        %v2913 = vrcp.pop %v2897
        %v2914 = vmul.f32 %v2897, %v2913
        %v2915 = vsub.f32 1.0, %v2914
        %v2916 = vmul.f32 %v2913, %v2915
        %v2917 = vadd.f32 %v2913, %v2916
        %vm2918 = vweird.f32 %v2897
        %vm2919 = vweird.f32 %v2913
        %vm2920 = vmor %vm2918, %vm2919
        %v2921 = vsel %vm2920, %v2913, %v2917
        %v2922 = vand.u32 2147483647, %v2897
        %vm2923 = vcmp.eq.f32.partialorder %v2922, 8.507059e+37
        %v2924 = vand.u32 %v2897, 2147483648
        %v2925 = vor.u32 1.1754944e-38, %v2924
        %v2926 = vsel %vm2923, %v2925, %v2921
        %v2927 = vmul.f32 1.0, %v2926
        %v2928 = vmul.f32 %v2872, %v2732
        %v2929 = vmul.f32 %v2887, %v2733
        %v2930 = vmul.f32 %v2834, %v2888
        %v2931 = vmul.f32 %v2849, %v2889
        %v2932 = vadd.f32 %v2928, %v2930
        %v2933 = vadd.f32 %v2929, %v2931
        %v2934 = vtanh.pop %v2932
        %v2935 = vtanh.pop %v2933
        %v2936 = vmul.f32 %v2912, %v2934
        %v2937 = vmul.f32 %v2927, %v2935
        %vm2938 = vcmp.gt.s32.totalorder %v342, 10
        %vm2939 = vcmp.gt.s32.totalorder %v343, 10
        %v2940 = vsel %vm2938, 1, 0
        %v2941 = vsel %vm2939, 1, 0
        %2942 = vset.pattern.permute.xlu0 0
        %2943 = vperm.xlu0 %2942, %v2940
        %v2944 = vpop.permute.xlu0 %2943
        %2945 = vset.pattern.permute.xlu0 0
        %2946 = vperm.xlu0 %2945, %v2941
        %v2947 = vpop.permute.xlu0 %2946
        %vm2948 = vcmp.eq.s32.totalorder %v2944, 1
        %vm2949 = vcmp.eq.s32.totalorder %v2947, 1
        %v2950 = vsel %vm2948, %v2936, %v2730
        %v2951 = vsel %vm2949, %v2937, %v2731
        %v2952 = vsel %vm2948, %v2932, %v2732
        %v2953 = vsel %vm2949, %v2933, %v2733
        %2954 = vst [vmem:[%s338] sm:$0xff] %v2950
        %2955 = vst [vmem:[%s338 + $0x8] sm:$0xff] %v2951
        %2956 = vst [vmem:[%s326] sm:$0xff] %v2952
        %2957 = vst [vmem:[%s326 + $0x8] sm:$0xff] %v2953
        %s2958 = smul.u32 2, %s19
        %p2959 = scmp.lt.s32.totalorder %s2958, 3
        %s2960 = scalar_select %p2959, %s2958, 3
        %s2961 = smul.addr %s2960, 8
        %s2962 = scalar_lea.vmem %s3, %s2961
        %s2963 = sand.u32 %s126, 1
        %s2964 = scalar_lea.sflag [#allocation4], %s2963
        %s2965 = sand.u32 %s126, 1
        %s2966 = smul.addr %s2965, 16
        %s2967 = scalar_lea.vmem [#allocation3], %s2966
        // Predicated region
        $region56: #{qbot_forward.3} parent=50 // pred_check
          %p2968 = pneg %p110
        $region57: #{qbot_forward.3} parent=50 // pred_check_branch
          %2970 = sbr.rel (%p2968) target = $region59
        $region58: #{qbot_forward.3} parent=50 // pred_region
          %s2971 = smul.u32 2, %s19
        $region59: #{qbot_forward.3} parent=50 // pred_fallthru
          _
        // Predicated region
        $region60: #{qbot_forward.3} parent=50 // pred_check
          %p2972 = pneg %p136
        $region61: #{qbot_forward.3} parent=50 // pred_check_branch
          %2974 = sbr.rel (%p2972) target = $region63
        $region62: #{qbot_forward.3} parent=50 // pred_region
          %s2975 = smul.u32 2, %s19
          %2977 = vsyncadd %s2964, 0
          %s2978 = smul.addr %s2975, 8
          %s2979 = scalar_lea.hbm %s4, %s2978
          %s2980 = sshll.u32 %s2967, 4
          %s2981 = int_to_ptr.vmem [resolvable:$true] %s2980
          %s2982 = sshll.u32 %s2979, 4
          %s2983 = int_to_ptr.hbm [resolvable:$true] %s2982
          %2988 = dma.vmem_to_hbm [thread:$0]  %s2981, 256, %s2983, %s2964, 128, 128, 8
        $region63: #{qbot_forward.3} parent=50 // pred_fallthru
          _
      $region51: #{qbot_forward.3} parent=5 // pred_fallthru
        _
      %p2989 = scmp.le.s32.totalorder 2, %s14
      // Predicated region
      $region64: #{qbot_forward.3} parent=5 // pred_check
        %p2990 = pneg %p2989
      $region65: #{qbot_forward.3} parent=5 // pred_check_branch
        %2992 = sbr.rel (%p2990) target = $region67
      $region66: #{qbot_forward.3} parent=5 // pred_region
        %s2993 = ssub.s32 %s14, 2
        // Predicated region
        $region68: #{qbot_forward.3} parent=66 // pred_check
          %p2994 = pneg %p116
        $region69: #{qbot_forward.3} parent=66 // pred_check_branch
          %2996 = sbr.rel (%p2994) target = $region71
        $region70: #{qbot_forward.3} parent=66 // pred_region
          %s2997 = smul.u32 2, %s20
          %p2998 = scmp.lt.s32.totalorder %s2997, 3
          %s2999 = scalar_select %p2998, %s2997, 3
          %s3000 = smul.addr %s2999, 8
          %s3001 = scalar_lea.vmem %s3, %s3000
        $region71: #{qbot_forward.3} parent=66 // pred_fallthru
          _
        // Predicated region
        $region72: #{qbot_forward.3} parent=66 // pred_check
          %p3002 = pneg %p142
        $region73: #{qbot_forward.3} parent=66 // pred_check_branch
          %3004 = sbr.rel (%p3002) target = $region75
        $region74: #{qbot_forward.3} parent=66 // pred_region
          %s3005 = sand.u32 %s127, 1
          %s3006 = scalar_lea.sflag [#allocation4], %s3005
          %s3007 = sand.u32 %s127, 1
          %s3008 = smul.addr %s3007, 16
          %s3009 = scalar_lea.vmem [#allocation3], %s3008
          %3011 = dma.done %s3006, 256
        $region75: #{qbot_forward.3} parent=66 // pred_fallthru
          _
      $region67: #{qbot_forward.3} parent=5 // pred_fallthru
        _
    $region6: #{qbot_forward.3} parent=1 // loop_footer
      %s18 = sadd.s32 1, %s14
    $region7: #{qbot_forward.3} parent=1 // loop_footer_branch
      %13 = sbr.rel target = $region3
    $region8: #{qbot_forward.3} parent=1 // loop_exit
      _
    %3012 = vsyncpa [#allocation4], 1
    %s3013 = scalar_lea.sflag [#allocation4], 1
    %3014 = vsyncpa %s3013, 1

// kernel: qbot_forward.4
$region0: #{qbot_forward.4}
  #allocation0 [shape = 'u32[]', space=smem, size = 0x4, offset = 0x4, fixed_abs, tag = 'smem constant byte address 0x4 - core index']
  #allocation1 [shape = 'u32[72,128]{1,0:T(1,128)}', space=vmem, size = 0x9000, scoped, tag = 'internal scratch']
  %s0 = inlined_call_operand.vmem [shape: f32[4,8,128], index: 0, kind: input, shape index: {}]
  %s1 = inlined_call_operand.vmem [shape: bf16[256,512], index: 1, kind: input, shape index: {}]
  %s2 = inlined_call_operand.vmem [shape: f32[1,512], index: 2, kind: input, shape index: {}]
  %s3 = inlined_call_operand.vmem [shape: bf16[128,64], index: 3, kind: input, shape index: {}]
  %s4 = inlined_call_operand.vmem [shape: f32[1,64], index: 4, kind: input, shape index: {}]
  %s5 = inlined_call_operand.vmem [shape: f32[8,64], index: 5, kind: input, shape index: {}]
  %s6 = inlined_call_operand.vmem [shape: f32[3,8,128], index: 6, kind: output, shape index: {0}]
  %s7 = inlined_call_operand.vmem [shape: f32[3,8,128], index: 7, kind: output, shape index: {1}]
  %s8 = inlined_call_operand.hbm [shape: f32[1,1], index: 8, kind: output, shape index: {2}]
  %9 = xla_tuple %s6, %s7, %s8
  %s10 = sld [smem:[#allocation0]]
  $region50: #{qbot_forward.4} parent=0
    _
  %s12 = ssub.s32 1, %s10
  %s13 = scalar_select 0, %s12, %s10
  $region1: #{qbot_forward.4} parent=0
    #allocation2 [shape = 'u8[512]{0}', space=vmem, size = 0x400, scoped, tag = 'output window, operand 2, single buffered']
    #allocation3 [shape = 's32[1]{0}', space=sflag, size = 0x4, scoped, tag = 'scoped memory for qbot_forward.4']
    %14 = vsyncpa [#allocation3], 0
    // Predicated region
    $region2: #{qbot_forward.4} parent=1 // pred_check
      _
    $region3: #{qbot_forward.4} parent=1 // pred_check_branch
      %16 = sbr.rel (0) target = $region5
    $region4: #{qbot_forward.4} parent=1 // pred_region
      _
    $region5: #{qbot_forward.4} parent=1 // pred_fallthru
      _
    // Predicated region
    $region6: #{qbot_forward.4} parent=1 // pred_check
      _
    $region7: #{qbot_forward.4} parent=1 // pred_check_branch
      %18 = sbr.rel (0) target = $region9
    $region8: #{qbot_forward.4} parent=1 // pred_region
      _
    $region9: #{qbot_forward.4} parent=1 // pred_fallthru
      _
    // Predicated region
    $region10: #{qbot_forward.4} parent=1 // pred_check
      _
    $region11: #{qbot_forward.4} parent=1 // pred_check_branch
      %20 = sbr.rel (0) target = $region13
    $region12: #{qbot_forward.4} parent=1 // pred_region
      _
    $region13: #{qbot_forward.4} parent=1 // pred_fallthru
      _
    // Predicated region
    $region14: #{qbot_forward.4} parent=1 // pred_check
      _
    $region15: #{qbot_forward.4} parent=1 // pred_check_branch
      %22 = sbr.rel (0) target = $region17
    $region16: #{qbot_forward.4} parent=1 // pred_region
      _
    $region17: #{qbot_forward.4} parent=1 // pred_fallthru
      _
    // Predicated region
    $region18: #{qbot_forward.4} parent=1 // pred_check
      _
    $region19: #{qbot_forward.4} parent=1 // pred_check_branch
      %24 = sbr.rel (0) target = $region21
    $region20: #{qbot_forward.4} parent=1 // pred_region
      _
    $region21: #{qbot_forward.4} parent=1 // pred_fallthru
      _
    // Predicated region
    $region22: #{qbot_forward.4} parent=1 // pred_check
      _
    $region23: #{qbot_forward.4} parent=1 // pred_check_branch
      %26 = sbr.rel (0) target = $region25
    $region24: #{qbot_forward.4} parent=1 // pred_region
      _
    $region25: #{qbot_forward.4} parent=1 // pred_fallthru
      _
    %v28 = vld [vmem:[%s2] sm:$0xf]
    %v29 = vld [vmem:[%s0] sm:$0xff]
    %v30 = vpack.c.bf16 %v29, %v29
    %v31 = vld [vmem:[%s1] sm:$0xff]
    %v32 = vld [vmem:[%s1 + $0x8] sm:$0xff]
    %v33 = vld [vmem:[%s1 + $0x10] sm:$0xff]
    %v34 = vld [vmem:[%s1 + $0x18] sm:$0xff]
    %v35 = vld [vmem:[%s1 + $0x20] sm:$0xff]
    %v36 = vld [vmem:[%s1 + $0x28] sm:$0xff]
    %v37 = vld [vmem:[%s1 + $0x30] sm:$0xff]
    %v38 = vld [vmem:[%s1 + $0x38] sm:$0xff]
    %v39 = vld [vmem:[%s1 + $0x40] sm:$0xff]
    %v40 = vld [vmem:[%s1 + $0x48] sm:$0xff]
    %v41 = vld [vmem:[%s1 + $0x50] sm:$0xff]
    %v42 = vld [vmem:[%s1 + $0x58] sm:$0xff]
    %v43 = vld [vmem:[%s1 + $0x60] sm:$0xff]
    %v44 = vld [vmem:[%s1 + $0x68] sm:$0xff]
    %v45 = vld [vmem:[%s1 + $0x70] sm:$0xff]
    %v46 = vld [vmem:[%s1 + $0x78] sm:$0xff]
    %v47 = vld [vmem:[%s1 + $0x80] sm:$0xff]
    %v48 = vld [vmem:[%s1 + $0x88] sm:$0xff]
    %v49 = vld [vmem:[%s1 + $0x90] sm:$0xff]
    %v50 = vld [vmem:[%s1 + $0x98] sm:$0xff]
    %v51 = vld [vmem:[%s1 + $0xa0] sm:$0xff]
    %v52 = vld [vmem:[%s1 + $0xa8] sm:$0xff]
    %v53 = vld [vmem:[%s1 + $0xb0] sm:$0xff]
    %v54 = vld [vmem:[%s1 + $0xb8] sm:$0xff]
    %v55 = vld [vmem:[%s1 + $0xc0] sm:$0xff]
    %v56 = vld [vmem:[%s1 + $0xc8] sm:$0xff]
    %v57 = vld [vmem:[%s1 + $0xd0] sm:$0xff]
    %v58 = vld [vmem:[%s1 + $0xd8] sm:$0xff]
    %v59 = vld [vmem:[%s1 + $0xe0] sm:$0xff]
    %v60 = vld [vmem:[%s1 + $0xe8] sm:$0xff]
    %v61 = vld [vmem:[%s1 + $0xf0] sm:$0xff]
    %v62 = vld [vmem:[%s1 + $0xf8] sm:$0xff]
    %v63 = vld [vmem:[%s1 + $0x100] sm:$0xff]
    %v64 = vld [vmem:[%s1 + $0x108] sm:$0xff]
    %v65 = vld [vmem:[%s1 + $0x110] sm:$0xff]
    %v66 = vld [vmem:[%s1 + $0x118] sm:$0xff]
    %v67 = vld [vmem:[%s1 + $0x120] sm:$0xff]
    %v68 = vld [vmem:[%s1 + $0x128] sm:$0xff]
    %v69 = vld [vmem:[%s1 + $0x130] sm:$0xff]
    %v70 = vld [vmem:[%s1 + $0x138] sm:$0xff]
    %v71 = vld [vmem:[%s1 + $0x140] sm:$0xff]
    %v72 = vld [vmem:[%s1 + $0x148] sm:$0xff]
    %v73 = vld [vmem:[%s1 + $0x150] sm:$0xff]
    %v74 = vld [vmem:[%s1 + $0x158] sm:$0xff]
    %v75 = vld [vmem:[%s1 + $0x160] sm:$0xff]
    %v76 = vld [vmem:[%s1 + $0x168] sm:$0xff]
    %v77 = vld [vmem:[%s1 + $0x170] sm:$0xff]
    %v78 = vld [vmem:[%s1 + $0x178] sm:$0xff]
    %v79 = vld [vmem:[%s1 + $0x180] sm:$0xff]
    %v80 = vld [vmem:[%s1 + $0x188] sm:$0xff]
    %v81 = vld [vmem:[%s1 + $0x190] sm:$0xff]
    %v82 = vld [vmem:[%s1 + $0x198] sm:$0xff]
    %v83 = vld [vmem:[%s1 + $0x1a0] sm:$0xff]
    %v84 = vld [vmem:[%s1 + $0x1a8] sm:$0xff]
    %v85 = vld [vmem:[%s1 + $0x1b0] sm:$0xff]
    %v86 = vld [vmem:[%s1 + $0x1b8] sm:$0xff]
    %v87 = vld [vmem:[%s1 + $0x1c0] sm:$0xff]
    %v88 = vld [vmem:[%s1 + $0x1c8] sm:$0xff]
    %v89 = vld [vmem:[%s1 + $0x1d0] sm:$0xff]
    %v90 = vld [vmem:[%s1 + $0x1d8] sm:$0xff]
    %v91 = vld [vmem:[%s1 + $0x1e0] sm:$0xff]
    %v92 = vld [vmem:[%s1 + $0x1e8] sm:$0xff]
    %v93 = vld [vmem:[%s1 + $0x1f0] sm:$0xff]
    %v94 = vld [vmem:[%s1 + $0x1f8] sm:$0xff]
    %v96 = vperm.slane %v28, 0
    %v97 = vperm.slane %v28, 1
    %v98 = vperm.slane %v28, 2
    %v99 = vperm.slane %v28, 3
    %v168 = vunpack.c.l.b16 %v31
    %v169 = vunpack.c.h.b16 %v31
    %v170 = vunpack.c.l.b16 %v32
    %v171 = vunpack.c.h.b16 %v32
    %v172 = vunpack.c.l.b16 %v33
    %v173 = vunpack.c.h.b16 %v33
    %v174 = vunpack.c.l.b16 %v34
    %v175 = vunpack.c.h.b16 %v34
    %v176 = vunpack.c.l.b16 %v35
    %v177 = vunpack.c.h.b16 %v35
    %v178 = vunpack.c.l.b16 %v36
    %v179 = vunpack.c.h.b16 %v36
    %v180 = vunpack.c.l.b16 %v37
    %v181 = vunpack.c.h.b16 %v37
    %v182 = vunpack.c.l.b16 %v38
    %v183 = vunpack.c.h.b16 %v38
    %v184 = vunpack.c.l.b16 %v39
    %v185 = vunpack.c.h.b16 %v39
    %v186 = vunpack.c.l.b16 %v40
    %v187 = vunpack.c.h.b16 %v40
    %v188 = vunpack.c.l.b16 %v41
    %v189 = vunpack.c.h.b16 %v41
    %v190 = vunpack.c.l.b16 %v42
    %v191 = vunpack.c.h.b16 %v42
    %v192 = vunpack.c.l.b16 %v43
    %v193 = vunpack.c.h.b16 %v43
    %v194 = vunpack.c.l.b16 %v44
    %v195 = vunpack.c.h.b16 %v44
    %v196 = vunpack.c.l.b16 %v45
    %v197 = vunpack.c.h.b16 %v45
    %v198 = vunpack.c.l.b16 %v46
    %v199 = vunpack.c.h.b16 %v46
    %v200 = vunpack.c.l.b16 %v47
    %v201 = vunpack.c.h.b16 %v47
    %v202 = vunpack.c.l.b16 %v48
    %v203 = vunpack.c.h.b16 %v48
    %v204 = vunpack.c.l.b16 %v49
    %v205 = vunpack.c.h.b16 %v49
    %v206 = vunpack.c.l.b16 %v50
    %v207 = vunpack.c.h.b16 %v50
    %v208 = vunpack.c.l.b16 %v51
    %v209 = vunpack.c.h.b16 %v51
    %v210 = vunpack.c.l.b16 %v52
    %v211 = vunpack.c.h.b16 %v52
    %v212 = vunpack.c.l.b16 %v53
    %v213 = vunpack.c.h.b16 %v53
    %v214 = vunpack.c.l.b16 %v54
    %v215 = vunpack.c.h.b16 %v54
    %v216 = vunpack.c.l.b16 %v55
    %v217 = vunpack.c.h.b16 %v55
    %v218 = vunpack.c.l.b16 %v56
    %v219 = vunpack.c.h.b16 %v56
    %v220 = vunpack.c.l.b16 %v57
    %v221 = vunpack.c.h.b16 %v57
    %v222 = vunpack.c.l.b16 %v58
    %v223 = vunpack.c.h.b16 %v58
    %v224 = vunpack.c.l.b16 %v59
    %v225 = vunpack.c.h.b16 %v59
    %v226 = vunpack.c.l.b16 %v60
    %v227 = vunpack.c.h.b16 %v60
    %v228 = vunpack.c.l.b16 %v61
    %v229 = vunpack.c.h.b16 %v61
    %v230 = vunpack.c.l.b16 %v62
    %v231 = vunpack.c.h.b16 %v62
    %v232 = vunpack.c.l.b16 %v63
    %v233 = vunpack.c.h.b16 %v63
    %v234 = vunpack.c.l.b16 %v64
    %v235 = vunpack.c.h.b16 %v64
    %v236 = vunpack.c.l.b16 %v65
    %v237 = vunpack.c.h.b16 %v65
    %v238 = vunpack.c.l.b16 %v66
    %v239 = vunpack.c.h.b16 %v66
    %v240 = vunpack.c.l.b16 %v67
    %v241 = vunpack.c.h.b16 %v67
    %v242 = vunpack.c.l.b16 %v68
    %v243 = vunpack.c.h.b16 %v68
    %v244 = vunpack.c.l.b16 %v69
    %v245 = vunpack.c.h.b16 %v69
    %v246 = vunpack.c.l.b16 %v70
    %v247 = vunpack.c.h.b16 %v70
    %v248 = vunpack.c.l.b16 %v71
    %v249 = vunpack.c.h.b16 %v71
    %v250 = vunpack.c.l.b16 %v72
    %v251 = vunpack.c.h.b16 %v72
    %v252 = vunpack.c.l.b16 %v73
    %v253 = vunpack.c.h.b16 %v73
    %v254 = vunpack.c.l.b16 %v74
    %v255 = vunpack.c.h.b16 %v74
    %v256 = vunpack.c.l.b16 %v75
    %v257 = vunpack.c.h.b16 %v75
    %v258 = vunpack.c.l.b16 %v76
    %v259 = vunpack.c.h.b16 %v76
    %v260 = vunpack.c.l.b16 %v77
    %v261 = vunpack.c.h.b16 %v77
    %v262 = vunpack.c.l.b16 %v78
    %v263 = vunpack.c.h.b16 %v78
    %v264 = vunpack.c.l.b16 %v79
    %v265 = vunpack.c.h.b16 %v79
    %v266 = vunpack.c.l.b16 %v80
    %v267 = vunpack.c.h.b16 %v80
    %v268 = vunpack.c.l.b16 %v81
    %v269 = vunpack.c.h.b16 %v81
    %v270 = vunpack.c.l.b16 %v82
    %v271 = vunpack.c.h.b16 %v82
    %v272 = vunpack.c.l.b16 %v83
    %v273 = vunpack.c.h.b16 %v83
    %v274 = vunpack.c.l.b16 %v84
    %v275 = vunpack.c.h.b16 %v84
    %v276 = vunpack.c.l.b16 %v85
    %v277 = vunpack.c.h.b16 %v85
    %v278 = vunpack.c.l.b16 %v86
    %v279 = vunpack.c.h.b16 %v86
    %v280 = vunpack.c.l.b16 %v87
    %v281 = vunpack.c.h.b16 %v87
    %v282 = vunpack.c.l.b16 %v88
    %v283 = vunpack.c.h.b16 %v88
    %v284 = vunpack.c.l.b16 %v89
    %v285 = vunpack.c.h.b16 %v89
    %v286 = vunpack.c.l.b16 %v90
    %v287 = vunpack.c.h.b16 %v90
    %v288 = vunpack.c.l.b16 %v91
    %v289 = vunpack.c.h.b16 %v91
    %v290 = vunpack.c.l.b16 %v92
    %v291 = vunpack.c.h.b16 %v92
    %v292 = vunpack.c.l.b16 %v93
    %v293 = vunpack.c.h.b16 %v93
    %v294 = vunpack.c.l.b16 %v94
    %v295 = vunpack.c.h.b16 %v94
    %v296 = vpack.c.b16 %v172, %v168
    %v297 = vpack.c.b16 %v173, %v169
    %v298 = vpack.c.b16 %v174, %v170
    %v299 = vpack.c.b16 %v175, %v171
    %v300 = vpack.c.b16 %v180, %v176
    %v301 = vpack.c.b16 %v181, %v177
    %v302 = vpack.c.b16 %v182, %v178
    %v303 = vpack.c.b16 %v183, %v179
    %v304 = vpack.c.b16 %v188, %v184
    %v305 = vpack.c.b16 %v189, %v185
    %v306 = vpack.c.b16 %v190, %v186
    %v307 = vpack.c.b16 %v191, %v187
    %v308 = vpack.c.b16 %v196, %v192
    %v309 = vpack.c.b16 %v197, %v193
    %v310 = vpack.c.b16 %v198, %v194
    %v311 = vpack.c.b16 %v199, %v195
    %v312 = vpack.c.b16 %v204, %v200
    %v313 = vpack.c.b16 %v205, %v201
    %v314 = vpack.c.b16 %v206, %v202
    %v315 = vpack.c.b16 %v207, %v203
    %v316 = vpack.c.b16 %v212, %v208
    %v317 = vpack.c.b16 %v213, %v209
    %v318 = vpack.c.b16 %v214, %v210
    %v319 = vpack.c.b16 %v215, %v211
    %v320 = vpack.c.b16 %v220, %v216
    %v321 = vpack.c.b16 %v221, %v217
    %v322 = vpack.c.b16 %v222, %v218
    %v323 = vpack.c.b16 %v223, %v219
    %v324 = vpack.c.b16 %v228, %v224
    %v325 = vpack.c.b16 %v229, %v225
    %v326 = vpack.c.b16 %v230, %v226
    %v327 = vpack.c.b16 %v231, %v227
    %v328 = vpack.c.b16 %v236, %v232
    %v329 = vpack.c.b16 %v237, %v233
    %v330 = vpack.c.b16 %v238, %v234
    %v331 = vpack.c.b16 %v239, %v235
    %v332 = vpack.c.b16 %v244, %v240
    %v333 = vpack.c.b16 %v245, %v241
    %v334 = vpack.c.b16 %v246, %v242
    %v335 = vpack.c.b16 %v247, %v243
    %v336 = vpack.c.b16 %v252, %v248
    %v337 = vpack.c.b16 %v253, %v249
    %v338 = vpack.c.b16 %v254, %v250
    %v339 = vpack.c.b16 %v255, %v251
    %v340 = vpack.c.b16 %v260, %v256
    %v341 = vpack.c.b16 %v261, %v257
    %v342 = vpack.c.b16 %v262, %v258
    %v343 = vpack.c.b16 %v263, %v259
    %v344 = vpack.c.b16 %v268, %v264
    %v345 = vpack.c.b16 %v269, %v265
    %v346 = vpack.c.b16 %v270, %v266
    %v347 = vpack.c.b16 %v271, %v267
    %v348 = vpack.c.b16 %v276, %v272
    %v349 = vpack.c.b16 %v277, %v273
    %v350 = vpack.c.b16 %v278, %v274
    %v351 = vpack.c.b16 %v279, %v275
    %v352 = vpack.c.b16 %v284, %v280
    %v353 = vpack.c.b16 %v285, %v281
    %v354 = vpack.c.b16 %v286, %v282
    %v355 = vpack.c.b16 %v287, %v283
    %v356 = vpack.c.b16 %v292, %v288
    %v357 = vpack.c.b16 %v293, %v289
    %v358 = vpack.c.b16 %v294, %v290
    %v359 = vpack.c.b16 %v295, %v291
    %424 = vmatpush.bf16.msra.mxu0 %v324
    %425 = vmatpush.bf16.msra.mxu0 %v320
    %426 = vmatpush.bf16.msra.mxu0 %v316
    %427 = vmatpush.bf16.msra.mxu0 %v312
    %428 = vmatpush.bf16.msra.mxu0 %v308
    %429 = vmatpush.bf16.msra.mxu0 %v304
    %430 = vmatpush.bf16.msra.mxu0 %v300
    %431 = vmatpush.bf16.msra.mxu0 %v296
    %432 = vmatmul.bf16.gmra.mxu0 %v30
    %v433 = vpop.f32.mrf.mxu0
    %v434 = vadd.f32 %v96, %v433
    %v435 = vpop.f32.mrf.mxu0
    %436 = vdwg.mxu0
    %437 = vmatpush.bf16.msra.mxu0 %v356
    %438 = vmatpush.bf16.msra.mxu0 %v352
    %439 = vmatpush.bf16.msra.mxu0 %v348
    %440 = vmatpush.bf16.msra.mxu0 %v344
    %441 = vmatpush.bf16.msra.mxu0 %v340
    %442 = vmatpush.bf16.msra.mxu0 %v336
    %443 = vmatpush.bf16.msra.mxu0 %v332
    %444 = vmatpush.bf16.msra.mxu0 %v328
    %445 = vmatmul.bf16.gmra.mxu0 0
    %v446 = vpop.f32.mrf.mxu0
    %v447 = vadd.f32 %v434, %v446
    %v448 = vpop.f32.mrf.mxu0
    %449 = vdwg.mxu0
    %450 = vmatpush.bf16.msra.mxu0 %v325
    %451 = vmatpush.bf16.msra.mxu0 %v321
    %452 = vmatpush.bf16.msra.mxu0 %v317
    %453 = vmatpush.bf16.msra.mxu0 %v313
    %454 = vmatpush.bf16.msra.mxu0 %v309
    %455 = vmatpush.bf16.msra.mxu0 %v305
    %456 = vmatpush.bf16.msra.mxu0 %v301
    %457 = vmatpush.bf16.msra.mxu0 %v297
    %458 = vmatmul.bf16.gmra.mxu0 %v30
    %v459 = vpop.f32.mrf.mxu0
    %v460 = vadd.f32 %v97, %v459
    %v461 = vpop.f32.mrf.mxu0
    %462 = vdwg.mxu0
    %463 = vmatpush.bf16.msra.mxu0 %v357
    %464 = vmatpush.bf16.msra.mxu0 %v353
    %465 = vmatpush.bf16.msra.mxu0 %v349
    %466 = vmatpush.bf16.msra.mxu0 %v345
    %467 = vmatpush.bf16.msra.mxu0 %v341
    %468 = vmatpush.bf16.msra.mxu0 %v337
    %469 = vmatpush.bf16.msra.mxu0 %v333
    %470 = vmatpush.bf16.msra.mxu0 %v329
    %471 = vmatmul.bf16.gmra.mxu0 0
    %v472 = vpop.f32.mrf.mxu0
    %v473 = vadd.f32 %v460, %v472
    %v474 = vpop.f32.mrf.mxu0
    %475 = vdwg.mxu0
    %476 = vmatpush.bf16.msra.mxu0 %v326
    %477 = vmatpush.bf16.msra.mxu0 %v322
    %478 = vmatpush.bf16.msra.mxu0 %v318
    %479 = vmatpush.bf16.msra.mxu0 %v314
    %480 = vmatpush.bf16.msra.mxu0 %v310
    %481 = vmatpush.bf16.msra.mxu0 %v306
    %482 = vmatpush.bf16.msra.mxu0 %v302
    %483 = vmatpush.bf16.msra.mxu0 %v298
    %484 = vmatmul.bf16.gmra.mxu0 %v30
    %v485 = vpop.f32.mrf.mxu0
    %v486 = vadd.f32 %v98, %v485
    %v487 = vpop.f32.mrf.mxu0
    %488 = vdwg.mxu0
    %489 = vmatpush.bf16.msra.mxu0 %v358
    %490 = vmatpush.bf16.msra.mxu0 %v354
    %491 = vmatpush.bf16.msra.mxu0 %v350
    %492 = vmatpush.bf16.msra.mxu0 %v346
    %493 = vmatpush.bf16.msra.mxu0 %v342
    %494 = vmatpush.bf16.msra.mxu0 %v338
    %495 = vmatpush.bf16.msra.mxu0 %v334
    %496 = vmatpush.bf16.msra.mxu0 %v330
    %497 = vmatmul.bf16.gmra.mxu0 0
    %v498 = vpop.f32.mrf.mxu0
    %v499 = vadd.f32 %v486, %v498
    %v500 = vpop.f32.mrf.mxu0
    %501 = vdwg.mxu0
    %502 = vmatpush.bf16.msra.mxu0 %v327
    %503 = vmatpush.bf16.msra.mxu0 %v323
    %504 = vmatpush.bf16.msra.mxu0 %v319
    %505 = vmatpush.bf16.msra.mxu0 %v315
    %506 = vmatpush.bf16.msra.mxu0 %v311
    %507 = vmatpush.bf16.msra.mxu0 %v307
    %508 = vmatpush.bf16.msra.mxu0 %v303
    %509 = vmatpush.bf16.msra.mxu0 %v299
    %510 = vmatmul.bf16.gmra.mxu0 %v30
    %v511 = vpop.f32.mrf.mxu0
    %v512 = vadd.f32 %v99, %v511
    %v513 = vpop.f32.mrf.mxu0
    %514 = vdwg.mxu0
    %515 = vmatpush.bf16.msra.mxu0 %v359
    %516 = vmatpush.bf16.msra.mxu0 %v355
    %517 = vmatpush.bf16.msra.mxu0 %v351
    %518 = vmatpush.bf16.msra.mxu0 %v347
    %519 = vmatpush.bf16.msra.mxu0 %v343
    %520 = vmatpush.bf16.msra.mxu0 %v339
    %521 = vmatpush.bf16.msra.mxu0 %v335
    %522 = vmatpush.bf16.msra.mxu0 %v331
    %523 = vmatmul.bf16.gmra.mxu0 0
    %v524 = vpop.f32.mrf.mxu0
    %v525 = vadd.f32 %v512, %v524
    %v526 = vpop.f32.mrf.mxu0
    %527 = vdwg.mxu0
    %v528 = vxor.u32 %v447, 2147483648
    %v529 = vmul.f32 %v528, 1.442695
    %v530 = vpow.pop %v529
    %v531 = vadd.f32 %v530, 1.0
    %v532 = vrcp.pop %v531
    %v533 = vmul.f32 %v531, %v532
    %v534 = vsub.f32 1.0, %v533
    %v535 = vmul.f32 %v532, %v534
    %v536 = vadd.f32 %v532, %v535
    %vm537 = vweird.f32 %v531
    %vm538 = vweird.f32 %v532
    %vm539 = vmor %vm537, %vm538
    %v540 = vsel %vm539, %v532, %v536
    %v541 = vand.u32 2147483647, %v531
    %vm542 = vcmp.eq.f32.partialorder %v541, 8.507059e+37
    %v543 = vand.u32 %v531, 2147483648
    %v544 = vor.u32 1.1754944e-38, %v543
    %v545 = vsel %vm542, %v544, %v540
    %v546 = vmul.f32 1.0, %v545
    %v547 = vxor.u32 %v473, 2147483648
    %v548 = vmul.f32 %v547, 1.442695
    %v549 = vpow.pop %v548
    %v550 = vadd.f32 %v549, 1.0
    %v551 = vrcp.pop %v550
    %v552 = vmul.f32 %v550, %v551
    %v553 = vsub.f32 1.0, %v552
    %v554 = vmul.f32 %v551, %v553
    %v555 = vadd.f32 %v551, %v554
    %vm556 = vweird.f32 %v550
    %vm557 = vweird.f32 %v551
    %vm558 = vmor %vm556, %vm557
    %v559 = vsel %vm558, %v551, %v555
    %v560 = vand.u32 2147483647, %v550
    %vm561 = vcmp.eq.f32.partialorder %v560, 8.507059e+37
    %v562 = vand.u32 %v550, 2147483648
    %v563 = vor.u32 1.1754944e-38, %v562
    %v564 = vsel %vm561, %v563, %v559
    %v565 = vmul.f32 1.0, %v564
    %v566 = vtanh.pop %v499
    %v567 = vxor.u32 %v525, 2147483648
    %v568 = vmul.f32 %v567, 1.442695
    %v569 = vpow.pop %v568
    %v570 = vadd.f32 %v569, 1.0
    %v571 = vrcp.pop %v570
    %v572 = vmul.f32 %v570, %v571
    %v573 = vsub.f32 1.0, %v572
    %v574 = vmul.f32 %v571, %v573
    %v575 = vadd.f32 %v571, %v574
    %vm576 = vweird.f32 %v570
    %vm577 = vweird.f32 %v571
    %vm578 = vmor %vm576, %vm577
    %v579 = vsel %vm578, %v571, %v575
    %v580 = vand.u32 2147483647, %v570
    %vm581 = vcmp.eq.f32.partialorder %v580, 8.507059e+37
    %v582 = vand.u32 %v570, 2147483648
    %v583 = vor.u32 1.1754944e-38, %v582
    %v584 = vsel %vm581, %v583, %v579
    %v585 = vmul.f32 1.0, %v584
    %v586 = vmul.f32 %v565, 0.0
    %v587 = vmul.f32 %v546, %v566
    %v588 = vadd.f32 %v586, %v587
    %v589 = vtanh.pop %v588
    %v590 = vmul.f32 %v585, %v589
    %591 = vst [vmem:[%s6] sm:$0xff] %v590
    %592 = vst [vmem:[%s7] sm:$0xff] %v588
    %s593 = scalar_lea.vmem %s0, 8
    %v594 = vld [vmem:[%s593] sm:$0xff]
    %v595 = vpack.c.bf16 %v594, %v594
    %v596 = vpack.c.bf16 %v590, %v590
    %v597 = vld [vmem:[%s1] sm:$0xff]
    %v598 = vld [vmem:[%s1 + $0x8] sm:$0xff]
    %v599 = vld [vmem:[%s1 + $0x10] sm:$0xff]
    %v600 = vld [vmem:[%s1 + $0x18] sm:$0xff]
    %v601 = vld [vmem:[%s1 + $0x20] sm:$0xff]
    %v602 = vld [vmem:[%s1 + $0x28] sm:$0xff]
    %v603 = vld [vmem:[%s1 + $0x30] sm:$0xff]
    %v604 = vld [vmem:[%s1 + $0x38] sm:$0xff]
    %v605 = vld [vmem:[%s1 + $0x40] sm:$0xff]
    %v606 = vld [vmem:[%s1 + $0x48] sm:$0xff]
    %v607 = vld [vmem:[%s1 + $0x50] sm:$0xff]
    %v608 = vld [vmem:[%s1 + $0x58] sm:$0xff]
    %v609 = vld [vmem:[%s1 + $0x60] sm:$0xff]
    %v610 = vld [vmem:[%s1 + $0x68] sm:$0xff]
    %v611 = vld [vmem:[%s1 + $0x70] sm:$0xff]
    %v612 = vld [vmem:[%s1 + $0x78] sm:$0xff]
    %v613 = vld [vmem:[%s1 + $0x80] sm:$0xff]
    %v614 = vld [vmem:[%s1 + $0x88] sm:$0xff]
    %v615 = vld [vmem:[%s1 + $0x90] sm:$0xff]
    %v616 = vld [vmem:[%s1 + $0x98] sm:$0xff]
    %v617 = vld [vmem:[%s1 + $0xa0] sm:$0xff]
    %v618 = vld [vmem:[%s1 + $0xa8] sm:$0xff]
    %v619 = vld [vmem:[%s1 + $0xb0] sm:$0xff]
    %v620 = vld [vmem:[%s1 + $0xb8] sm:$0xff]
    %v621 = vld [vmem:[%s1 + $0xc0] sm:$0xff]
    %v622 = vld [vmem:[%s1 + $0xc8] sm:$0xff]
    %v623 = vld [vmem:[%s1 + $0xd0] sm:$0xff]
    %v624 = vld [vmem:[%s1 + $0xd8] sm:$0xff]
    %v625 = vld [vmem:[%s1 + $0xe0] sm:$0xff]
    %v626 = vld [vmem:[%s1 + $0xe8] sm:$0xff]
    %v627 = vld [vmem:[%s1 + $0xf0] sm:$0xff]
    %v628 = vld [vmem:[%s1 + $0xf8] sm:$0xff]
    %v629 = vld [vmem:[%s1 + $0x100] sm:$0xff]
    %v630 = vld [vmem:[%s1 + $0x108] sm:$0xff]
    %v631 = vld [vmem:[%s1 + $0x110] sm:$0xff]
    %v632 = vld [vmem:[%s1 + $0x118] sm:$0xff]
    %v633 = vld [vmem:[%s1 + $0x120] sm:$0xff]
    %v634 = vld [vmem:[%s1 + $0x128] sm:$0xff]
    %v635 = vld [vmem:[%s1 + $0x130] sm:$0xff]
    %v636 = vld [vmem:[%s1 + $0x138] sm:$0xff]
    %v637 = vld [vmem:[%s1 + $0x140] sm:$0xff]
    %v638 = vld [vmem:[%s1 + $0x148] sm:$0xff]
    %v639 = vld [vmem:[%s1 + $0x150] sm:$0xff]
    %v640 = vld [vmem:[%s1 + $0x158] sm:$0xff]
    %v641 = vld [vmem:[%s1 + $0x160] sm:$0xff]
    %v642 = vld [vmem:[%s1 + $0x168] sm:$0xff]
    %v643 = vld [vmem:[%s1 + $0x170] sm:$0xff]
    %v644 = vld [vmem:[%s1 + $0x178] sm:$0xff]
    %v645 = vld [vmem:[%s1 + $0x180] sm:$0xff]
    %v646 = vld [vmem:[%s1 + $0x188] sm:$0xff]
    %v647 = vld [vmem:[%s1 + $0x190] sm:$0xff]
    %v648 = vld [vmem:[%s1 + $0x198] sm:$0xff]
    %v649 = vld [vmem:[%s1 + $0x1a0] sm:$0xff]
    %v650 = vld [vmem:[%s1 + $0x1a8] sm:$0xff]
    %v651 = vld [vmem:[%s1 + $0x1b0] sm:$0xff]
    %v652 = vld [vmem:[%s1 + $0x1b8] sm:$0xff]
    %v653 = vld [vmem:[%s1 + $0x1c0] sm:$0xff]
    %v654 = vld [vmem:[%s1 + $0x1c8] sm:$0xff]
    %v655 = vld [vmem:[%s1 + $0x1d0] sm:$0xff]
    %v656 = vld [vmem:[%s1 + $0x1d8] sm:$0xff]
    %v657 = vld [vmem:[%s1 + $0x1e0] sm:$0xff]
    %v658 = vld [vmem:[%s1 + $0x1e8] sm:$0xff]
    %v659 = vld [vmem:[%s1 + $0x1f0] sm:$0xff]
    %v660 = vld [vmem:[%s1 + $0x1f8] sm:$0xff]
    %v725 = vunpack.c.l.b16 %v597
    %v726 = vunpack.c.h.b16 %v597
    %v727 = vunpack.c.l.b16 %v598
    %v728 = vunpack.c.h.b16 %v598
    %v729 = vunpack.c.l.b16 %v599
    %v730 = vunpack.c.h.b16 %v599
    %v731 = vunpack.c.l.b16 %v600
    %v732 = vunpack.c.h.b16 %v600
    %v733 = vunpack.c.l.b16 %v601
    %v734 = vunpack.c.h.b16 %v601
    %v735 = vunpack.c.l.b16 %v602
    %v736 = vunpack.c.h.b16 %v602
    %v737 = vunpack.c.l.b16 %v603
    %v738 = vunpack.c.h.b16 %v603
    %v739 = vunpack.c.l.b16 %v604
    %v740 = vunpack.c.h.b16 %v604
    %v741 = vunpack.c.l.b16 %v605
    %v742 = vunpack.c.h.b16 %v605
    %v743 = vunpack.c.l.b16 %v606
    %v744 = vunpack.c.h.b16 %v606
    %v745 = vunpack.c.l.b16 %v607
    %v746 = vunpack.c.h.b16 %v607
    %v747 = vunpack.c.l.b16 %v608
    %v748 = vunpack.c.h.b16 %v608
    %v749 = vunpack.c.l.b16 %v609
    %v750 = vunpack.c.h.b16 %v609
    %v751 = vunpack.c.l.b16 %v610
    %v752 = vunpack.c.h.b16 %v610
    %v753 = vunpack.c.l.b16 %v611
    %v754 = vunpack.c.h.b16 %v611
    %v755 = vunpack.c.l.b16 %v612
    %v756 = vunpack.c.h.b16 %v612
    %v757 = vunpack.c.l.b16 %v613
    %v758 = vunpack.c.h.b16 %v613
    %v759 = vunpack.c.l.b16 %v614
    %v760 = vunpack.c.h.b16 %v614
    %v761 = vunpack.c.l.b16 %v615
    %v762 = vunpack.c.h.b16 %v615
    %v763 = vunpack.c.l.b16 %v616
    %v764 = vunpack.c.h.b16 %v616
    %v765 = vunpack.c.l.b16 %v617
    %v766 = vunpack.c.h.b16 %v617
    %v767 = vunpack.c.l.b16 %v618
    %v768 = vunpack.c.h.b16 %v618
    %v769 = vunpack.c.l.b16 %v619
    %v770 = vunpack.c.h.b16 %v619
    %v771 = vunpack.c.l.b16 %v620
    %v772 = vunpack.c.h.b16 %v620
    %v773 = vunpack.c.l.b16 %v621
    %v774 = vunpack.c.h.b16 %v621
    %v775 = vunpack.c.l.b16 %v622
    %v776 = vunpack.c.h.b16 %v622
    %v777 = vunpack.c.l.b16 %v623
    %v778 = vunpack.c.h.b16 %v623
    %v779 = vunpack.c.l.b16 %v624
    %v780 = vunpack.c.h.b16 %v624
    %v781 = vunpack.c.l.b16 %v625
    %v782 = vunpack.c.h.b16 %v625
    %v783 = vunpack.c.l.b16 %v626
    %v784 = vunpack.c.h.b16 %v626
    %v785 = vunpack.c.l.b16 %v627
    %v786 = vunpack.c.h.b16 %v627
    %v787 = vunpack.c.l.b16 %v628
    %v788 = vunpack.c.h.b16 %v628
    %v789 = vunpack.c.l.b16 %v629
    %v790 = vunpack.c.h.b16 %v629
    %v791 = vunpack.c.l.b16 %v630
    %v792 = vunpack.c.h.b16 %v630
    %v793 = vunpack.c.l.b16 %v631
    %v794 = vunpack.c.h.b16 %v631
    %v795 = vunpack.c.l.b16 %v632
    %v796 = vunpack.c.h.b16 %v632
    %v797 = vunpack.c.l.b16 %v633
    %v798 = vunpack.c.h.b16 %v633
    %v799 = vunpack.c.l.b16 %v634
    %v800 = vunpack.c.h.b16 %v634
    %v801 = vunpack.c.l.b16 %v635
    %v802 = vunpack.c.h.b16 %v635
    %v803 = vunpack.c.l.b16 %v636
    %v804 = vunpack.c.h.b16 %v636
    %v805 = vunpack.c.l.b16 %v637
    %v806 = vunpack.c.h.b16 %v637
    %v807 = vunpack.c.l.b16 %v638
    %v808 = vunpack.c.h.b16 %v638
    %v809 = vunpack.c.l.b16 %v639
    %v810 = vunpack.c.h.b16 %v639
    %v811 = vunpack.c.l.b16 %v640
    %v812 = vunpack.c.h.b16 %v640
    %v813 = vunpack.c.l.b16 %v641
    %v814 = vunpack.c.h.b16 %v641
    %v815 = vunpack.c.l.b16 %v642
    %v816 = vunpack.c.h.b16 %v642
    %v817 = vunpack.c.l.b16 %v643
    %v818 = vunpack.c.h.b16 %v643
    %v819 = vunpack.c.l.b16 %v644
    %v820 = vunpack.c.h.b16 %v644
    %v821 = vunpack.c.l.b16 %v645
    %v822 = vunpack.c.h.b16 %v645
    %v823 = vunpack.c.l.b16 %v646
    %v824 = vunpack.c.h.b16 %v646
    %v825 = vunpack.c.l.b16 %v647
    %v826 = vunpack.c.h.b16 %v647
    %v827 = vunpack.c.l.b16 %v648
    %v828 = vunpack.c.h.b16 %v648
    %v829 = vunpack.c.l.b16 %v649
    %v830 = vunpack.c.h.b16 %v649
    %v831 = vunpack.c.l.b16 %v650
    %v832 = vunpack.c.h.b16 %v650
    %v833 = vunpack.c.l.b16 %v651
    %v834 = vunpack.c.h.b16 %v651
    %v835 = vunpack.c.l.b16 %v652
    %v836 = vunpack.c.h.b16 %v652
    %v837 = vunpack.c.l.b16 %v653
    %v838 = vunpack.c.h.b16 %v653
    %v839 = vunpack.c.l.b16 %v654
    %v840 = vunpack.c.h.b16 %v654
    %v841 = vunpack.c.l.b16 %v655
    %v842 = vunpack.c.h.b16 %v655
    %v843 = vunpack.c.l.b16 %v656
    %v844 = vunpack.c.h.b16 %v656
    %v845 = vunpack.c.l.b16 %v657
    %v846 = vunpack.c.h.b16 %v657
    %v847 = vunpack.c.l.b16 %v658
    %v848 = vunpack.c.h.b16 %v658
    %v849 = vunpack.c.l.b16 %v659
    %v850 = vunpack.c.h.b16 %v659
    %v851 = vunpack.c.l.b16 %v660
    %v852 = vunpack.c.h.b16 %v660
    %v853 = vpack.c.b16 %v729, %v725
    %v854 = vpack.c.b16 %v730, %v726
    %v855 = vpack.c.b16 %v731, %v727
    %v856 = vpack.c.b16 %v732, %v728
    %v857 = vpack.c.b16 %v737, %v733
    %v858 = vpack.c.b16 %v738, %v734
    %v859 = vpack.c.b16 %v739, %v735
    %v860 = vpack.c.b16 %v740, %v736
    %v861 = vpack.c.b16 %v745, %v741
    %v862 = vpack.c.b16 %v746, %v742
    %v863 = vpack.c.b16 %v747, %v743
    %v864 = vpack.c.b16 %v748, %v744
    %v865 = vpack.c.b16 %v753, %v749
    %v866 = vpack.c.b16 %v754, %v750
    %v867 = vpack.c.b16 %v755, %v751
    %v868 = vpack.c.b16 %v756, %v752
    %v869 = vpack.c.b16 %v761, %v757
    %v870 = vpack.c.b16 %v762, %v758
    %v871 = vpack.c.b16 %v763, %v759
    %v872 = vpack.c.b16 %v764, %v760
    %v873 = vpack.c.b16 %v769, %v765
    %v874 = vpack.c.b16 %v770, %v766
    %v875 = vpack.c.b16 %v771, %v767
    %v876 = vpack.c.b16 %v772, %v768
    %v877 = vpack.c.b16 %v777, %v773
    %v878 = vpack.c.b16 %v778, %v774
    %v879 = vpack.c.b16 %v779, %v775
    %v880 = vpack.c.b16 %v780, %v776
    %v881 = vpack.c.b16 %v785, %v781
    %v882 = vpack.c.b16 %v786, %v782
    %v883 = vpack.c.b16 %v787, %v783
    %v884 = vpack.c.b16 %v788, %v784
    %v885 = vpack.c.b16 %v793, %v789
    %v886 = vpack.c.b16 %v794, %v790
    %v887 = vpack.c.b16 %v795, %v791
    %v888 = vpack.c.b16 %v796, %v792
    %v889 = vpack.c.b16 %v801, %v797
    %v890 = vpack.c.b16 %v802, %v798
    %v891 = vpack.c.b16 %v803, %v799
    %v892 = vpack.c.b16 %v804, %v800
    %v893 = vpack.c.b16 %v809, %v805
    %v894 = vpack.c.b16 %v810, %v806
    %v895 = vpack.c.b16 %v811, %v807
    %v896 = vpack.c.b16 %v812, %v808
    %v897 = vpack.c.b16 %v817, %v813
    %v898 = vpack.c.b16 %v818, %v814
    %v899 = vpack.c.b16 %v819, %v815
    %v900 = vpack.c.b16 %v820, %v816
    %v901 = vpack.c.b16 %v825, %v821
    %v902 = vpack.c.b16 %v826, %v822
    %v903 = vpack.c.b16 %v827, %v823
    %v904 = vpack.c.b16 %v828, %v824
    %v905 = vpack.c.b16 %v833, %v829
    %v906 = vpack.c.b16 %v834, %v830
    %v907 = vpack.c.b16 %v835, %v831
    %v908 = vpack.c.b16 %v836, %v832
    %v909 = vpack.c.b16 %v841, %v837
    %v910 = vpack.c.b16 %v842, %v838
    %v911 = vpack.c.b16 %v843, %v839
    %v912 = vpack.c.b16 %v844, %v840
    %v913 = vpack.c.b16 %v849, %v845
    %v914 = vpack.c.b16 %v850, %v846
    %v915 = vpack.c.b16 %v851, %v847
    %v916 = vpack.c.b16 %v852, %v848
    %981 = vmatpush.bf16.msra.mxu0 %v881
    %982 = vmatpush.bf16.msra.mxu0 %v877
    %983 = vmatpush.bf16.msra.mxu0 %v873
    %984 = vmatpush.bf16.msra.mxu0 %v869
    %985 = vmatpush.bf16.msra.mxu0 %v865
    %986 = vmatpush.bf16.msra.mxu0 %v861
    %987 = vmatpush.bf16.msra.mxu0 %v857
    %988 = vmatpush.bf16.msra.mxu0 %v853
    %989 = vmatmul.bf16.gmra.mxu0 %v595
    %v990 = vpop.f32.mrf.mxu0
    %v991 = vadd.f32 %v96, %v990
    %v992 = vpop.f32.mrf.mxu0
    %993 = vdwg.mxu0
    %994 = vmatpush.bf16.msra.mxu0 %v913
    %995 = vmatpush.bf16.msra.mxu0 %v909
    %996 = vmatpush.bf16.msra.mxu0 %v905
    %997 = vmatpush.bf16.msra.mxu0 %v901
    %998 = vmatpush.bf16.msra.mxu0 %v897
    %999 = vmatpush.bf16.msra.mxu0 %v893
    %1000 = vmatpush.bf16.msra.mxu0 %v889
    %1001 = vmatpush.bf16.msra.mxu0 %v885
    %1002 = vmatmul.bf16.gmra.mxu0 %v596
    %v1003 = vpop.f32.mrf.mxu0
    %v1004 = vadd.f32 %v991, %v1003
    %v1005 = vpop.f32.mrf.mxu0
    %1006 = vdwg.mxu0
    %1007 = vmatpush.bf16.msra.mxu0 %v882
    %1008 = vmatpush.bf16.msra.mxu0 %v878
    %1009 = vmatpush.bf16.msra.mxu0 %v874
    %1010 = vmatpush.bf16.msra.mxu0 %v870
    %1011 = vmatpush.bf16.msra.mxu0 %v866
    %1012 = vmatpush.bf16.msra.mxu0 %v862
    %1013 = vmatpush.bf16.msra.mxu0 %v858
    %1014 = vmatpush.bf16.msra.mxu0 %v854
    %1015 = vmatmul.bf16.gmra.mxu0 %v595
    %v1016 = vpop.f32.mrf.mxu0
    %v1017 = vadd.f32 %v97, %v1016
    %v1018 = vpop.f32.mrf.mxu0
    %1019 = vdwg.mxu0
    %1020 = vmatpush.bf16.msra.mxu0 %v914
    %1021 = vmatpush.bf16.msra.mxu0 %v910
    %1022 = vmatpush.bf16.msra.mxu0 %v906
    %1023 = vmatpush.bf16.msra.mxu0 %v902
    %1024 = vmatpush.bf16.msra.mxu0 %v898
    %1025 = vmatpush.bf16.msra.mxu0 %v894
    %1026 = vmatpush.bf16.msra.mxu0 %v890
    %1027 = vmatpush.bf16.msra.mxu0 %v886
    %1028 = vmatmul.bf16.gmra.mxu0 %v596
    %v1029 = vpop.f32.mrf.mxu0
    %v1030 = vadd.f32 %v1017, %v1029
    %v1031 = vpop.f32.mrf.mxu0
    %1032 = vdwg.mxu0
    %1033 = vmatpush.bf16.msra.mxu0 %v883
    %1034 = vmatpush.bf16.msra.mxu0 %v879
    %1035 = vmatpush.bf16.msra.mxu0 %v875
    %1036 = vmatpush.bf16.msra.mxu0 %v871
    %1037 = vmatpush.bf16.msra.mxu0 %v867
    %1038 = vmatpush.bf16.msra.mxu0 %v863
    %1039 = vmatpush.bf16.msra.mxu0 %v859
    %1040 = vmatpush.bf16.msra.mxu0 %v855
    %1041 = vmatmul.bf16.gmra.mxu0 %v595
    %v1042 = vpop.f32.mrf.mxu0
    %v1043 = vadd.f32 %v98, %v1042
    %v1044 = vpop.f32.mrf.mxu0
    %1045 = vdwg.mxu0
    %1046 = vmatpush.bf16.msra.mxu0 %v915
    %1047 = vmatpush.bf16.msra.mxu0 %v911
    %1048 = vmatpush.bf16.msra.mxu0 %v907
    %1049 = vmatpush.bf16.msra.mxu0 %v903
    %1050 = vmatpush.bf16.msra.mxu0 %v899
    %1051 = vmatpush.bf16.msra.mxu0 %v895
    %1052 = vmatpush.bf16.msra.mxu0 %v891
    %1053 = vmatpush.bf16.msra.mxu0 %v887
    %1054 = vmatmul.bf16.gmra.mxu0 %v596
    %v1055 = vpop.f32.mrf.mxu0
    %v1056 = vadd.f32 %v1043, %v1055
    %v1057 = vpop.f32.mrf.mxu0
    %1058 = vdwg.mxu0
    %1059 = vmatpush.bf16.msra.mxu0 %v884
    %1060 = vmatpush.bf16.msra.mxu0 %v880
    %1061 = vmatpush.bf16.msra.mxu0 %v876
    %1062 = vmatpush.bf16.msra.mxu0 %v872
    %1063 = vmatpush.bf16.msra.mxu0 %v868
    %1064 = vmatpush.bf16.msra.mxu0 %v864
    %1065 = vmatpush.bf16.msra.mxu0 %v860
    %1066 = vmatpush.bf16.msra.mxu0 %v856
    %1067 = vmatmul.bf16.gmra.mxu0 %v595
    %v1068 = vpop.f32.mrf.mxu0
    %v1069 = vadd.f32 %v99, %v1068
    %v1070 = vpop.f32.mrf.mxu0
    %1071 = vdwg.mxu0
    %1072 = vmatpush.bf16.msra.mxu0 %v916
    %1073 = vmatpush.bf16.msra.mxu0 %v912
    %1074 = vmatpush.bf16.msra.mxu0 %v908
    %1075 = vmatpush.bf16.msra.mxu0 %v904
    %1076 = vmatpush.bf16.msra.mxu0 %v900
    %1077 = vmatpush.bf16.msra.mxu0 %v896
    %1078 = vmatpush.bf16.msra.mxu0 %v892
    %1079 = vmatpush.bf16.msra.mxu0 %v888
    %1080 = vmatmul.bf16.gmra.mxu0 %v596
    %v1081 = vpop.f32.mrf.mxu0
    %v1082 = vadd.f32 %v1069, %v1081
    %v1083 = vpop.f32.mrf.mxu0
    %1084 = vdwg.mxu0
    %v1085 = vxor.u32 %v1004, 2147483648
    %v1086 = vmul.f32 %v1085, 1.442695
    %v1087 = vpow.pop %v1086
    %v1088 = vadd.f32 %v1087, 1.0
    %v1089 = vrcp.pop %v1088
    %v1090 = vmul.f32 %v1088, %v1089
    %v1091 = vsub.f32 1.0, %v1090
    %v1092 = vmul.f32 %v1089, %v1091
    %v1093 = vadd.f32 %v1089, %v1092
    %vm1094 = vweird.f32 %v1088
    %vm1095 = vweird.f32 %v1089
    %vm1096 = vmor %vm1094, %vm1095
    %v1097 = vsel %vm1096, %v1089, %v1093
    %v1098 = vand.u32 2147483647, %v1088
    %vm1099 = vcmp.eq.f32.partialorder %v1098, 8.507059e+37
    %v1100 = vand.u32 %v1088, 2147483648
    %v1101 = vor.u32 1.1754944e-38, %v1100
    %v1102 = vsel %vm1099, %v1101, %v1097
    %v1103 = vmul.f32 1.0, %v1102
    %v1104 = vxor.u32 %v1030, 2147483648
    %v1105 = vmul.f32 %v1104, 1.442695
    %v1106 = vpow.pop %v1105
    %v1107 = vadd.f32 %v1106, 1.0
    %v1108 = vrcp.pop %v1107
    %v1109 = vmul.f32 %v1107, %v1108
    %v1110 = vsub.f32 1.0, %v1109
    %v1111 = vmul.f32 %v1108, %v1110
    %v1112 = vadd.f32 %v1108, %v1111
    %vm1113 = vweird.f32 %v1107
    %vm1114 = vweird.f32 %v1108
    %vm1115 = vmor %vm1113, %vm1114
    %v1116 = vsel %vm1115, %v1108, %v1112
    %v1117 = vand.u32 2147483647, %v1107
    %vm1118 = vcmp.eq.f32.partialorder %v1117, 8.507059e+37
    %v1119 = vand.u32 %v1107, 2147483648
    %v1120 = vor.u32 1.1754944e-38, %v1119
    %v1121 = vsel %vm1118, %v1120, %v1116
    %v1122 = vmul.f32 1.0, %v1121
    %v1123 = vtanh.pop %v1056
    %v1124 = vxor.u32 %v1082, 2147483648
    %v1125 = vmul.f32 %v1124, 1.442695
    %v1126 = vpow.pop %v1125
    %v1127 = vadd.f32 %v1126, 1.0
    %v1128 = vrcp.pop %v1127
    %v1129 = vmul.f32 %v1127, %v1128
    %v1130 = vsub.f32 1.0, %v1129
    %v1131 = vmul.f32 %v1128, %v1130
    %v1132 = vadd.f32 %v1128, %v1131
    %vm1133 = vweird.f32 %v1127
    %vm1134 = vweird.f32 %v1128
    %vm1135 = vmor %vm1133, %vm1134
    %v1136 = vsel %vm1135, %v1128, %v1132
    %v1137 = vand.u32 2147483647, %v1127
    %vm1138 = vcmp.eq.f32.partialorder %v1137, 8.507059e+37
    %v1139 = vand.u32 %v1127, 2147483648
    %v1140 = vor.u32 1.1754944e-38, %v1139
    %v1141 = vsel %vm1138, %v1140, %v1136
    %v1142 = vmul.f32 1.0, %v1141
    %v1143 = vmul.f32 %v1122, %v588
    %v1144 = vmul.f32 %v1103, %v1123
    %v1145 = vadd.f32 %v1143, %v1144
    %v1146 = vtanh.pop %v1145
    %v1147 = vmul.f32 %v1142, %v1146
    %s1148 = scalar_lea.vmem %s6, 8
    %1149 = vst [vmem:[%s1148] sm:$0xff] %v1147
    %s1150 = scalar_lea.vmem %s7, 8
    %1151 = vst [vmem:[%s1150] sm:$0xff] %v1145
    %s1152 = scalar_lea.vmem %s0, 16
    %v1153 = vld [vmem:[%s1152] sm:$0xff]
    %v1154 = vpack.c.bf16 %v1153, %v1153
    %v1155 = vpack.c.bf16 %v1147, %v1147
    %v1156 = vld [vmem:[%s1] sm:$0xff]
    %v1157 = vld [vmem:[%s1 + $0x8] sm:$0xff]
    %v1158 = vld [vmem:[%s1 + $0x10] sm:$0xff]
    %v1159 = vld [vmem:[%s1 + $0x18] sm:$0xff]
    %v1160 = vld [vmem:[%s1 + $0x20] sm:$0xff]
    %v1161 = vld [vmem:[%s1 + $0x28] sm:$0xff]
    %v1162 = vld [vmem:[%s1 + $0x30] sm:$0xff]
    %v1163 = vld [vmem:[%s1 + $0x38] sm:$0xff]
    %v1164 = vld [vmem:[%s1 + $0x40] sm:$0xff]
    %v1165 = vld [vmem:[%s1 + $0x48] sm:$0xff]
    %v1166 = vld [vmem:[%s1 + $0x50] sm:$0xff]
    %v1167 = vld [vmem:[%s1 + $0x58] sm:$0xff]
    %v1168 = vld [vmem:[%s1 + $0x60] sm:$0xff]
    %v1169 = vld [vmem:[%s1 + $0x68] sm:$0xff]
    %v1170 = vld [vmem:[%s1 + $0x70] sm:$0xff]
    %v1171 = vld [vmem:[%s1 + $0x78] sm:$0xff]
    %v1172 = vld [vmem:[%s1 + $0x80] sm:$0xff]
    %v1173 = vld [vmem:[%s1 + $0x88] sm:$0xff]
    %v1174 = vld [vmem:[%s1 + $0x90] sm:$0xff]
    %v1175 = vld [vmem:[%s1 + $0x98] sm:$0xff]
    %v1176 = vld [vmem:[%s1 + $0xa0] sm:$0xff]
    %v1177 = vld [vmem:[%s1 + $0xa8] sm:$0xff]
    %v1178 = vld [vmem:[%s1 + $0xb0] sm:$0xff]
    %v1179 = vld [vmem:[%s1 + $0xb8] sm:$0xff]
    %v1180 = vld [vmem:[%s1 + $0xc0] sm:$0xff]
    %v1181 = vld [vmem:[%s1 + $0xc8] sm:$0xff]
    %v1182 = vld [vmem:[%s1 + $0xd0] sm:$0xff]
    %v1183 = vld [vmem:[%s1 + $0xd8] sm:$0xff]
    %v1184 = vld [vmem:[%s1 + $0xe0] sm:$0xff]
    %v1185 = vld [vmem:[%s1 + $0xe8] sm:$0xff]
    %v1186 = vld [vmem:[%s1 + $0xf0] sm:$0xff]
    %v1187 = vld [vmem:[%s1 + $0xf8] sm:$0xff]
    %v1188 = vld [vmem:[%s1 + $0x100] sm:$0xff]
    %v1189 = vld [vmem:[%s1 + $0x108] sm:$0xff]
    %v1190 = vld [vmem:[%s1 + $0x110] sm:$0xff]
    %v1191 = vld [vmem:[%s1 + $0x118] sm:$0xff]
    %v1192 = vld [vmem:[%s1 + $0x120] sm:$0xff]
    %v1193 = vld [vmem:[%s1 + $0x128] sm:$0xff]
    %v1194 = vld [vmem:[%s1 + $0x130] sm:$0xff]
    %v1195 = vld [vmem:[%s1 + $0x138] sm:$0xff]
    %v1196 = vld [vmem:[%s1 + $0x140] sm:$0xff]
    %v1197 = vld [vmem:[%s1 + $0x148] sm:$0xff]
    %v1198 = vld [vmem:[%s1 + $0x150] sm:$0xff]
    %v1199 = vld [vmem:[%s1 + $0x158] sm:$0xff]
    %v1200 = vld [vmem:[%s1 + $0x160] sm:$0xff]
    %v1201 = vld [vmem:[%s1 + $0x168] sm:$0xff]
    %v1202 = vld [vmem:[%s1 + $0x170] sm:$0xff]
    %v1203 = vld [vmem:[%s1 + $0x178] sm:$0xff]
    %v1204 = vld [vmem:[%s1 + $0x180] sm:$0xff]
    %v1205 = vld [vmem:[%s1 + $0x188] sm:$0xff]
    %v1206 = vld [vmem:[%s1 + $0x190] sm:$0xff]
    %v1207 = vld [vmem:[%s1 + $0x198] sm:$0xff]
    %v1208 = vld [vmem:[%s1 + $0x1a0] sm:$0xff]
    %v1209 = vld [vmem:[%s1 + $0x1a8] sm:$0xff]
    %v1210 = vld [vmem:[%s1 + $0x1b0] sm:$0xff]
    %v1211 = vld [vmem:[%s1 + $0x1b8] sm:$0xff]
    %v1212 = vld [vmem:[%s1 + $0x1c0] sm:$0xff]
    %v1213 = vld [vmem:[%s1 + $0x1c8] sm:$0xff]
    %v1214 = vld [vmem:[%s1 + $0x1d0] sm:$0xff]
    %v1215 = vld [vmem:[%s1 + $0x1d8] sm:$0xff]
    %v1216 = vld [vmem:[%s1 + $0x1e0] sm:$0xff]
    %v1217 = vld [vmem:[%s1 + $0x1e8] sm:$0xff]
    %v1218 = vld [vmem:[%s1 + $0x1f0] sm:$0xff]
    %v1219 = vld [vmem:[%s1 + $0x1f8] sm:$0xff]
    %v1284 = vunpack.c.l.b16 %v1156
    %v1285 = vunpack.c.h.b16 %v1156
    %v1286 = vunpack.c.l.b16 %v1157
    %v1287 = vunpack.c.h.b16 %v1157
    %v1288 = vunpack.c.l.b16 %v1158
    %v1289 = vunpack.c.h.b16 %v1158
    %v1290 = vunpack.c.l.b16 %v1159
    %v1291 = vunpack.c.h.b16 %v1159
    %v1292 = vunpack.c.l.b16 %v1160
    %v1293 = vunpack.c.h.b16 %v1160
    %v1294 = vunpack.c.l.b16 %v1161
    %v1295 = vunpack.c.h.b16 %v1161
    %v1296 = vunpack.c.l.b16 %v1162
    %v1297 = vunpack.c.h.b16 %v1162
    %v1298 = vunpack.c.l.b16 %v1163
    %v1299 = vunpack.c.h.b16 %v1163
    %v1300 = vunpack.c.l.b16 %v1164
    %v1301 = vunpack.c.h.b16 %v1164
    %v1302 = vunpack.c.l.b16 %v1165
    %v1303 = vunpack.c.h.b16 %v1165
    %v1304 = vunpack.c.l.b16 %v1166
    %v1305 = vunpack.c.h.b16 %v1166
    %v1306 = vunpack.c.l.b16 %v1167
    %v1307 = vunpack.c.h.b16 %v1167
    %v1308 = vunpack.c.l.b16 %v1168
    %v1309 = vunpack.c.h.b16 %v1168
    %v1310 = vunpack.c.l.b16 %v1169
    %v1311 = vunpack.c.h.b16 %v1169
    %v1312 = vunpack.c.l.b16 %v1170
    %v1313 = vunpack.c.h.b16 %v1170
    %v1314 = vunpack.c.l.b16 %v1171
    %v1315 = vunpack.c.h.b16 %v1171
    %v1316 = vunpack.c.l.b16 %v1172
    %v1317 = vunpack.c.h.b16 %v1172
    %v1318 = vunpack.c.l.b16 %v1173
    %v1319 = vunpack.c.h.b16 %v1173
    %v1320 = vunpack.c.l.b16 %v1174
    %v1321 = vunpack.c.h.b16 %v1174
    %v1322 = vunpack.c.l.b16 %v1175
    %v1323 = vunpack.c.h.b16 %v1175
    %v1324 = vunpack.c.l.b16 %v1176
    %v1325 = vunpack.c.h.b16 %v1176
    %v1326 = vunpack.c.l.b16 %v1177
    %v1327 = vunpack.c.h.b16 %v1177
    %v1328 = vunpack.c.l.b16 %v1178
    %v1329 = vunpack.c.h.b16 %v1178
    %v1330 = vunpack.c.l.b16 %v1179
    %v1331 = vunpack.c.h.b16 %v1179
    %v1332 = vunpack.c.l.b16 %v1180
    %v1333 = vunpack.c.h.b16 %v1180
    %v1334 = vunpack.c.l.b16 %v1181
    %v1335 = vunpack.c.h.b16 %v1181
    %v1336 = vunpack.c.l.b16 %v1182
    %v1337 = vunpack.c.h.b16 %v1182
    %v1338 = vunpack.c.l.b16 %v1183
    %v1339 = vunpack.c.h.b16 %v1183
    %v1340 = vunpack.c.l.b16 %v1184
    %v1341 = vunpack.c.h.b16 %v1184
    %v1342 = vunpack.c.l.b16 %v1185
    %v1343 = vunpack.c.h.b16 %v1185
    %v1344 = vunpack.c.l.b16 %v1186
    %v1345 = vunpack.c.h.b16 %v1186
    %v1346 = vunpack.c.l.b16 %v1187
    %v1347 = vunpack.c.h.b16 %v1187
    %v1348 = vunpack.c.l.b16 %v1188
    %v1349 = vunpack.c.h.b16 %v1188
    %v1350 = vunpack.c.l.b16 %v1189
    %v1351 = vunpack.c.h.b16 %v1189
    %v1352 = vunpack.c.l.b16 %v1190
    %v1353 = vunpack.c.h.b16 %v1190
    %v1354 = vunpack.c.l.b16 %v1191
    %v1355 = vunpack.c.h.b16 %v1191
    %v1356 = vunpack.c.l.b16 %v1192
    %v1357 = vunpack.c.h.b16 %v1192
    %v1358 = vunpack.c.l.b16 %v1193
    %v1359 = vunpack.c.h.b16 %v1193
    %v1360 = vunpack.c.l.b16 %v1194
    %v1361 = vunpack.c.h.b16 %v1194
    %v1362 = vunpack.c.l.b16 %v1195
    %v1363 = vunpack.c.h.b16 %v1195
    %v1364 = vunpack.c.l.b16 %v1196
    %v1365 = vunpack.c.h.b16 %v1196
    %v1366 = vunpack.c.l.b16 %v1197
    %v1367 = vunpack.c.h.b16 %v1197
    %v1368 = vunpack.c.l.b16 %v1198
    %v1369 = vunpack.c.h.b16 %v1198
    %v1370 = vunpack.c.l.b16 %v1199
    %v1371 = vunpack.c.h.b16 %v1199
    %v1372 = vunpack.c.l.b16 %v1200
    %v1373 = vunpack.c.h.b16 %v1200
    %v1374 = vunpack.c.l.b16 %v1201
    %v1375 = vunpack.c.h.b16 %v1201
    %v1376 = vunpack.c.l.b16 %v1202
    %v1377 = vunpack.c.h.b16 %v1202
    %v1378 = vunpack.c.l.b16 %v1203
    %v1379 = vunpack.c.h.b16 %v1203
    %v1380 = vunpack.c.l.b16 %v1204
    %v1381 = vunpack.c.h.b16 %v1204
    %v1382 = vunpack.c.l.b16 %v1205
    %v1383 = vunpack.c.h.b16 %v1205
    %v1384 = vunpack.c.l.b16 %v1206
    %v1385 = vunpack.c.h.b16 %v1206
    %v1386 = vunpack.c.l.b16 %v1207
    %v1387 = vunpack.c.h.b16 %v1207
    %v1388 = vunpack.c.l.b16 %v1208
    %v1389 = vunpack.c.h.b16 %v1208
    %v1390 = vunpack.c.l.b16 %v1209
    %v1391 = vunpack.c.h.b16 %v1209
    %v1392 = vunpack.c.l.b16 %v1210
    %v1393 = vunpack.c.h.b16 %v1210
    %v1394 = vunpack.c.l.b16 %v1211
    %v1395 = vunpack.c.h.b16 %v1211
    %v1396 = vunpack.c.l.b16 %v1212
    %v1397 = vunpack.c.h.b16 %v1212
    %v1398 = vunpack.c.l.b16 %v1213
    %v1399 = vunpack.c.h.b16 %v1213
    %v1400 = vunpack.c.l.b16 %v1214
    %v1401 = vunpack.c.h.b16 %v1214
    %v1402 = vunpack.c.l.b16 %v1215
    %v1403 = vunpack.c.h.b16 %v1215
    %v1404 = vunpack.c.l.b16 %v1216
    %v1405 = vunpack.c.h.b16 %v1216
    %v1406 = vunpack.c.l.b16 %v1217
    %v1407 = vunpack.c.h.b16 %v1217
    %v1408 = vunpack.c.l.b16 %v1218
    %v1409 = vunpack.c.h.b16 %v1218
    %v1410 = vunpack.c.l.b16 %v1219
    %v1411 = vunpack.c.h.b16 %v1219
    %v1412 = vpack.c.b16 %v1288, %v1284
    %v1413 = vpack.c.b16 %v1289, %v1285
    %v1414 = vpack.c.b16 %v1290, %v1286
    %v1415 = vpack.c.b16 %v1291, %v1287
    %v1416 = vpack.c.b16 %v1296, %v1292
    %v1417 = vpack.c.b16 %v1297, %v1293
    %v1418 = vpack.c.b16 %v1298, %v1294
    %v1419 = vpack.c.b16 %v1299, %v1295
    %v1420 = vpack.c.b16 %v1304, %v1300
    %v1421 = vpack.c.b16 %v1305, %v1301
    %v1422 = vpack.c.b16 %v1306, %v1302
    %v1423 = vpack.c.b16 %v1307, %v1303
    %v1424 = vpack.c.b16 %v1312, %v1308
    %v1425 = vpack.c.b16 %v1313, %v1309
    %v1426 = vpack.c.b16 %v1314, %v1310
    %v1427 = vpack.c.b16 %v1315, %v1311
    %v1428 = vpack.c.b16 %v1320, %v1316
    %v1429 = vpack.c.b16 %v1321, %v1317
    %v1430 = vpack.c.b16 %v1322, %v1318
    %v1431 = vpack.c.b16 %v1323, %v1319
    %v1432 = vpack.c.b16 %v1328, %v1324
    %v1433 = vpack.c.b16 %v1329, %v1325
    %v1434 = vpack.c.b16 %v1330, %v1326
    %v1435 = vpack.c.b16 %v1331, %v1327
    %v1436 = vpack.c.b16 %v1336, %v1332
    %v1437 = vpack.c.b16 %v1337, %v1333
    %v1438 = vpack.c.b16 %v1338, %v1334
    %v1439 = vpack.c.b16 %v1339, %v1335
    %v1440 = vpack.c.b16 %v1344, %v1340
    %v1441 = vpack.c.b16 %v1345, %v1341
    %v1442 = vpack.c.b16 %v1346, %v1342
    %v1443 = vpack.c.b16 %v1347, %v1343
    %v1444 = vpack.c.b16 %v1352, %v1348
    %v1445 = vpack.c.b16 %v1353, %v1349
    %v1446 = vpack.c.b16 %v1354, %v1350
    %v1447 = vpack.c.b16 %v1355, %v1351
    %v1448 = vpack.c.b16 %v1360, %v1356
    %v1449 = vpack.c.b16 %v1361, %v1357
    %v1450 = vpack.c.b16 %v1362, %v1358
    %v1451 = vpack.c.b16 %v1363, %v1359
    %v1452 = vpack.c.b16 %v1368, %v1364
    %v1453 = vpack.c.b16 %v1369, %v1365
    %v1454 = vpack.c.b16 %v1370, %v1366
    %v1455 = vpack.c.b16 %v1371, %v1367
    %v1456 = vpack.c.b16 %v1376, %v1372
    %v1457 = vpack.c.b16 %v1377, %v1373
    %v1458 = vpack.c.b16 %v1378, %v1374
    %v1459 = vpack.c.b16 %v1379, %v1375
    %v1460 = vpack.c.b16 %v1384, %v1380
    %v1461 = vpack.c.b16 %v1385, %v1381
    %v1462 = vpack.c.b16 %v1386, %v1382
    %v1463 = vpack.c.b16 %v1387, %v1383
    %v1464 = vpack.c.b16 %v1392, %v1388
    %v1465 = vpack.c.b16 %v1393, %v1389
    %v1466 = vpack.c.b16 %v1394, %v1390
    %v1467 = vpack.c.b16 %v1395, %v1391
    %v1468 = vpack.c.b16 %v1400, %v1396
    %v1469 = vpack.c.b16 %v1401, %v1397
    %v1470 = vpack.c.b16 %v1402, %v1398
    %v1471 = vpack.c.b16 %v1403, %v1399
    %v1472 = vpack.c.b16 %v1408, %v1404
    %v1473 = vpack.c.b16 %v1409, %v1405
    %v1474 = vpack.c.b16 %v1410, %v1406
    %v1475 = vpack.c.b16 %v1411, %v1407
    %1540 = vmatpush.bf16.msra.mxu0 %v1440
    %1541 = vmatpush.bf16.msra.mxu0 %v1436
    %1542 = vmatpush.bf16.msra.mxu0 %v1432
    %1543 = vmatpush.bf16.msra.mxu0 %v1428
    %1544 = vmatpush.bf16.msra.mxu0 %v1424
    %1545 = vmatpush.bf16.msra.mxu0 %v1420
    %1546 = vmatpush.bf16.msra.mxu0 %v1416
    %1547 = vmatpush.bf16.msra.mxu0 %v1412
    %1548 = vmatmul.bf16.gmra.mxu0 %v1154
    %v1549 = vpop.f32.mrf.mxu0
    %v1550 = vadd.f32 %v96, %v1549
    %v1551 = vpop.f32.mrf.mxu0
    %1552 = vdwg.mxu0
    %1553 = vmatpush.bf16.msra.mxu0 %v1472
    %1554 = vmatpush.bf16.msra.mxu0 %v1468
    %1555 = vmatpush.bf16.msra.mxu0 %v1464
    %1556 = vmatpush.bf16.msra.mxu0 %v1460
    %1557 = vmatpush.bf16.msra.mxu0 %v1456
    %1558 = vmatpush.bf16.msra.mxu0 %v1452
    %1559 = vmatpush.bf16.msra.mxu0 %v1448
    %1560 = vmatpush.bf16.msra.mxu0 %v1444
    %1561 = vmatmul.bf16.gmra.mxu0 %v1155
    %v1562 = vpop.f32.mrf.mxu0
    %v1563 = vadd.f32 %v1550, %v1562
    %v1564 = vpop.f32.mrf.mxu0
    %1565 = vdwg.mxu0
    %1566 = vmatpush.bf16.msra.mxu0 %v1441
    %1567 = vmatpush.bf16.msra.mxu0 %v1437
    %1568 = vmatpush.bf16.msra.mxu0 %v1433
    %1569 = vmatpush.bf16.msra.mxu0 %v1429
    %1570 = vmatpush.bf16.msra.mxu0 %v1425
    %1571 = vmatpush.bf16.msra.mxu0 %v1421
    %1572 = vmatpush.bf16.msra.mxu0 %v1417
    %1573 = vmatpush.bf16.msra.mxu0 %v1413
    %1574 = vmatmul.bf16.gmra.mxu0 %v1154
    %v1575 = vpop.f32.mrf.mxu0
    %v1576 = vadd.f32 %v97, %v1575
    %v1577 = vpop.f32.mrf.mxu0
    %1578 = vdwg.mxu0
    %1579 = vmatpush.bf16.msra.mxu0 %v1473
    %1580 = vmatpush.bf16.msra.mxu0 %v1469
    %1581 = vmatpush.bf16.msra.mxu0 %v1465
    %1582 = vmatpush.bf16.msra.mxu0 %v1461
    %1583 = vmatpush.bf16.msra.mxu0 %v1457
    %1584 = vmatpush.bf16.msra.mxu0 %v1453
    %1585 = vmatpush.bf16.msra.mxu0 %v1449
    %1586 = vmatpush.bf16.msra.mxu0 %v1445
    %1587 = vmatmul.bf16.gmra.mxu0 %v1155
    %v1588 = vpop.f32.mrf.mxu0
    %v1589 = vadd.f32 %v1576, %v1588
    %v1590 = vpop.f32.mrf.mxu0
    %1591 = vdwg.mxu0
    %1592 = vmatpush.bf16.msra.mxu0 %v1442
    %1593 = vmatpush.bf16.msra.mxu0 %v1438
    %1594 = vmatpush.bf16.msra.mxu0 %v1434
    %1595 = vmatpush.bf16.msra.mxu0 %v1430
    %1596 = vmatpush.bf16.msra.mxu0 %v1426
    %1597 = vmatpush.bf16.msra.mxu0 %v1422
    %1598 = vmatpush.bf16.msra.mxu0 %v1418
    %1599 = vmatpush.bf16.msra.mxu0 %v1414
    %1600 = vmatmul.bf16.gmra.mxu0 %v1154
    %v1601 = vpop.f32.mrf.mxu0
    %v1602 = vadd.f32 %v98, %v1601
    %v1603 = vpop.f32.mrf.mxu0
    %1604 = vdwg.mxu0
    %1605 = vmatpush.bf16.msra.mxu0 %v1474
    %1606 = vmatpush.bf16.msra.mxu0 %v1470
    %1607 = vmatpush.bf16.msra.mxu0 %v1466
    %1608 = vmatpush.bf16.msra.mxu0 %v1462
    %1609 = vmatpush.bf16.msra.mxu0 %v1458
    %1610 = vmatpush.bf16.msra.mxu0 %v1454
    %1611 = vmatpush.bf16.msra.mxu0 %v1450
    %1612 = vmatpush.bf16.msra.mxu0 %v1446
    %1613 = vmatmul.bf16.gmra.mxu0 %v1155
    %v1614 = vpop.f32.mrf.mxu0
    %v1615 = vadd.f32 %v1602, %v1614
    %v1616 = vpop.f32.mrf.mxu0
    %1617 = vdwg.mxu0
    %1618 = vmatpush.bf16.msra.mxu0 %v1443
    %1619 = vmatpush.bf16.msra.mxu0 %v1439
    %1620 = vmatpush.bf16.msra.mxu0 %v1435
    %1621 = vmatpush.bf16.msra.mxu0 %v1431
    %1622 = vmatpush.bf16.msra.mxu0 %v1427
    %1623 = vmatpush.bf16.msra.mxu0 %v1423
    %1624 = vmatpush.bf16.msra.mxu0 %v1419
    %1625 = vmatpush.bf16.msra.mxu0 %v1415
    %1626 = vmatmul.bf16.gmra.mxu0 %v1154
    %v1627 = vpop.f32.mrf.mxu0
    %v1628 = vadd.f32 %v99, %v1627
    %v1629 = vpop.f32.mrf.mxu0
    %1630 = vdwg.mxu0
    %1631 = vmatpush.bf16.msra.mxu0 %v1475
    %1632 = vmatpush.bf16.msra.mxu0 %v1471
    %1633 = vmatpush.bf16.msra.mxu0 %v1467
    %1634 = vmatpush.bf16.msra.mxu0 %v1463
    %1635 = vmatpush.bf16.msra.mxu0 %v1459
    %1636 = vmatpush.bf16.msra.mxu0 %v1455
    %1637 = vmatpush.bf16.msra.mxu0 %v1451
    %1638 = vmatpush.bf16.msra.mxu0 %v1447
    %1639 = vmatmul.bf16.gmra.mxu0 %v1155
    %v1640 = vpop.f32.mrf.mxu0
    %v1641 = vadd.f32 %v1628, %v1640
    %v1642 = vpop.f32.mrf.mxu0
    %1643 = vdwg.mxu0
    %v1644 = vxor.u32 %v1563, 2147483648
    %v1645 = vmul.f32 %v1644, 1.442695
    %v1646 = vpow.pop %v1645
    %v1647 = vadd.f32 %v1646, 1.0
    %v1648 = vrcp.pop %v1647
    %v1649 = vmul.f32 %v1647, %v1648
    %v1650 = vsub.f32 1.0, %v1649
    %v1651 = vmul.f32 %v1648, %v1650
    %v1652 = vadd.f32 %v1648, %v1651
    %vm1653 = vweird.f32 %v1647
    %vm1654 = vweird.f32 %v1648
    %vm1655 = vmor %vm1653, %vm1654
    %v1656 = vsel %vm1655, %v1648, %v1652
    %v1657 = vand.u32 2147483647, %v1647
    %vm1658 = vcmp.eq.f32.partialorder %v1657, 8.507059e+37
    %v1659 = vand.u32 %v1647, 2147483648
    %v1660 = vor.u32 1.1754944e-38, %v1659
    %v1661 = vsel %vm1658, %v1660, %v1656
    %v1662 = vmul.f32 1.0, %v1661
    %v1663 = vxor.u32 %v1589, 2147483648
    %v1664 = vmul.f32 %v1663, 1.442695
    %v1665 = vpow.pop %v1664
    %v1666 = vadd.f32 %v1665, 1.0
    %v1667 = vrcp.pop %v1666
    %v1668 = vmul.f32 %v1666, %v1667
    %v1669 = vsub.f32 1.0, %v1668
    %v1670 = vmul.f32 %v1667, %v1669
    %v1671 = vadd.f32 %v1667, %v1670
    %vm1672 = vweird.f32 %v1666
    %vm1673 = vweird.f32 %v1667
    %vm1674 = vmor %vm1672, %vm1673
    %v1675 = vsel %vm1674, %v1667, %v1671
    %v1676 = vand.u32 2147483647, %v1666
    %vm1677 = vcmp.eq.f32.partialorder %v1676, 8.507059e+37
    %v1678 = vand.u32 %v1666, 2147483648
    %v1679 = vor.u32 1.1754944e-38, %v1678
    %v1680 = vsel %vm1677, %v1679, %v1675
    %v1681 = vmul.f32 1.0, %v1680
    %v1682 = vtanh.pop %v1615
    %v1683 = vxor.u32 %v1641, 2147483648
    %v1684 = vmul.f32 %v1683, 1.442695
    %v1685 = vpow.pop %v1684
    %v1686 = vadd.f32 %v1685, 1.0
    %v1687 = vrcp.pop %v1686
    %v1688 = vmul.f32 %v1686, %v1687
    %v1689 = vsub.f32 1.0, %v1688
    %v1690 = vmul.f32 %v1687, %v1689
    %v1691 = vadd.f32 %v1687, %v1690
    %vm1692 = vweird.f32 %v1686
    %vm1693 = vweird.f32 %v1687
    %vm1694 = vmor %vm1692, %vm1693
    %v1695 = vsel %vm1694, %v1687, %v1691
    %v1696 = vand.u32 2147483647, %v1686
    %vm1697 = vcmp.eq.f32.partialorder %v1696, 8.507059e+37
    %v1698 = vand.u32 %v1686, 2147483648
    %v1699 = vor.u32 1.1754944e-38, %v1698
    %v1700 = vsel %vm1697, %v1699, %v1695
    %v1701 = vmul.f32 1.0, %v1700
    %v1702 = vmul.f32 %v1681, %v1145
    %v1703 = vmul.f32 %v1662, %v1682
    %v1704 = vadd.f32 %v1702, %v1703
    %v1705 = vtanh.pop %v1704
    %v1706 = vmul.f32 %v1701, %v1705
    %s1707 = scalar_lea.vmem %s6, 16
    %1708 = vst [vmem:[%s1707] sm:$0xff] %v1706
    %s1709 = scalar_lea.vmem %s7, 16
    %1710 = vst [vmem:[%s1709] sm:$0xff] %v1704
    %s1711 = scalar_lea.vmem %s0, 24
    %v1712 = vld [vmem:[%s1711] sm:$0xff]
    %v1713 = vpack.c.bf16 %v1712, %v1712
    %v1714 = vpack.c.bf16 %v1706, %v1706
    %v1715 = vld [vmem:[%s1] sm:$0xff]
    %v1716 = vld [vmem:[%s1 + $0x8] sm:$0xff]
    %v1717 = vld [vmem:[%s1 + $0x10] sm:$0xff]
    %v1718 = vld [vmem:[%s1 + $0x18] sm:$0xff]
    %v1719 = vld [vmem:[%s1 + $0x20] sm:$0xff]
    %v1720 = vld [vmem:[%s1 + $0x28] sm:$0xff]
    %v1721 = vld [vmem:[%s1 + $0x30] sm:$0xff]
    %v1722 = vld [vmem:[%s1 + $0x38] sm:$0xff]
    %v1723 = vld [vmem:[%s1 + $0x40] sm:$0xff]
    %v1724 = vld [vmem:[%s1 + $0x48] sm:$0xff]
    %v1725 = vld [vmem:[%s1 + $0x50] sm:$0xff]
    %v1726 = vld [vmem:[%s1 + $0x58] sm:$0xff]
    %v1727 = vld [vmem:[%s1 + $0x60] sm:$0xff]
    %v1728 = vld [vmem:[%s1 + $0x68] sm:$0xff]
    %v1729 = vld [vmem:[%s1 + $0x70] sm:$0xff]
    %v1730 = vld [vmem:[%s1 + $0x78] sm:$0xff]
    %v1731 = vld [vmem:[%s1 + $0x80] sm:$0xff]
    %v1732 = vld [vmem:[%s1 + $0x88] sm:$0xff]
    %v1733 = vld [vmem:[%s1 + $0x90] sm:$0xff]
    %v1734 = vld [vmem:[%s1 + $0x98] sm:$0xff]
    %v1735 = vld [vmem:[%s1 + $0xa0] sm:$0xff]
    %v1736 = vld [vmem:[%s1 + $0xa8] sm:$0xff]
    %v1737 = vld [vmem:[%s1 + $0xb0] sm:$0xff]
    %v1738 = vld [vmem:[%s1 + $0xb8] sm:$0xff]
    %v1739 = vld [vmem:[%s1 + $0xc0] sm:$0xff]
    %v1740 = vld [vmem:[%s1 + $0xc8] sm:$0xff]
    %v1741 = vld [vmem:[%s1 + $0xd0] sm:$0xff]
    %v1742 = vld [vmem:[%s1 + $0xd8] sm:$0xff]
    %v1743 = vld [vmem:[%s1 + $0xe0] sm:$0xff]
    %v1744 = vld [vmem:[%s1 + $0xe8] sm:$0xff]
    %v1745 = vld [vmem:[%s1 + $0xf0] sm:$0xff]
    %v1746 = vld [vmem:[%s1 + $0xf8] sm:$0xff]
    %v1747 = vld [vmem:[%s1 + $0x100] sm:$0xff]
    %v1748 = vld [vmem:[%s1 + $0x108] sm:$0xff]
    %v1749 = vld [vmem:[%s1 + $0x110] sm:$0xff]
    %v1750 = vld [vmem:[%s1 + $0x118] sm:$0xff]
    %v1751 = vld [vmem:[%s1 + $0x120] sm:$0xff]
    %v1752 = vld [vmem:[%s1 + $0x128] sm:$0xff]
    %v1753 = vld [vmem:[%s1 + $0x130] sm:$0xff]
    %v1754 = vld [vmem:[%s1 + $0x138] sm:$0xff]
    %v1755 = vld [vmem:[%s1 + $0x140] sm:$0xff]
    %v1756 = vld [vmem:[%s1 + $0x148] sm:$0xff]
    %v1757 = vld [vmem:[%s1 + $0x150] sm:$0xff]
    %v1758 = vld [vmem:[%s1 + $0x158] sm:$0xff]
    %v1759 = vld [vmem:[%s1 + $0x160] sm:$0xff]
    %v1760 = vld [vmem:[%s1 + $0x168] sm:$0xff]
    %v1761 = vld [vmem:[%s1 + $0x170] sm:$0xff]
    %v1762 = vld [vmem:[%s1 + $0x178] sm:$0xff]
    %v1763 = vld [vmem:[%s1 + $0x180] sm:$0xff]
    %v1764 = vld [vmem:[%s1 + $0x188] sm:$0xff]
    %v1765 = vld [vmem:[%s1 + $0x190] sm:$0xff]
    %v1766 = vld [vmem:[%s1 + $0x198] sm:$0xff]
    %v1767 = vld [vmem:[%s1 + $0x1a0] sm:$0xff]
    %v1768 = vld [vmem:[%s1 + $0x1a8] sm:$0xff]
    %v1769 = vld [vmem:[%s1 + $0x1b0] sm:$0xff]
    %v1770 = vld [vmem:[%s1 + $0x1b8] sm:$0xff]
    %v1771 = vld [vmem:[%s1 + $0x1c0] sm:$0xff]
    %v1772 = vld [vmem:[%s1 + $0x1c8] sm:$0xff]
    %v1773 = vld [vmem:[%s1 + $0x1d0] sm:$0xff]
    %v1774 = vld [vmem:[%s1 + $0x1d8] sm:$0xff]
    %v1775 = vld [vmem:[%s1 + $0x1e0] sm:$0xff]
    %v1776 = vld [vmem:[%s1 + $0x1e8] sm:$0xff]
    %v1777 = vld [vmem:[%s1 + $0x1f0] sm:$0xff]
    %v1778 = vld [vmem:[%s1 + $0x1f8] sm:$0xff]
    %v1843 = vunpack.c.l.b16 %v1715
    %v1844 = vunpack.c.h.b16 %v1715
    %v1845 = vunpack.c.l.b16 %v1716
    %v1846 = vunpack.c.h.b16 %v1716
    %v1847 = vunpack.c.l.b16 %v1717
    %v1848 = vunpack.c.h.b16 %v1717
    %v1849 = vunpack.c.l.b16 %v1718
    %v1850 = vunpack.c.h.b16 %v1718
    %v1851 = vunpack.c.l.b16 %v1719
    %v1852 = vunpack.c.h.b16 %v1719
    %v1853 = vunpack.c.l.b16 %v1720
    %v1854 = vunpack.c.h.b16 %v1720
    %v1855 = vunpack.c.l.b16 %v1721
    %v1856 = vunpack.c.h.b16 %v1721
    %v1857 = vunpack.c.l.b16 %v1722
    %v1858 = vunpack.c.h.b16 %v1722
    %v1859 = vunpack.c.l.b16 %v1723
    %v1860 = vunpack.c.h.b16 %v1723
    %v1861 = vunpack.c.l.b16 %v1724
    %v1862 = vunpack.c.h.b16 %v1724
    %v1863 = vunpack.c.l.b16 %v1725
    %v1864 = vunpack.c.h.b16 %v1725
    %v1865 = vunpack.c.l.b16 %v1726
    %v1866 = vunpack.c.h.b16 %v1726
    %v1867 = vunpack.c.l.b16 %v1727
    %v1868 = vunpack.c.h.b16 %v1727
    %v1869 = vunpack.c.l.b16 %v1728
    %v1870 = vunpack.c.h.b16 %v1728
    %v1871 = vunpack.c.l.b16 %v1729
    %v1872 = vunpack.c.h.b16 %v1729
    %v1873 = vunpack.c.l.b16 %v1730
    %v1874 = vunpack.c.h.b16 %v1730
    %v1875 = vunpack.c.l.b16 %v1731
    %v1876 = vunpack.c.h.b16 %v1731
    %v1877 = vunpack.c.l.b16 %v1732
    %v1878 = vunpack.c.h.b16 %v1732
    %v1879 = vunpack.c.l.b16 %v1733
    %v1880 = vunpack.c.h.b16 %v1733
    %v1881 = vunpack.c.l.b16 %v1734
    %v1882 = vunpack.c.h.b16 %v1734
    %v1883 = vunpack.c.l.b16 %v1735
    %v1884 = vunpack.c.h.b16 %v1735
    %v1885 = vunpack.c.l.b16 %v1736
    %v1886 = vunpack.c.h.b16 %v1736
    %v1887 = vunpack.c.l.b16 %v1737
    %v1888 = vunpack.c.h.b16 %v1737
    %v1889 = vunpack.c.l.b16 %v1738
    %v1890 = vunpack.c.h.b16 %v1738
    %v1891 = vunpack.c.l.b16 %v1739
    %v1892 = vunpack.c.h.b16 %v1739
    %v1893 = vunpack.c.l.b16 %v1740
    %v1894 = vunpack.c.h.b16 %v1740
    %v1895 = vunpack.c.l.b16 %v1741
    %v1896 = vunpack.c.h.b16 %v1741
    %v1897 = vunpack.c.l.b16 %v1742
    %v1898 = vunpack.c.h.b16 %v1742
    %v1899 = vunpack.c.l.b16 %v1743
    %v1900 = vunpack.c.h.b16 %v1743
    %v1901 = vunpack.c.l.b16 %v1744
    %v1902 = vunpack.c.h.b16 %v1744
    %v1903 = vunpack.c.l.b16 %v1745
    %v1904 = vunpack.c.h.b16 %v1745
    %v1905 = vunpack.c.l.b16 %v1746
    %v1906 = vunpack.c.h.b16 %v1746
    %v1907 = vunpack.c.l.b16 %v1747
    %v1908 = vunpack.c.h.b16 %v1747
    %v1909 = vunpack.c.l.b16 %v1748
    %v1910 = vunpack.c.h.b16 %v1748
    %v1911 = vunpack.c.l.b16 %v1749
    %v1912 = vunpack.c.h.b16 %v1749
    %v1913 = vunpack.c.l.b16 %v1750
    %v1914 = vunpack.c.h.b16 %v1750
    %v1915 = vunpack.c.l.b16 %v1751
    %v1916 = vunpack.c.h.b16 %v1751
    %v1917 = vunpack.c.l.b16 %v1752
    %v1918 = vunpack.c.h.b16 %v1752
    %v1919 = vunpack.c.l.b16 %v1753
    %v1920 = vunpack.c.h.b16 %v1753
    %v1921 = vunpack.c.l.b16 %v1754
    %v1922 = vunpack.c.h.b16 %v1754
    %v1923 = vunpack.c.l.b16 %v1755
    %v1924 = vunpack.c.h.b16 %v1755
    %v1925 = vunpack.c.l.b16 %v1756
    %v1926 = vunpack.c.h.b16 %v1756
    %v1927 = vunpack.c.l.b16 %v1757
    %v1928 = vunpack.c.h.b16 %v1757
    %v1929 = vunpack.c.l.b16 %v1758
    %v1930 = vunpack.c.h.b16 %v1758
    %v1931 = vunpack.c.l.b16 %v1759
    %v1932 = vunpack.c.h.b16 %v1759
    %v1933 = vunpack.c.l.b16 %v1760
    %v1934 = vunpack.c.h.b16 %v1760
    %v1935 = vunpack.c.l.b16 %v1761
    %v1936 = vunpack.c.h.b16 %v1761
    %v1937 = vunpack.c.l.b16 %v1762
    %v1938 = vunpack.c.h.b16 %v1762
    %v1939 = vunpack.c.l.b16 %v1763
    %v1940 = vunpack.c.h.b16 %v1763
    %v1941 = vunpack.c.l.b16 %v1764
    %v1942 = vunpack.c.h.b16 %v1764
    %v1943 = vunpack.c.l.b16 %v1765
    %v1944 = vunpack.c.h.b16 %v1765
    %v1945 = vunpack.c.l.b16 %v1766
    %v1946 = vunpack.c.h.b16 %v1766
    %v1947 = vunpack.c.l.b16 %v1767
    %v1948 = vunpack.c.h.b16 %v1767
    %v1949 = vunpack.c.l.b16 %v1768
    %v1950 = vunpack.c.h.b16 %v1768
    %v1951 = vunpack.c.l.b16 %v1769
    %v1952 = vunpack.c.h.b16 %v1769
    %v1953 = vunpack.c.l.b16 %v1770
    %v1954 = vunpack.c.h.b16 %v1770
    %v1955 = vunpack.c.l.b16 %v1771
    %v1956 = vunpack.c.h.b16 %v1771
    %v1957 = vunpack.c.l.b16 %v1772
    %v1958 = vunpack.c.h.b16 %v1772
    %v1959 = vunpack.c.l.b16 %v1773
    %v1960 = vunpack.c.h.b16 %v1773
    %v1961 = vunpack.c.l.b16 %v1774
    %v1962 = vunpack.c.h.b16 %v1774
    %v1963 = vunpack.c.l.b16 %v1775
    %v1964 = vunpack.c.h.b16 %v1775
    %v1965 = vunpack.c.l.b16 %v1776
    %v1966 = vunpack.c.h.b16 %v1776
    %v1967 = vunpack.c.l.b16 %v1777
    %v1968 = vunpack.c.h.b16 %v1777
    %v1969 = vunpack.c.l.b16 %v1778
    %v1970 = vunpack.c.h.b16 %v1778
    %v1971 = vpack.c.b16 %v1847, %v1843
    %v1972 = vpack.c.b16 %v1848, %v1844
    %v1973 = vpack.c.b16 %v1849, %v1845
    %v1974 = vpack.c.b16 %v1850, %v1846
    %v1975 = vpack.c.b16 %v1855, %v1851
    %v1976 = vpack.c.b16 %v1856, %v1852
    %v1977 = vpack.c.b16 %v1857, %v1853
    %v1978 = vpack.c.b16 %v1858, %v1854
    %v1979 = vpack.c.b16 %v1863, %v1859
    %v1980 = vpack.c.b16 %v1864, %v1860
    %v1981 = vpack.c.b16 %v1865, %v1861
    %v1982 = vpack.c.b16 %v1866, %v1862
    %v1983 = vpack.c.b16 %v1871, %v1867
    %v1984 = vpack.c.b16 %v1872, %v1868
    %v1985 = vpack.c.b16 %v1873, %v1869
    %v1986 = vpack.c.b16 %v1874, %v1870
    %v1987 = vpack.c.b16 %v1879, %v1875
    %v1988 = vpack.c.b16 %v1880, %v1876
    %v1989 = vpack.c.b16 %v1881, %v1877
    %v1990 = vpack.c.b16 %v1882, %v1878
    %v1991 = vpack.c.b16 %v1887, %v1883
    %v1992 = vpack.c.b16 %v1888, %v1884
    %v1993 = vpack.c.b16 %v1889, %v1885
    %v1994 = vpack.c.b16 %v1890, %v1886
    %v1995 = vpack.c.b16 %v1895, %v1891
    %v1996 = vpack.c.b16 %v1896, %v1892
    %v1997 = vpack.c.b16 %v1897, %v1893
    %v1998 = vpack.c.b16 %v1898, %v1894
    %v1999 = vpack.c.b16 %v1903, %v1899
    %v2000 = vpack.c.b16 %v1904, %v1900
    %v2001 = vpack.c.b16 %v1905, %v1901
    %v2002 = vpack.c.b16 %v1906, %v1902
    %v2003 = vpack.c.b16 %v1911, %v1907
    %v2004 = vpack.c.b16 %v1912, %v1908
    %v2005 = vpack.c.b16 %v1913, %v1909
    %v2006 = vpack.c.b16 %v1914, %v1910
    %v2007 = vpack.c.b16 %v1919, %v1915
    %v2008 = vpack.c.b16 %v1920, %v1916
    %v2009 = vpack.c.b16 %v1921, %v1917
    %v2010 = vpack.c.b16 %v1922, %v1918
    %v2011 = vpack.c.b16 %v1927, %v1923
    %v2012 = vpack.c.b16 %v1928, %v1924
    %v2013 = vpack.c.b16 %v1929, %v1925
    %v2014 = vpack.c.b16 %v1930, %v1926
    %v2015 = vpack.c.b16 %v1935, %v1931
    %v2016 = vpack.c.b16 %v1936, %v1932
    %v2017 = vpack.c.b16 %v1937, %v1933
    %v2018 = vpack.c.b16 %v1938, %v1934
    %v2019 = vpack.c.b16 %v1943, %v1939
    %v2020 = vpack.c.b16 %v1944, %v1940
    %v2021 = vpack.c.b16 %v1945, %v1941
    %v2022 = vpack.c.b16 %v1946, %v1942
    %v2023 = vpack.c.b16 %v1951, %v1947
    %v2024 = vpack.c.b16 %v1952, %v1948
    %v2025 = vpack.c.b16 %v1953, %v1949
    %v2026 = vpack.c.b16 %v1954, %v1950
    %v2027 = vpack.c.b16 %v1959, %v1955
    %v2028 = vpack.c.b16 %v1960, %v1956
    %v2029 = vpack.c.b16 %v1961, %v1957
    %v2030 = vpack.c.b16 %v1962, %v1958
    %v2031 = vpack.c.b16 %v1967, %v1963
    %v2032 = vpack.c.b16 %v1968, %v1964
    %v2033 = vpack.c.b16 %v1969, %v1965
    %v2034 = vpack.c.b16 %v1970, %v1966
    %2099 = vmatpush.bf16.msra.mxu0 %v1999
    %2100 = vmatpush.bf16.msra.mxu0 %v1995
    %2101 = vmatpush.bf16.msra.mxu0 %v1991
    %2102 = vmatpush.bf16.msra.mxu0 %v1987
    %2103 = vmatpush.bf16.msra.mxu0 %v1983
    %2104 = vmatpush.bf16.msra.mxu0 %v1979
    %2105 = vmatpush.bf16.msra.mxu0 %v1975
    %2106 = vmatpush.bf16.msra.mxu0 %v1971
    %2107 = vmatmul.bf16.gmra.mxu0 %v1713
    %v2108 = vpop.f32.mrf.mxu0
    %v2109 = vadd.f32 %v96, %v2108
    %v2110 = vpop.f32.mrf.mxu0
    %2111 = vdwg.mxu0
    %2112 = vmatpush.bf16.msra.mxu0 %v2031
    %2113 = vmatpush.bf16.msra.mxu0 %v2027
    %2114 = vmatpush.bf16.msra.mxu0 %v2023
    %2115 = vmatpush.bf16.msra.mxu0 %v2019
    %2116 = vmatpush.bf16.msra.mxu0 %v2015
    %2117 = vmatpush.bf16.msra.mxu0 %v2011
    %2118 = vmatpush.bf16.msra.mxu0 %v2007
    %2119 = vmatpush.bf16.msra.mxu0 %v2003
    %2120 = vmatmul.bf16.gmra.mxu0 %v1714
    %v2121 = vpop.f32.mrf.mxu0
    %v2122 = vadd.f32 %v2109, %v2121
    %v2123 = vpop.f32.mrf.mxu0
    %2124 = vdwg.mxu0
    %2125 = vmatpush.bf16.msra.mxu0 %v2000
    %2126 = vmatpush.bf16.msra.mxu0 %v1996
    %2127 = vmatpush.bf16.msra.mxu0 %v1992
    %2128 = vmatpush.bf16.msra.mxu0 %v1988
    %2129 = vmatpush.bf16.msra.mxu0 %v1984
    %2130 = vmatpush.bf16.msra.mxu0 %v1980
    %2131 = vmatpush.bf16.msra.mxu0 %v1976
    %2132 = vmatpush.bf16.msra.mxu0 %v1972
    %2133 = vmatmul.bf16.gmra.mxu0 %v1713
    %v2134 = vpop.f32.mrf.mxu0
    %v2135 = vadd.f32 %v97, %v2134
    %v2136 = vpop.f32.mrf.mxu0
    %2137 = vdwg.mxu0
    %2138 = vmatpush.bf16.msra.mxu0 %v2032
    %2139 = vmatpush.bf16.msra.mxu0 %v2028
    %2140 = vmatpush.bf16.msra.mxu0 %v2024
    %2141 = vmatpush.bf16.msra.mxu0 %v2020
    %2142 = vmatpush.bf16.msra.mxu0 %v2016
    %2143 = vmatpush.bf16.msra.mxu0 %v2012
    %2144 = vmatpush.bf16.msra.mxu0 %v2008
    %2145 = vmatpush.bf16.msra.mxu0 %v2004
    %2146 = vmatmul.bf16.gmra.mxu0 %v1714
    %v2147 = vpop.f32.mrf.mxu0
    %v2148 = vadd.f32 %v2135, %v2147
    %v2149 = vpop.f32.mrf.mxu0
    %2150 = vdwg.mxu0
    %2151 = vmatpush.bf16.msra.mxu0 %v2001
    %2152 = vmatpush.bf16.msra.mxu0 %v1997
    %2153 = vmatpush.bf16.msra.mxu0 %v1993
    %2154 = vmatpush.bf16.msra.mxu0 %v1989
    %2155 = vmatpush.bf16.msra.mxu0 %v1985
    %2156 = vmatpush.bf16.msra.mxu0 %v1981
    %2157 = vmatpush.bf16.msra.mxu0 %v1977
    %2158 = vmatpush.bf16.msra.mxu0 %v1973
    %2159 = vmatmul.bf16.gmra.mxu0 %v1713
    %v2160 = vpop.f32.mrf.mxu0
    %v2161 = vadd.f32 %v98, %v2160
    %v2162 = vpop.f32.mrf.mxu0
    %2163 = vdwg.mxu0
    %2164 = vmatpush.bf16.msra.mxu0 %v2033
    %2165 = vmatpush.bf16.msra.mxu0 %v2029
    %2166 = vmatpush.bf16.msra.mxu0 %v2025
    %2167 = vmatpush.bf16.msra.mxu0 %v2021
    %2168 = vmatpush.bf16.msra.mxu0 %v2017
    %2169 = vmatpush.bf16.msra.mxu0 %v2013
    %2170 = vmatpush.bf16.msra.mxu0 %v2009
    %2171 = vmatpush.bf16.msra.mxu0 %v2005
    %2172 = vmatmul.bf16.gmra.mxu0 %v1714
    %v2173 = vpop.f32.mrf.mxu0
    %v2174 = vadd.f32 %v2161, %v2173
    %v2175 = vpop.f32.mrf.mxu0
    %2176 = vdwg.mxu0
    %2177 = vmatpush.bf16.msra.mxu0 %v2002
    %2178 = vmatpush.bf16.msra.mxu0 %v1998
    %2179 = vmatpush.bf16.msra.mxu0 %v1994
    %2180 = vmatpush.bf16.msra.mxu0 %v1990
    %2181 = vmatpush.bf16.msra.mxu0 %v1986
    %2182 = vmatpush.bf16.msra.mxu0 %v1982
    %2183 = vmatpush.bf16.msra.mxu0 %v1978
    %2184 = vmatpush.bf16.msra.mxu0 %v1974
    %2185 = vmatmul.bf16.gmra.mxu0 %v1713
    %v2186 = vpop.f32.mrf.mxu0
    %v2187 = vadd.f32 %v99, %v2186
    %v2188 = vpop.f32.mrf.mxu0
    %2189 = vdwg.mxu0
    %2190 = vmatpush.bf16.msra.mxu0 %v2034
    %2191 = vmatpush.bf16.msra.mxu0 %v2030
    %2192 = vmatpush.bf16.msra.mxu0 %v2026
    %2193 = vmatpush.bf16.msra.mxu0 %v2022
    %2194 = vmatpush.bf16.msra.mxu0 %v2018
    %2195 = vmatpush.bf16.msra.mxu0 %v2014
    %2196 = vmatpush.bf16.msra.mxu0 %v2010
    %2197 = vmatpush.bf16.msra.mxu0 %v2006
    %2198 = vmatmul.bf16.gmra.mxu0 %v1714
    %v2199 = vpop.f32.mrf.mxu0
    %v2200 = vadd.f32 %v2187, %v2199
    %v2201 = vpop.f32.mrf.mxu0
    %2202 = vdwg.mxu0
    %v2203 = vxor.u32 %v2122, 2147483648
    %v2204 = vmul.f32 %v2203, 1.442695
    %v2205 = vpow.pop %v2204
    %v2206 = vadd.f32 %v2205, 1.0
    %v2207 = vrcp.pop %v2206
    %v2208 = vmul.f32 %v2206, %v2207
    %v2209 = vsub.f32 1.0, %v2208
    %v2210 = vmul.f32 %v2207, %v2209
    %v2211 = vadd.f32 %v2207, %v2210
    %vm2212 = vweird.f32 %v2206
    %vm2213 = vweird.f32 %v2207
    %vm2214 = vmor %vm2212, %vm2213
    %v2215 = vsel %vm2214, %v2207, %v2211
    %v2216 = vand.u32 2147483647, %v2206
    %vm2217 = vcmp.eq.f32.partialorder %v2216, 8.507059e+37
    %v2218 = vand.u32 %v2206, 2147483648
    %v2219 = vor.u32 1.1754944e-38, %v2218
    %v2220 = vsel %vm2217, %v2219, %v2215
    %v2221 = vmul.f32 1.0, %v2220
    %v2222 = vxor.u32 %v2148, 2147483648
    %v2223 = vmul.f32 %v2222, 1.442695
    %v2224 = vpow.pop %v2223
    %v2225 = vadd.f32 %v2224, 1.0
    %v2226 = vrcp.pop %v2225
    %v2227 = vmul.f32 %v2225, %v2226
    %v2228 = vsub.f32 1.0, %v2227
    %v2229 = vmul.f32 %v2226, %v2228
    %v2230 = vadd.f32 %v2226, %v2229
    %vm2231 = vweird.f32 %v2225
    %vm2232 = vweird.f32 %v2226
    %vm2233 = vmor %vm2231, %vm2232
    %v2234 = vsel %vm2233, %v2226, %v2230
    %v2235 = vand.u32 2147483647, %v2225
    %vm2236 = vcmp.eq.f32.partialorder %v2235, 8.507059e+37
    %v2237 = vand.u32 %v2225, 2147483648
    %v2238 = vor.u32 1.1754944e-38, %v2237
    %v2239 = vsel %vm2236, %v2238, %v2234
    %v2240 = vmul.f32 1.0, %v2239
    %v2241 = vtanh.pop %v2174
    %v2242 = vxor.u32 %v2200, 2147483648
    %v2243 = vmul.f32 %v2242, 1.442695
    %v2244 = vpow.pop %v2243
    %v2245 = vadd.f32 %v2244, 1.0
    %v2246 = vrcp.pop %v2245
    %v2247 = vmul.f32 %v2245, %v2246
    %v2248 = vsub.f32 1.0, %v2247
    %v2249 = vmul.f32 %v2246, %v2248
    %v2250 = vadd.f32 %v2246, %v2249
    %vm2251 = vweird.f32 %v2245
    %vm2252 = vweird.f32 %v2246
    %vm2253 = vmor %vm2251, %vm2252
    %v2254 = vsel %vm2253, %v2246, %v2250
    %v2255 = vand.u32 2147483647, %v2245
    %vm2256 = vcmp.eq.f32.partialorder %v2255, 8.507059e+37
    %v2257 = vand.u32 %v2245, 2147483648
    %v2258 = vor.u32 1.1754944e-38, %v2257
    %v2259 = vsel %vm2256, %v2258, %v2254
    %v2260 = vmul.f32 1.0, %v2259
    %v2261 = vmul.f32 %v2240, %v1704
    %v2262 = vmul.f32 %v2221, %v2241
    %v2263 = vadd.f32 %v2261, %v2262
    %v2264 = vtanh.pop %v2263
    %v2265 = vmul.f32 %v2260, %v2264
    %v2266 = vpack.c.bf16 %v1706, %v1147
    %v2267 = vpack.c.bf16 %v2265, %v2265
    %v2268 = vld [vmem:[%s3] sm:$0xf]
    %v2269 = vld [vmem:[%s3 + $0x4] sm:$0xf]
    %v2270 = vld [vmem:[%s3 + $0x8] sm:$0xf]
    %v2271 = vld [vmem:[%s3 + $0xc] sm:$0xf]
    %v2272 = vld [vmem:[%s3 + $0x10] sm:$0xf]
    %v2273 = vld [vmem:[%s3 + $0x14] sm:$0xf]
    %v2274 = vld [vmem:[%s3 + $0x18] sm:$0xf]
    %v2275 = vld [vmem:[%s3 + $0x1c] sm:$0xf]
    %v2276 = vld [vmem:[%s3 + $0x20] sm:$0xf]
    %v2277 = vld [vmem:[%s3 + $0x24] sm:$0xf]
    %v2278 = vld [vmem:[%s3 + $0x28] sm:$0xf]
    %v2279 = vld [vmem:[%s3 + $0x2c] sm:$0xf]
    %v2280 = vld [vmem:[%s3 + $0x30] sm:$0xf]
    %v2281 = vld [vmem:[%s3 + $0x34] sm:$0xf]
    %v2282 = vld [vmem:[%s3 + $0x38] sm:$0xf]
    %v2283 = vld [vmem:[%s3 + $0x3c] sm:$0xf]
    %v2284 = vld [vmem:[%s4] sm:$0x1]
    %v2286 = vperm.slane %v2284, 0
    %v2304 = vunpack.c.l.b16 %v2268
    %v2305 = vunpack.c.l.b16 %v2269
    %v2306 = vunpack.c.l.b16 %v2270
    %v2307 = vunpack.c.l.b16 %v2271
    %v2308 = vunpack.c.l.b16 %v2272
    %v2309 = vunpack.c.l.b16 %v2273
    %v2310 = vunpack.c.l.b16 %v2274
    %v2311 = vunpack.c.l.b16 %v2275
    %v2312 = vunpack.c.l.b16 %v2276
    %v2313 = vunpack.c.l.b16 %v2277
    %v2314 = vunpack.c.l.b16 %v2278
    %v2315 = vunpack.c.l.b16 %v2279
    %v2316 = vunpack.c.l.b16 %v2280
    %v2317 = vunpack.c.l.b16 %v2281
    %v2318 = vunpack.c.l.b16 %v2282
    %v2319 = vunpack.c.l.b16 %v2283
    %v2320 = vpack.c.b16 %v2305, %v2304
    %v2321 = vpack.c.b16 %v2307, %v2306
    %v2322 = vpack.c.b16 %v2309, %v2308
    %v2323 = vpack.c.b16 %v2311, %v2310
    %v2324 = vpack.c.b16 %v2313, %v2312
    %v2325 = vpack.c.b16 %v2315, %v2314
    %v2326 = vpack.c.b16 %v2317, %v2316
    %v2327 = vpack.c.b16 %v2319, %v2318
    %2336 = vmatpush.bf16.msra.mxu0 %v2327
    %2337 = vmatpush.bf16.msra.mxu0 %v2326
    %2338 = vmatpush.bf16.msra.mxu0 %v2325
    %2339 = vmatpush.bf16.msra.mxu0 %v2324
    %2340 = vmatpush.bf16.msra.mxu0 %v2323
    %2341 = vmatpush.bf16.msra.mxu0 %v2322
    %2342 = vmatpush.bf16.msra.mxu0 %v2321
    %2343 = vmatpush.bf16.msra.mxu0 %v2320
    %2344 = vmatmul.bf16.gmra.mxu0 %v2266
    %v2345 = vpop.f32.mrf.mxu0
    %v2346 = vadd.f32 %v2286, %v2345
    %v2347 = vpop.f32.mrf.mxu0
    %v2348 = vadd.f32 %v2286, %v2347
    %2349 = vmatmul.bf16.gmra.mxu0 %v2267
    %v2350 = vpop.f32.mrf.mxu0
    %v2351 = vadd.f32 %v2286, %v2350
    %v2352 = vpop.f32.mrf.mxu0
    %2353 = vdwg.mxu0
    %v2354 = vld [vmem:[%s5] sm:$0xff]
    %v2355 = vsub.f32 %v2346, %v2354
    %v2356 = vmul.f32 %v2355, %v2355
    %vm2357 = vcmask 523264
    %v2358 = vsel %vm2357, %v2356, 0.0
    %2359 = vadd.xlane.f32.xlu0 %v2358
    %v2360 = vpop.xlane.xlu0 %2359
    %v2361 = vrot.slane %v2360, 4
    %v2362 = vadd.f32 %v2360, %v2361
    %v2363 = vrot.slane %v2362, 2
    %v2364 = vadd.f32 %v2362, %v2363
    %v2365 = vrot.slane %v2364, 1
    %v2366 = vadd.f32 %v2364, %v2365
    %s2367 = vtos %v2366
    %v2368 = vstv %s2367
    %v2369 = vrsqrt.pop %v2368
    %v2370 = vmul.f32 %v2369, %v2368
    %v2371 = vmul.f32 %v2370, %v2369
    %v2372 = vmul.f32 0.5, %v2371
    %v2373 = vsub.f32 1.5, %v2372
    %v2374 = vmul.f32 %v2369, %v2373
    %v2375 = vmul.f32 %v2368, %v2374
    %vm2376 = vcmp.eq.f32.partialorder %v2368, inf
    %v2377 = vsel %vm2376, %v2368, %v2375
    %vm2378 = vcmp.eq.f32.partialorder %v2368, 0.0
    %v2379 = vand.u32 %v2368, 2147483648
    %v2380 = vsel %vm2378, %v2379, %v2377
    %s2381 = vtos %v2380
    %v2382 = vstv %s2381
    %v2383 = vadd.f32 %v2382, 0.0
    %v2384 = vsub.f32 %v2348, %v2354
    %v2385 = vmul.f32 %v2384, %v2384
    %v2386 = vsel %vm2357, %v2385, 0.0
    %2387 = vadd.xlane.f32.xlu0 %v2386
    %v2388 = vpop.xlane.xlu0 %2387
    %v2389 = vrot.slane %v2388, 4
    %v2390 = vadd.f32 %v2388, %v2389
    %v2391 = vrot.slane %v2390, 2
    %v2392 = vadd.f32 %v2390, %v2391
    %v2393 = vrot.slane %v2392, 1
    %v2394 = vadd.f32 %v2392, %v2393
    %s2395 = vtos %v2394
    %v2396 = vstv %s2395
    %v2397 = vrsqrt.pop %v2396
    %v2398 = vmul.f32 %v2397, %v2396
    %v2399 = vmul.f32 %v2398, %v2397
    %v2400 = vmul.f32 0.5, %v2399
    %v2401 = vsub.f32 1.5, %v2400
    %v2402 = vmul.f32 %v2397, %v2401
    %v2403 = vmul.f32 %v2396, %v2402
    %vm2404 = vcmp.eq.f32.partialorder %v2396, inf
    %v2405 = vsel %vm2404, %v2396, %v2403
    %vm2406 = vcmp.eq.f32.partialorder %v2396, 0.0
    %v2407 = vand.u32 %v2396, 2147483648
    %v2408 = vsel %vm2406, %v2407, %v2405
    %s2409 = vtos %v2408
    %v2410 = vstv %s2409
    %v2411 = vadd.f32 %v2383, %v2410
    %v2412 = vsub.f32 %v2351, %v2354
    %v2413 = vmul.f32 %v2412, %v2412
    %v2414 = vsel %vm2357, %v2413, 0.0
    %2415 = vadd.xlane.f32.xlu0 %v2414
    %v2416 = vpop.xlane.xlu0 %2415
    %v2417 = vrot.slane %v2416, 4
    %v2418 = vadd.f32 %v2416, %v2417
    %v2419 = vrot.slane %v2418, 2
    %v2420 = vadd.f32 %v2418, %v2419
    %v2421 = vrot.slane %v2420, 1
    %v2422 = vadd.f32 %v2420, %v2421
    %s2423 = vtos %v2422
    %v2424 = vstv %s2423
    %v2425 = vrsqrt.pop %v2424
    %v2426 = vmul.f32 %v2425, %v2424
    %v2427 = vmul.f32 %v2426, %v2425
    %v2428 = vmul.f32 0.5, %v2427
    %v2429 = vsub.f32 1.5, %v2428
    %v2430 = vmul.f32 %v2425, %v2429
    %v2431 = vmul.f32 %v2424, %v2430
    %vm2432 = vcmp.eq.f32.partialorder %v2424, inf
    %v2433 = vsel %vm2432, %v2424, %v2431
    %vm2434 = vcmp.eq.f32.partialorder %v2424, 0.0
    %v2435 = vand.u32 %v2424, 2147483648
    %v2436 = vsel %vm2434, %v2435, %v2433
    %s2437 = vtos %v2436
    %v2438 = vstv %s2437
    %v2439 = vadd.f32 %v2411, %v2438
    %vm2440 = vcmask 0
    %2441 = vst.msk [vmem:[#allocation2] sm:$0x1] %vm2440, %v2439
    // Predicated region
    $region26: #{qbot_forward.4} parent=1 // pred_check
      _
    $region27: #{qbot_forward.4} parent=1 // pred_check_branch
      %2443 = sbr.rel (0) target = $region29
    $region28: #{qbot_forward.4} parent=1 // pred_region
      _
    $region29: #{qbot_forward.4} parent=1 // pred_fallthru
      _
    // Predicated region
    $region30: #{qbot_forward.4} parent=1 // pred_check
      _
    $region31: #{qbot_forward.4} parent=1 // pred_check_branch
      %2445 = sbr.rel (0) target = $region33
    $region32: #{qbot_forward.4} parent=1 // pred_region
      _
    $region33: #{qbot_forward.4} parent=1 // pred_fallthru
      _
    // Predicated region
    $region34: #{qbot_forward.4} parent=1 // pred_check
      _
    $region35: #{qbot_forward.4} parent=1 // pred_check_branch
      %2447 = sbr.rel (0) target = $region37
    $region36: #{qbot_forward.4} parent=1 // pred_region
      %2449 = vsyncadd [#allocation3], 0
      %s2451 = sshll.u32 [#allocation2], 4
      %s2452 = int_to_ptr.vmem [resolvable:$true] %s2451
      %s2453 = sshll.u32 %s8, 4
      %s2454 = int_to_ptr.hbm [resolvable:$true] %s2453
      %2456 = dma.vmem_to_hbm [thread:$0]  %s2452, 16, %s2454, [#allocation3]
    $region37: #{qbot_forward.4} parent=1 // pred_fallthru
      _
    // Predicated region
    $region38: #{qbot_forward.4} parent=1 // pred_check
      _
    $region39: #{qbot_forward.4} parent=1 // pred_check_branch
      %2458 = sbr.rel (0) target = $region41
    $region40: #{qbot_forward.4} parent=1 // pred_region
      _
    $region41: #{qbot_forward.4} parent=1 // pred_fallthru
      _
    // Predicated region
    $region42: #{qbot_forward.4} parent=1 // pred_check
      _
    $region43: #{qbot_forward.4} parent=1 // pred_check_branch
      %2460 = sbr.rel (0) target = $region45
    $region44: #{qbot_forward.4} parent=1 // pred_region
      _
    $region45: #{qbot_forward.4} parent=1 // pred_fallthru
      _
    // Predicated region
    $region46: #{qbot_forward.4} parent=1 // pred_check
      _
    $region47: #{qbot_forward.4} parent=1 // pred_check_branch
      %2462 = sbr.rel (0) target = $region49
    $region48: #{qbot_forward.4} parent=1 // pred_region
      %2464 = dma.done [#allocation3], 16
    $region49: #{qbot_forward.4} parent=1 // pred_fallthru
      _
    %2465 = vsyncpa [#allocation3], 1

// kernel: qbot_forward.5
$region0: #{qbot_forward.5}
  #allocation0 [shape = 'u32[]', space=smem, size = 0x4, offset = 0x4, fixed_abs, tag = 'smem constant byte address 0x4 - core index']
  #allocation1 [shape = 'u32[72,128]{1,0:T(1,128)}', space=vmem, size = 0x9000, scoped, tag = 'internal scratch']
  %s0 = inlined_call_operand.vmem [shape: bf16[5,32,512], index: 0, kind: input, shape index: {}]
  %s1 = inlined_call_operand.vmem [shape: s32[5,32,1], index: 1, kind: input, shape index: {}]
  %s2 = inlined_call_operand.vmem [shape: f32[32,128], index: 2, kind: input, shape index: {}]
  %s3 = inlined_call_operand.vmem [shape: f32[32,128], index: 3, kind: input, shape index: {}]
  %s4 = inlined_call_operand.vmem [shape: bf16[128,512], index: 4, kind: input, shape index: {}]
  %s5 = inlined_call_operand.vmem [shape: bf16[128,256], index: 5, kind: input, shape index: {}]
  %s6 = inlined_call_operand.vmem [shape: f32[1,256], index: 6, kind: input, shape index: {}]
  %s7 = inlined_call_operand.vmem [shape: f32[2,1,1], index: 7, kind: output, shape index: {}]
  %s8 = sld [smem:[#allocation0]]
  $region122: #{qbot_forward.5} parent=0
    _
  %s10 = ssub.s32 1, %s8
  %s11 = scalar_select 0, %s10, %s8
  $region1: #{qbot_forward.5} parent=0
    #allocation2 [shape = 'u8[163840]{0}', space=vmem, size = 0x28000, scoped, tag = 'input window, operand 0']
    #allocation3 [shape = 'u8[81920]{0}', space=vmem, size = 0x14000, scoped, tag = 'input window, operand 1']
    loop: start=0, step=1, limit=4
    $region2: #{qbot_forward.5} parent=1 // loop_pre_header
      _
    $region3: #{qbot_forward.5} parent=1 // loop_header
      %s13 = sphi 0, %s17
      %p14 = scmp.ge.s32.totalorder %s13, 4
      %s23 = sphi 0, %s25
      %s26 = sphi 0, %s23
      %s27 = sphi 0, %s26
      %s43 = sphi 0, %s27
      %s49 = sphi 0, %s51
      %s52 = sphi 0, %s49
      %s53 = sphi 0, %s52
      %s69 = sphi 0, %s53
      %s75 = sphi 0, %s77
      %s78 = sphi 0, %s75
      %s79 = sphi 0, %s78
      %s95 = sphi 0, %s79
      %s101 = sphi 0, %s103
      %s104 = sphi 0, %s101
      %s105 = sphi 0, %s104
      %s121 = sphi 0, %s105
      %s125 = sphi 0, %s125
      %s127 = sphi 0, %s125
      %s128 = sphi 0, %s127
      %s142 = sphi 0, %s128
      %s146 = sphi 0, %s146
      %s148 = sphi 0, %s146
      %s149 = sphi 0, %s148
      %s163 = sphi 0, %s149
      %s167 = sphi 0, %s167
      %s169 = sphi 0, %s167
      %s170 = sphi 0, %s169
      %s184 = sphi 0, %s170
      %s190 = sphi 0, %s192
      %s193 = sphi 0, %s190
      %s194 = sphi 0, %s193
      %s210 = sphi 0, %s194
    $region4: #{qbot_forward.5} parent=1 // loop_header_branch
      %16 = sbr.rel (%p14) target = $region8
    $region5: #{qbot_forward.5} parent=1 // loop_body
      %s18 = ssub.s32 %s13, 1
      %s19 = ssub.s32 %s13, 2
      %s20 = sadd.s32 %s13, 1
      %s21 = ssub.s32 %s13, %s20
      %p22 = scmp.eq.s32.totalorder %s21, 0
      %s24 = sadd.s32 %s23, 1
      %s25 = scalar_select %p22, %s23, %s24
      %p28 = pneg %p22
      %p29 = scmp.eq.s32.totalorder %s13, 1
      %p30 = por %p28, %p29
      %p31 = scmp.ne.s32.totalorder %s23, %s26
      %p32 = scmp.eq.s32.totalorder %s13, 0
      %p33 = por %p31, %p32
      %p34 = scmp.ne.s32.totalorder %s23, %s26
      %p35 = scmp.eq.s32.totalorder %s18, 1
      %p36 = por %p34, %p35
      %p37 = scmp.ne.s32.totalorder %s26, %s27
      %p38 = scmp.eq.s32.totalorder %s18, 0
      %p39 = por %p37, %p38
      %p40 = scmp.ne.s32.totalorder %s26, %s27
      %p41 = scmp.eq.s32.totalorder %s19, 1
      %p42 = por %p40, %p41
      %p44 = scmp.ne.s32.totalorder %s27, %s43
      %p45 = scmp.eq.s32.totalorder %s19, 0
      %p46 = por %p44, %p45
      %s47 = ssub.s32 %s13, %s20
      %p48 = scmp.eq.s32.totalorder %s47, 0
      %s50 = sadd.s32 %s49, 1
      %s51 = scalar_select %p48, %s49, %s50
      %p54 = pneg %p48
      %p55 = scmp.eq.s32.totalorder %s13, 1
      %p56 = por %p54, %p55
      %p57 = scmp.ne.s32.totalorder %s49, %s52
      %p58 = scmp.eq.s32.totalorder %s13, 0
      %p59 = por %p57, %p58
      %p60 = scmp.ne.s32.totalorder %s49, %s52
      %p61 = scmp.eq.s32.totalorder %s18, 1
      %p62 = por %p60, %p61
      %p63 = scmp.ne.s32.totalorder %s52, %s53
      %p64 = scmp.eq.s32.totalorder %s18, 0
      %p65 = por %p63, %p64
      %p66 = scmp.ne.s32.totalorder %s52, %s53
      %p67 = scmp.eq.s32.totalorder %s19, 1
      %p68 = por %p66, %p67
      %p70 = scmp.ne.s32.totalorder %s53, %s69
      %p71 = scmp.eq.s32.totalorder %s19, 0
      %p72 = por %p70, %p71
      %s73 = ssub.s32 %s13, %s20
      %p74 = scmp.eq.s32.totalorder %s73, 0
      %s76 = sadd.s32 %s75, 1
      %s77 = scalar_select %p74, %s75, %s76
      %p80 = pneg %p74
      %p81 = scmp.eq.s32.totalorder %s13, 1
      %p82 = por %p80, %p81
      %p83 = scmp.ne.s32.totalorder %s75, %s78
      %p84 = scmp.eq.s32.totalorder %s13, 0
      %p85 = por %p83, %p84
      %p86 = scmp.ne.s32.totalorder %s75, %s78
      %p87 = scmp.eq.s32.totalorder %s18, 1
      %p88 = por %p86, %p87
      %p89 = scmp.ne.s32.totalorder %s78, %s79
      %p90 = scmp.eq.s32.totalorder %s18, 0
      %p91 = por %p89, %p90
      %p92 = scmp.ne.s32.totalorder %s78, %s79
      %p93 = scmp.eq.s32.totalorder %s19, 1
      %p94 = por %p92, %p93
      %p96 = scmp.ne.s32.totalorder %s79, %s95
      %p97 = scmp.eq.s32.totalorder %s19, 0
      %p98 = por %p96, %p97
      %s99 = ssub.s32 %s13, %s20
      %p100 = scmp.eq.s32.totalorder %s99, 0
      %s102 = sadd.s32 %s101, 1
      %s103 = scalar_select %p100, %s101, %s102
      %p106 = pneg %p100
      %p107 = scmp.eq.s32.totalorder %s13, 1
      %p108 = por %p106, %p107
      %p109 = scmp.ne.s32.totalorder %s101, %s104
      %p110 = scmp.eq.s32.totalorder %s13, 0
      %p111 = por %p109, %p110
      %p112 = scmp.ne.s32.totalorder %s101, %s104
      %p113 = scmp.eq.s32.totalorder %s18, 1
      %p114 = por %p112, %p113
      %p115 = scmp.ne.s32.totalorder %s104, %s105
      %p116 = scmp.eq.s32.totalorder %s18, 0
      %p117 = por %p115, %p116
      %p118 = scmp.ne.s32.totalorder %s104, %s105
      %p119 = scmp.eq.s32.totalorder %s19, 1
      %p120 = por %p118, %p119
      %p122 = scmp.ne.s32.totalorder %s105, %s121
      %p123 = scmp.eq.s32.totalorder %s19, 0
      %p124 = por %p122, %p123
      %s126 = sadd.s32 %s125, 1
      %p129 = scmp.eq.s32.totalorder %s13, 1
      %p130 = scmp.ne.s32.totalorder %s125, %s127
      %p131 = scmp.eq.s32.totalorder %s13, 0
      %p132 = por %p130, %p131
      %p133 = scmp.ne.s32.totalorder %s125, %s127
      %p134 = scmp.eq.s32.totalorder %s18, 1
      %p135 = por %p133, %p134
      %p136 = scmp.ne.s32.totalorder %s127, %s128
      %p137 = scmp.eq.s32.totalorder %s18, 0
      %p138 = por %p136, %p137
      %p139 = scmp.ne.s32.totalorder %s127, %s128
      %p140 = scmp.eq.s32.totalorder %s19, 1
      %p141 = por %p139, %p140
      %p143 = scmp.ne.s32.totalorder %s128, %s142
      %p144 = scmp.eq.s32.totalorder %s19, 0
      %p145 = por %p143, %p144
      %s147 = sadd.s32 %s146, 1
      %p150 = scmp.eq.s32.totalorder %s13, 1
      %p151 = scmp.ne.s32.totalorder %s146, %s148
      %p152 = scmp.eq.s32.totalorder %s13, 0
      %p153 = por %p151, %p152
      %p154 = scmp.ne.s32.totalorder %s146, %s148
      %p155 = scmp.eq.s32.totalorder %s18, 1
      %p156 = por %p154, %p155
      %p157 = scmp.ne.s32.totalorder %s148, %s149
      %p158 = scmp.eq.s32.totalorder %s18, 0
      %p159 = por %p157, %p158
      %p160 = scmp.ne.s32.totalorder %s148, %s149
      %p161 = scmp.eq.s32.totalorder %s19, 1
      %p162 = por %p160, %p161
      %p164 = scmp.ne.s32.totalorder %s149, %s163
      %p165 = scmp.eq.s32.totalorder %s19, 0
      %p166 = por %p164, %p165
      %s168 = sadd.s32 %s167, 1
      %p171 = scmp.eq.s32.totalorder %s13, 1
      %p172 = scmp.ne.s32.totalorder %s167, %s169
      %p173 = scmp.eq.s32.totalorder %s13, 0
      %p174 = por %p172, %p173
      %p175 = scmp.ne.s32.totalorder %s167, %s169
      %p176 = scmp.eq.s32.totalorder %s18, 1
      %p177 = por %p175, %p176
      %p178 = scmp.ne.s32.totalorder %s169, %s170
      %p179 = scmp.eq.s32.totalorder %s18, 0
      %p180 = por %p178, %p179
      %p181 = scmp.ne.s32.totalorder %s169, %s170
      %p182 = scmp.eq.s32.totalorder %s19, 1
      %p183 = por %p181, %p182
      %p185 = scmp.ne.s32.totalorder %s170, %s184
      %p186 = scmp.eq.s32.totalorder %s19, 0
      %p187 = por %p185, %p186
      %s188 = ssub.s32 %s13, %s20
      %p189 = scmp.eq.s32.totalorder %s188, 0
      %s191 = sadd.s32 %s190, 1
      %s192 = scalar_select %p189, %s190, %s191
      %p195 = pneg %p189
      %p196 = scmp.eq.s32.totalorder %s13, 1
      %p197 = por %p195, %p196
      %p198 = scmp.ne.s32.totalorder %s190, %s193
      %p199 = scmp.eq.s32.totalorder %s13, 0
      %p200 = por %p198, %p199
      %p201 = scmp.ne.s32.totalorder %s190, %s193
      %p202 = scmp.eq.s32.totalorder %s18, 1
      %p203 = por %p201, %p202
      %p204 = scmp.ne.s32.totalorder %s193, %s194
      %p205 = scmp.eq.s32.totalorder %s18, 0
      %p206 = por %p204, %p205
      %p207 = scmp.ne.s32.totalorder %s193, %s194
      %p208 = scmp.eq.s32.totalorder %s19, 1
      %p209 = por %p207, %p208
      %p211 = scmp.ne.s32.totalorder %s194, %s210
      %p212 = scmp.eq.s32.totalorder %s19, 0
      %p213 = por %p211, %p212
      %p214 = scmp.le.s32.totalorder 1, %s13
      %p215 = scmp.lt.s32.totalorder %s13, 3
      %p216 = pnand %p214, %p215
      %p217 = pneg %p216
      // Predicated region
      $region9: #{qbot_forward.5} parent=5 // pred_check
        _
      $region10: #{qbot_forward.5} parent=5 // pred_check_branch
        %219 = sbr.rel (%p216) target = $region12
      $region11: #{qbot_forward.5} parent=5 // pred_region
        %s220 = ssub.s32 %s13, 1
        // Predicated region
        $region13: #{qbot_forward.5} parent=11 // pred_check
          %p221 = pneg %p138
        $region14: #{qbot_forward.5} parent=11 // pred_check_branch
          %223 = sbr.rel (%p221) target = $region16
        $region15: #{qbot_forward.5} parent=11 // pred_region
          _
        $region16: #{qbot_forward.5} parent=11 // pred_fallthru
          _
        // Predicated region
        $region17: #{qbot_forward.5} parent=11 // pred_check
          %p224 = pneg %p159
        $region18: #{qbot_forward.5} parent=11 // pred_check_branch
          %226 = sbr.rel (%p224) target = $region20
        $region19: #{qbot_forward.5} parent=11 // pred_region
          _
        $region20: #{qbot_forward.5} parent=11 // pred_fallthru
          _
        // Predicated region
        $region21: #{qbot_forward.5} parent=11 // pred_check
          %p227 = pneg %p180
        $region22: #{qbot_forward.5} parent=11 // pred_check_branch
          %229 = sbr.rel (%p227) target = $region24
        $region23: #{qbot_forward.5} parent=11 // pred_region
          _
        $region24: #{qbot_forward.5} parent=11 // pred_fallthru
          _
      $region12: #{qbot_forward.5} parent=5 // pred_fallthru
        _
      %p230 = scmp.lt.s32.totalorder %s13, 2
      // Predicated region
      $region25: #{qbot_forward.5} parent=5 // pred_check
        %p231 = pneg %p230
      $region26: #{qbot_forward.5} parent=5 // pred_check_branch
        %233 = sbr.rel (%p231) target = $region28
      $region27: #{qbot_forward.5} parent=5 // pred_region
        // Predicated region
        $region29: #{qbot_forward.5} parent=27 // pred_check
          %p234 = pneg %p33
        $region30: #{qbot_forward.5} parent=27 // pred_check_branch
          %236 = sbr.rel (%p234) target = $region32
        $region31: #{qbot_forward.5} parent=27 // pred_region
          %s237 = sand.u32 %s23, 1
          %s238 = sand.u32 %s23, 1
          %s239 = smul.addr %s238, 160
          %s240 = scalar_lea.vmem [#allocation2], %s239
          %s241 = smul.u32 2, %s13
          %s242 = smul.addr %s241, 4
          %s243 = smul.addr %s242, 4
          %s244 = scalar_lea.vmem %s0, %s243
          // Predicated region
          $region33: #{qbot_forward.5} parent=31 // pred_check
            _
          $region34: #{qbot_forward.5} parent=31 // pred_check_branch
            %246 = sbr.rel (0) target = $region36
          $region35: #{qbot_forward.5} parent=31 // pred_region
            // Predicated region
            $region37: #{qbot_forward.5} parent=35 // pred_check
              _
            $region38: #{qbot_forward.5} parent=35 // pred_check_branch
              %248 = sbr.rel (0) target = $region40
            $region39: #{qbot_forward.5} parent=35 // pred_region
              loop: start=0, step=1, limit=1
              $region41: #{qbot_forward.5} parent=39 // loop_pre_header
                _
              $region42: #{qbot_forward.5} parent=39 // loop_header
                %s250 = sphi 0, %s254
                %p251 = scmp.ge.s32.totalorder %s250, 1
                %s255 = sphi %s244, %s244
                %s256 = sphi %s240, %s240
              $region43: #{qbot_forward.5} parent=39 // loop_header_branch
                %253 = sbr.rel (%p251) target = $region47
              $region44: #{qbot_forward.5} parent=39 // loop_body
                %v257 = vld [vmem:[%s255] sm:$0xff]
                %258 = vst [vmem:[%s256] sm:$0xff] %v257
                %v259 = vld [vmem:[%s255 + $0x8] sm:$0xff]
                %260 = vst [vmem:[%s256 + $0x8] sm:$0xff] %v259
                %v261 = vld [vmem:[%s255 + $0x10] sm:$0xff]
                %262 = vst [vmem:[%s256 + $0x10] sm:$0xff] %v261
                %v263 = vld [vmem:[%s255 + $0x18] sm:$0xff]
                %264 = vst [vmem:[%s256 + $0x18] sm:$0xff] %v263
                %v265 = vld [vmem:[%s255 + $0x40] sm:$0xff]
                %266 = vst [vmem:[%s256 + $0x20] sm:$0xff] %v265
                %v267 = vld [vmem:[%s255 + $0x48] sm:$0xff]
                %268 = vst [vmem:[%s256 + $0x28] sm:$0xff] %v267
                %v269 = vld [vmem:[%s255 + $0x50] sm:$0xff]
                %270 = vst [vmem:[%s256 + $0x30] sm:$0xff] %v269
                %v271 = vld [vmem:[%s255 + $0x58] sm:$0xff]
                %272 = vst [vmem:[%s256 + $0x38] sm:$0xff] %v271
                %v273 = vld [vmem:[%s255 + $0x80] sm:$0xff]
                %274 = vst [vmem:[%s256 + $0x40] sm:$0xff] %v273
                %v275 = vld [vmem:[%s255 + $0x88] sm:$0xff]
                %276 = vst [vmem:[%s256 + $0x48] sm:$0xff] %v275
                %v277 = vld [vmem:[%s255 + $0x90] sm:$0xff]
                %278 = vst [vmem:[%s256 + $0x50] sm:$0xff] %v277
                %v279 = vld [vmem:[%s255 + $0x98] sm:$0xff]
                %280 = vst [vmem:[%s256 + $0x58] sm:$0xff] %v279
                %v281 = vld [vmem:[%s255 + $0xc0] sm:$0xff]
                %282 = vst [vmem:[%s256 + $0x60] sm:$0xff] %v281
                %v283 = vld [vmem:[%s255 + $0xc8] sm:$0xff]
                %284 = vst [vmem:[%s256 + $0x68] sm:$0xff] %v283
                %v285 = vld [vmem:[%s255 + $0xd0] sm:$0xff]
                %286 = vst [vmem:[%s256 + $0x70] sm:$0xff] %v285
                %v287 = vld [vmem:[%s255 + $0xd8] sm:$0xff]
                %288 = vst [vmem:[%s256 + $0x78] sm:$0xff] %v287
                %v289 = vld [vmem:[%s255 + $0x100] sm:$0xff]
                %290 = vst [vmem:[%s256 + $0x80] sm:$0xff] %v289
                %v291 = vld [vmem:[%s255 + $0x108] sm:$0xff]
                %292 = vst [vmem:[%s256 + $0x88] sm:$0xff] %v291
                %v293 = vld [vmem:[%s255 + $0x110] sm:$0xff]
                %294 = vst [vmem:[%s256 + $0x90] sm:$0xff] %v293
                %v295 = vld [vmem:[%s255 + $0x118] sm:$0xff]
                %296 = vst [vmem:[%s256 + $0x98] sm:$0xff] %v295
              $region45: #{qbot_forward.5} parent=39 // loop_footer
                %s254 = sadd.s32 1, %s250
              $region46: #{qbot_forward.5} parent=39 // loop_footer_branch
                %249 = sbr.rel target = $region42
              $region47: #{qbot_forward.5} parent=39 // loop_exit
                _
            $region40: #{qbot_forward.5} parent=35 // pred_fallthru
              _
            // Predicated region
            $region48: #{qbot_forward.5} parent=35 // pred_check
              _
            $region49: #{qbot_forward.5} parent=35 // pred_check_branch
              %298 = sbr.rel target = $region51
            $region50: #{qbot_forward.5} parent=35 // pred_region
              _
            $region51: #{qbot_forward.5} parent=35 // pred_fallthru
              _
          $region36: #{qbot_forward.5} parent=31 // pred_fallthru
            _
          %299 = vnop
        $region32: #{qbot_forward.5} parent=27 // pred_fallthru
          _
        // Predicated region
        $region52: #{qbot_forward.5} parent=27 // pred_check
          %p300 = pneg %p59
        $region53: #{qbot_forward.5} parent=27 // pred_check_branch
          %302 = sbr.rel (%p300) target = $region55
        $region54: #{qbot_forward.5} parent=27 // pred_region
          %s303 = sand.u32 %s49, 1
          %s304 = sand.u32 %s49, 1
          %s305 = smul.addr %s304, 80
          %s306 = scalar_lea.vmem [#allocation3], %s305
          %s307 = smul.u32 2, %s13
          %s308 = smul.addr %s307, 8
          %s309 = scalar_lea.vmem %s1, %s308
          // Predicated region
          $region56: #{qbot_forward.5} parent=54 // pred_check
            _
          $region57: #{qbot_forward.5} parent=54 // pred_check_branch
            %311 = sbr.rel (0) target = $region59
          $region58: #{qbot_forward.5} parent=54 // pred_region
            // Predicated region
            $region60: #{qbot_forward.5} parent=58 // pred_check
              _
            $region61: #{qbot_forward.5} parent=58 // pred_check_branch
              %313 = sbr.rel (0) target = $region63
            $region62: #{qbot_forward.5} parent=58 // pred_region
              // Predicated region
              $region75: #{qbot_forward.5} parent=62 // pred_check
                _
              $region76: #{qbot_forward.5} parent=62 // pred_check_branch
                %347 = sbr.rel (0) target = $region78
              $region77: #{qbot_forward.5} parent=62 // pred_region
                loop: start=0, step=1, limit=1
                $region79: #{qbot_forward.5} parent=77 // loop_pre_header
                  _
                $region80: #{qbot_forward.5} parent=77 // loop_header
                  %s349 = sphi 0, %s353
                  %p350 = scmp.ge.s32.totalorder %s349, 1
                  %s354 = sphi %s309, %s309
                  %s355 = sphi %s306, %s306
                $region81: #{qbot_forward.5} parent=77 // loop_header_branch
                  %352 = sbr.rel (%p350) target = $region85
                $region82: #{qbot_forward.5} parent=77 // loop_body
                  %v356 = vld [vmem:[%s354] sm:$0xff]
                  %357 = vst [vmem:[%s355] sm:$0xff] %v356
                  %v358 = vld [vmem:[%s354 + $0x8] sm:$0xff]
                  %359 = vst [vmem:[%s355 + $0x8] sm:$0xff] %v358
                  %v360 = vld [vmem:[%s354 + $0x20] sm:$0xff]
                  %361 = vst [vmem:[%s355 + $0x10] sm:$0xff] %v360
                  %v362 = vld [vmem:[%s354 + $0x28] sm:$0xff]
                  %363 = vst [vmem:[%s355 + $0x18] sm:$0xff] %v362
                  %v364 = vld [vmem:[%s354 + $0x40] sm:$0xff]
                  %365 = vst [vmem:[%s355 + $0x20] sm:$0xff] %v364
                  %v366 = vld [vmem:[%s354 + $0x48] sm:$0xff]
                  %367 = vst [vmem:[%s355 + $0x28] sm:$0xff] %v366
                  %v368 = vld [vmem:[%s354 + $0x60] sm:$0xff]
                  %369 = vst [vmem:[%s355 + $0x30] sm:$0xff] %v368
                  %v370 = vld [vmem:[%s354 + $0x68] sm:$0xff]
                  %371 = vst [vmem:[%s355 + $0x38] sm:$0xff] %v370
                  %v372 = vld [vmem:[%s354 + $0x80] sm:$0xff]
                  %373 = vst [vmem:[%s355 + $0x40] sm:$0xff] %v372
                  %v374 = vld [vmem:[%s354 + $0x88] sm:$0xff]
                  %375 = vst [vmem:[%s355 + $0x48] sm:$0xff] %v374
                $region83: #{qbot_forward.5} parent=77 // loop_footer
                  %s353 = sadd.s32 1, %s349
                $region84: #{qbot_forward.5} parent=77 // loop_footer_branch
                  %348 = sbr.rel target = $region80
                $region85: #{qbot_forward.5} parent=77 // loop_exit
                  _
              $region78: #{qbot_forward.5} parent=62 // pred_fallthru
                _
              // Predicated region
              $region86: #{qbot_forward.5} parent=62 // pred_check
                _
              $region87: #{qbot_forward.5} parent=62 // pred_check_branch
                %377 = sbr.rel target = $region89
              $region88: #{qbot_forward.5} parent=62 // pred_region
                _
              $region89: #{qbot_forward.5} parent=62 // pred_fallthru
                _
            $region63: #{qbot_forward.5} parent=58 // pred_fallthru
              _
            // Predicated region
            $region64: #{qbot_forward.5} parent=58 // pred_check
              _
            $region65: #{qbot_forward.5} parent=58 // pred_check_branch
              %315 = sbr.rel target = $region67
            $region66: #{qbot_forward.5} parent=58 // pred_region
              %s317 = ssub.s32 256, 1
              loop: start=0, step=1, limit=1
              $region68: #{qbot_forward.5} parent=66 // loop_pre_header
                _
              $region69: #{qbot_forward.5} parent=66 // loop_header
                %s319 = sphi 0, %s323
                %p320 = scmp.ge.s32.totalorder %s319, 1
                %s324 = sphi %s309, %s309
                %s325 = sphi %s306, %s306
              $region70: #{qbot_forward.5} parent=66 // loop_header_branch
                %322 = sbr.rel (%p320) target = $region74
              $region71: #{qbot_forward.5} parent=66 // loop_body
                %v326 = vld [vmem:[%s324] sm:%s317]
                %327 = vst [vmem:[%s325] sm:%s317] %v326
                %v328 = vld [vmem:[%s324 + $0x8] sm:%s317]
                %329 = vst [vmem:[%s325 + $0x8] sm:%s317] %v328
                %v330 = vld [vmem:[%s324 + $0x20] sm:%s317]
                %331 = vst [vmem:[%s325 + $0x10] sm:%s317] %v330
                %v332 = vld [vmem:[%s324 + $0x28] sm:%s317]
                %333 = vst [vmem:[%s325 + $0x18] sm:%s317] %v332
                %v334 = vld [vmem:[%s324 + $0x40] sm:%s317]
                %335 = vst [vmem:[%s325 + $0x20] sm:%s317] %v334
                %v336 = vld [vmem:[%s324 + $0x48] sm:%s317]
                %337 = vst [vmem:[%s325 + $0x28] sm:%s317] %v336
                %v338 = vld [vmem:[%s324 + $0x60] sm:%s317]
                %339 = vst [vmem:[%s325 + $0x30] sm:%s317] %v338
                %v340 = vld [vmem:[%s324 + $0x68] sm:%s317]
                %341 = vst [vmem:[%s325 + $0x38] sm:%s317] %v340
                %v342 = vld [vmem:[%s324 + $0x80] sm:%s317]
                %343 = vst [vmem:[%s325 + $0x40] sm:%s317] %v342
                %v344 = vld [vmem:[%s324 + $0x88] sm:%s317]
                %345 = vst [vmem:[%s325 + $0x48] sm:%s317] %v344
              $region72: #{qbot_forward.5} parent=66 // loop_footer
                %s323 = sadd.s32 1, %s319
              $region73: #{qbot_forward.5} parent=66 // loop_footer_branch
                %318 = sbr.rel target = $region69
              $region74: #{qbot_forward.5} parent=66 // loop_exit
                _
            $region67: #{qbot_forward.5} parent=58 // pred_fallthru
              _
          $region59: #{qbot_forward.5} parent=54 // pred_fallthru
            _
          %378 = vnop
        $region55: #{qbot_forward.5} parent=27 // pred_fallthru
          _
        // Predicated region
        $region90: #{qbot_forward.5} parent=27 // pred_check
          %p379 = pneg %p85
        $region91: #{qbot_forward.5} parent=27 // pred_check_branch
          %381 = sbr.rel (%p379) target = $region93
        $region92: #{qbot_forward.5} parent=27 // pred_region
          %s382 = smul.u32 2, %s13
          %p383 = scmp.lt.s32.totalorder %s382, 3
          %s384 = scalar_select %p383, %s382, 3
          %s385 = smul.addr %s384, 8
          %s386 = scalar_lea.vmem %s2, %s385
          %s387 = smul.u32 2, %s13
        $region93: #{qbot_forward.5} parent=27 // pred_fallthru
          _
        // Predicated region
        $region94: #{qbot_forward.5} parent=27 // pred_check
          %p388 = pneg %p111
        $region95: #{qbot_forward.5} parent=27 // pred_check_branch
          %390 = sbr.rel (%p388) target = $region97
        $region96: #{qbot_forward.5} parent=27 // pred_region
          %s391 = smul.u32 2, %s13
          %p392 = scmp.lt.s32.totalorder %s391, 3
          %s393 = scalar_select %p392, %s391, 3
          %s394 = smul.addr %s393, 8
          %s395 = scalar_lea.vmem %s3, %s394
          %s396 = smul.u32 2, %s13
        $region97: #{qbot_forward.5} parent=27 // pred_fallthru
          _
      $region28: #{qbot_forward.5} parent=5 // pred_fallthru
        _
      %p397 = scmp.le.s32.totalorder 1, %s13
      %p398 = scmp.lt.s32.totalorder %s13, 3
      %p399 = pnand %p397, %p398
      %p400 = pneg %p399
      // Predicated region
      $region98: #{qbot_forward.5} parent=5 // pred_check
        _
      $region99: #{qbot_forward.5} parent=5 // pred_check_branch
        %402 = sbr.rel (%p399) target = $region101
      $region100: #{qbot_forward.5} parent=5 // pred_region
        %s403 = ssub.s32 %s13, 1
        %s404 = sand.u32 %s26, 1
        %s405 = sand.u32 %s26, 1
        %s406 = smul.addr %s405, 160
        %s407 = scalar_lea.vmem [#allocation2], %s406
        // Predicated region
        $region102: #{qbot_forward.5} parent=100 // pred_check
          %p408 = pneg %p39
        $region103: #{qbot_forward.5} parent=100 // pred_check_branch
          %410 = sbr.rel (%p408) target = $region105
        $region104: #{qbot_forward.5} parent=100 // pred_region
          _
        $region105: #{qbot_forward.5} parent=100 // pred_fallthru
          _
        %s411 = sand.u32 %s52, 1
        %s412 = sand.u32 %s52, 1
        %s413 = smul.addr %s412, 80
        %s414 = scalar_lea.vmem [#allocation3], %s413
        // Predicated region
        $region106: #{qbot_forward.5} parent=100 // pred_check
          %p415 = pneg %p65
        $region107: #{qbot_forward.5} parent=100 // pred_check_branch
          %417 = sbr.rel (%p415) target = $region109
        $region108: #{qbot_forward.5} parent=100 // pred_region
          _
        $region109: #{qbot_forward.5} parent=100 // pred_fallthru
          _
        %s418 = sand.u32 %s26, 1
        %s419 = sand.u32 %s26, 1
        %s420 = smul.addr %s419, 160
        %s421 = scalar_lea.vmem [#allocation2], %s420
        %p422 = pneg %p39
        %p423 = pneg %p36
        %s424 = sand.u32 %s52, 1
        %s425 = sand.u32 %s52, 1
        %s426 = smul.addr %s425, 80
        %s427 = scalar_lea.vmem [#allocation3], %s426
        %p428 = pneg %p65
        %p429 = pneg %p62
        %s430 = smul.u32 2, %s18
        %p431 = scmp.lt.s32.totalorder %s430, 3
        %s432 = scalar_select %p431, %s430, 3
        %s433 = smul.addr %s432, 8
        %s434 = scalar_lea.vmem %s2, %s433
        %p435 = pneg %p91
        %p436 = pneg %p88
        %s437 = smul.u32 2, %s18
        %p438 = scmp.lt.s32.totalorder %s437, 3
        %s439 = scalar_select %p438, %s437, 3
        %s440 = smul.addr %s439, 8
        %s441 = scalar_lea.vmem %s3, %s440
        %p442 = pneg %p117
        %p443 = pneg %p114
        %p444 = pneg %p138
        %p445 = pneg %p135
        %p446 = pneg %p159
        %p447 = pneg %p156
        %p448 = pneg %p180
        %p449 = pneg %p177
        %p450 = pneg %p206
        %p451 = pneg %p203
        %p452 = scmp.lt.s32.totalorder %s18, 1
        %s453 = scalar_select %p452, %s18, 1
        %s454 = scalar_lea.vmem %s7, %s453
        %s455 = smul.u32 2, %s18
        %s456 = smul.u32 2, %s18
        %s457 = smul.u32 2, %s18
        %p458 = scmp.lt.s32.totalorder %s457, 3
        %s459 = scalar_select %p458, %s457, 3
        %s460 = smul.addr %s459, 8
        %s461 = scalar_lea.vmem %s2, %s460
        %s462 = smul.u32 2, %s18
        %s463 = smul.u32 2, %s18
        %p464 = scmp.lt.s32.totalorder %s463, 3
        %s465 = scalar_select %p464, %s463, 3
        %s466 = smul.addr %s465, 8
        %s467 = scalar_lea.vmem %s3, %s466
        %s468 = smul.u32 2, %s18
        %p469 = scmp.lt.s32.totalorder %s18, 1
        %s470 = scalar_select %p469, %s18, 1
        %s471 = scalar_lea.vmem %s7, %s470
        %v472 = vlaneseq
        %v473 = vand.u32 %v472, 127
        %v474 = vadd.s32 %v473, 128
        %v475 = vld [vmem:[%s6] sm:$0x3]
        %v477 = vperm.slane %v475, 0
        %v478 = vperm.slane %v475, 1
        %v481 = vld [vmem:[%s461] sm:$0xff]
        %v482 = vld [vmem:[%s461 + $0x8] sm:$0xff]
        %v483 = vld [vmem:[%s467] sm:$0xff]
        %v484 = vld [vmem:[%s467 + $0x8] sm:$0xff]
        %v485 = vld [vmem:[%s407] sm:$0xff]
        %v486 = vld [vmem:[%s407 + $0x8] sm:$0xff]
        %v487 = vld [vmem:[%s407 + $0x10] sm:$0xff]
        %v488 = vld [vmem:[%s407 + $0x18] sm:$0xff]
        %v489 = vunpack.c.l.bf16 %v485
        %v490 = vunpack.c.h.bf16 %v485
        %v491 = vunpack.c.l.bf16 %v486
        %v492 = vunpack.c.h.bf16 %v486
        %v493 = vunpack.c.l.bf16 %v487
        %v494 = vunpack.c.h.bf16 %v487
        %v495 = vunpack.c.l.bf16 %v488
        %v496 = vunpack.c.h.bf16 %v488
        %v497 = vpack.c.bf16 %v482, %v481
        %v498 = vld [vmem:[%s4] sm:$0xff]
        %v499 = vld [vmem:[%s4 + $0x8] sm:$0xff]
        %v500 = vld [vmem:[%s4 + $0x10] sm:$0xff]
        %v501 = vld [vmem:[%s4 + $0x18] sm:$0xff]
        %v502 = vld [vmem:[%s4 + $0x20] sm:$0xff]
        %v503 = vld [vmem:[%s4 + $0x28] sm:$0xff]
        %v504 = vld [vmem:[%s4 + $0x30] sm:$0xff]
        %v505 = vld [vmem:[%s4 + $0x38] sm:$0xff]
        %v506 = vld [vmem:[%s4 + $0x40] sm:$0xff]
        %v507 = vld [vmem:[%s4 + $0x48] sm:$0xff]
        %v508 = vld [vmem:[%s4 + $0x50] sm:$0xff]
        %v509 = vld [vmem:[%s4 + $0x58] sm:$0xff]
        %v510 = vld [vmem:[%s4 + $0x60] sm:$0xff]
        %v511 = vld [vmem:[%s4 + $0x68] sm:$0xff]
        %v512 = vld [vmem:[%s4 + $0x70] sm:$0xff]
        %v513 = vld [vmem:[%s4 + $0x78] sm:$0xff]
        %v514 = vld [vmem:[%s4 + $0x80] sm:$0xff]
        %v515 = vld [vmem:[%s4 + $0x88] sm:$0xff]
        %v516 = vld [vmem:[%s4 + $0x90] sm:$0xff]
        %v517 = vld [vmem:[%s4 + $0x98] sm:$0xff]
        %v518 = vld [vmem:[%s4 + $0xa0] sm:$0xff]
        %v519 = vld [vmem:[%s4 + $0xa8] sm:$0xff]
        %v520 = vld [vmem:[%s4 + $0xb0] sm:$0xff]
        %v521 = vld [vmem:[%s4 + $0xb8] sm:$0xff]
        %v522 = vld [vmem:[%s4 + $0xc0] sm:$0xff]
        %v523 = vld [vmem:[%s4 + $0xc8] sm:$0xff]
        %v524 = vld [vmem:[%s4 + $0xd0] sm:$0xff]
        %v525 = vld [vmem:[%s4 + $0xd8] sm:$0xff]
        %v526 = vld [vmem:[%s4 + $0xe0] sm:$0xff]
        %v527 = vld [vmem:[%s4 + $0xe8] sm:$0xff]
        %v528 = vld [vmem:[%s4 + $0xf0] sm:$0xff]
        %v529 = vld [vmem:[%s4 + $0xf8] sm:$0xff]
        %v562 = vunpack.c.l.b16 %v498
        %v563 = vunpack.c.h.b16 %v498
        %v564 = vunpack.c.l.b16 %v499
        %v565 = vunpack.c.h.b16 %v499
        %v566 = vunpack.c.l.b16 %v500
        %v567 = vunpack.c.h.b16 %v500
        %v568 = vunpack.c.l.b16 %v501
        %v569 = vunpack.c.h.b16 %v501
        %v570 = vunpack.c.l.b16 %v502
        %v571 = vunpack.c.h.b16 %v502
        %v572 = vunpack.c.l.b16 %v503
        %v573 = vunpack.c.h.b16 %v503
        %v574 = vunpack.c.l.b16 %v504
        %v575 = vunpack.c.h.b16 %v504
        %v576 = vunpack.c.l.b16 %v505
        %v577 = vunpack.c.h.b16 %v505
        %v578 = vunpack.c.l.b16 %v506
        %v579 = vunpack.c.h.b16 %v506
        %v580 = vunpack.c.l.b16 %v507
        %v581 = vunpack.c.h.b16 %v507
        %v582 = vunpack.c.l.b16 %v508
        %v583 = vunpack.c.h.b16 %v508
        %v584 = vunpack.c.l.b16 %v509
        %v585 = vunpack.c.h.b16 %v509
        %v586 = vunpack.c.l.b16 %v510
        %v587 = vunpack.c.h.b16 %v510
        %v588 = vunpack.c.l.b16 %v511
        %v589 = vunpack.c.h.b16 %v511
        %v590 = vunpack.c.l.b16 %v512
        %v591 = vunpack.c.h.b16 %v512
        %v592 = vunpack.c.l.b16 %v513
        %v593 = vunpack.c.h.b16 %v513
        %v594 = vunpack.c.l.b16 %v514
        %v595 = vunpack.c.h.b16 %v514
        %v596 = vunpack.c.l.b16 %v515
        %v597 = vunpack.c.h.b16 %v515
        %v598 = vunpack.c.l.b16 %v516
        %v599 = vunpack.c.h.b16 %v516
        %v600 = vunpack.c.l.b16 %v517
        %v601 = vunpack.c.h.b16 %v517
        %v602 = vunpack.c.l.b16 %v518
        %v603 = vunpack.c.h.b16 %v518
        %v604 = vunpack.c.l.b16 %v519
        %v605 = vunpack.c.h.b16 %v519
        %v606 = vunpack.c.l.b16 %v520
        %v607 = vunpack.c.h.b16 %v520
        %v608 = vunpack.c.l.b16 %v521
        %v609 = vunpack.c.h.b16 %v521
        %v610 = vunpack.c.l.b16 %v522
        %v611 = vunpack.c.h.b16 %v522
        %v612 = vunpack.c.l.b16 %v523
        %v613 = vunpack.c.h.b16 %v523
        %v614 = vunpack.c.l.b16 %v524
        %v615 = vunpack.c.h.b16 %v524
        %v616 = vunpack.c.l.b16 %v525
        %v617 = vunpack.c.h.b16 %v525
        %v618 = vunpack.c.l.b16 %v526
        %v619 = vunpack.c.h.b16 %v526
        %v620 = vunpack.c.l.b16 %v527
        %v621 = vunpack.c.h.b16 %v527
        %v622 = vunpack.c.l.b16 %v528
        %v623 = vunpack.c.h.b16 %v528
        %v624 = vunpack.c.l.b16 %v529
        %v625 = vunpack.c.h.b16 %v529
        %v626 = vpack.c.b16 %v566, %v562
        %v627 = vpack.c.b16 %v567, %v563
        %v628 = vpack.c.b16 %v568, %v564
        %v629 = vpack.c.b16 %v569, %v565
        %v630 = vpack.c.b16 %v574, %v570
        %v631 = vpack.c.b16 %v575, %v571
        %v632 = vpack.c.b16 %v576, %v572
        %v633 = vpack.c.b16 %v577, %v573
        %v634 = vpack.c.b16 %v582, %v578
        %v635 = vpack.c.b16 %v583, %v579
        %v636 = vpack.c.b16 %v584, %v580
        %v637 = vpack.c.b16 %v585, %v581
        %v638 = vpack.c.b16 %v590, %v586
        %v639 = vpack.c.b16 %v591, %v587
        %v640 = vpack.c.b16 %v592, %v588
        %v641 = vpack.c.b16 %v593, %v589
        %v642 = vpack.c.b16 %v598, %v594
        %v643 = vpack.c.b16 %v599, %v595
        %v644 = vpack.c.b16 %v600, %v596
        %v645 = vpack.c.b16 %v601, %v597
        %v646 = vpack.c.b16 %v606, %v602
        %v647 = vpack.c.b16 %v607, %v603
        %v648 = vpack.c.b16 %v608, %v604
        %v649 = vpack.c.b16 %v609, %v605
        %v650 = vpack.c.b16 %v614, %v610
        %v651 = vpack.c.b16 %v615, %v611
        %v652 = vpack.c.b16 %v616, %v612
        %v653 = vpack.c.b16 %v617, %v613
        %v654 = vpack.c.b16 %v622, %v618
        %v655 = vpack.c.b16 %v623, %v619
        %v656 = vpack.c.b16 %v624, %v620
        %v657 = vpack.c.b16 %v625, %v621
        %690 = vmatpush.bf16.msra.mxu0 %v654
        %691 = vmatpush.bf16.msra.mxu0 %v650
        %692 = vmatpush.bf16.msra.mxu0 %v646
        %693 = vmatpush.bf16.msra.mxu0 %v642
        %694 = vmatpush.bf16.msra.mxu0 %v638
        %695 = vmatpush.bf16.msra.mxu0 %v634
        %696 = vmatpush.bf16.msra.mxu0 %v630
        %697 = vmatpush.bf16.msra.mxu0 %v626
        %698 = vmatmul.bf16.gmra.mxu0 %v497
        %v699 = vpop.f32.mrf.mxu0
        %v700 = vadd.f32 0.0, %v699
        %v701 = vpop.f32.mrf.mxu0
        %v702 = vadd.f32 0.0, %v701
        %703 = vdwg.mxu0
        %704 = vmatpush.bf16.msra.mxu0 %v655
        %705 = vmatpush.bf16.msra.mxu0 %v651
        %706 = vmatpush.bf16.msra.mxu0 %v647
        %707 = vmatpush.bf16.msra.mxu0 %v643
        %708 = vmatpush.bf16.msra.mxu0 %v639
        %709 = vmatpush.bf16.msra.mxu0 %v635
        %710 = vmatpush.bf16.msra.mxu0 %v631
        %711 = vmatpush.bf16.msra.mxu0 %v627
        %712 = vmatmul.bf16.gmra.mxu0 %v497
        %v713 = vpop.f32.mrf.mxu0
        %v714 = vadd.f32 0.0, %v713
        %v715 = vpop.f32.mrf.mxu0
        %v716 = vadd.f32 0.0, %v715
        %717 = vdwg.mxu0
        %718 = vmatpush.bf16.msra.mxu0 %v656
        %719 = vmatpush.bf16.msra.mxu0 %v652
        %720 = vmatpush.bf16.msra.mxu0 %v648
        %721 = vmatpush.bf16.msra.mxu0 %v644
        %722 = vmatpush.bf16.msra.mxu0 %v640
        %723 = vmatpush.bf16.msra.mxu0 %v636
        %724 = vmatpush.bf16.msra.mxu0 %v632
        %725 = vmatpush.bf16.msra.mxu0 %v628
        %726 = vmatmul.bf16.gmra.mxu0 %v497
        %v727 = vpop.f32.mrf.mxu0
        %v728 = vadd.f32 0.0, %v727
        %v729 = vpop.f32.mrf.mxu0
        %v730 = vadd.f32 0.0, %v729
        %731 = vdwg.mxu0
        %732 = vmatpush.bf16.msra.mxu0 %v657
        %733 = vmatpush.bf16.msra.mxu0 %v653
        %734 = vmatpush.bf16.msra.mxu0 %v649
        %735 = vmatpush.bf16.msra.mxu0 %v645
        %736 = vmatpush.bf16.msra.mxu0 %v641
        %737 = vmatpush.bf16.msra.mxu0 %v637
        %738 = vmatpush.bf16.msra.mxu0 %v633
        %739 = vmatpush.bf16.msra.mxu0 %v629
        %740 = vmatmul.bf16.gmra.mxu0 %v497
        %v741 = vpop.f32.mrf.mxu0
        %v742 = vadd.f32 0.0, %v741
        %v743 = vpop.f32.mrf.mxu0
        %v744 = vadd.f32 0.0, %v743
        %745 = vdwg.mxu0
        %v746 = vadd.f32 %v489, %v700
        %v747 = vadd.f32 %v490, %v714
        %v748 = vadd.f32 %v491, %v728
        %v749 = vadd.f32 %v492, %v742
        %v750 = vadd.f32 %v493, %v702
        %v751 = vadd.f32 %v494, %v716
        %v752 = vadd.f32 %v495, %v730
        %v753 = vadd.f32 %v496, %v744
        %v754 = vxor.u32 %v746, 2147483648
        %v755 = vxor.u32 %v750, 2147483648
        %v756 = vmul.f32 %v754, 1.442695
        %v757 = vpow.pop %v756
        %v758 = vmul.f32 %v755, 1.442695
        %v759 = vpow.pop %v758
        %v760 = vadd.f32 %v757, 1.0
        %v761 = vadd.f32 %v759, 1.0
        %v762 = vrcp.pop %v760
        %v763 = vmul.f32 %v760, %v762
        %v764 = vsub.f32 1.0, %v763
        %v765 = vmul.f32 %v762, %v764
        %v766 = vadd.f32 %v762, %v765
        %vm767 = vweird.f32 %v760
        %vm768 = vweird.f32 %v762
        %vm769 = vmor %vm767, %vm768
        %v770 = vsel %vm769, %v762, %v766
        %v771 = vand.u32 2147483647, %v760
        %vm772 = vcmp.eq.f32.partialorder %v771, 8.507059e+37
        %v773 = vand.u32 %v760, 2147483648
        %v774 = vor.u32 1.1754944e-38, %v773
        %v775 = vsel %vm772, %v774, %v770
        %v776 = vmul.f32 1.0, %v775
        %v777 = vrcp.pop %v761
        %v778 = vmul.f32 %v761, %v777
        %v779 = vsub.f32 1.0, %v778
        %v780 = vmul.f32 %v777, %v779
        %v781 = vadd.f32 %v777, %v780
        %vm782 = vweird.f32 %v761
        %vm783 = vweird.f32 %v777
        %vm784 = vmor %vm782, %vm783
        %v785 = vsel %vm784, %v777, %v781
        %v786 = vand.u32 2147483647, %v761
        %vm787 = vcmp.eq.f32.partialorder %v786, 8.507059e+37
        %v788 = vand.u32 %v761, 2147483648
        %v789 = vor.u32 1.1754944e-38, %v788
        %v790 = vsel %vm787, %v789, %v785
        %v791 = vmul.f32 1.0, %v790
        %v792 = vxor.u32 %v747, 2147483648
        %v793 = vxor.u32 %v751, 2147483648
        %v794 = vmul.f32 %v792, 1.442695
        %v795 = vpow.pop %v794
        %v796 = vmul.f32 %v793, 1.442695
        %v797 = vpow.pop %v796
        %v798 = vadd.f32 %v795, 1.0
        %v799 = vadd.f32 %v797, 1.0
        %v800 = vrcp.pop %v798
        %v801 = vmul.f32 %v798, %v800
        %v802 = vsub.f32 1.0, %v801
        %v803 = vmul.f32 %v800, %v802
        %v804 = vadd.f32 %v800, %v803
        %vm805 = vweird.f32 %v798
        %vm806 = vweird.f32 %v800
        %vm807 = vmor %vm805, %vm806
        %v808 = vsel %vm807, %v800, %v804
        %v809 = vand.u32 2147483647, %v798
        %vm810 = vcmp.eq.f32.partialorder %v809, 8.507059e+37
        %v811 = vand.u32 %v798, 2147483648
        %v812 = vor.u32 1.1754944e-38, %v811
        %v813 = vsel %vm810, %v812, %v808
        %v814 = vmul.f32 1.0, %v813
        %v815 = vrcp.pop %v799
        %v816 = vmul.f32 %v799, %v815
        %v817 = vsub.f32 1.0, %v816
        %v818 = vmul.f32 %v815, %v817
        %v819 = vadd.f32 %v815, %v818
        %vm820 = vweird.f32 %v799
        %vm821 = vweird.f32 %v815
        %vm822 = vmor %vm820, %vm821
        %v823 = vsel %vm822, %v815, %v819
        %v824 = vand.u32 2147483647, %v799
        %vm825 = vcmp.eq.f32.partialorder %v824, 8.507059e+37
        %v826 = vand.u32 %v799, 2147483648
        %v827 = vor.u32 1.1754944e-38, %v826
        %v828 = vsel %vm825, %v827, %v823
        %v829 = vmul.f32 1.0, %v828
        %v830 = vtanh.pop %v748
        %v831 = vtanh.pop %v752
        %v832 = vxor.u32 %v749, 2147483648
        %v833 = vxor.u32 %v753, 2147483648
        %v834 = vmul.f32 %v832, 1.442695
        %v835 = vpow.pop %v834
        %v836 = vmul.f32 %v833, 1.442695
        %v837 = vpow.pop %v836
        %v838 = vadd.f32 %v835, 1.0
        %v839 = vadd.f32 %v837, 1.0
        %v840 = vrcp.pop %v838
        %v841 = vmul.f32 %v838, %v840
        %v842 = vsub.f32 1.0, %v841
        %v843 = vmul.f32 %v840, %v842
        %v844 = vadd.f32 %v840, %v843
        %vm845 = vweird.f32 %v838
        %vm846 = vweird.f32 %v840
        %vm847 = vmor %vm845, %vm846
        %v848 = vsel %vm847, %v840, %v844
        %v849 = vand.u32 2147483647, %v838
        %vm850 = vcmp.eq.f32.partialorder %v849, 8.507059e+37
        %v851 = vand.u32 %v838, 2147483648
        %v852 = vor.u32 1.1754944e-38, %v851
        %v853 = vsel %vm850, %v852, %v848
        %v854 = vmul.f32 1.0, %v853
        %v855 = vrcp.pop %v839
        %v856 = vmul.f32 %v839, %v855
        %v857 = vsub.f32 1.0, %v856
        %v858 = vmul.f32 %v855, %v857
        %v859 = vadd.f32 %v855, %v858
        %vm860 = vweird.f32 %v839
        %vm861 = vweird.f32 %v855
        %vm862 = vmor %vm860, %vm861
        %v863 = vsel %vm862, %v855, %v859
        %v864 = vand.u32 2147483647, %v839
        %vm865 = vcmp.eq.f32.partialorder %v864, 8.507059e+37
        %v866 = vand.u32 %v839, 2147483648
        %v867 = vor.u32 1.1754944e-38, %v866
        %v868 = vsel %vm865, %v867, %v863
        %v869 = vmul.f32 1.0, %v868
        %v870 = vmul.f32 %v814, %v483
        %v871 = vmul.f32 %v829, %v484
        %v872 = vmul.f32 %v776, %v830
        %v873 = vmul.f32 %v791, %v831
        %v874 = vadd.f32 %v870, %v872
        %v875 = vadd.f32 %v871, %v873
        %v876 = vtanh.pop %v874
        %v877 = vtanh.pop %v875
        %v878 = vmul.f32 %v854, %v876
        %v879 = vmul.f32 %v869, %v877
        %v880 = vpack.c.bf16 %v879, %v878
        %v881 = vld [vmem:[%s5] sm:$0xff]
        %v882 = vld [vmem:[%s5 + $0x8] sm:$0xff]
        %v883 = vld [vmem:[%s5 + $0x10] sm:$0xff]
        %v884 = vld [vmem:[%s5 + $0x18] sm:$0xff]
        %v885 = vld [vmem:[%s5 + $0x20] sm:$0xff]
        %v886 = vld [vmem:[%s5 + $0x28] sm:$0xff]
        %v887 = vld [vmem:[%s5 + $0x30] sm:$0xff]
        %v888 = vld [vmem:[%s5 + $0x38] sm:$0xff]
        %v889 = vld [vmem:[%s5 + $0x40] sm:$0xff]
        %v890 = vld [vmem:[%s5 + $0x48] sm:$0xff]
        %v891 = vld [vmem:[%s5 + $0x50] sm:$0xff]
        %v892 = vld [vmem:[%s5 + $0x58] sm:$0xff]
        %v893 = vld [vmem:[%s5 + $0x60] sm:$0xff]
        %v894 = vld [vmem:[%s5 + $0x68] sm:$0xff]
        %v895 = vld [vmem:[%s5 + $0x70] sm:$0xff]
        %v896 = vld [vmem:[%s5 + $0x78] sm:$0xff]
        %v913 = vunpack.c.l.b16 %v881
        %v914 = vunpack.c.h.b16 %v881
        %v915 = vunpack.c.l.b16 %v882
        %v916 = vunpack.c.h.b16 %v882
        %v917 = vunpack.c.l.b16 %v883
        %v918 = vunpack.c.h.b16 %v883
        %v919 = vunpack.c.l.b16 %v884
        %v920 = vunpack.c.h.b16 %v884
        %v921 = vunpack.c.l.b16 %v885
        %v922 = vunpack.c.h.b16 %v885
        %v923 = vunpack.c.l.b16 %v886
        %v924 = vunpack.c.h.b16 %v886
        %v925 = vunpack.c.l.b16 %v887
        %v926 = vunpack.c.h.b16 %v887
        %v927 = vunpack.c.l.b16 %v888
        %v928 = vunpack.c.h.b16 %v888
        %v929 = vunpack.c.l.b16 %v889
        %v930 = vunpack.c.h.b16 %v889
        %v931 = vunpack.c.l.b16 %v890
        %v932 = vunpack.c.h.b16 %v890
        %v933 = vunpack.c.l.b16 %v891
        %v934 = vunpack.c.h.b16 %v891
        %v935 = vunpack.c.l.b16 %v892
        %v936 = vunpack.c.h.b16 %v892
        %v937 = vunpack.c.l.b16 %v893
        %v938 = vunpack.c.h.b16 %v893
        %v939 = vunpack.c.l.b16 %v894
        %v940 = vunpack.c.h.b16 %v894
        %v941 = vunpack.c.l.b16 %v895
        %v942 = vunpack.c.h.b16 %v895
        %v943 = vunpack.c.l.b16 %v896
        %v944 = vunpack.c.h.b16 %v896
        %v945 = vpack.c.b16 %v915, %v913
        %v946 = vpack.c.b16 %v916, %v914
        %v947 = vpack.c.b16 %v919, %v917
        %v948 = vpack.c.b16 %v920, %v918
        %v949 = vpack.c.b16 %v923, %v921
        %v950 = vpack.c.b16 %v924, %v922
        %v951 = vpack.c.b16 %v927, %v925
        %v952 = vpack.c.b16 %v928, %v926
        %v953 = vpack.c.b16 %v931, %v929
        %v954 = vpack.c.b16 %v932, %v930
        %v955 = vpack.c.b16 %v935, %v933
        %v956 = vpack.c.b16 %v936, %v934
        %v957 = vpack.c.b16 %v939, %v937
        %v958 = vpack.c.b16 %v940, %v938
        %v959 = vpack.c.b16 %v943, %v941
        %v960 = vpack.c.b16 %v944, %v942
        %977 = vmatpush.bf16.msra.mxu0 %v959
        %978 = vmatpush.bf16.msra.mxu0 %v957
        %979 = vmatpush.bf16.msra.mxu0 %v955
        %980 = vmatpush.bf16.msra.mxu0 %v953
        %981 = vmatpush.bf16.msra.mxu0 %v951
        %982 = vmatpush.bf16.msra.mxu0 %v949
        %983 = vmatpush.bf16.msra.mxu0 %v947
        %984 = vmatpush.bf16.msra.mxu0 %v945
        %985 = vmatmul.bf16.gmra.mxu0 %v880
        %v986 = vpop.f32.mrf.mxu0
        %v987 = vadd.f32 %v477, %v986
        %v988 = vpop.f32.mrf.mxu0
        %v989 = vadd.f32 %v477, %v988
        %990 = vdwg.mxu0
        %991 = vmatpush.bf16.msra.mxu0 %v960
        %992 = vmatpush.bf16.msra.mxu0 %v958
        %993 = vmatpush.bf16.msra.mxu0 %v956
        %994 = vmatpush.bf16.msra.mxu0 %v954
        %995 = vmatpush.bf16.msra.mxu0 %v952
        %996 = vmatpush.bf16.msra.mxu0 %v950
        %997 = vmatpush.bf16.msra.mxu0 %v948
        %998 = vmatpush.bf16.msra.mxu0 %v946
        %999 = vmatmul.bf16.gmra.mxu0 %v880
        %v1000 = vpop.f32.mrf.mxu0
        %v1001 = vadd.f32 %v478, %v1000
        %v1002 = vpop.f32.mrf.mxu0
        %v1003 = vadd.f32 %v478, %v1002
        %1004 = vdwg.mxu0
        %v1005 = vmax.f32 %v987, %v1001
        %1006 = vmax.xlane.f32.xlu0 %v1005
        %v1007 = vpop.xlane.xlu0 %1006
        %v1008 = vmax.f32 %v989, %v1003
        %1009 = vmax.xlane.f32.xlu0 %v1008
        %v1010 = vpop.xlane.xlu0 %1009
        %v1011 = vsub.f32 %v987, %v1007
        %v1012 = vsub.f32 %v1001, %v1007
        %v1013 = vsub.f32 %v989, %v1010
        %v1014 = vsub.f32 %v1003, %v1010
        %v1015 = vmul.f32 %v1011, 1.442695
        %v1016 = vpow.pop %v1015
        %v1017 = vmul.f32 %v1012, 1.442695
        %v1018 = vpow.pop %v1017
        %v1019 = vmul.f32 %v1013, 1.442695
        %v1020 = vpow.pop %v1019
        %v1021 = vmul.f32 %v1014, 1.442695
        %v1022 = vpow.pop %v1021
        %v1023 = vadd.f32 %v1016, %v1018
        %1024 = vadd.xlane.f32.xlu0 %v1023
        %v1025 = vpop.xlane.xlu0 %1024
        %v1026 = vadd.f32 %v1020, %v1022
        %1027 = vadd.xlane.f32.xlu0 %v1026
        %v1028 = vpop.xlane.xlu0 %1027
        %v1029 = vlog2.pop %v1025
        %v1030 = vmul.f32 %v1029, 0.6931472
        %v1031 = vlog2.pop %v1028
        %v1032 = vmul.f32 %v1031, 0.6931472
        %v1033 = vld [vmem:[%s414] sm:$0xff]
        %v1034 = vld [vmem:[%s414 + $0x8] sm:$0xff]
        %1035 = vset.pattern.permute.xlu0 0
        %1036 = vperm.xlu0 %1035, %v1033
        %v1037 = vpop.permute.xlu0 %1036
        %1038 = vset.pattern.permute.xlu0 0
        %1039 = vperm.xlu0 %1038, %v1034
        %v1040 = vpop.permute.xlu0 %1039
        %vm1041 = vcmp.eq.s32.totalorder %v473, %v1037
        %vm1042 = vcmp.eq.s32.totalorder %v474, %v1037
        %vm1043 = vcmp.eq.s32.totalorder %v473, %v1040
        %vm1044 = vcmp.eq.s32.totalorder %v474, %v1040
        %v1045 = vsel %vm1041, %v987, 0.0
        %v1046 = vsel %vm1042, %v1001, 0.0
        %v1047 = vsel %vm1043, %v989, 0.0
        %v1048 = vsel %vm1044, %v1003, 0.0
        %v1049 = vadd.f32 %v1045, %v1046
        %1050 = vadd.xlane.f32.xlu0 %v1049
        %v1051 = vpop.xlane.xlu0 %1050
        %v1052 = vadd.f32 %v1047, %v1048
        %1053 = vadd.xlane.f32.xlu0 %v1052
        %v1054 = vpop.xlane.xlu0 %1053
        %vm1055 = vcmp.ne.s32.totalorder %v1033, 0
        %vm1056 = vcmp.ne.s32.totalorder %v1034, 0
        %v1057 = vsel %vm1055, 1, 0
        %v1058 = vsel %vm1056, 1, 0
        %v1059 = vcvt.s32.f32 %v1057
        %v1060 = vcvt.s32.f32 %v1058
        %v1061 = vadd.f32 %v1007, %v1030
        %v1062 = vadd.f32 %v1010, %v1032
        %v1063 = vsub.f32 %v1061, %v1051
        %v1064 = vsub.f32 %v1062, %v1054
        %v1065 = vmul.f32 %v1059, %v1063
        %v1066 = vmul.f32 %v1060, %v1064
        %v1067 = vadd.f32 %v1065, 0.0
        %v1068 = vadd.f32 %v1066, 0.0
        %s1069 = scalar_lea.vmem %s407, 32 [#allocation2]
        %v1070 = vld [vmem:[%s1069] sm:$0xff]
        %v1071 = vld [vmem:[%s1069 + $0x8] sm:$0xff]
        %v1072 = vld [vmem:[%s1069 + $0x10] sm:$0xff]
        %v1073 = vld [vmem:[%s1069 + $0x18] sm:$0xff]
        %v1074 = vunpack.c.l.bf16 %v1070
        %v1075 = vunpack.c.h.bf16 %v1070
        %v1076 = vunpack.c.l.bf16 %v1071
        %v1077 = vunpack.c.h.bf16 %v1071
        %v1078 = vunpack.c.l.bf16 %v1072
        %v1079 = vunpack.c.h.bf16 %v1072
        %v1080 = vunpack.c.l.bf16 %v1073
        %v1081 = vunpack.c.h.bf16 %v1073
        %1082 = vmatpush.bf16.msra.mxu0 %v654
        %1083 = vmatpush.bf16.msra.mxu0 %v650
        %1084 = vmatpush.bf16.msra.mxu0 %v646
        %1085 = vmatpush.bf16.msra.mxu0 %v642
        %1086 = vmatpush.bf16.msra.mxu0 %v638
        %1087 = vmatpush.bf16.msra.mxu0 %v634
        %1088 = vmatpush.bf16.msra.mxu0 %v630
        %1089 = vmatpush.bf16.msra.mxu0 %v626
        %1090 = vmatmul.bf16.gmra.mxu0 %v880
        %v1091 = vpop.f32.mrf.mxu0
        %v1092 = vadd.f32 0.0, %v1091
        %v1093 = vpop.f32.mrf.mxu0
        %v1094 = vadd.f32 0.0, %v1093
        %1095 = vdwg.mxu0
        %1096 = vmatpush.bf16.msra.mxu0 %v655
        %1097 = vmatpush.bf16.msra.mxu0 %v651
        %1098 = vmatpush.bf16.msra.mxu0 %v647
        %1099 = vmatpush.bf16.msra.mxu0 %v643
        %1100 = vmatpush.bf16.msra.mxu0 %v639
        %1101 = vmatpush.bf16.msra.mxu0 %v635
        %1102 = vmatpush.bf16.msra.mxu0 %v631
        %1103 = vmatpush.bf16.msra.mxu0 %v627
        %1104 = vmatmul.bf16.gmra.mxu0 %v880
        %v1105 = vpop.f32.mrf.mxu0
        %v1106 = vadd.f32 0.0, %v1105
        %v1107 = vpop.f32.mrf.mxu0
        %v1108 = vadd.f32 0.0, %v1107
        %1109 = vdwg.mxu0
        %1110 = vmatpush.bf16.msra.mxu0 %v656
        %1111 = vmatpush.bf16.msra.mxu0 %v652
        %1112 = vmatpush.bf16.msra.mxu0 %v648
        %1113 = vmatpush.bf16.msra.mxu0 %v644
        %1114 = vmatpush.bf16.msra.mxu0 %v640
        %1115 = vmatpush.bf16.msra.mxu0 %v636
        %1116 = vmatpush.bf16.msra.mxu0 %v632
        %1117 = vmatpush.bf16.msra.mxu0 %v628
        %1118 = vmatmul.bf16.gmra.mxu0 %v880
        %v1119 = vpop.f32.mrf.mxu0
        %v1120 = vadd.f32 0.0, %v1119
        %v1121 = vpop.f32.mrf.mxu0
        %v1122 = vadd.f32 0.0, %v1121
        %1123 = vdwg.mxu0
        %1124 = vmatpush.bf16.msra.mxu0 %v657
        %1125 = vmatpush.bf16.msra.mxu0 %v653
        %1126 = vmatpush.bf16.msra.mxu0 %v649
        %1127 = vmatpush.bf16.msra.mxu0 %v645
        %1128 = vmatpush.bf16.msra.mxu0 %v641
        %1129 = vmatpush.bf16.msra.mxu0 %v637
        %1130 = vmatpush.bf16.msra.mxu0 %v633
        %1131 = vmatpush.bf16.msra.mxu0 %v629
        %1132 = vmatmul.bf16.gmra.mxu0 %v880
        %v1133 = vpop.f32.mrf.mxu0
        %v1134 = vadd.f32 0.0, %v1133
        %v1135 = vpop.f32.mrf.mxu0
        %v1136 = vadd.f32 0.0, %v1135
        %1137 = vdwg.mxu0
        %v1138 = vadd.f32 %v1074, %v1092
        %v1139 = vadd.f32 %v1075, %v1106
        %v1140 = vadd.f32 %v1076, %v1120
        %v1141 = vadd.f32 %v1077, %v1134
        %v1142 = vadd.f32 %v1078, %v1094
        %v1143 = vadd.f32 %v1079, %v1108
        %v1144 = vadd.f32 %v1080, %v1122
        %v1145 = vadd.f32 %v1081, %v1136
        %v1146 = vxor.u32 %v1138, 2147483648
        %v1147 = vxor.u32 %v1142, 2147483648
        %v1148 = vmul.f32 %v1146, 1.442695
        %v1149 = vpow.pop %v1148
        %v1150 = vmul.f32 %v1147, 1.442695
        %v1151 = vpow.pop %v1150
        %v1152 = vadd.f32 %v1149, 1.0
        %v1153 = vadd.f32 %v1151, 1.0
        %v1154 = vrcp.pop %v1152
        %v1155 = vmul.f32 %v1152, %v1154
        %v1156 = vsub.f32 1.0, %v1155
        %v1157 = vmul.f32 %v1154, %v1156
        %v1158 = vadd.f32 %v1154, %v1157
        %vm1159 = vweird.f32 %v1152
        %vm1160 = vweird.f32 %v1154
        %vm1161 = vmor %vm1159, %vm1160
        %v1162 = vsel %vm1161, %v1154, %v1158
        %v1163 = vand.u32 2147483647, %v1152
        %vm1164 = vcmp.eq.f32.partialorder %v1163, 8.507059e+37
        %v1165 = vand.u32 %v1152, 2147483648
        %v1166 = vor.u32 1.1754944e-38, %v1165
        %v1167 = vsel %vm1164, %v1166, %v1162
        %v1168 = vmul.f32 1.0, %v1167
        %v1169 = vrcp.pop %v1153
        %v1170 = vmul.f32 %v1153, %v1169
        %v1171 = vsub.f32 1.0, %v1170
        %v1172 = vmul.f32 %v1169, %v1171
        %v1173 = vadd.f32 %v1169, %v1172
        %vm1174 = vweird.f32 %v1153
        %vm1175 = vweird.f32 %v1169
        %vm1176 = vmor %vm1174, %vm1175
        %v1177 = vsel %vm1176, %v1169, %v1173
        %v1178 = vand.u32 2147483647, %v1153
        %vm1179 = vcmp.eq.f32.partialorder %v1178, 8.507059e+37
        %v1180 = vand.u32 %v1153, 2147483648
        %v1181 = vor.u32 1.1754944e-38, %v1180
        %v1182 = vsel %vm1179, %v1181, %v1177
        %v1183 = vmul.f32 1.0, %v1182
        %v1184 = vxor.u32 %v1139, 2147483648
        %v1185 = vxor.u32 %v1143, 2147483648
        %v1186 = vmul.f32 %v1184, 1.442695
        %v1187 = vpow.pop %v1186
        %v1188 = vmul.f32 %v1185, 1.442695
        %v1189 = vpow.pop %v1188
        %v1190 = vadd.f32 %v1187, 1.0
        %v1191 = vadd.f32 %v1189, 1.0
        %v1192 = vrcp.pop %v1190
        %v1193 = vmul.f32 %v1190, %v1192
        %v1194 = vsub.f32 1.0, %v1193
        %v1195 = vmul.f32 %v1192, %v1194
        %v1196 = vadd.f32 %v1192, %v1195
        %vm1197 = vweird.f32 %v1190
        %vm1198 = vweird.f32 %v1192
        %vm1199 = vmor %vm1197, %vm1198
        %v1200 = vsel %vm1199, %v1192, %v1196
        %v1201 = vand.u32 2147483647, %v1190
        %vm1202 = vcmp.eq.f32.partialorder %v1201, 8.507059e+37
        %v1203 = vand.u32 %v1190, 2147483648
        %v1204 = vor.u32 1.1754944e-38, %v1203
        %v1205 = vsel %vm1202, %v1204, %v1200
        %v1206 = vmul.f32 1.0, %v1205
        %v1207 = vrcp.pop %v1191
        %v1208 = vmul.f32 %v1191, %v1207
        %v1209 = vsub.f32 1.0, %v1208
        %v1210 = vmul.f32 %v1207, %v1209
        %v1211 = vadd.f32 %v1207, %v1210
        %vm1212 = vweird.f32 %v1191
        %vm1213 = vweird.f32 %v1207
        %vm1214 = vmor %vm1212, %vm1213
        %v1215 = vsel %vm1214, %v1207, %v1211
        %v1216 = vand.u32 2147483647, %v1191
        %vm1217 = vcmp.eq.f32.partialorder %v1216, 8.507059e+37
        %v1218 = vand.u32 %v1191, 2147483648
        %v1219 = vor.u32 1.1754944e-38, %v1218
        %v1220 = vsel %vm1217, %v1219, %v1215
        %v1221 = vmul.f32 1.0, %v1220
        %v1222 = vtanh.pop %v1140
        %v1223 = vtanh.pop %v1144
        %v1224 = vxor.u32 %v1141, 2147483648
        %v1225 = vxor.u32 %v1145, 2147483648
        %v1226 = vmul.f32 %v1224, 1.442695
        %v1227 = vpow.pop %v1226
        %v1228 = vmul.f32 %v1225, 1.442695
        %v1229 = vpow.pop %v1228
        %v1230 = vadd.f32 %v1227, 1.0
        %v1231 = vadd.f32 %v1229, 1.0
        %v1232 = vrcp.pop %v1230
        %v1233 = vmul.f32 %v1230, %v1232
        %v1234 = vsub.f32 1.0, %v1233
        %v1235 = vmul.f32 %v1232, %v1234
        %v1236 = vadd.f32 %v1232, %v1235
        %vm1237 = vweird.f32 %v1230
        %vm1238 = vweird.f32 %v1232
        %vm1239 = vmor %vm1237, %vm1238
        %v1240 = vsel %vm1239, %v1232, %v1236
        %v1241 = vand.u32 2147483647, %v1230
        %vm1242 = vcmp.eq.f32.partialorder %v1241, 8.507059e+37
        %v1243 = vand.u32 %v1230, 2147483648
        %v1244 = vor.u32 1.1754944e-38, %v1243
        %v1245 = vsel %vm1242, %v1244, %v1240
        %v1246 = vmul.f32 1.0, %v1245
        %v1247 = vrcp.pop %v1231
        %v1248 = vmul.f32 %v1231, %v1247
        %v1249 = vsub.f32 1.0, %v1248
        %v1250 = vmul.f32 %v1247, %v1249
        %v1251 = vadd.f32 %v1247, %v1250
        %vm1252 = vweird.f32 %v1231
        %vm1253 = vweird.f32 %v1247
        %vm1254 = vmor %vm1252, %vm1253
        %v1255 = vsel %vm1254, %v1247, %v1251
        %v1256 = vand.u32 2147483647, %v1231
        %vm1257 = vcmp.eq.f32.partialorder %v1256, 8.507059e+37
        %v1258 = vand.u32 %v1231, 2147483648
        %v1259 = vor.u32 1.1754944e-38, %v1258
        %v1260 = vsel %vm1257, %v1259, %v1255
        %v1261 = vmul.f32 1.0, %v1260
        %v1262 = vmul.f32 %v1206, %v874
        %v1263 = vmul.f32 %v1221, %v875
        %v1264 = vmul.f32 %v1168, %v1222
        %v1265 = vmul.f32 %v1183, %v1223
        %v1266 = vadd.f32 %v1262, %v1264
        %v1267 = vadd.f32 %v1263, %v1265
        %v1268 = vtanh.pop %v1266
        %v1269 = vtanh.pop %v1267
        %v1270 = vmul.f32 %v1246, %v1268
        %v1271 = vmul.f32 %v1261, %v1269
        %v1272 = vpack.c.bf16 %v1271, %v1270
        %1273 = vmatpush.bf16.msra.mxu0 %v959
        %1274 = vmatpush.bf16.msra.mxu0 %v957
        %1275 = vmatpush.bf16.msra.mxu0 %v955
        %1276 = vmatpush.bf16.msra.mxu0 %v953
        %1277 = vmatpush.bf16.msra.mxu0 %v951
        %1278 = vmatpush.bf16.msra.mxu0 %v949
        %1279 = vmatpush.bf16.msra.mxu0 %v947
        %1280 = vmatpush.bf16.msra.mxu0 %v945
        %1281 = vmatmul.bf16.gmra.mxu0 %v1272
        %v1282 = vpop.f32.mrf.mxu0
        %v1283 = vadd.f32 %v477, %v1282
        %v1284 = vpop.f32.mrf.mxu0
        %v1285 = vadd.f32 %v477, %v1284
        %1286 = vdwg.mxu0
        %1287 = vmatpush.bf16.msra.mxu0 %v960
        %1288 = vmatpush.bf16.msra.mxu0 %v958
        %1289 = vmatpush.bf16.msra.mxu0 %v956
        %1290 = vmatpush.bf16.msra.mxu0 %v954
        %1291 = vmatpush.bf16.msra.mxu0 %v952
        %1292 = vmatpush.bf16.msra.mxu0 %v950
        %1293 = vmatpush.bf16.msra.mxu0 %v948
        %1294 = vmatpush.bf16.msra.mxu0 %v946
        %1295 = vmatmul.bf16.gmra.mxu0 %v1272
        %v1296 = vpop.f32.mrf.mxu0
        %v1297 = vadd.f32 %v478, %v1296
        %v1298 = vpop.f32.mrf.mxu0
        %v1299 = vadd.f32 %v478, %v1298
        %1300 = vdwg.mxu0
        %v1301 = vmax.f32 %v1283, %v1297
        %1302 = vmax.xlane.f32.xlu0 %v1301
        %v1303 = vpop.xlane.xlu0 %1302
        %v1304 = vmax.f32 %v1285, %v1299
        %1305 = vmax.xlane.f32.xlu0 %v1304
        %v1306 = vpop.xlane.xlu0 %1305
        %v1307 = vsub.f32 %v1283, %v1303
        %v1308 = vsub.f32 %v1297, %v1303
        %v1309 = vsub.f32 %v1285, %v1306
        %v1310 = vsub.f32 %v1299, %v1306
        %v1311 = vmul.f32 %v1307, 1.442695
        %v1312 = vpow.pop %v1311
        %v1313 = vmul.f32 %v1308, 1.442695
        %v1314 = vpow.pop %v1313
        %v1315 = vmul.f32 %v1309, 1.442695
        %v1316 = vpow.pop %v1315
        %v1317 = vmul.f32 %v1310, 1.442695
        %v1318 = vpow.pop %v1317
        %v1319 = vadd.f32 %v1312, %v1314
        %1320 = vadd.xlane.f32.xlu0 %v1319
        %v1321 = vpop.xlane.xlu0 %1320
        %v1322 = vadd.f32 %v1316, %v1318
        %1323 = vadd.xlane.f32.xlu0 %v1322
        %v1324 = vpop.xlane.xlu0 %1323
        %v1325 = vlog2.pop %v1321
        %v1326 = vmul.f32 %v1325, 0.6931472
        %v1327 = vlog2.pop %v1324
        %v1328 = vmul.f32 %v1327, 0.6931472
        %s1329 = scalar_lea.vmem %s414, 16 [#allocation3]
        %v1330 = vld [vmem:[%s1329] sm:$0xff]
        %v1331 = vld [vmem:[%s1329 + $0x8] sm:$0xff]
        %1332 = vset.pattern.permute.xlu0 0
        %1333 = vperm.xlu0 %1332, %v1330
        %v1334 = vpop.permute.xlu0 %1333
        %1335 = vset.pattern.permute.xlu0 0
        %1336 = vperm.xlu0 %1335, %v1331
        %v1337 = vpop.permute.xlu0 %1336
        %vm1338 = vcmp.eq.s32.totalorder %v473, %v1334
        %vm1339 = vcmp.eq.s32.totalorder %v474, %v1334
        %vm1340 = vcmp.eq.s32.totalorder %v473, %v1337
        %vm1341 = vcmp.eq.s32.totalorder %v474, %v1337
        %v1342 = vsel %vm1338, %v1283, 0.0
        %v1343 = vsel %vm1339, %v1297, 0.0
        %v1344 = vsel %vm1340, %v1285, 0.0
        %v1345 = vsel %vm1341, %v1299, 0.0
        %v1346 = vadd.f32 %v1342, %v1343
        %1347 = vadd.xlane.f32.xlu0 %v1346
        %v1348 = vpop.xlane.xlu0 %1347
        %v1349 = vadd.f32 %v1344, %v1345
        %1350 = vadd.xlane.f32.xlu0 %v1349
        %v1351 = vpop.xlane.xlu0 %1350
        %vm1352 = vcmp.ne.s32.totalorder %v1330, 0
        %vm1353 = vcmp.ne.s32.totalorder %v1331, 0
        %v1354 = vsel %vm1352, 1, 0
        %v1355 = vsel %vm1353, 1, 0
        %v1356 = vcvt.s32.f32 %v1354
        %v1357 = vcvt.s32.f32 %v1355
        %v1358 = vadd.f32 %v1303, %v1326
        %v1359 = vadd.f32 %v1306, %v1328
        %v1360 = vsub.f32 %v1358, %v1348
        %v1361 = vsub.f32 %v1359, %v1351
        %v1362 = vmul.f32 %v1356, %v1360
        %v1363 = vmul.f32 %v1357, %v1361
        %v1364 = vadd.f32 %v1067, %v1362
        %v1365 = vadd.f32 %v1068, %v1363
        %s1366 = scalar_lea.vmem %s407, 64 [#allocation2]
        %v1367 = vld [vmem:[%s1366] sm:$0xff]
        %v1368 = vld [vmem:[%s1366 + $0x8] sm:$0xff]
        %v1369 = vld [vmem:[%s1366 + $0x10] sm:$0xff]
        %v1370 = vld [vmem:[%s1366 + $0x18] sm:$0xff]
        %v1371 = vunpack.c.l.bf16 %v1367
        %v1372 = vunpack.c.h.bf16 %v1367
        %v1373 = vunpack.c.l.bf16 %v1368
        %v1374 = vunpack.c.h.bf16 %v1368
        %v1375 = vunpack.c.l.bf16 %v1369
        %v1376 = vunpack.c.h.bf16 %v1369
        %v1377 = vunpack.c.l.bf16 %v1370
        %v1378 = vunpack.c.h.bf16 %v1370
        %1379 = vmatpush.bf16.msra.mxu0 %v654
        %1380 = vmatpush.bf16.msra.mxu0 %v650
        %1381 = vmatpush.bf16.msra.mxu0 %v646
        %1382 = vmatpush.bf16.msra.mxu0 %v642
        %1383 = vmatpush.bf16.msra.mxu0 %v638
        %1384 = vmatpush.bf16.msra.mxu0 %v634
        %1385 = vmatpush.bf16.msra.mxu0 %v630
        %1386 = vmatpush.bf16.msra.mxu0 %v626
        %1387 = vmatmul.bf16.gmra.mxu0 %v1272
        %v1388 = vpop.f32.mrf.mxu0
        %v1389 = vadd.f32 0.0, %v1388
        %v1390 = vpop.f32.mrf.mxu0
        %v1391 = vadd.f32 0.0, %v1390
        %1392 = vdwg.mxu0
        %1393 = vmatpush.bf16.msra.mxu0 %v655
        %1394 = vmatpush.bf16.msra.mxu0 %v651
        %1395 = vmatpush.bf16.msra.mxu0 %v647
        %1396 = vmatpush.bf16.msra.mxu0 %v643
        %1397 = vmatpush.bf16.msra.mxu0 %v639
        %1398 = vmatpush.bf16.msra.mxu0 %v635
        %1399 = vmatpush.bf16.msra.mxu0 %v631
        %1400 = vmatpush.bf16.msra.mxu0 %v627
        %1401 = vmatmul.bf16.gmra.mxu0 %v1272
        %v1402 = vpop.f32.mrf.mxu0
        %v1403 = vadd.f32 0.0, %v1402
        %v1404 = vpop.f32.mrf.mxu0
        %v1405 = vadd.f32 0.0, %v1404
        %1406 = vdwg.mxu0
        %1407 = vmatpush.bf16.msra.mxu0 %v656
        %1408 = vmatpush.bf16.msra.mxu0 %v652
        %1409 = vmatpush.bf16.msra.mxu0 %v648
        %1410 = vmatpush.bf16.msra.mxu0 %v644
        %1411 = vmatpush.bf16.msra.mxu0 %v640
        %1412 = vmatpush.bf16.msra.mxu0 %v636
        %1413 = vmatpush.bf16.msra.mxu0 %v632
        %1414 = vmatpush.bf16.msra.mxu0 %v628
        %1415 = vmatmul.bf16.gmra.mxu0 %v1272
        %v1416 = vpop.f32.mrf.mxu0
        %v1417 = vadd.f32 0.0, %v1416
        %v1418 = vpop.f32.mrf.mxu0
        %v1419 = vadd.f32 0.0, %v1418
        %1420 = vdwg.mxu0
        %1421 = vmatpush.bf16.msra.mxu0 %v657
        %1422 = vmatpush.bf16.msra.mxu0 %v653
        %1423 = vmatpush.bf16.msra.mxu0 %v649
        %1424 = vmatpush.bf16.msra.mxu0 %v645
        %1425 = vmatpush.bf16.msra.mxu0 %v641
        %1426 = vmatpush.bf16.msra.mxu0 %v637
        %1427 = vmatpush.bf16.msra.mxu0 %v633
        %1428 = vmatpush.bf16.msra.mxu0 %v629
        %1429 = vmatmul.bf16.gmra.mxu0 %v1272
        %v1430 = vpop.f32.mrf.mxu0
        %v1431 = vadd.f32 0.0, %v1430
        %v1432 = vpop.f32.mrf.mxu0
        %v1433 = vadd.f32 0.0, %v1432
        %1434 = vdwg.mxu0
        %v1435 = vadd.f32 %v1371, %v1389
        %v1436 = vadd.f32 %v1372, %v1403
        %v1437 = vadd.f32 %v1373, %v1417
        %v1438 = vadd.f32 %v1374, %v1431
        %v1439 = vadd.f32 %v1375, %v1391
        %v1440 = vadd.f32 %v1376, %v1405
        %v1441 = vadd.f32 %v1377, %v1419
        %v1442 = vadd.f32 %v1378, %v1433
        %v1443 = vxor.u32 %v1435, 2147483648
        %v1444 = vxor.u32 %v1439, 2147483648
        %v1445 = vmul.f32 %v1443, 1.442695
        %v1446 = vpow.pop %v1445
        %v1447 = vmul.f32 %v1444, 1.442695
        %v1448 = vpow.pop %v1447
        %v1449 = vadd.f32 %v1446, 1.0
        %v1450 = vadd.f32 %v1448, 1.0
        %v1451 = vrcp.pop %v1449
        %v1452 = vmul.f32 %v1449, %v1451
        %v1453 = vsub.f32 1.0, %v1452
        %v1454 = vmul.f32 %v1451, %v1453
        %v1455 = vadd.f32 %v1451, %v1454
        %vm1456 = vweird.f32 %v1449
        %vm1457 = vweird.f32 %v1451
        %vm1458 = vmor %vm1456, %vm1457
        %v1459 = vsel %vm1458, %v1451, %v1455
        %v1460 = vand.u32 2147483647, %v1449
        %vm1461 = vcmp.eq.f32.partialorder %v1460, 8.507059e+37
        %v1462 = vand.u32 %v1449, 2147483648
        %v1463 = vor.u32 1.1754944e-38, %v1462
        %v1464 = vsel %vm1461, %v1463, %v1459
        %v1465 = vmul.f32 1.0, %v1464
        %v1466 = vrcp.pop %v1450
        %v1467 = vmul.f32 %v1450, %v1466
        %v1468 = vsub.f32 1.0, %v1467
        %v1469 = vmul.f32 %v1466, %v1468
        %v1470 = vadd.f32 %v1466, %v1469
        %vm1471 = vweird.f32 %v1450
        %vm1472 = vweird.f32 %v1466
        %vm1473 = vmor %vm1471, %vm1472
        %v1474 = vsel %vm1473, %v1466, %v1470
        %v1475 = vand.u32 2147483647, %v1450
        %vm1476 = vcmp.eq.f32.partialorder %v1475, 8.507059e+37
        %v1477 = vand.u32 %v1450, 2147483648
        %v1478 = vor.u32 1.1754944e-38, %v1477
        %v1479 = vsel %vm1476, %v1478, %v1474
        %v1480 = vmul.f32 1.0, %v1479
        %v1481 = vxor.u32 %v1436, 2147483648
        %v1482 = vxor.u32 %v1440, 2147483648
        %v1483 = vmul.f32 %v1481, 1.442695
        %v1484 = vpow.pop %v1483
        %v1485 = vmul.f32 %v1482, 1.442695
        %v1486 = vpow.pop %v1485
        %v1487 = vadd.f32 %v1484, 1.0
        %v1488 = vadd.f32 %v1486, 1.0
        %v1489 = vrcp.pop %v1487
        %v1490 = vmul.f32 %v1487, %v1489
        %v1491 = vsub.f32 1.0, %v1490
        %v1492 = vmul.f32 %v1489, %v1491
        %v1493 = vadd.f32 %v1489, %v1492
        %vm1494 = vweird.f32 %v1487
        %vm1495 = vweird.f32 %v1489
        %vm1496 = vmor %vm1494, %vm1495
        %v1497 = vsel %vm1496, %v1489, %v1493
        %v1498 = vand.u32 2147483647, %v1487
        %vm1499 = vcmp.eq.f32.partialorder %v1498, 8.507059e+37
        %v1500 = vand.u32 %v1487, 2147483648
        %v1501 = vor.u32 1.1754944e-38, %v1500
        %v1502 = vsel %vm1499, %v1501, %v1497
        %v1503 = vmul.f32 1.0, %v1502
        %v1504 = vrcp.pop %v1488
        %v1505 = vmul.f32 %v1488, %v1504
        %v1506 = vsub.f32 1.0, %v1505
        %v1507 = vmul.f32 %v1504, %v1506
        %v1508 = vadd.f32 %v1504, %v1507
        %vm1509 = vweird.f32 %v1488
        %vm1510 = vweird.f32 %v1504
        %vm1511 = vmor %vm1509, %vm1510
        %v1512 = vsel %vm1511, %v1504, %v1508
        %v1513 = vand.u32 2147483647, %v1488
        %vm1514 = vcmp.eq.f32.partialorder %v1513, 8.507059e+37
        %v1515 = vand.u32 %v1488, 2147483648
        %v1516 = vor.u32 1.1754944e-38, %v1515
        %v1517 = vsel %vm1514, %v1516, %v1512
        %v1518 = vmul.f32 1.0, %v1517
        %v1519 = vtanh.pop %v1437
        %v1520 = vtanh.pop %v1441
        %v1521 = vxor.u32 %v1438, 2147483648
        %v1522 = vxor.u32 %v1442, 2147483648
        %v1523 = vmul.f32 %v1521, 1.442695
        %v1524 = vpow.pop %v1523
        %v1525 = vmul.f32 %v1522, 1.442695
        %v1526 = vpow.pop %v1525
        %v1527 = vadd.f32 %v1524, 1.0
        %v1528 = vadd.f32 %v1526, 1.0
        %v1529 = vrcp.pop %v1527
        %v1530 = vmul.f32 %v1527, %v1529
        %v1531 = vsub.f32 1.0, %v1530
        %v1532 = vmul.f32 %v1529, %v1531
        %v1533 = vadd.f32 %v1529, %v1532
        %vm1534 = vweird.f32 %v1527
        %vm1535 = vweird.f32 %v1529
        %vm1536 = vmor %vm1534, %vm1535
        %v1537 = vsel %vm1536, %v1529, %v1533
        %v1538 = vand.u32 2147483647, %v1527
        %vm1539 = vcmp.eq.f32.partialorder %v1538, 8.507059e+37
        %v1540 = vand.u32 %v1527, 2147483648
        %v1541 = vor.u32 1.1754944e-38, %v1540
        %v1542 = vsel %vm1539, %v1541, %v1537
        %v1543 = vmul.f32 1.0, %v1542
        %v1544 = vrcp.pop %v1528
        %v1545 = vmul.f32 %v1528, %v1544
        %v1546 = vsub.f32 1.0, %v1545
        %v1547 = vmul.f32 %v1544, %v1546
        %v1548 = vadd.f32 %v1544, %v1547
        %vm1549 = vweird.f32 %v1528
        %vm1550 = vweird.f32 %v1544
        %vm1551 = vmor %vm1549, %vm1550
        %v1552 = vsel %vm1551, %v1544, %v1548
        %v1553 = vand.u32 2147483647, %v1528
        %vm1554 = vcmp.eq.f32.partialorder %v1553, 8.507059e+37
        %v1555 = vand.u32 %v1528, 2147483648
        %v1556 = vor.u32 1.1754944e-38, %v1555
        %v1557 = vsel %vm1554, %v1556, %v1552
        %v1558 = vmul.f32 1.0, %v1557
        %v1559 = vmul.f32 %v1503, %v1266
        %v1560 = vmul.f32 %v1518, %v1267
        %v1561 = vmul.f32 %v1465, %v1519
        %v1562 = vmul.f32 %v1480, %v1520
        %v1563 = vadd.f32 %v1559, %v1561
        %v1564 = vadd.f32 %v1560, %v1562
        %v1565 = vtanh.pop %v1563
        %v1566 = vtanh.pop %v1564
        %v1567 = vmul.f32 %v1543, %v1565
        %v1568 = vmul.f32 %v1558, %v1566
        %v1569 = vpack.c.bf16 %v1568, %v1567
        %1570 = vmatpush.bf16.msra.mxu0 %v959
        %1571 = vmatpush.bf16.msra.mxu0 %v957
        %1572 = vmatpush.bf16.msra.mxu0 %v955
        %1573 = vmatpush.bf16.msra.mxu0 %v953
        %1574 = vmatpush.bf16.msra.mxu0 %v951
        %1575 = vmatpush.bf16.msra.mxu0 %v949
        %1576 = vmatpush.bf16.msra.mxu0 %v947
        %1577 = vmatpush.bf16.msra.mxu0 %v945
        %1578 = vmatmul.bf16.gmra.mxu0 %v1569
        %v1579 = vpop.f32.mrf.mxu0
        %v1580 = vadd.f32 %v477, %v1579
        %v1581 = vpop.f32.mrf.mxu0
        %v1582 = vadd.f32 %v477, %v1581
        %1583 = vdwg.mxu0
        %1584 = vmatpush.bf16.msra.mxu0 %v960
        %1585 = vmatpush.bf16.msra.mxu0 %v958
        %1586 = vmatpush.bf16.msra.mxu0 %v956
        %1587 = vmatpush.bf16.msra.mxu0 %v954
        %1588 = vmatpush.bf16.msra.mxu0 %v952
        %1589 = vmatpush.bf16.msra.mxu0 %v950
        %1590 = vmatpush.bf16.msra.mxu0 %v948
        %1591 = vmatpush.bf16.msra.mxu0 %v946
        %1592 = vmatmul.bf16.gmra.mxu0 %v1569
        %v1593 = vpop.f32.mrf.mxu0
        %v1594 = vadd.f32 %v478, %v1593
        %v1595 = vpop.f32.mrf.mxu0
        %v1596 = vadd.f32 %v478, %v1595
        %1597 = vdwg.mxu0
        %v1598 = vmax.f32 %v1580, %v1594
        %1599 = vmax.xlane.f32.xlu0 %v1598
        %v1600 = vpop.xlane.xlu0 %1599
        %v1601 = vmax.f32 %v1582, %v1596
        %1602 = vmax.xlane.f32.xlu0 %v1601
        %v1603 = vpop.xlane.xlu0 %1602
        %v1604 = vsub.f32 %v1580, %v1600
        %v1605 = vsub.f32 %v1594, %v1600
        %v1606 = vsub.f32 %v1582, %v1603
        %v1607 = vsub.f32 %v1596, %v1603
        %v1608 = vmul.f32 %v1604, 1.442695
        %v1609 = vpow.pop %v1608
        %v1610 = vmul.f32 %v1605, 1.442695
        %v1611 = vpow.pop %v1610
        %v1612 = vmul.f32 %v1606, 1.442695
        %v1613 = vpow.pop %v1612
        %v1614 = vmul.f32 %v1607, 1.442695
        %v1615 = vpow.pop %v1614
        %v1616 = vadd.f32 %v1609, %v1611
        %1617 = vadd.xlane.f32.xlu0 %v1616
        %v1618 = vpop.xlane.xlu0 %1617
        %v1619 = vadd.f32 %v1613, %v1615
        %1620 = vadd.xlane.f32.xlu0 %v1619
        %v1621 = vpop.xlane.xlu0 %1620
        %v1622 = vlog2.pop %v1618
        %v1623 = vmul.f32 %v1622, 0.6931472
        %v1624 = vlog2.pop %v1621
        %v1625 = vmul.f32 %v1624, 0.6931472
        %s1626 = scalar_lea.vmem %s414, 32 [#allocation3]
        %v1627 = vld [vmem:[%s1626] sm:$0xff]
        %v1628 = vld [vmem:[%s1626 + $0x8] sm:$0xff]
        %1629 = vset.pattern.permute.xlu0 0
        %1630 = vperm.xlu0 %1629, %v1627
        %v1631 = vpop.permute.xlu0 %1630
        %1632 = vset.pattern.permute.xlu0 0
        %1633 = vperm.xlu0 %1632, %v1628
        %v1634 = vpop.permute.xlu0 %1633
        %vm1635 = vcmp.eq.s32.totalorder %v473, %v1631
        %vm1636 = vcmp.eq.s32.totalorder %v474, %v1631
        %vm1637 = vcmp.eq.s32.totalorder %v473, %v1634
        %vm1638 = vcmp.eq.s32.totalorder %v474, %v1634
        %v1639 = vsel %vm1635, %v1580, 0.0
        %v1640 = vsel %vm1636, %v1594, 0.0
        %v1641 = vsel %vm1637, %v1582, 0.0
        %v1642 = vsel %vm1638, %v1596, 0.0
        %v1643 = vadd.f32 %v1639, %v1640
        %1644 = vadd.xlane.f32.xlu0 %v1643
        %v1645 = vpop.xlane.xlu0 %1644
        %v1646 = vadd.f32 %v1641, %v1642
        %1647 = vadd.xlane.f32.xlu0 %v1646
        %v1648 = vpop.xlane.xlu0 %1647
        %vm1649 = vcmp.ne.s32.totalorder %v1627, 0
        %vm1650 = vcmp.ne.s32.totalorder %v1628, 0
        %v1651 = vsel %vm1649, 1, 0
        %v1652 = vsel %vm1650, 1, 0
        %v1653 = vcvt.s32.f32 %v1651
        %v1654 = vcvt.s32.f32 %v1652
        %v1655 = vadd.f32 %v1600, %v1623
        %v1656 = vadd.f32 %v1603, %v1625
        %v1657 = vsub.f32 %v1655, %v1645
        %v1658 = vsub.f32 %v1656, %v1648
        %v1659 = vmul.f32 %v1653, %v1657
        %v1660 = vmul.f32 %v1654, %v1658
        %v1661 = vadd.f32 %v1364, %v1659
        %v1662 = vadd.f32 %v1365, %v1660
        %s1663 = scalar_lea.vmem %s407, 96 [#allocation2]
        %v1664 = vld [vmem:[%s1663] sm:$0xff]
        %v1665 = vld [vmem:[%s1663 + $0x8] sm:$0xff]
        %v1666 = vld [vmem:[%s1663 + $0x10] sm:$0xff]
        %v1667 = vld [vmem:[%s1663 + $0x18] sm:$0xff]
        %v1668 = vunpack.c.l.bf16 %v1664
        %v1669 = vunpack.c.h.bf16 %v1664
        %v1670 = vunpack.c.l.bf16 %v1665
        %v1671 = vunpack.c.h.bf16 %v1665
        %v1672 = vunpack.c.l.bf16 %v1666
        %v1673 = vunpack.c.h.bf16 %v1666
        %v1674 = vunpack.c.l.bf16 %v1667
        %v1675 = vunpack.c.h.bf16 %v1667
        %1676 = vmatpush.bf16.msra.mxu0 %v654
        %1677 = vmatpush.bf16.msra.mxu0 %v650
        %1678 = vmatpush.bf16.msra.mxu0 %v646
        %1679 = vmatpush.bf16.msra.mxu0 %v642
        %1680 = vmatpush.bf16.msra.mxu0 %v638
        %1681 = vmatpush.bf16.msra.mxu0 %v634
        %1682 = vmatpush.bf16.msra.mxu0 %v630
        %1683 = vmatpush.bf16.msra.mxu0 %v626
        %1684 = vmatmul.bf16.gmra.mxu0 %v1569
        %v1685 = vpop.f32.mrf.mxu0
        %v1686 = vadd.f32 0.0, %v1685
        %v1687 = vpop.f32.mrf.mxu0
        %v1688 = vadd.f32 0.0, %v1687
        %1689 = vdwg.mxu0
        %1690 = vmatpush.bf16.msra.mxu0 %v655
        %1691 = vmatpush.bf16.msra.mxu0 %v651
        %1692 = vmatpush.bf16.msra.mxu0 %v647
        %1693 = vmatpush.bf16.msra.mxu0 %v643
        %1694 = vmatpush.bf16.msra.mxu0 %v639
        %1695 = vmatpush.bf16.msra.mxu0 %v635
        %1696 = vmatpush.bf16.msra.mxu0 %v631
        %1697 = vmatpush.bf16.msra.mxu0 %v627
        %1698 = vmatmul.bf16.gmra.mxu0 %v1569
        %v1699 = vpop.f32.mrf.mxu0
        %v1700 = vadd.f32 0.0, %v1699
        %v1701 = vpop.f32.mrf.mxu0
        %v1702 = vadd.f32 0.0, %v1701
        %1703 = vdwg.mxu0
        %1704 = vmatpush.bf16.msra.mxu0 %v656
        %1705 = vmatpush.bf16.msra.mxu0 %v652
        %1706 = vmatpush.bf16.msra.mxu0 %v648
        %1707 = vmatpush.bf16.msra.mxu0 %v644
        %1708 = vmatpush.bf16.msra.mxu0 %v640
        %1709 = vmatpush.bf16.msra.mxu0 %v636
        %1710 = vmatpush.bf16.msra.mxu0 %v632
        %1711 = vmatpush.bf16.msra.mxu0 %v628
        %1712 = vmatmul.bf16.gmra.mxu0 %v1569
        %v1713 = vpop.f32.mrf.mxu0
        %v1714 = vadd.f32 0.0, %v1713
        %v1715 = vpop.f32.mrf.mxu0
        %v1716 = vadd.f32 0.0, %v1715
        %1717 = vdwg.mxu0
        %1718 = vmatpush.bf16.msra.mxu0 %v657
        %1719 = vmatpush.bf16.msra.mxu0 %v653
        %1720 = vmatpush.bf16.msra.mxu0 %v649
        %1721 = vmatpush.bf16.msra.mxu0 %v645
        %1722 = vmatpush.bf16.msra.mxu0 %v641
        %1723 = vmatpush.bf16.msra.mxu0 %v637
        %1724 = vmatpush.bf16.msra.mxu0 %v633
        %1725 = vmatpush.bf16.msra.mxu0 %v629
        %1726 = vmatmul.bf16.gmra.mxu0 %v1569
        %v1727 = vpop.f32.mrf.mxu0
        %v1728 = vadd.f32 0.0, %v1727
        %v1729 = vpop.f32.mrf.mxu0
        %v1730 = vadd.f32 0.0, %v1729
        %1731 = vdwg.mxu0
        %v1732 = vadd.f32 %v1668, %v1686
        %v1733 = vadd.f32 %v1669, %v1700
        %v1734 = vadd.f32 %v1670, %v1714
        %v1735 = vadd.f32 %v1671, %v1728
        %v1736 = vadd.f32 %v1672, %v1688
        %v1737 = vadd.f32 %v1673, %v1702
        %v1738 = vadd.f32 %v1674, %v1716
        %v1739 = vadd.f32 %v1675, %v1730
        %v1740 = vxor.u32 %v1732, 2147483648
        %v1741 = vxor.u32 %v1736, 2147483648
        %v1742 = vmul.f32 %v1740, 1.442695
        %v1743 = vpow.pop %v1742
        %v1744 = vmul.f32 %v1741, 1.442695
        %v1745 = vpow.pop %v1744
        %v1746 = vadd.f32 %v1743, 1.0
        %v1747 = vadd.f32 %v1745, 1.0
        %v1748 = vrcp.pop %v1746
        %v1749 = vmul.f32 %v1746, %v1748
        %v1750 = vsub.f32 1.0, %v1749
        %v1751 = vmul.f32 %v1748, %v1750
        %v1752 = vadd.f32 %v1748, %v1751
        %vm1753 = vweird.f32 %v1746
        %vm1754 = vweird.f32 %v1748
        %vm1755 = vmor %vm1753, %vm1754
        %v1756 = vsel %vm1755, %v1748, %v1752
        %v1757 = vand.u32 2147483647, %v1746
        %vm1758 = vcmp.eq.f32.partialorder %v1757, 8.507059e+37
        %v1759 = vand.u32 %v1746, 2147483648
        %v1760 = vor.u32 1.1754944e-38, %v1759
        %v1761 = vsel %vm1758, %v1760, %v1756
        %v1762 = vmul.f32 1.0, %v1761
        %v1763 = vrcp.pop %v1747
        %v1764 = vmul.f32 %v1747, %v1763
        %v1765 = vsub.f32 1.0, %v1764
        %v1766 = vmul.f32 %v1763, %v1765
        %v1767 = vadd.f32 %v1763, %v1766
        %vm1768 = vweird.f32 %v1747
        %vm1769 = vweird.f32 %v1763
        %vm1770 = vmor %vm1768, %vm1769
        %v1771 = vsel %vm1770, %v1763, %v1767
        %v1772 = vand.u32 2147483647, %v1747
        %vm1773 = vcmp.eq.f32.partialorder %v1772, 8.507059e+37
        %v1774 = vand.u32 %v1747, 2147483648
        %v1775 = vor.u32 1.1754944e-38, %v1774
        %v1776 = vsel %vm1773, %v1775, %v1771
        %v1777 = vmul.f32 1.0, %v1776
        %v1778 = vxor.u32 %v1733, 2147483648
        %v1779 = vxor.u32 %v1737, 2147483648
        %v1780 = vmul.f32 %v1778, 1.442695
        %v1781 = vpow.pop %v1780
        %v1782 = vmul.f32 %v1779, 1.442695
        %v1783 = vpow.pop %v1782
        %v1784 = vadd.f32 %v1781, 1.0
        %v1785 = vadd.f32 %v1783, 1.0
        %v1786 = vrcp.pop %v1784
        %v1787 = vmul.f32 %v1784, %v1786
        %v1788 = vsub.f32 1.0, %v1787
        %v1789 = vmul.f32 %v1786, %v1788
        %v1790 = vadd.f32 %v1786, %v1789
        %vm1791 = vweird.f32 %v1784
        %vm1792 = vweird.f32 %v1786
        %vm1793 = vmor %vm1791, %vm1792
        %v1794 = vsel %vm1793, %v1786, %v1790
        %v1795 = vand.u32 2147483647, %v1784
        %vm1796 = vcmp.eq.f32.partialorder %v1795, 8.507059e+37
        %v1797 = vand.u32 %v1784, 2147483648
        %v1798 = vor.u32 1.1754944e-38, %v1797
        %v1799 = vsel %vm1796, %v1798, %v1794
        %v1800 = vmul.f32 1.0, %v1799
        %v1801 = vrcp.pop %v1785
        %v1802 = vmul.f32 %v1785, %v1801
        %v1803 = vsub.f32 1.0, %v1802
        %v1804 = vmul.f32 %v1801, %v1803
        %v1805 = vadd.f32 %v1801, %v1804
        %vm1806 = vweird.f32 %v1785
        %vm1807 = vweird.f32 %v1801
        %vm1808 = vmor %vm1806, %vm1807
        %v1809 = vsel %vm1808, %v1801, %v1805
        %v1810 = vand.u32 2147483647, %v1785
        %vm1811 = vcmp.eq.f32.partialorder %v1810, 8.507059e+37
        %v1812 = vand.u32 %v1785, 2147483648
        %v1813 = vor.u32 1.1754944e-38, %v1812
        %v1814 = vsel %vm1811, %v1813, %v1809
        %v1815 = vmul.f32 1.0, %v1814
        %v1816 = vtanh.pop %v1734
        %v1817 = vtanh.pop %v1738
        %v1818 = vxor.u32 %v1735, 2147483648
        %v1819 = vxor.u32 %v1739, 2147483648
        %v1820 = vmul.f32 %v1818, 1.442695
        %v1821 = vpow.pop %v1820
        %v1822 = vmul.f32 %v1819, 1.442695
        %v1823 = vpow.pop %v1822
        %v1824 = vadd.f32 %v1821, 1.0
        %v1825 = vadd.f32 %v1823, 1.0
        %v1826 = vrcp.pop %v1824
        %v1827 = vmul.f32 %v1824, %v1826
        %v1828 = vsub.f32 1.0, %v1827
        %v1829 = vmul.f32 %v1826, %v1828
        %v1830 = vadd.f32 %v1826, %v1829
        %vm1831 = vweird.f32 %v1824
        %vm1832 = vweird.f32 %v1826
        %vm1833 = vmor %vm1831, %vm1832
        %v1834 = vsel %vm1833, %v1826, %v1830
        %v1835 = vand.u32 2147483647, %v1824
        %vm1836 = vcmp.eq.f32.partialorder %v1835, 8.507059e+37
        %v1837 = vand.u32 %v1824, 2147483648
        %v1838 = vor.u32 1.1754944e-38, %v1837
        %v1839 = vsel %vm1836, %v1838, %v1834
        %v1840 = vmul.f32 1.0, %v1839
        %v1841 = vrcp.pop %v1825
        %v1842 = vmul.f32 %v1825, %v1841
        %v1843 = vsub.f32 1.0, %v1842
        %v1844 = vmul.f32 %v1841, %v1843
        %v1845 = vadd.f32 %v1841, %v1844
        %vm1846 = vweird.f32 %v1825
        %vm1847 = vweird.f32 %v1841
        %vm1848 = vmor %vm1846, %vm1847
        %v1849 = vsel %vm1848, %v1841, %v1845
        %v1850 = vand.u32 2147483647, %v1825
        %vm1851 = vcmp.eq.f32.partialorder %v1850, 8.507059e+37
        %v1852 = vand.u32 %v1825, 2147483648
        %v1853 = vor.u32 1.1754944e-38, %v1852
        %v1854 = vsel %vm1851, %v1853, %v1849
        %v1855 = vmul.f32 1.0, %v1854
        %v1856 = vmul.f32 %v1800, %v1563
        %v1857 = vmul.f32 %v1815, %v1564
        %v1858 = vmul.f32 %v1762, %v1816
        %v1859 = vmul.f32 %v1777, %v1817
        %v1860 = vadd.f32 %v1856, %v1858
        %v1861 = vadd.f32 %v1857, %v1859
        %v1862 = vtanh.pop %v1860
        %v1863 = vtanh.pop %v1861
        %v1864 = vmul.f32 %v1840, %v1862
        %v1865 = vmul.f32 %v1855, %v1863
        %v1866 = vpack.c.bf16 %v1865, %v1864
        %1867 = vmatpush.bf16.msra.mxu0 %v959
        %1868 = vmatpush.bf16.msra.mxu0 %v957
        %1869 = vmatpush.bf16.msra.mxu0 %v955
        %1870 = vmatpush.bf16.msra.mxu0 %v953
        %1871 = vmatpush.bf16.msra.mxu0 %v951
        %1872 = vmatpush.bf16.msra.mxu0 %v949
        %1873 = vmatpush.bf16.msra.mxu0 %v947
        %1874 = vmatpush.bf16.msra.mxu0 %v945
        %1875 = vmatmul.bf16.gmra.mxu0 %v1866
        %v1876 = vpop.f32.mrf.mxu0
        %v1877 = vadd.f32 %v477, %v1876
        %v1878 = vpop.f32.mrf.mxu0
        %v1879 = vadd.f32 %v477, %v1878
        %1880 = vdwg.mxu0
        %1881 = vmatpush.bf16.msra.mxu0 %v960
        %1882 = vmatpush.bf16.msra.mxu0 %v958
        %1883 = vmatpush.bf16.msra.mxu0 %v956
        %1884 = vmatpush.bf16.msra.mxu0 %v954
        %1885 = vmatpush.bf16.msra.mxu0 %v952
        %1886 = vmatpush.bf16.msra.mxu0 %v950
        %1887 = vmatpush.bf16.msra.mxu0 %v948
        %1888 = vmatpush.bf16.msra.mxu0 %v946
        %1889 = vmatmul.bf16.gmra.mxu0 %v1866
        %v1890 = vpop.f32.mrf.mxu0
        %v1891 = vadd.f32 %v478, %v1890
        %v1892 = vpop.f32.mrf.mxu0
        %v1893 = vadd.f32 %v478, %v1892
        %1894 = vdwg.mxu0
        %v1895 = vmax.f32 %v1877, %v1891
        %1896 = vmax.xlane.f32.xlu0 %v1895
        %v1897 = vpop.xlane.xlu0 %1896
        %v1898 = vmax.f32 %v1879, %v1893
        %1899 = vmax.xlane.f32.xlu0 %v1898
        %v1900 = vpop.xlane.xlu0 %1899
        %v1901 = vsub.f32 %v1877, %v1897
        %v1902 = vsub.f32 %v1891, %v1897
        %v1903 = vsub.f32 %v1879, %v1900
        %v1904 = vsub.f32 %v1893, %v1900
        %v1905 = vmul.f32 %v1901, 1.442695
        %v1906 = vpow.pop %v1905
        %v1907 = vmul.f32 %v1902, 1.442695
        %v1908 = vpow.pop %v1907
        %v1909 = vmul.f32 %v1903, 1.442695
        %v1910 = vpow.pop %v1909
        %v1911 = vmul.f32 %v1904, 1.442695
        %v1912 = vpow.pop %v1911
        %v1913 = vadd.f32 %v1906, %v1908
        %1914 = vadd.xlane.f32.xlu0 %v1913
        %v1915 = vpop.xlane.xlu0 %1914
        %v1916 = vadd.f32 %v1910, %v1912
        %1917 = vadd.xlane.f32.xlu0 %v1916
        %v1918 = vpop.xlane.xlu0 %1917
        %v1919 = vlog2.pop %v1915
        %v1920 = vmul.f32 %v1919, 0.6931472
        %v1921 = vlog2.pop %v1918
        %v1922 = vmul.f32 %v1921, 0.6931472
        %s1923 = scalar_lea.vmem %s414, 48 [#allocation3]
        %v1924 = vld [vmem:[%s1923] sm:$0xff]
        %v1925 = vld [vmem:[%s1923 + $0x8] sm:$0xff]
        %1926 = vset.pattern.permute.xlu0 0
        %1927 = vperm.xlu0 %1926, %v1924
        %v1928 = vpop.permute.xlu0 %1927
        %1929 = vset.pattern.permute.xlu0 0
        %1930 = vperm.xlu0 %1929, %v1925
        %v1931 = vpop.permute.xlu0 %1930
        %vm1932 = vcmp.eq.s32.totalorder %v473, %v1928
        %vm1933 = vcmp.eq.s32.totalorder %v474, %v1928
        %vm1934 = vcmp.eq.s32.totalorder %v473, %v1931
        %vm1935 = vcmp.eq.s32.totalorder %v474, %v1931
        %v1936 = vsel %vm1932, %v1877, 0.0
        %v1937 = vsel %vm1933, %v1891, 0.0
        %v1938 = vsel %vm1934, %v1879, 0.0
        %v1939 = vsel %vm1935, %v1893, 0.0
        %v1940 = vadd.f32 %v1936, %v1937
        %1941 = vadd.xlane.f32.xlu0 %v1940
        %v1942 = vpop.xlane.xlu0 %1941
        %v1943 = vadd.f32 %v1938, %v1939
        %1944 = vadd.xlane.f32.xlu0 %v1943
        %v1945 = vpop.xlane.xlu0 %1944
        %vm1946 = vcmp.ne.s32.totalorder %v1924, 0
        %vm1947 = vcmp.ne.s32.totalorder %v1925, 0
        %v1948 = vsel %vm1946, 1, 0
        %v1949 = vsel %vm1947, 1, 0
        %v1950 = vcvt.s32.f32 %v1948
        %v1951 = vcvt.s32.f32 %v1949
        %v1952 = vadd.f32 %v1897, %v1920
        %v1953 = vadd.f32 %v1900, %v1922
        %v1954 = vsub.f32 %v1952, %v1942
        %v1955 = vsub.f32 %v1953, %v1945
        %v1956 = vmul.f32 %v1950, %v1954
        %v1957 = vmul.f32 %v1951, %v1955
        %v1958 = vadd.f32 %v1661, %v1956
        %v1959 = vadd.f32 %v1662, %v1957
        %s1960 = scalar_lea.vmem %s407, 128 [#allocation2]
        %v1961 = vld [vmem:[%s1960] sm:$0xff]
        %v1962 = vld [vmem:[%s1960 + $0x8] sm:$0xff]
        %v1963 = vld [vmem:[%s1960 + $0x10] sm:$0xff]
        %v1964 = vld [vmem:[%s1960 + $0x18] sm:$0xff]
        %v1965 = vunpack.c.l.bf16 %v1961
        %v1966 = vunpack.c.h.bf16 %v1961
        %v1967 = vunpack.c.l.bf16 %v1962
        %v1968 = vunpack.c.h.bf16 %v1962
        %v1969 = vunpack.c.l.bf16 %v1963
        %v1970 = vunpack.c.h.bf16 %v1963
        %v1971 = vunpack.c.l.bf16 %v1964
        %v1972 = vunpack.c.h.bf16 %v1964
        %1973 = vmatpush.bf16.msra.mxu0 %v654
        %1974 = vmatpush.bf16.msra.mxu0 %v650
        %1975 = vmatpush.bf16.msra.mxu0 %v646
        %1976 = vmatpush.bf16.msra.mxu0 %v642
        %1977 = vmatpush.bf16.msra.mxu0 %v638
        %1978 = vmatpush.bf16.msra.mxu0 %v634
        %1979 = vmatpush.bf16.msra.mxu0 %v630
        %1980 = vmatpush.bf16.msra.mxu0 %v626
        %1981 = vmatmul.bf16.gmra.mxu0 %v1866
        %v1982 = vpop.f32.mrf.mxu0
        %v1983 = vadd.f32 0.0, %v1982
        %v1984 = vpop.f32.mrf.mxu0
        %v1985 = vadd.f32 0.0, %v1984
        %1986 = vdwg.mxu0
        %1987 = vmatpush.bf16.msra.mxu0 %v655
        %1988 = vmatpush.bf16.msra.mxu0 %v651
        %1989 = vmatpush.bf16.msra.mxu0 %v647
        %1990 = vmatpush.bf16.msra.mxu0 %v643
        %1991 = vmatpush.bf16.msra.mxu0 %v639
        %1992 = vmatpush.bf16.msra.mxu0 %v635
        %1993 = vmatpush.bf16.msra.mxu0 %v631
        %1994 = vmatpush.bf16.msra.mxu0 %v627
        %1995 = vmatmul.bf16.gmra.mxu0 %v1866
        %v1996 = vpop.f32.mrf.mxu0
        %v1997 = vadd.f32 0.0, %v1996
        %v1998 = vpop.f32.mrf.mxu0
        %v1999 = vadd.f32 0.0, %v1998
        %2000 = vdwg.mxu0
        %2001 = vmatpush.bf16.msra.mxu0 %v656
        %2002 = vmatpush.bf16.msra.mxu0 %v652
        %2003 = vmatpush.bf16.msra.mxu0 %v648
        %2004 = vmatpush.bf16.msra.mxu0 %v644
        %2005 = vmatpush.bf16.msra.mxu0 %v640
        %2006 = vmatpush.bf16.msra.mxu0 %v636
        %2007 = vmatpush.bf16.msra.mxu0 %v632
        %2008 = vmatpush.bf16.msra.mxu0 %v628
        %2009 = vmatmul.bf16.gmra.mxu0 %v1866
        %v2010 = vpop.f32.mrf.mxu0
        %v2011 = vadd.f32 0.0, %v2010
        %v2012 = vpop.f32.mrf.mxu0
        %v2013 = vadd.f32 0.0, %v2012
        %2014 = vdwg.mxu0
        %2015 = vmatpush.bf16.msra.mxu0 %v657
        %2016 = vmatpush.bf16.msra.mxu0 %v653
        %2017 = vmatpush.bf16.msra.mxu0 %v649
        %2018 = vmatpush.bf16.msra.mxu0 %v645
        %2019 = vmatpush.bf16.msra.mxu0 %v641
        %2020 = vmatpush.bf16.msra.mxu0 %v637
        %2021 = vmatpush.bf16.msra.mxu0 %v633
        %2022 = vmatpush.bf16.msra.mxu0 %v629
        %2023 = vmatmul.bf16.gmra.mxu0 %v1866
        %v2024 = vpop.f32.mrf.mxu0
        %v2025 = vadd.f32 0.0, %v2024
        %v2026 = vpop.f32.mrf.mxu0
        %v2027 = vadd.f32 0.0, %v2026
        %2028 = vdwg.mxu0
        %v2029 = vadd.f32 %v1965, %v1983
        %v2030 = vadd.f32 %v1966, %v1997
        %v2031 = vadd.f32 %v1967, %v2011
        %v2032 = vadd.f32 %v1968, %v2025
        %v2033 = vadd.f32 %v1969, %v1985
        %v2034 = vadd.f32 %v1970, %v1999
        %v2035 = vadd.f32 %v1971, %v2013
        %v2036 = vadd.f32 %v1972, %v2027
        %v2037 = vxor.u32 %v2029, 2147483648
        %v2038 = vxor.u32 %v2033, 2147483648
        %v2039 = vmul.f32 %v2037, 1.442695
        %v2040 = vpow.pop %v2039
        %v2041 = vmul.f32 %v2038, 1.442695
        %v2042 = vpow.pop %v2041
        %v2043 = vadd.f32 %v2040, 1.0
        %v2044 = vadd.f32 %v2042, 1.0
        %v2045 = vrcp.pop %v2043
        %v2046 = vmul.f32 %v2043, %v2045
        %v2047 = vsub.f32 1.0, %v2046
        %v2048 = vmul.f32 %v2045, %v2047
        %v2049 = vadd.f32 %v2045, %v2048
        %vm2050 = vweird.f32 %v2043
        %vm2051 = vweird.f32 %v2045
        %vm2052 = vmor %vm2050, %vm2051
        %v2053 = vsel %vm2052, %v2045, %v2049
        %v2054 = vand.u32 2147483647, %v2043
        %vm2055 = vcmp.eq.f32.partialorder %v2054, 8.507059e+37
        %v2056 = vand.u32 %v2043, 2147483648
        %v2057 = vor.u32 1.1754944e-38, %v2056
        %v2058 = vsel %vm2055, %v2057, %v2053
        %v2059 = vmul.f32 1.0, %v2058
        %v2060 = vrcp.pop %v2044
        %v2061 = vmul.f32 %v2044, %v2060
        %v2062 = vsub.f32 1.0, %v2061
        %v2063 = vmul.f32 %v2060, %v2062
        %v2064 = vadd.f32 %v2060, %v2063
        %vm2065 = vweird.f32 %v2044
        %vm2066 = vweird.f32 %v2060
        %vm2067 = vmor %vm2065, %vm2066
        %v2068 = vsel %vm2067, %v2060, %v2064
        %v2069 = vand.u32 2147483647, %v2044
        %vm2070 = vcmp.eq.f32.partialorder %v2069, 8.507059e+37
        %v2071 = vand.u32 %v2044, 2147483648
        %v2072 = vor.u32 1.1754944e-38, %v2071
        %v2073 = vsel %vm2070, %v2072, %v2068
        %v2074 = vmul.f32 1.0, %v2073
        %v2075 = vxor.u32 %v2030, 2147483648
        %v2076 = vxor.u32 %v2034, 2147483648
        %v2077 = vmul.f32 %v2075, 1.442695
        %v2078 = vpow.pop %v2077
        %v2079 = vmul.f32 %v2076, 1.442695
        %v2080 = vpow.pop %v2079
        %v2081 = vadd.f32 %v2078, 1.0
        %v2082 = vadd.f32 %v2080, 1.0
        %v2083 = vrcp.pop %v2081
        %v2084 = vmul.f32 %v2081, %v2083
        %v2085 = vsub.f32 1.0, %v2084
        %v2086 = vmul.f32 %v2083, %v2085
        %v2087 = vadd.f32 %v2083, %v2086
        %vm2088 = vweird.f32 %v2081
        %vm2089 = vweird.f32 %v2083
        %vm2090 = vmor %vm2088, %vm2089
        %v2091 = vsel %vm2090, %v2083, %v2087
        %v2092 = vand.u32 2147483647, %v2081
        %vm2093 = vcmp.eq.f32.partialorder %v2092, 8.507059e+37
        %v2094 = vand.u32 %v2081, 2147483648
        %v2095 = vor.u32 1.1754944e-38, %v2094
        %v2096 = vsel %vm2093, %v2095, %v2091
        %v2097 = vmul.f32 1.0, %v2096
        %v2098 = vrcp.pop %v2082
        %v2099 = vmul.f32 %v2082, %v2098
        %v2100 = vsub.f32 1.0, %v2099
        %v2101 = vmul.f32 %v2098, %v2100
        %v2102 = vadd.f32 %v2098, %v2101
        %vm2103 = vweird.f32 %v2082
        %vm2104 = vweird.f32 %v2098
        %vm2105 = vmor %vm2103, %vm2104
        %v2106 = vsel %vm2105, %v2098, %v2102
        %v2107 = vand.u32 2147483647, %v2082
        %vm2108 = vcmp.eq.f32.partialorder %v2107, 8.507059e+37
        %v2109 = vand.u32 %v2082, 2147483648
        %v2110 = vor.u32 1.1754944e-38, %v2109
        %v2111 = vsel %vm2108, %v2110, %v2106
        %v2112 = vmul.f32 1.0, %v2111
        %v2113 = vtanh.pop %v2031
        %v2114 = vtanh.pop %v2035
        %v2115 = vxor.u32 %v2032, 2147483648
        %v2116 = vxor.u32 %v2036, 2147483648
        %v2117 = vmul.f32 %v2115, 1.442695
        %v2118 = vpow.pop %v2117
        %v2119 = vmul.f32 %v2116, 1.442695
        %v2120 = vpow.pop %v2119
        %v2121 = vadd.f32 %v2118, 1.0
        %v2122 = vadd.f32 %v2120, 1.0
        %v2123 = vrcp.pop %v2121
        %v2124 = vmul.f32 %v2121, %v2123
        %v2125 = vsub.f32 1.0, %v2124
        %v2126 = vmul.f32 %v2123, %v2125
        %v2127 = vadd.f32 %v2123, %v2126
        %vm2128 = vweird.f32 %v2121
        %vm2129 = vweird.f32 %v2123
        %vm2130 = vmor %vm2128, %vm2129
        %v2131 = vsel %vm2130, %v2123, %v2127
        %v2132 = vand.u32 2147483647, %v2121
        %vm2133 = vcmp.eq.f32.partialorder %v2132, 8.507059e+37
        %v2134 = vand.u32 %v2121, 2147483648
        %v2135 = vor.u32 1.1754944e-38, %v2134
        %v2136 = vsel %vm2133, %v2135, %v2131
        %v2137 = vmul.f32 1.0, %v2136
        %v2138 = vrcp.pop %v2122
        %v2139 = vmul.f32 %v2122, %v2138
        %v2140 = vsub.f32 1.0, %v2139
        %v2141 = vmul.f32 %v2138, %v2140
        %v2142 = vadd.f32 %v2138, %v2141
        %vm2143 = vweird.f32 %v2122
        %vm2144 = vweird.f32 %v2138
        %vm2145 = vmor %vm2143, %vm2144
        %v2146 = vsel %vm2145, %v2138, %v2142
        %v2147 = vand.u32 2147483647, %v2122
        %vm2148 = vcmp.eq.f32.partialorder %v2147, 8.507059e+37
        %v2149 = vand.u32 %v2122, 2147483648
        %v2150 = vor.u32 1.1754944e-38, %v2149
        %v2151 = vsel %vm2148, %v2150, %v2146
        %v2152 = vmul.f32 1.0, %v2151
        %v2153 = vmul.f32 %v2097, %v1860
        %v2154 = vmul.f32 %v2112, %v1861
        %v2155 = vmul.f32 %v2059, %v2113
        %v2156 = vmul.f32 %v2074, %v2114
        %v2157 = vadd.f32 %v2153, %v2155
        %v2158 = vadd.f32 %v2154, %v2156
        %v2159 = vtanh.pop %v2157
        %v2160 = vtanh.pop %v2158
        %v2161 = vmul.f32 %v2137, %v2159
        %v2162 = vmul.f32 %v2152, %v2160
        %v2163 = vpack.c.bf16 %v2162, %v2161
        %2164 = vmatpush.bf16.msra.mxu0 %v959
        %2165 = vmatpush.bf16.msra.mxu0 %v957
        %2166 = vmatpush.bf16.msra.mxu0 %v955
        %2167 = vmatpush.bf16.msra.mxu0 %v953
        %2168 = vmatpush.bf16.msra.mxu0 %v951
        %2169 = vmatpush.bf16.msra.mxu0 %v949
        %2170 = vmatpush.bf16.msra.mxu0 %v947
        %2171 = vmatpush.bf16.msra.mxu0 %v945
        %2172 = vmatmul.bf16.gmra.mxu0 %v2163
        %v2173 = vpop.f32.mrf.mxu0
        %v2174 = vadd.f32 %v477, %v2173
        %v2175 = vpop.f32.mrf.mxu0
        %v2176 = vadd.f32 %v477, %v2175
        %2177 = vdwg.mxu0
        %2178 = vmatpush.bf16.msra.mxu0 %v960
        %2179 = vmatpush.bf16.msra.mxu0 %v958
        %2180 = vmatpush.bf16.msra.mxu0 %v956
        %2181 = vmatpush.bf16.msra.mxu0 %v954
        %2182 = vmatpush.bf16.msra.mxu0 %v952
        %2183 = vmatpush.bf16.msra.mxu0 %v950
        %2184 = vmatpush.bf16.msra.mxu0 %v948
        %2185 = vmatpush.bf16.msra.mxu0 %v946
        %2186 = vmatmul.bf16.gmra.mxu0 %v2163
        %v2187 = vpop.f32.mrf.mxu0
        %v2188 = vadd.f32 %v478, %v2187
        %v2189 = vpop.f32.mrf.mxu0
        %v2190 = vadd.f32 %v478, %v2189
        %2191 = vdwg.mxu0
        %v2192 = vmax.f32 %v2174, %v2188
        %2193 = vmax.xlane.f32.xlu0 %v2192
        %v2194 = vpop.xlane.xlu0 %2193
        %v2195 = vmax.f32 %v2176, %v2190
        %2196 = vmax.xlane.f32.xlu0 %v2195
        %v2197 = vpop.xlane.xlu0 %2196
        %v2198 = vsub.f32 %v2174, %v2194
        %v2199 = vsub.f32 %v2188, %v2194
        %v2200 = vsub.f32 %v2176, %v2197
        %v2201 = vsub.f32 %v2190, %v2197
        %v2202 = vmul.f32 %v2198, 1.442695
        %v2203 = vpow.pop %v2202
        %v2204 = vmul.f32 %v2199, 1.442695
        %v2205 = vpow.pop %v2204
        %v2206 = vmul.f32 %v2200, 1.442695
        %v2207 = vpow.pop %v2206
        %v2208 = vmul.f32 %v2201, 1.442695
        %v2209 = vpow.pop %v2208
        %v2210 = vadd.f32 %v2203, %v2205
        %2211 = vadd.xlane.f32.xlu0 %v2210
        %v2212 = vpop.xlane.xlu0 %2211
        %v2213 = vadd.f32 %v2207, %v2209
        %2214 = vadd.xlane.f32.xlu0 %v2213
        %v2215 = vpop.xlane.xlu0 %2214
        %v2216 = vlog2.pop %v2212
        %v2217 = vmul.f32 %v2216, 0.6931472
        %v2218 = vlog2.pop %v2215
        %v2219 = vmul.f32 %v2218, 0.6931472
        %s2220 = scalar_lea.vmem %s414, 64 [#allocation3]
        %v2221 = vld [vmem:[%s2220] sm:$0xff]
        %v2222 = vld [vmem:[%s2220 + $0x8] sm:$0xff]
        %2223 = vset.pattern.permute.xlu0 0
        %2224 = vperm.xlu0 %2223, %v2221
        %v2225 = vpop.permute.xlu0 %2224
        %2226 = vset.pattern.permute.xlu0 0
        %2227 = vperm.xlu0 %2226, %v2222
        %v2228 = vpop.permute.xlu0 %2227
        %vm2229 = vcmp.eq.s32.totalorder %v473, %v2225
        %vm2230 = vcmp.eq.s32.totalorder %v474, %v2225
        %vm2231 = vcmp.eq.s32.totalorder %v473, %v2228
        %vm2232 = vcmp.eq.s32.totalorder %v474, %v2228
        %v2233 = vsel %vm2229, %v2174, 0.0
        %v2234 = vsel %vm2230, %v2188, 0.0
        %v2235 = vsel %vm2231, %v2176, 0.0
        %v2236 = vsel %vm2232, %v2190, 0.0
        %v2237 = vadd.f32 %v2233, %v2234
        %2238 = vadd.xlane.f32.xlu0 %v2237
        %v2239 = vpop.xlane.xlu0 %2238
        %v2240 = vadd.f32 %v2235, %v2236
        %2241 = vadd.xlane.f32.xlu0 %v2240
        %v2242 = vpop.xlane.xlu0 %2241
        %vm2243 = vcmp.ne.s32.totalorder %v2221, 0
        %vm2244 = vcmp.ne.s32.totalorder %v2222, 0
        %v2245 = vsel %vm2243, 1, 0
        %v2246 = vsel %vm2244, 1, 0
        %v2247 = vcvt.s32.f32 %v2245
        %v2248 = vcvt.s32.f32 %v2246
        %v2249 = vadd.f32 %v2194, %v2217
        %v2250 = vadd.f32 %v2197, %v2219
        %v2251 = vsub.f32 %v2249, %v2239
        %v2252 = vsub.f32 %v2250, %v2242
        %v2253 = vmul.f32 %v2247, %v2251
        %v2254 = vmul.f32 %v2248, %v2252
        %v2255 = vadd.f32 %v1958, %v2253
        %v2256 = vadd.f32 %v1959, %v2254
        %vm2257 = vcmask 7168
        %v2258 = vsel %vm2257, %v2255, 0.0
        %v2259 = vsel %vm2257, %v2256, 0.0
        %v2260 = vadd.f32 %v2258, %v2259
        %2261 = vadd.xlane.f32.xlu0 %v2260
        %v2262 = vpop.xlane.xlu0 %2261
        %v2263 = vrot.slane %v2262, 4
        %v2264 = vadd.f32 %v2262, %v2263
        %v2265 = vrot.slane %v2264, 2
        %v2266 = vadd.f32 %v2264, %v2265
        %v2267 = vrot.slane %v2266, 1
        %v2268 = vadd.f32 %v2266, %v2267
        %s2269 = vtos %v2268
        %v2270 = vstv %s2269
        %vm2271 = vcmask 0
        %2272 = vst.msk [vmem:[%s471] sm:$0x1] %vm2271, %v2270
        %p2273 = scmp.lt.s32.totalorder %s18, 1
        %s2274 = scalar_select %p2273, %s18, 1
        %s2275 = scalar_lea.vmem %s7, %s2274
        // Predicated region
        $region110: #{qbot_forward.5} parent=100 // pred_check
          %p2276 = pneg %p203
        $region111: #{qbot_forward.5} parent=100 // pred_check_branch
          %2278 = sbr.rel (%p2276) target = $region113
        $region112: #{qbot_forward.5} parent=100 // pred_region
          _
        $region113: #{qbot_forward.5} parent=100 // pred_fallthru
          _
      $region101: #{qbot_forward.5} parent=5 // pred_fallthru
        _
      %p2279 = scmp.le.s32.totalorder 2, %s13
      // Predicated region
      $region114: #{qbot_forward.5} parent=5 // pred_check
        %p2280 = pneg %p2279
      $region115: #{qbot_forward.5} parent=5 // pred_check_branch
        %2282 = sbr.rel (%p2280) target = $region117
      $region116: #{qbot_forward.5} parent=5 // pred_region
        %s2283 = ssub.s32 %s13, 2
        // Predicated region
        $region118: #{qbot_forward.5} parent=116 // pred_check
          %p2284 = pneg %p209
        $region119: #{qbot_forward.5} parent=116 // pred_check_branch
          %2286 = sbr.rel (%p2284) target = $region121
        $region120: #{qbot_forward.5} parent=116 // pred_region
          %p2287 = scmp.lt.s32.totalorder %s19, 1
          %s2288 = scalar_select %p2287, %s19, 1
          %s2289 = scalar_lea.vmem %s7, %s2288
        $region121: #{qbot_forward.5} parent=116 // pred_fallthru
          _
      $region117: #{qbot_forward.5} parent=5 // pred_fallthru
        _
    $region6: #{qbot_forward.5} parent=1 // loop_footer
      %s17 = sadd.s32 1, %s13
    $region7: #{qbot_forward.5} parent=1 // loop_footer_branch
      %12 = sbr.rel target = $region3
    $region8: #{qbot_forward.5} parent=1 // loop_exit
      _

</llo_original>
